<compile_context>
chip_gen: v5e
topology: v5e:2x2
jax: 0.10.0
libtpu: 0.0.40
codegen_flags: <defaults>
</compile_context>

<pallas_src>
import math

import numpy as np
import jax
import jax.numpy as jnp
from jax.experimental import pallas as pl
from jax.experimental.pallas import tpu as pltpu

# ----------------------------- configuration (synthetic) -----------------------------
WEEKS_AHEAD = 4
TRAINING_WEEKS = 8          # sequence length of the weekly training data
X_DIM = 5                   # X_train_dim  (features per week)
METAS_DIM = 4               # metas_train_dim
HIDDEN = 64                 # hidden_dim (overridden to 64 in __init__)
H_DIR = HIDDEN // 2         # per-direction GRU hidden size (bidirectional)
OUT_LAYER_DIM = 32          # out_layer_dim
OUT_DIM = 3                 # number of calibrated ABM params (len of MIN_VAL_PARAMS)
NUM_PATCH = 16              # CONFIGS['bogota']['num_patch']
BATCH = 2
SEQ_DEC = TRAINING_WEEKS + WEEKS_AHEAD   # decoder sequence length (12)

assert BATCH + 2 <= 8, "packed (8,128) output tile assumes BATCH <= 6"

G3 = 3 * H_DIR              # per-direction fused gate width  (96)
G6 = 6 * H_DIR              # both directions                 (192)
PK_COLS = G6                # packed parameter buffer width

MIN_VALS = np.asarray([[1.0, 0.001, 0.01]], np.float32)       # MIN_VAL_PARAMS['abm-covid']
MAX_VALS = np.asarray([[8.0, 0.02, 1.0]], np.float32)         # MAX_VAL_PARAMS['abm-covid']
MIN_VALS_2 = np.full((1, NUM_PATCH), 0.001, np.float32)       # MIN_VAL_PARAMS_2
MAX_VALS_2 = np.full((1, NUM_PATCH), 1.0, np.float32)         # MAX_VAL_PARAMS_2

_VMEM = pl.BlockSpec(memory_space=pltpu.MemorySpace.VMEM)


# ------------------------- packed-parameter buffer layout -------------------------
_PARAM_SHAPES = (
    # fused / block-diagonal GRU weights  (gate order per direction: [r | z | n])
    ("enc0_wih", (X_DIM, G6)),
    ("enc0_whh", (HIDDEN, G6)),
    ("enc1_wih", (HIDDEN, G6)),
    ("enc1_whh", (HIDDEN, G6)),
    ("dec_wih", (HIDDEN, G6)),
    ("dec_whh", (HIDDEN, G6)),
    # TransformerAttn fused [V | Q | K] projection
    ("attn_wvqk", (HIDDEN, 3 * HIDDEN)),
    # DecodeSeq attn_combine weight (rows: [embed half | context half])
    ("comb_w", (2 * HIDDEN, HIDDEN)),
    # EmbedAttenSeq out layer, split over the (attn_out, metadata) concat
    ("emb_out_wa", (HIDDEN, HIDDEN)),
    ("emb_out_wm", (METAS_DIM, HIDDEN)),
    # DecodeSeq out layer
    ("dec_out_w", (HIDDEN, OUT_LAYER_DIM)),
    # CalibNN heads
    ("h1_w1", (OUT_LAYER_DIM, OUT_LAYER_DIM // 2)),
    ("h1_w2", (OUT_LAYER_DIM // 2, OUT_DIM)),
    ("h2_w1", (OUT_LAYER_DIM, OUT_LAYER_DIM // 2)),
    ("h2_w2", (OUT_LAYER_DIM // 2, NUM_PATCH)),
    ("h3_w1", (OUT_LAYER_DIM, OUT_LAYER_DIM // 2)),
    ("h3_w2", (OUT_LAYER_DIM // 2, NUM_PATCH)),
    # selector / mask constants for the flat "row = t*B + b" sequence layout
    ("attn_bias", (TRAINING_WEEKS * BATCH, TRAINING_WEEKS * BATCH)),
    ("sel_sum", (BATCH, TRAINING_WEEKS * BATCH)),
    ("sel_mean", (BATCH, SEQ_DEC * BATCH)),
    # biases and scaling constants (one row each)
    ("enc0_bx", (1, G6)), ("enc0_bh", (1, 2 * H_DIR)),
    ("enc1_bx", (1, G6)), ("enc1_bh", (1, 2 * H_DIR)),
    ("dec_bx", (1, G6)), ("dec_bh", (1, 2 * H_DIR)),
    ("attn_bvqk", (1, 3 * HIDDEN)),
    ("emb_out_b", (1, HIDDEN)),
    ("demb_w", (1, HIDDEN)), ("demb_b", (1, HIDDEN)),
    ("comb_b", (1, HIDDEN)),
    ("dec_out_b", (1, OUT_LAYER_DIM)),
    ("h1_b1", (1, OUT_LAYER_DIM // 2)), ("h1_b2", (1, OUT_DIM)),
    ("h2_b1", (1, OUT_LAYER_DIM // 2)), ("h2_b2", (1, NUM_PATCH)),
    ("h3_b1", (1, OUT_LAYER_DIM // 2)), ("h3_b2", (1, NUM_PATCH)),
    ("min_vals", (1, OUT_DIM)), ("max_vals", (1, OUT_DIM)),
    ("min_vals_2", (1, NUM_PATCH)), ("max_vals_2", (1, NUM_PATCH)),
)


def _build_layout():
    layout, row = {}, 0
    for name, (r, c) in _PARAM_SHAPES:
        align = 8 if r >= 8 else 1          # sublane-tile align the big matrices
        row = ((row + align - 1) // align) * align
        layout[name] = (row, 0, r, c)
        row += r
    return layout, ((row + 7) // 8) * 8


_LAYOUT, _PK_ROWS = _build_layout()


# ------------------------------------- parameters -------------------------------------
def init_params(key):
    """Deterministic parameter init; returns ONE packed (R, 192) f32 buffer."""
    keys = iter(jax.random.split(key, 64))

    def w(shape, scale=0.1):
        return np.asarray(jax.random.normal(next(keys), shape, jnp.float32)) * scale

    def bias(shape, val=0.01):
        return np.full(shape, val, np.float32)

    def gru_dir(din, hd):
        # PyTorch gate order [r, z, n]; weights stored (in_features, 3h).
        wih, whh = w((din, 3 * hd)), w((hd, 3 * hd))
        b_ih, b_hh = bias((1, 3 * hd)), bias((1, 3 * hd))
        # pre-combine r/z input+hidden biases; keep b_hn separate (it sits inside r*(.)).
        bx = np.concatenate([b_ih[:, :2 * hd] + b_hh[:, :2 * hd], b_ih[:, 2 * hd:]], axis=1)
        bh = b_hh[:, 2 * hd:]
        return wih, whh, bx, bh

    def gru_bidir_packed(din, hd):
        wih_f, whh_f, bx_f, bh_f = gru_dir(din, hd)
        wih_b, whh_b, bx_b, bh_b = gru_dir(din, hd)
        wih = np.concatenate([wih_f, wih_b], axis=1)            # (din, 6h)
        whh = np.zeros((2 * hd, 6 * hd), np.float32)            # block-diag -> 1 MXU push/step
        whh[:hd, :3 * hd] = whh_f
        whh[hd:, 3 * hd:] = whh_b
        bx = np.concatenate([bx_f, bx_b], axis=1)
        bh = np.concatenate([bh_f, bh_b], axis=1)
        return wih, whh, bx, bh

    arrs = {}
    for nm, din in (("enc0", X_DIM), ("enc1", HIDDEN), ("dec", HIDDEN)):
        wih, whh, bx, bh = gru_bidir_packed(din, H_DIR)
        arrs[nm + "_wih"], arrs[nm + "_whh"] = wih, whh
        arrs[nm + "_bx"], arrs[nm + "_bh"] = bx, bh

    arrs["attn_wvqk"], arrs["attn_bvqk"] = w((HIDDEN, 3 * HIDDEN)), bias((1, 3 * HIDDEN))
    arrs["emb_out_wa"], arrs["emb_out_wm"] = w((HIDDEN, HIDDEN)), w((METAS_DIM, HIDDEN))
    arrs["emb_out_b"] = bias((1, HIDDEN))
    arrs["demb_w"], arrs["demb_b"] = w((1, HIDDEN)), bias((1, HIDDEN))
    arrs["comb_w"], arrs["comb_b"] = w((2 * HIDDEN, HIDDEN)), bias((1, HIDDEN))
    arrs["dec_out_w"], arrs["dec_out_b"] = w((HIDDEN, OUT_LAYER_DIM)), bias((1, OUT_LAYER_DIM))
    half = OUT_LAYER_DIM // 2
    arrs["h1_w1"], arrs["h1_b1"] = w((OUT_LAYER_DIM, half)), bias((1, half))
    arrs["h1_w2"], arrs["h1_b2"] = w((half, OUT_DIM)), bias((1, OUT_DIM))
    arrs["h2_w1"], arrs["h2_b1"] = w((OUT_LAYER_DIM, half)), bias((1, half))
    arrs["h2_w2"], arrs["h2_b2"] = w((half, NUM_PATCH)), bias((1, NUM_PATCH))
    arrs["h3_w1"], arrs["h3_b1"] = w((OUT_LAYER_DIM, half)), bias((1, half))
    arrs["h3_w2"], arrs["h3_b2"] = w((half, NUM_PATCH)), bias((1, NUM_PATCH))

    # cross-batch softmax mask and per-batch sum/mean selectors (row = t*B + b layout)
    sb, lb = TRAINING_WEEKS * BATCH, SEQ_DEC * BATCH
    rb = np.arange(sb) % BATCH
    arrs["attn_bias"] = np.where(rb[:, None] == rb[None, :], 0.0, -1e9).astype(np.float32)
    arrs["sel_sum"] = (np.arange(sb)[None, :] % BATCH
                       == np.arange(BATCH)[:, None]).astype(np.float32)
    arrs["sel_mean"] = ((np.arange(lb)[None, :] % BATCH
                         == np.arange(BATCH)[:, None]).astype(np.float32) / float(SEQ_DEC))

    arrs["min_vals"], arrs["max_vals"] = MIN_VALS, MAX_VALS
    arrs["min_vals_2"], arrs["max_vals_2"] = MIN_VALS_2, MAX_VALS_2

    buf = np.zeros((_PK_ROWS, PK_COLS), np.float32)
    for name, (r0, c0, r, c) in _LAYOUT.items():
        a = np.asarray(arrs[name], np.float32)
        assert a.shape == (r, c), (name, a.shape, (r, c))
        buf[r0:r0 + r, c0:c0 + c] = a
    return jnp.asarray(buf)


# -------------------------------- fused forward kernel --------------------------------
def _calibnn_kernel(x_ref, meta_ref, pk_ref, out_ref, xflat, seq0, seq1, dseq):
    f32 = jnp.float32
    b, s_enc, l_dec = BATCH, TRAINING_WEEKS, SEQ_DEC
    hd, h = H_DIR, HIDDEN

    def pk(name):
        r0, c0, nr, nc = _LAYOUT[name]
        return pk_ref[r0:r0 + nr, c0:c0 + nc]

    def gru_gates(gi, gh, h_prev, bhn):
        # PyTorch GRU cell; gi already holds x@W_ih + (b_i+b_h for r/z, b_in for n).
        r = jax.nn.sigmoid(gi[:, 0:hd] + gh[:, 0:hd])
        z = jax.nn.sigmoid(gi[:, hd:2 * hd] + gh[:, hd:2 * hd])
        n = jnp.tanh(gi[:, 2 * hd:G3] + r * (gh[:, 2 * hd:G3] + bhn))
        return (1.0 - z) * n + z * h_prev

    def run_bidir(name, gi_f, gi_b, steps, h0_cat, seq_scr):
        # One block-diagonal hidden-side matmul per step drives BOTH directions.
        whh = pk(name + "_whh")                     # (2*hd, 6*hd) block-diagonal
        bh = pk(name + "_bh")                       # (1, 2*hd) = [b_hn fwd | b_hn bwd]
        bh_f, bh_b = bh[:, 0:hd], bh[:, hd:2 * hd]
        h_cat = h0_cat                              # (b, 2*hd) = [h_fwd | h_bwd]
        for t in range(steps):                      # fully unrolled at trace time
            tr = steps - 1 - t
            gh = jnp.dot(h_cat, whh, preferred_element_type=f32)          # (b, 6*hd)
            hf = gru_gates(gi_f(t), gh[:, 0:G3], h_cat[:, 0:hd], bh_f)
            hb = gru_gates(gi_b(tr), gh[:, G3:G6], h_cat[:, hd:2 * hd], bh_b)
            seq_scr[t * b:(t + 1) * b, 0:hd] = hf                 # forward half
            seq_scr[tr * b:(tr + 1) * b, hd:2 * hd] = hb          # backward half (reversed)
            h_cat = jnp.concatenate([hf, hb], axis=1)
        return h_cat

    # ------------------------- encoder (EmbedAttenSeq) -------------------------
    # flatten (b, s*X) -> (s*b, X) with row = t*b + batch  (time-major, batch interleaved)
    x_all = x_ref[...]
    for t in range(s_enc):
        xflat[t * b:(t + 1) * b, :] = x_all[:, t * X_DIM:(t + 1) * X_DIM]

    zeros_h = jnp.zeros((b, h), f32)

    # layer 0: input-side gate projection hoisted to ONE (s*b, X) @ (X, 6*hd) matmul
    gi0 = jnp.dot(xflat[...], pk("enc0_wih"), preferred_element_type=f32) + pk("enc0_bx")
    run_bidir("enc0",
              lambda t: gi0[t * b:(t + 1) * b, 0:G3],
              lambda t: gi0[t * b:(t + 1) * b, G3:G6],
              s_enc, zeros_h, seq0)

    # layer 1: input = layer-0 bidirectional output sequence (already flat in seq0)
    gi1 = jnp.dot(seq0[...], pk("enc1_wih"), preferred_element_type=f32) + pk("enc1_bx")
    h_enc = run_bidir("enc1",
                      lambda t: gi1[t * b:(t + 1) * b, 0:G3],
                      lambda t: gi1[t * b:(t + 1) * b, G3:G6],
                      s_enc, zeros_h, seq1)
    # h_enc == [layer-1 fwd final | layer-1 bwd final] == encoder_hidden[2:] -> decoder h0

    # TransformerAttn (fused V/Q/K projection) + per-batch sum over time
    seq = seq1[...]                                                         # (s*b, h)
    vqk = jnp.dot(seq, pk("attn_wvqk"), preferred_element_type=f32) + pk("attn_bvqk")
    v, q, k = vqk[:, 0:h], vqk[:, h:2 * h], vqk[:, 2 * h:3 * h]
    scores = (jnp.dot(v, q.T, preferred_element_type=f32) * (1.0 / math.sqrt(h))
              + pk("attn_bias"))                     # mask pairs from different batches
    scores = scores - jnp.max(scores, axis=-1, keepdims=True)
    e = jnp.exp(scores)
    p_attn = e * pl.reciprocal(jnp.sum(e, axis=-1, keepdims=True), approx=True)
    ctx = jnp.dot(p_attn, k, preferred_element_type=f32)                    # (s*b, h)
    attn_sum = jnp.dot(pk("sel_sum"), ctx, preferred_element_type=f32)      # (b, h)

    # EmbedAttenSeq out layer (weight split over the [attn_out, metadata] concat) + Tanh
    x_emb = jnp.tanh(
        jnp.dot(attn_sum, pk("emb_out_wa"), preferred_element_type=f32)
        + jnp.dot(meta_ref[...], pk("emb_out_wm"), preferred_element_type=f32)
        + pk("emb_out_b"))                                                  # (b, h)

    # --------------------------- decoder (DecodeSeq) ---------------------------
    # embed_input + attn_combine fold to an affine function of the Hi ramp, so the
    # input-side GRU projection is also affine:  gi_t = ramp_t * g_vec + g_base
    # (zero per-step input matmuls; the whole decoder input path is 4 matmuls total).
    wcomb = pk("comb_w")
    w_top, w_bot = wcomb[0:h, :], wcomb[h:2 * h, :]
    ramp_vec = jnp.dot(pk("demb_w"), w_top, preferred_element_type=f32)          # (1, h)
    base = (jnp.dot(pk("demb_b"), w_top, preferred_element_type=f32)
            + jnp.dot(x_emb, w_bot, preferred_element_type=f32)
            + pk("comb_b"))                                                      # (b, h)
    wihd = pk("dec_wih")
    g_vec = jnp.dot(ramp_vec, wihd, preferred_element_type=f32)                  # (1, 6*hd)
    g_base = jnp.dot(base, wihd, preferred_element_type=f32) + pk("dec_bx")      # (b, 6*hd)
    rs = 1.0 / (l_dec - 1.0)                           # Hi_data ramp: t/(L-1), t = 0..L-1

    run_bidir("dec",
              lambda t: (t * rs) * g_vec[:, 0:G3] + g_base[:, 0:G3],
              lambda t: (t * rs) * g_vec[:, G3:G6] + g_base[:, G3:G6],
              l_dec, h_enc, dseq)

    # DecodeSeq out layer + the three CalibNN heads, on the flat (l*b, .) sequence
    emb = jnp.tanh(jnp.dot(dseq[...], pk("dec_out_w"), preferred_element_type=f32)
                   + pk("dec_out_b"))                                            # (l*b, 32)
    sel_mean = pk("sel_mean")                                                    # (b, l*b)

    # head 1: Linear-ReLU-Linear per step, mean over time, sigmoid min/max scaling
    h1 = jnp.maximum(jnp.dot(emb, pk("h1_w1"), preferred_element_type=f32) + pk("h1_b1"), 0.0)
    o1 = jnp.dot(h1, pk("h1_w2"), preferred_element_type=f32) + pk("h1_b2")      # (l*b, 3)
    o1m = jnp.dot(sel_mean, o1, preferred_element_type=f32)                      # (b, 3)
    mn1, mx1 = pk("min_vals"), pk("max_vals")
    out1 = mn1 + (mx1 - mn1) * jax.nn.sigmoid(o1m)

    # heads 2 & 3: time-mean embedding of the LAST batch element
    emb_mean = jnp.dot(sel_mean, emb, preferred_element_type=f32)                # (b, 32)
    emb_last = emb_mean[b - 1:b, :]                                              # (1, 32)

    h2 = jnp.maximum(jnp.dot(emb_last, pk("h2_w1"), preferred_element_type=f32)
                     + pk("h2_b1"), 0.0)
    o2 = jnp.dot(h2, pk("h2_w2"), preferred_element_type=f32) + pk("h2_b2")
    mn2, mx2 = pk("min_vals_2"), pk("max_vals_2")
    out2 = mn2 + (mx2 - mn2) * jax.nn.sigmoid(o2)

    h3 = jnp.maximum(jnp.dot(emb_last, pk("h3_w1"), preferred_element_type=f32)
                     + pk("h3_b1"), 0.0)
    o3 = jnp.dot(h3, pk("h3_w2"), preferred_element_type=f32) + pk("h3_b2")
    out3 = -jax.nn.sigmoid(o3)

    # pack the three tiny results into one lane-padded output tile (single output DMA)
    out_ref[...] = jnp.zeros_like(out_ref)
    out_ref[0:b, 0:OUT_DIM] = out1
    out_ref[b:b + 1, 0:NUM_PATCH] = out2
    out_ref[b + 1:b + 2, 0:NUM_PATCH] = out3


# ------------------------------------ forward pass ------------------------------------
def calibnn_forward(packed_params, x, meta):
    """x: (B, S, X_DIM) batch-major weekly features; meta: (B, METAS_DIM)."""
    b, s, xd = x.shape
    x2d = x.reshape(b, s * xd)                      # contiguous reshape (free)
    buf = pl.pallas_call(
        _calibnn_kernel,
        out_shape=jax.ShapeDtypeStruct((8, 128), jnp.float32),
        in_specs=[_VMEM, _VMEM, _VMEM],
        out_specs=_VMEM,
        scratch_shapes=[
            pltpu.VMEM((s * b, X_DIM), jnp.float32),         # flat x  (row = t*B + b)
            pltpu.VMEM((s * b, HIDDEN), jnp.float32),        # encoder layer-0 output seq
            pltpu.VMEM((s * b, HIDDEN), jnp.float32),        # encoder layer-1 output seq
            pltpu.VMEM((SEQ_DEC * b, HIDDEN), jnp.float32),  # decoder output seq
        ],
    )(x2d, meta, packed_params)
    out = buf[0:b, 0:OUT_DIM]
    out2 = buf[b, 0:NUM_PATCH]
    out3 = buf[b + 1, 0:NUM_PATCH]
    return out, out2, out3


# --------------------------------------- main ---------------------------------------
if __name__ == "__main__":
    key = jax.random.PRNGKey(0)
    k_p, k_x, k_m = jax.random.split(key, 3)

    packed_params = init_params(k_p)
    x = jax.random.normal(k_x, (BATCH, TRAINING_WEEKS, X_DIM), jnp.float32)
    meta = jax.random.normal(k_m, (BATCH, METAS_DIM), jnp.float32)

    fwd = jax.jit(calibnn_forward)
    out, out2, out3 = fwd(packed_params, x, meta)
    jax.block_until_ready((out, out2, out3))

    assert out.shape == (BATCH, OUT_DIM)
    assert out2.shape == (NUM_PATCH,)
    assert out3.shape == (NUM_PATCH,)
    assert bool(jnp.all(jnp.isfinite(out)))
    assert bool(jnp.all(jnp.isfinite(out2)))
    assert bool(jnp.all(jnp.isfinite(out3)))
    print("KERNEL_OK")
</pallas_src>

<mosaic_0001>
module attributes {stable_mosaic.version = 11 : i64} {
  func.func @_calibnn_kernel(%arg0: memref<2x40xf32, #tpu.memory_space<vmem>>, %arg1: memref<2x4xf32, #tpu.memory_space<vmem>>, %arg2: memref<848x192xf32, #tpu.memory_space<vmem>>, %arg3: memref<8x128xf32, #tpu.memory_space<vmem>>, %arg4: memref<16x5xf32, #tpu.memory_space<vmem>>, %arg5: memref<16x64xf32, #tpu.memory_space<vmem>>, %arg6: memref<16x64xf32, #tpu.memory_space<vmem>>, %arg7: memref<24x64xf32, #tpu.memory_space<vmem>>) attributes {dimension_semantics = [], scalar_prefetch = 0 : i64, scratch_operands = 4 : i64, tpu.core_type = #tpu.core_type<tc>} {
    %c0 = arith.constant 0 : index
    %c0_0 = arith.constant 0 : index
    %0 = vector.load %arg0[%c0, %c0_0] : memref<2x40xf32, #tpu.memory_space<vmem>>, vector<2x40xf32>
    %1 = vector.extract_strided_slice %0 {offsets = [0, 0], sizes = [2, 5], strides = [1, 1]} : vector<2x40xf32> to vector<2x5xf32>
    %c0_1 = arith.constant 0 : index
    %c0_2 = arith.constant 0 : index
    %2 = vector.load %arg4[%c0_1, %c0_2] : memref<16x5xf32, #tpu.memory_space<vmem>>, vector<2x5xf32>
    tpu.vector_store %arg4[%c0_1, %c0_2], %1 {strides = array<i32>} : memref<16x5xf32, #tpu.memory_space<vmem>>, vector<2x5xf32>,
    %3 = vector.extract_strided_slice %0 {offsets = [0, 5], sizes = [2, 5], strides = [1, 1]} : vector<2x40xf32> to vector<2x5xf32>
    %c2 = arith.constant 2 : index
    %c0_3 = arith.constant 0 : index
    %4 = vector.load %arg4[%c2, %c0_3] : memref<16x5xf32, #tpu.memory_space<vmem>>, vector<2x5xf32>
    tpu.vector_store %arg4[%c2, %c0_3], %3 {strides = array<i32>} : memref<16x5xf32, #tpu.memory_space<vmem>>, vector<2x5xf32>,
    %5 = vector.extract_strided_slice %0 {offsets = [0, 10], sizes = [2, 5], strides = [1, 1]} : vector<2x40xf32> to vector<2x5xf32>
    %c4 = arith.constant 4 : index
    %c0_4 = arith.constant 0 : index
    %6 = vector.load %arg4[%c4, %c0_4] : memref<16x5xf32, #tpu.memory_space<vmem>>, vector<2x5xf32>
    tpu.vector_store %arg4[%c4, %c0_4], %5 {strides = array<i32>} : memref<16x5xf32, #tpu.memory_space<vmem>>, vector<2x5xf32>,
    %7 = vector.extract_strided_slice %0 {offsets = [0, 15], sizes = [2, 5], strides = [1, 1]} : vector<2x40xf32> to vector<2x5xf32>
    %c6 = arith.constant 6 : index
    %c0_5 = arith.constant 0 : index
    %8 = vector.load %arg4[%c6, %c0_5] : memref<16x5xf32, #tpu.memory_space<vmem>>, vector<2x5xf32>
    tpu.vector_store %arg4[%c6, %c0_5], %7 {strides = array<i32>} : memref<16x5xf32, #tpu.memory_space<vmem>>, vector<2x5xf32>,
    %9 = vector.extract_strided_slice %0 {offsets = [0, 20], sizes = [2, 5], strides = [1, 1]} : vector<2x40xf32> to vector<2x5xf32>
    %c8 = arith.constant 8 : index
    %c0_6 = arith.constant 0 : index
    %10 = vector.load %arg4[%c8, %c0_6] : memref<16x5xf32, #tpu.memory_space<vmem>>, vector<2x5xf32>
    tpu.vector_store %arg4[%c8, %c0_6], %9 {strides = array<i32>} : memref<16x5xf32, #tpu.memory_space<vmem>>, vector<2x5xf32>,
    %11 = vector.extract_strided_slice %0 {offsets = [0, 25], sizes = [2, 5], strides = [1, 1]} : vector<2x40xf32> to vector<2x5xf32>
    %c10 = arith.constant 10 : index
    %c0_7 = arith.constant 0 : index
    %12 = vector.load %arg4[%c10, %c0_7] : memref<16x5xf32, #tpu.memory_space<vmem>>, vector<2x5xf32>
    tpu.vector_store %arg4[%c10, %c0_7], %11 {strides = array<i32>} : memref<16x5xf32, #tpu.memory_space<vmem>>, vector<2x5xf32>,
    %13 = vector.extract_strided_slice %0 {offsets = [0, 30], sizes = [2, 5], strides = [1, 1]} : vector<2x40xf32> to vector<2x5xf32>
    %c12 = arith.constant 12 : index
    %c0_8 = arith.constant 0 : index
    %14 = vector.load %arg4[%c12, %c0_8] : memref<16x5xf32, #tpu.memory_space<vmem>>, vector<2x5xf32>
    tpu.vector_store %arg4[%c12, %c0_8], %13 {strides = array<i32>} : memref<16x5xf32, #tpu.memory_space<vmem>>, vector<2x5xf32>,
    %15 = vector.extract_strided_slice %0 {offsets = [0, 35], sizes = [2, 5], strides = [1, 1]} : vector<2x40xf32> to vector<2x5xf32>
    %c14 = arith.constant 14 : index
    %c0_9 = arith.constant 0 : index
    %16 = vector.load %arg4[%c14, %c0_9] : memref<16x5xf32, #tpu.memory_space<vmem>>, vector<2x5xf32>
    tpu.vector_store %arg4[%c14, %c0_9], %15 {strides = array<i32>} : memref<16x5xf32, #tpu.memory_space<vmem>>, vector<2x5xf32>,
    %cst = arith.constant 0.000000e+00 : f32
    %17 = vector.broadcast %cst : f32 to vector<2x64xf32>
    %c0_10 = arith.constant 0 : index
    %c0_11 = arith.constant 0 : index
    %18 = vector.load %arg4[%c0_10, %c0_11] : memref<16x5xf32, #tpu.memory_space<vmem>>, vector<16x5xf32>
    %c0_12 = arith.constant 0 : index
    %c0_13 = arith.constant 0 : index
    %19 = vector.load %arg2[%c0_12, %c0_13] : memref<848x192xf32, #tpu.memory_space<vmem>>, vector<5x192xf32>
    %cst_14 = arith.constant dense<0.000000e+00> : vector<16x192xf32>
    %20 = tpu.matmul %18, %19, %cst_14 {dimension_numbers = #tpu.dot_dimension_numbers<[1], [0], [0], [1], [0, 0, 1, 1], [], []>} : vector<16x5xf32>, vector<5x192xf32>, vector<16x192xf32> -> vector<16x192xf32>
    %c820 = arith.constant 820 : index
    %c0_15 = arith.constant 0 : index
    %21 = vector.load %arg2[%c820, %c0_15] : memref<848x192xf32, #tpu.memory_space<vmem>>, vector<1x192xf32>
    %22 = vector.broadcast %21 : vector<1x192xf32> to vector<16x192xf32>
    %23 = arith.addf %20, %22 : vector<16x192xf32>
    %c8_16 = arith.constant 8 : index
    %c0_17 = arith.constant 0 : index
    %24 = vector.load %arg2[%c8_16, %c0_17] : memref<848x192xf32, #tpu.memory_space<vmem>>, vector<64x192xf32>
    %c821 = arith.constant 821 : index
    %c0_18 = arith.constant 0 : index
    %25 = vector.load %arg2[%c821, %c0_18] : memref<848x192xf32, #tpu.memory_space<vmem>>, vector<1x64xf32>
    %26 = vector.extract_strided_slice %25 {offsets = [0, 0], sizes = [1, 32], strides = [1, 1]} : vector<1x64xf32> to vector<1x32xf32>
    %27 = vector.extract_strided_slice %25 {offsets = [0, 32], sizes = [1, 32], strides = [1, 1]} : vector<1x64xf32> to vector<1x32xf32>
    %cst_19 = arith.constant dense<0.000000e+00> : vector<2x192xf32>
    %28 = tpu.matmul %17, %24, %cst_19 {dimension_numbers = #tpu.dot_dimension_numbers<[1], [0], [0], [1], [0, 0, 1, 1], [], []>} : vector<2x64xf32>, vector<64x192xf32>, vector<2x192xf32> -> vector<2x192xf32>
    %29 = vector.extract_strided_slice %23 {offsets = [0, 0], sizes = [2, 96], strides = [1, 1]} : vector<16x192xf32> to vector<2x96xf32>
    %30 = vector.extract_strided_slice %28 {offsets = [0, 0], sizes = [2, 96], strides = [1, 1]} : vector<2x192xf32> to vector<2x96xf32>
    %31 = vector.extract_strided_slice %17 {offsets = [0, 0], sizes = [2, 32], strides = [1, 1]} : vector<2x64xf32> to vector<2x32xf32>
    %32 = vector.extract_strided_slice %29 {offsets = [0, 0], sizes = [2, 32], strides = [1, 1]} : vector<2x96xf32> to vector<2x32xf32>
    %33 = vector.extract_strided_slice %30 {offsets = [0, 0], sizes = [2, 32], strides = [1, 1]} : vector<2x96xf32> to vector<2x32xf32>
    %34 = arith.addf %32, %33 : vector<2x32xf32>
    %35 = arith.negf %34 : vector<2x32xf32>
    %36 = math.exp %35 : vector<2x32xf32>
    %cst_20 = arith.constant 1.000000e+00 : f32
    %37 = vector.broadcast %cst_20 : f32 to vector<2x32xf32>
    %38 = arith.addf %37, %36 : vector<2x32xf32>
    %39 = arith.divf %37, %38 : vector<2x32xf32>
    %40 = vector.extract_strided_slice %29 {offsets = [0, 32], sizes = [2, 32], strides = [1, 1]} : vector<2x96xf32> to vector<2x32xf32>
    %41 = vector.extract_strided_slice %30 {offsets = [0, 32], sizes = [2, 32], strides = [1, 1]} : vector<2x96xf32> to vector<2x32xf32>
    %42 = arith.addf %40, %41 : vector<2x32xf32>
    %43 = arith.negf %42 : vector<2x32xf32>
    %44 = math.exp %43 : vector<2x32xf32>
    %cst_21 = arith.constant 1.000000e+00 : f32
    %45 = vector.broadcast %cst_21 : f32 to vector<2x32xf32>
    %46 = arith.addf %45, %44 : vector<2x32xf32>
    %47 = arith.divf %45, %46 : vector<2x32xf32>
    %48 = vector.extract_strided_slice %29 {offsets = [0, 64], sizes = [2, 32], strides = [1, 1]} : vector<2x96xf32> to vector<2x32xf32>
    %49 = vector.extract_strided_slice %30 {offsets = [0, 64], sizes = [2, 32], strides = [1, 1]} : vector<2x96xf32> to vector<2x32xf32>
    %50 = vector.broadcast %26 : vector<1x32xf32> to vector<2x32xf32>
    %51 = arith.addf %49, %50 : vector<2x32xf32>
    %52 = arith.mulf %39, %51 : vector<2x32xf32>
    %53 = arith.addf %48, %52 : vector<2x32xf32>
    %54 = math.tanh %53 : vector<2x32xf32>
    %cst_22 = arith.constant 1.000000e+00 : f32
    %55 = vector.broadcast %cst_22 : f32 to vector<2x32xf32>
    %56 = arith.subf %55, %47 : vector<2x32xf32>
    %57 = arith.mulf %56, %54 : vector<2x32xf32>
    %58 = arith.mulf %47, %31 : vector<2x32xf32>
    %59 = arith.addf %57, %58 : vector<2x32xf32>
    %60 = vector.extract_strided_slice %23 {offsets = [14, 96], sizes = [2, 96], strides = [1, 1]} : vector<16x192xf32> to vector<2x96xf32>
    %61 = vector.extract_strided_slice %28 {offsets = [0, 96], sizes = [2, 96], strides = [1, 1]} : vector<2x192xf32> to vector<2x96xf32>
    %62 = vector.extract_strided_slice %17 {offsets = [0, 32], sizes = [2, 32], strides = [1, 1]} : vector<2x64xf32> to vector<2x32xf32>
    %63 = vector.extract_strided_slice %60 {offsets = [0, 0], sizes = [2, 32], strides = [1, 1]} : vector<2x96xf32> to vector<2x32xf32>
    %64 = vector.extract_strided_slice %61 {offsets = [0, 0], sizes = [2, 32], strides = [1, 1]} : vector<2x96xf32> to vector<2x32xf32>
    %65 = arith.addf %63, %64 : vector<2x32xf32>
    %66 = arith.negf %65 : vector<2x32xf32>
    %67 = math.exp %66 : vector<2x32xf32>
    %cst_23 = arith.constant 1.000000e+00 : f32
    %68 = vector.broadcast %cst_23 : f32 to vector<2x32xf32>
    %69 = arith.addf %68, %67 : vector<2x32xf32>
    %70 = arith.divf %68, %69 : vector<2x32xf32>
    %71 = vector.extract_strided_slice %60 {offsets = [0, 32], sizes = [2, 32], strides = [1, 1]} : vector<2x96xf32> to vector<2x32xf32>
    %72 = vector.extract_strided_slice %61 {offsets = [0, 32], sizes = [2, 32], strides = [1, 1]} : vector<2x96xf32> to vector<2x32xf32>
    %73 = arith.addf %71, %72 : vector<2x32xf32>
    %74 = arith.negf %73 : vector<2x32xf32>
    %75 = math.exp %74 : vector<2x32xf32>
    %cst_24 = arith.constant 1.000000e+00 : f32
    %76 = vector.broadcast %cst_24 : f32 to vector<2x32xf32>
    %77 = arith.addf %76, %75 : vector<2x32xf32>
    %78 = arith.divf %76, %77 : vector<2x32xf32>
    %79 = vector.extract_strided_slice %60 {offsets = [0, 64], sizes = [2, 32], strides = [1, 1]} : vector<2x96xf32> to vector<2x32xf32>
    %80 = vector.extract_strided_slice %61 {offsets = [0, 64], sizes = [2, 32], strides = [1, 1]} : vector<2x96xf32> to vector<2x32xf32>
    %81 = vector.broadcast %27 : vector<1x32xf32> to vector<2x32xf32>
    %82 = arith.addf %80, %81 : vector<2x32xf32>
    %83 = arith.mulf %70, %82 : vector<2x32xf32>
    %84 = arith.addf %79, %83 : vector<2x32xf32>
    %85 = math.tanh %84 : vector<2x32xf32>
    %cst_25 = arith.constant 1.000000e+00 : f32
    %86 = vector.broadcast %cst_25 : f32 to vector<2x32xf32>
    %87 = arith.subf %86, %78 : vector<2x32xf32>
    %88 = arith.mulf %87, %85 : vector<2x32xf32>
    %89 = arith.mulf %78, %62 : vector<2x32xf32>
    %90 = arith.addf %88, %89 : vector<2x32xf32>
    %c0_26 = arith.constant 0 : index
    %c0_27 = arith.constant 0 : index
    %91 = vector.load %arg5[%c0_26, %c0_27] : memref<16x64xf32, #tpu.memory_space<vmem>>, vector<2x32xf32>
    tpu.vector_store %arg5[%c0_26, %c0_27], %59 {strides = array<i32>} : memref<16x64xf32, #tpu.memory_space<vmem>>, vector<2x32xf32>,
    %c14_28 = arith.constant 14 : index
    %c32 = arith.constant 32 : index
    %92 = vector.load %arg5[%c14_28, %c32] : memref<16x64xf32, #tpu.memory_space<vmem>>, vector<2x32xf32>
    tpu.vector_store %arg5[%c14_28, %c32], %90 {strides = array<i32>} : memref<16x64xf32, #tpu.memory_space<vmem>>, vector<2x32xf32>,
    %93 = tpu.concatenate %59, %90 in 1 : vector<2x32xf32>, vector<2x32xf32> -> vector<2x64xf32>
    %cst_29 = arith.constant dense<0.000000e+00> : vector<2x192xf32>
    %94 = tpu.matmul %93, %24, %cst_29 {dimension_numbers = #tpu.dot_dimension_numbers<[1], [0], [0], [1], [0, 0, 1, 1], [], []>} : vector<2x64xf32>, vector<64x192xf32>, vector<2x192xf32> -> vector<2x192xf32>
    %95 = vector.extract_strided_slice %23 {offsets = [2, 0], sizes = [2, 96], strides = [1, 1]} : vector<16x192xf32> to vector<2x96xf32>
    %96 = vector.extract_strided_slice %94 {offsets = [0, 0], sizes = [2, 96], strides = [1, 1]} : vector<2x192xf32> to vector<2x96xf32>
    %97 = vector.extract_strided_slice %93 {offsets = [0, 0], sizes = [2, 32], strides = [1, 1]} : vector<2x64xf32> to vector<2x32xf32>
    %98 = vector.extract_strided_slice %95 {offsets = [0, 0], sizes = [2, 32], strides = [1, 1]} : vector<2x96xf32> to vector<2x32xf32>
    %99 = vector.extract_strided_slice %96 {offsets = [0, 0], sizes = [2, 32], strides = [1, 1]} : vector<2x96xf32> to vector<2x32xf32>
    %100 = arith.addf %98, %99 : vector<2x32xf32>
    %101 = arith.negf %100 : vector<2x32xf32>
    %102 = math.exp %101 : vector<2x32xf32>
    %cst_30 = arith.constant 1.000000e+00 : f32
    %103 = vector.broadcast %cst_30 : f32 to vector<2x32xf32>
    %104 = arith.addf %103, %102 : vector<2x32xf32>
    %105 = arith.divf %103, %104 : vector<2x32xf32>
    %106 = vector.extract_strided_slice %95 {offsets = [0, 32], sizes = [2, 32], strides = [1, 1]} : vector<2x96xf32> to vector<2x32xf32>
    %107 = vector.extract_strided_slice %96 {offsets = [0, 32], sizes = [2, 32], strides = [1, 1]} : vector<2x96xf32> to vector<2x32xf32>
    %108 = arith.addf %106, %107 : vector<2x32xf32>
    %109 = arith.negf %108 : vector<2x32xf32>
    %110 = math.exp %109 : vector<2x32xf32>
    %cst_31 = arith.constant 1.000000e+00 : f32
    %111 = vector.broadcast %cst_31 : f32 to vector<2x32xf32>
    %112 = arith.addf %111, %110 : vector<2x32xf32>
    %113 = arith.divf %111, %112 : vector<2x32xf32>
    %114 = vector.extract_strided_slice %95 {offsets = [0, 64], sizes = [2, 32], strides = [1, 1]} : vector<2x96xf32> to vector<2x32xf32>
    %115 = vector.extract_strided_slice %96 {offsets = [0, 64], sizes = [2, 32], strides = [1, 1]} : vector<2x96xf32> to vector<2x32xf32>
    %116 = vector.broadcast %26 : vector<1x32xf32> to vector<2x32xf32>
    %117 = arith.addf %115, %116 : vector<2x32xf32>
    %118 = arith.mulf %105, %117 : vector<2x32xf32>
    %119 = arith.addf %114, %118 : vector<2x32xf32>
    %120 = math.tanh %119 : vector<2x32xf32>
    %cst_32 = arith.constant 1.000000e+00 : f32
    %121 = vector.broadcast %cst_32 : f32 to vector<2x32xf32>
    %122 = arith.subf %121, %113 : vector<2x32xf32>
    %123 = arith.mulf %122, %120 : vector<2x32xf32>
    %124 = arith.mulf %113, %97 : vector<2x32xf32>
    %125 = arith.addf %123, %124 : vector<2x32xf32>
    %126 = vector.extract_strided_slice %23 {offsets = [12, 96], sizes = [2, 96], strides = [1, 1]} : vector<16x192xf32> to vector<2x96xf32>
    %127 = vector.extract_strided_slice %94 {offsets = [0, 96], sizes = [2, 96], strides = [1, 1]} : vector<2x192xf32> to vector<2x96xf32>
    %128 = vector.extract_strided_slice %93 {offsets = [0, 32], sizes = [2, 32], strides = [1, 1]} : vector<2x64xf32> to vector<2x32xf32>
    %129 = vector.extract_strided_slice %126 {offsets = [0, 0], sizes = [2, 32], strides = [1, 1]} : vector<2x96xf32> to vector<2x32xf32>
    %130 = vector.extract_strided_slice %127 {offsets = [0, 0], sizes = [2, 32], strides = [1, 1]} : vector<2x96xf32> to vector<2x32xf32>
    %131 = arith.addf %129, %130 : vector<2x32xf32>
    %132 = arith.negf %131 : vector<2x32xf32>
    %133 = math.exp %132 : vector<2x32xf32>
    %cst_33 = arith.constant 1.000000e+00 : f32
    %134 = vector.broadcast %cst_33 : f32 to vector<2x32xf32>
    %135 = arith.addf %134, %133 : vector<2x32xf32>
    %136 = arith.divf %134, %135 : vector<2x32xf32>
    %137 = vector.extract_strided_slice %126 {offsets = [0, 32], sizes = [2, 32], strides = [1, 1]} : vector<2x96xf32> to vector<2x32xf32>
    %138 = vector.extract_strided_slice %127 {offsets = [0, 32], sizes = [2, 32], strides = [1, 1]} : vector<2x96xf32> to vector<2x32xf32>
    %139 = arith.addf %137, %138 : vector<2x32xf32>
    %140 = arith.negf %139 : vector<2x32xf32>
    %141 = math.exp %140 : vector<2x32xf32>
    %cst_34 = arith.constant 1.000000e+00 : f32
    %142 = vector.broadcast %cst_34 : f32 to vector<2x32xf32>
    %143 = arith.addf %142, %141 : vector<2x32xf32>
    %144 = arith.divf %142, %143 : vector<2x32xf32>
    %145 = vector.extract_strided_slice %126 {offsets = [0, 64], sizes = [2, 32], strides = [1, 1]} : vector<2x96xf32> to vector<2x32xf32>
    %146 = vector.extract_strided_slice %127 {offsets = [0, 64], sizes = [2, 32], strides = [1, 1]} : vector<2x96xf32> to vector<2x32xf32>
    %147 = vector.broadcast %27 : vector<1x32xf32> to vector<2x32xf32>
    %148 = arith.addf %146, %147 : vector<2x32xf32>
    %149 = arith.mulf %136, %148 : vector<2x32xf32>
    %150 = arith.addf %145, %149 : vector<2x32xf32>
    %151 = math.tanh %150 : vector<2x32xf32>
    %cst_35 = arith.constant 1.000000e+00 : f32
    %152 = vector.broadcast %cst_35 : f32 to vector<2x32xf32>
    %153 = arith.subf %152, %144 : vector<2x32xf32>
    %154 = arith.mulf %153, %151 : vector<2x32xf32>
    %155 = arith.mulf %144, %128 : vector<2x32xf32>
    %156 = arith.addf %154, %155 : vector<2x32xf32>
    %c2_36 = arith.constant 2 : index
    %c0_37 = arith.constant 0 : index
    %157 = vector.load %arg5[%c2_36, %c0_37] : memref<16x64xf32, #tpu.memory_space<vmem>>, vector<2x32xf32>
    tpu.vector_store %arg5[%c2_36, %c0_37], %125 {strides = array<i32>} : memref<16x64xf32, #tpu.memory_space<vmem>>, vector<2x32xf32>,
    %c12_38 = arith.constant 12 : index
    %c32_39 = arith.constant 32 : index
    %158 = vector.load %arg5[%c12_38, %c32_39] : memref<16x64xf32, #tpu.memory_space<vmem>>, vector<2x32xf32>
    tpu.vector_store %arg5[%c12_38, %c32_39], %156 {strides = array<i32>} : memref<16x64xf32, #tpu.memory_space<vmem>>, vector<2x32xf32>,
    %159 = tpu.concatenate %125, %156 in 1 : vector<2x32xf32>, vector<2x32xf32> -> vector<2x64xf32>
    %cst_40 = arith.constant dense<0.000000e+00> : vector<2x192xf32>
    %160 = tpu.matmul %159, %24, %cst_40 {dimension_numbers = #tpu.dot_dimension_numbers<[1], [0], [0], [1], [0, 0, 1, 1], [], []>} : vector<2x64xf32>, vector<64x192xf32>, vector<2x192xf32> -> vector<2x192xf32>
    %161 = vector.extract_strided_slice %23 {offsets = [4, 0], sizes = [2, 96], strides = [1, 1]} : vector<16x192xf32> to vector<2x96xf32>
    %162 = vector.extract_strided_slice %160 {offsets = [0, 0], sizes = [2, 96], strides = [1, 1]} : vector<2x192xf32> to vector<2x96xf32>
    %163 = vector.extract_strided_slice %159 {offsets = [0, 0], sizes = [2, 32], strides = [1, 1]} : vector<2x64xf32> to vector<2x32xf32>
    %164 = vector.extract_strided_slice %161 {offsets = [0, 0], sizes = [2, 32], strides = [1, 1]} : vector<2x96xf32> to vector<2x32xf32>
    %165 = vector.extract_strided_slice %162 {offsets = [0, 0], sizes = [2, 32], strides = [1, 1]} : vector<2x96xf32> to vector<2x32xf32>
    %166 = arith.addf %164, %165 : vector<2x32xf32>
    %167 = arith.negf %166 : vector<2x32xf32>
    %168 = math.exp %167 : vector<2x32xf32>
    %cst_41 = arith.constant 1.000000e+00 : f32
    %169 = vector.broadcast %cst_41 : f32 to vector<2x32xf32>
    %170 = arith.addf %169, %168 : vector<2x32xf32>
    %171 = arith.divf %169, %170 : vector<2x32xf32>
    %172 = vector.extract_strided_slice %161 {offsets = [0, 32], sizes = [2, 32], strides = [1, 1]} : vector<2x96xf32> to vector<2x32xf32>
    %173 = vector.extract_strided_slice %162 {offsets = [0, 32], sizes = [2, 32], strides = [1, 1]} : vector<2x96xf32> to vector<2x32xf32>
    %174 = arith.addf %172, %173 : vector<2x32xf32>
    %175 = arith.negf %174 : vector<2x32xf32>
    %176 = math.exp %175 : vector<2x32xf32>
    %cst_42 = arith.constant 1.000000e+00 : f32
    %177 = vector.broadcast %cst_42 : f32 to vector<2x32xf32>
    %178 = arith.addf %177, %176 : vector<2x32xf32>
    %179 = arith.divf %177, %178 : vector<2x32xf32>
    %180 = vector.extract_strided_slice %161 {offsets = [0, 64], sizes = [2, 32], strides = [1, 1]} : vector<2x96xf32> to vector<2x32xf32>
    %181 = vector.extract_strided_slice %162 {offsets = [0, 64], sizes = [2, 32], strides = [1, 1]} : vector<2x96xf32> to vector<2x32xf32>
    %182 = vector.broadcast %26 : vector<1x32xf32> to vector<2x32xf32>
    %183 = arith.addf %181, %182 : vector<2x32xf32>
    %184 = arith.mulf %171, %183 : vector<2x32xf32>
    %185 = arith.addf %180, %184 : vector<2x32xf32>
    %186 = math.tanh %185 : vector<2x32xf32>
    %cst_43 = arith.constant 1.000000e+00 : f32
    %187 = vector.broadcast %cst_43 : f32 to vector<2x32xf32>
    %188 = arith.subf %187, %179 : vector<2x32xf32>
    %189 = arith.mulf %188, %186 : vector<2x32xf32>
    %190 = arith.mulf %179, %163 : vector<2x32xf32>
    %191 = arith.addf %189, %190 : vector<2x32xf32>
    %192 = vector.extract_strided_slice %23 {offsets = [10, 96], sizes = [2, 96], strides = [1, 1]} : vector<16x192xf32> to vector<2x96xf32>
    %193 = vector.extract_strided_slice %160 {offsets = [0, 96], sizes = [2, 96], strides = [1, 1]} : vector<2x192xf32> to vector<2x96xf32>
    %194 = vector.extract_strided_slice %159 {offsets = [0, 32], sizes = [2, 32], strides = [1, 1]} : vector<2x64xf32> to vector<2x32xf32>
    %195 = vector.extract_strided_slice %192 {offsets = [0, 0], sizes = [2, 32], strides = [1, 1]} : vector<2x96xf32> to vector<2x32xf32>
    %196 = vector.extract_strided_slice %193 {offsets = [0, 0], sizes = [2, 32], strides = [1, 1]} : vector<2x96xf32> to vector<2x32xf32>
    %197 = arith.addf %195, %196 : vector<2x32xf32>
    %198 = arith.negf %197 : vector<2x32xf32>
    %199 = math.exp %198 : vector<2x32xf32>
    %cst_44 = arith.constant 1.000000e+00 : f32
    %200 = vector.broadcast %cst_44 : f32 to vector<2x32xf32>
    %201 = arith.addf %200, %199 : vector<2x32xf32>
    %202 = arith.divf %200, %201 : vector<2x32xf32>
    %203 = vector.extract_strided_slice %192 {offsets = [0, 32], sizes = [2, 32], strides = [1, 1]} : vector<2x96xf32> to vector<2x32xf32>
    %204 = vector.extract_strided_slice %193 {offsets = [0, 32], sizes = [2, 32], strides = [1, 1]} : vector<2x96xf32> to vector<2x32xf32>
    %205 = arith.addf %203, %204 : vector<2x32xf32>
    %206 = arith.negf %205 : vector<2x32xf32>
    %207 = math.exp %206 : vector<2x32xf32>
    %cst_45 = arith.constant 1.000000e+00 : f32
    %208 = vector.broadcast %cst_45 : f32 to vector<2x32xf32>
    %209 = arith.addf %208, %207 : vector<2x32xf32>
    %210 = arith.divf %208, %209 : vector<2x32xf32>
    %211 = vector.extract_strided_slice %192 {offsets = [0, 64], sizes = [2, 32], strides = [1, 1]} : vector<2x96xf32> to vector<2x32xf32>
    %212 = vector.extract_strided_slice %193 {offsets = [0, 64], sizes = [2, 32], strides = [1, 1]} : vector<2x96xf32> to vector<2x32xf32>
    %213 = vector.broadcast %27 : vector<1x32xf32> to vector<2x32xf32>
    %214 = arith.addf %212, %213 : vector<2x32xf32>
    %215 = arith.mulf %202, %214 : vector<2x32xf32>
    %216 = arith.addf %211, %215 : vector<2x32xf32>
    %217 = math.tanh %216 : vector<2x32xf32>
    %cst_46 = arith.constant 1.000000e+00 : f32
    %218 = vector.broadcast %cst_46 : f32 to vector<2x32xf32>
    %219 = arith.subf %218, %210 : vector<2x32xf32>
    %220 = arith.mulf %219, %217 : vector<2x32xf32>
    %221 = arith.mulf %210, %194 : vector<2x32xf32>
    %222 = arith.addf %220, %221 : vector<2x32xf32>
    %c4_47 = arith.constant 4 : index
    %c0_48 = arith.constant 0 : index
    %223 = vector.load %arg5[%c4_47, %c0_48] : memref<16x64xf32, #tpu.memory_space<vmem>>, vector<2x32xf32>
    tpu.vector_store %arg5[%c4_47, %c0_48], %191 {strides = array<i32>} : memref<16x64xf32, #tpu.memory_space<vmem>>, vector<2x32xf32>,
    %c10_49 = arith.constant 10 : index
    %c32_50 = arith.constant 32 : index
    %224 = vector.load %arg5[%c10_49, %c32_50] : memref<16x64xf32, #tpu.memory_space<vmem>>, vector<2x32xf32>
    tpu.vector_store %arg5[%c10_49, %c32_50], %222 {strides = array<i32>} : memref<16x64xf32, #tpu.memory_space<vmem>>, vector<2x32xf32>,
    %225 = tpu.concatenate %191, %222 in 1 : vector<2x32xf32>, vector<2x32xf32> -> vector<2x64xf32>
    %cst_51 = arith.constant dense<0.000000e+00> : vector<2x192xf32>
    %226 = tpu.matmul %225, %24, %cst_51 {dimension_numbers = #tpu.dot_dimension_numbers<[1], [0], [0], [1], [0, 0, 1, 1], [], []>} : vector<2x64xf32>, vector<64x192xf32>, vector<2x192xf32> -> vector<2x192xf32>
    %227 = vector.extract_strided_slice %23 {offsets = [6, 0], sizes = [2, 96], strides = [1, 1]} : vector<16x192xf32> to vector<2x96xf32>
    %228 = vector.extract_strided_slice %226 {offsets = [0, 0], sizes = [2, 96], strides = [1, 1]} : vector<2x192xf32> to vector<2x96xf32>
    %229 = vector.extract_strided_slice %225 {offsets = [0, 0], sizes = [2, 32], strides = [1, 1]} : vector<2x64xf32> to vector<2x32xf32>
    %230 = vector.extract_strided_slice %227 {offsets = [0, 0], sizes = [2, 32], strides = [1, 1]} : vector<2x96xf32> to vector<2x32xf32>
    %231 = vector.extract_strided_slice %228 {offsets = [0, 0], sizes = [2, 32], strides = [1, 1]} : vector<2x96xf32> to vector<2x32xf32>
    %232 = arith.addf %230, %231 : vector<2x32xf32>
    %233 = arith.negf %232 : vector<2x32xf32>
    %234 = math.exp %233 : vector<2x32xf32>
    %cst_52 = arith.constant 1.000000e+00 : f32
    %235 = vector.broadcast %cst_52 : f32 to vector<2x32xf32>
    %236 = arith.addf %235, %234 : vector<2x32xf32>
    %237 = arith.divf %235, %236 : vector<2x32xf32>
    %238 = vector.extract_strided_slice %227 {offsets = [0, 32], sizes = [2, 32], strides = [1, 1]} : vector<2x96xf32> to vector<2x32xf32>
    %239 = vector.extract_strided_slice %228 {offsets = [0, 32], sizes = [2, 32], strides = [1, 1]} : vector<2x96xf32> to vector<2x32xf32>
    %240 = arith.addf %238, %239 : vector<2x32xf32>
    %241 = arith.negf %240 : vector<2x32xf32>
    %242 = math.exp %241 : vector<2x32xf32>
    %cst_53 = arith.constant 1.000000e+00 : f32
    %243 = vector.broadcast %cst_53 : f32 to vector<2x32xf32>
    %244 = arith.addf %243, %242 : vector<2x32xf32>
    %245 = arith.divf %243, %244 : vector<2x32xf32>
    %246 = vector.extract_strided_slice %227 {offsets = [0, 64], sizes = [2, 32], strides = [1, 1]} : vector<2x96xf32> to vector<2x32xf32>
    %247 = vector.extract_strided_slice %228 {offsets = [0, 64], sizes = [2, 32], strides = [1, 1]} : vector<2x96xf32> to vector<2x32xf32>
    %248 = vector.broadcast %26 : vector<1x32xf32> to vector<2x32xf32>
    %249 = arith.addf %247, %248 : vector<2x32xf32>
    %250 = arith.mulf %237, %249 : vector<2x32xf32>
    %251 = arith.addf %246, %250 : vector<2x32xf32>
    %252 = math.tanh %251 : vector<2x32xf32>
    %cst_54 = arith.constant 1.000000e+00 : f32
    %253 = vector.broadcast %cst_54 : f32 to vector<2x32xf32>
    %254 = arith.subf %253, %245 : vector<2x32xf32>
    %255 = arith.mulf %254, %252 : vector<2x32xf32>
    %256 = arith.mulf %245, %229 : vector<2x32xf32>
    %257 = arith.addf %255, %256 : vector<2x32xf32>
    %258 = vector.extract_strided_slice %23 {offsets = [8, 96], sizes = [2, 96], strides = [1, 1]} : vector<16x192xf32> to vector<2x96xf32>
    %259 = vector.extract_strided_slice %226 {offsets = [0, 96], sizes = [2, 96], strides = [1, 1]} : vector<2x192xf32> to vector<2x96xf32>
    %260 = vector.extract_strided_slice %225 {offsets = [0, 32], sizes = [2, 32], strides = [1, 1]} : vector<2x64xf32> to vector<2x32xf32>
    %261 = vector.extract_strided_slice %258 {offsets = [0, 0], sizes = [2, 32], strides = [1, 1]} : vector<2x96xf32> to vector<2x32xf32>
    %262 = vector.extract_strided_slice %259 {offsets = [0, 0], sizes = [2, 32], strides = [1, 1]} : vector<2x96xf32> to vector<2x32xf32>
    %263 = arith.addf %261, %262 : vector<2x32xf32>
    %264 = arith.negf %263 : vector<2x32xf32>
    %265 = math.exp %264 : vector<2x32xf32>
    %cst_55 = arith.constant 1.000000e+00 : f32
    %266 = vector.broadcast %cst_55 : f32 to vector<2x32xf32>
    %267 = arith.addf %266, %265 : vector<2x32xf32>
    %268 = arith.divf %266, %267 : vector<2x32xf32>
    %269 = vector.extract_strided_slice %258 {offsets = [0, 32], sizes = [2, 32], strides = [1, 1]} : vector<2x96xf32> to vector<2x32xf32>
    %270 = vector.extract_strided_slice %259 {offsets = [0, 32], sizes = [2, 32], strides = [1, 1]} : vector<2x96xf32> to vector<2x32xf32>
    %271 = arith.addf %269, %270 : vector<2x32xf32>
    %272 = arith.negf %271 : vector<2x32xf32>
    %273 = math.exp %272 : vector<2x32xf32>
    %cst_56 = arith.constant 1.000000e+00 : f32
    %274 = vector.broadcast %cst_56 : f32 to vector<2x32xf32>
    %275 = arith.addf %274, %273 : vector<2x32xf32>
    %276 = arith.divf %274, %275 : vector<2x32xf32>
    %277 = vector.extract_strided_slice %258 {offsets = [0, 64], sizes = [2, 32], strides = [1, 1]} : vector<2x96xf32> to vector<2x32xf32>
    %278 = vector.extract_strided_slice %259 {offsets = [0, 64], sizes = [2, 32], strides = [1, 1]} : vector<2x96xf32> to vector<2x32xf32>
    %279 = vector.broadcast %27 : vector<1x32xf32> to vector<2x32xf32>
    %280 = arith.addf %278, %279 : vector<2x32xf32>
    %281 = arith.mulf %268, %280 : vector<2x32xf32>
    %282 = arith.addf %277, %281 : vector<2x32xf32>
    %283 = math.tanh %282 : vector<2x32xf32>
    %cst_57 = arith.constant 1.000000e+00 : f32
    %284 = vector.broadcast %cst_57 : f32 to vector<2x32xf32>
    %285 = arith.subf %284, %276 : vector<2x32xf32>
    %286 = arith.mulf %285, %283 : vector<2x32xf32>
    %287 = arith.mulf %276, %260 : vector<2x32xf32>
    %288 = arith.addf %286, %287 : vector<2x32xf32>
    %c6_58 = arith.constant 6 : index
    %c0_59 = arith.constant 0 : index
    %289 = vector.load %arg5[%c6_58, %c0_59] : memref<16x64xf32, #tpu.memory_space<vmem>>, vector<2x32xf32>
    tpu.vector_store %arg5[%c6_58, %c0_59], %257 {strides = array<i32>} : memref<16x64xf32, #tpu.memory_space<vmem>>, vector<2x32xf32>,
    %c8_60 = arith.constant 8 : index
    %c32_61 = arith.constant 32 : index
    %290 = vector.load %arg5[%c8_60, %c32_61] : memref<16x64xf32, #tpu.memory_space<vmem>>, vector<2x32xf32>
    tpu.vector_store %arg5[%c8_60, %c32_61], %288 {strides = array<i32>} : memref<16x64xf32, #tpu.memory_space<vmem>>, vector<2x32xf32>,
    %291 = tpu.concatenate %257, %288 in 1 : vector<2x32xf32>, vector<2x32xf32> -> vector<2x64xf32>
    %cst_62 = arith.constant dense<0.000000e+00> : vector<2x192xf32>
    %292 = tpu.matmul %291, %24, %cst_62 {dimension_numbers = #tpu.dot_dimension_numbers<[1], [0], [0], [1], [0, 0, 1, 1], [], []>} : vector<2x64xf32>, vector<64x192xf32>, vector<2x192xf32> -> vector<2x192xf32>
    %293 = vector.extract_strided_slice %23 {offsets = [8, 0], sizes = [2, 96], strides = [1, 1]} : vector<16x192xf32> to vector<2x96xf32>
    %294 = vector.extract_strided_slice %292 {offsets = [0, 0], sizes = [2, 96], strides = [1, 1]} : vector<2x192xf32> to vector<2x96xf32>
    %295 = vector.extract_strided_slice %291 {offsets = [0, 0], sizes = [2, 32], strides = [1, 1]} : vector<2x64xf32> to vector<2x32xf32>
    %296 = vector.extract_strided_slice %293 {offsets = [0, 0], sizes = [2, 32], strides = [1, 1]} : vector<2x96xf32> to vector<2x32xf32>
    %297 = vector.extract_strided_slice %294 {offsets = [0, 0], sizes = [2, 32], strides = [1, 1]} : vector<2x96xf32> to vector<2x32xf32>
    %298 = arith.addf %296, %297 : vector<2x32xf32>
    %299 = arith.negf %298 : vector<2x32xf32>
    %300 = math.exp %299 : vector<2x32xf32>
    %cst_63 = arith.constant 1.000000e+00 : f32
    %301 = vector.broadcast %cst_63 : f32 to vector<2x32xf32>
    %302 = arith.addf %301, %300 : vector<2x32xf32>
    %303 = arith.divf %301, %302 : vector<2x32xf32>
    %304 = vector.extract_strided_slice %293 {offsets = [0, 32], sizes = [2, 32], strides = [1, 1]} : vector<2x96xf32> to vector<2x32xf32>
    %305 = vector.extract_strided_slice %294 {offsets = [0, 32], sizes = [2, 32], strides = [1, 1]} : vector<2x96xf32> to vector<2x32xf32>
    %306 = arith.addf %304, %305 : vector<2x32xf32>
    %307 = arith.negf %306 : vector<2x32xf32>
    %308 = math.exp %307 : vector<2x32xf32>
    %cst_64 = arith.constant 1.000000e+00 : f32
    %309 = vector.broadcast %cst_64 : f32 to vector<2x32xf32>
    %310 = arith.addf %309, %308 : vector<2x32xf32>
    %311 = arith.divf %309, %310 : vector<2x32xf32>
    %312 = vector.extract_strided_slice %293 {offsets = [0, 64], sizes = [2, 32], strides = [1, 1]} : vector<2x96xf32> to vector<2x32xf32>
    %313 = vector.extract_strided_slice %294 {offsets = [0, 64], sizes = [2, 32], strides = [1, 1]} : vector<2x96xf32> to vector<2x32xf32>
    %314 = vector.broadcast %26 : vector<1x32xf32> to vector<2x32xf32>
    %315 = arith.addf %313, %314 : vector<2x32xf32>
    %316 = arith.mulf %303, %315 : vector<2x32xf32>
    %317 = arith.addf %312, %316 : vector<2x32xf32>
    %318 = math.tanh %317 : vector<2x32xf32>
    %cst_65 = arith.constant 1.000000e+00 : f32
    %319 = vector.broadcast %cst_65 : f32 to vector<2x32xf32>
    %320 = arith.subf %319, %311 : vector<2x32xf32>
    %321 = arith.mulf %320, %318 : vector<2x32xf32>
    %322 = arith.mulf %311, %295 : vector<2x32xf32>
    %323 = arith.addf %321, %322 : vector<2x32xf32>
    %324 = vector.extract_strided_slice %23 {offsets = [6, 96], sizes = [2, 96], strides = [1, 1]} : vector<16x192xf32> to vector<2x96xf32>
    %325 = vector.extract_strided_slice %292 {offsets = [0, 96], sizes = [2, 96], strides = [1, 1]} : vector<2x192xf32> to vector<2x96xf32>
    %326 = vector.extract_strided_slice %291 {offsets = [0, 32], sizes = [2, 32], strides = [1, 1]} : vector<2x64xf32> to vector<2x32xf32>
    %327 = vector.extract_strided_slice %324 {offsets = [0, 0], sizes = [2, 32], strides = [1, 1]} : vector<2x96xf32> to vector<2x32xf32>
    %328 = vector.extract_strided_slice %325 {offsets = [0, 0], sizes = [2, 32], strides = [1, 1]} : vector<2x96xf32> to vector<2x32xf32>
    %329 = arith.addf %327, %328 : vector<2x32xf32>
    %330 = arith.negf %329 : vector<2x32xf32>
    %331 = math.exp %330 : vector<2x32xf32>
    %cst_66 = arith.constant 1.000000e+00 : f32
    %332 = vector.broadcast %cst_66 : f32 to vector<2x32xf32>
    %333 = arith.addf %332, %331 : vector<2x32xf32>
    %334 = arith.divf %332, %333 : vector<2x32xf32>
    %335 = vector.extract_strided_slice %324 {offsets = [0, 32], sizes = [2, 32], strides = [1, 1]} : vector<2x96xf32> to vector<2x32xf32>
    %336 = vector.extract_strided_slice %325 {offsets = [0, 32], sizes = [2, 32], strides = [1, 1]} : vector<2x96xf32> to vector<2x32xf32>
    %337 = arith.addf %335, %336 : vector<2x32xf32>
    %338 = arith.negf %337 : vector<2x32xf32>
    %339 = math.exp %338 : vector<2x32xf32>
    %cst_67 = arith.constant 1.000000e+00 : f32
    %340 = vector.broadcast %cst_67 : f32 to vector<2x32xf32>
    %341 = arith.addf %340, %339 : vector<2x32xf32>
    %342 = arith.divf %340, %341 : vector<2x32xf32>
    %343 = vector.extract_strided_slice %324 {offsets = [0, 64], sizes = [2, 32], strides = [1, 1]} : vector<2x96xf32> to vector<2x32xf32>
    %344 = vector.extract_strided_slice %325 {offsets = [0, 64], sizes = [2, 32], strides = [1, 1]} : vector<2x96xf32> to vector<2x32xf32>
    %345 = vector.broadcast %27 : vector<1x32xf32> to vector<2x32xf32>
    %346 = arith.addf %344, %345 : vector<2x32xf32>
    %347 = arith.mulf %334, %346 : vector<2x32xf32>
    %348 = arith.addf %343, %347 : vector<2x32xf32>
    %349 = math.tanh %348 : vector<2x32xf32>
    %cst_68 = arith.constant 1.000000e+00 : f32
    %350 = vector.broadcast %cst_68 : f32 to vector<2x32xf32>
    %351 = arith.subf %350, %342 : vector<2x32xf32>
    %352 = arith.mulf %351, %349 : vector<2x32xf32>
    %353 = arith.mulf %342, %326 : vector<2x32xf32>
    %354 = arith.addf %352, %353 : vector<2x32xf32>
    %c8_69 = arith.constant 8 : index
    %c0_70 = arith.constant 0 : index
    %355 = vector.load %arg5[%c8_69, %c0_70] : memref<16x64xf32, #tpu.memory_space<vmem>>, vector<2x32xf32>
    tpu.vector_store %arg5[%c8_69, %c0_70], %323 {strides = array<i32>} : memref<16x64xf32, #tpu.memory_space<vmem>>, vector<2x32xf32>,
    %c6_71 = arith.constant 6 : index
    %c32_72 = arith.constant 32 : index
    %356 = vector.load %arg5[%c6_71, %c32_72] : memref<16x64xf32, #tpu.memory_space<vmem>>, vector<2x32xf32>
    tpu.vector_store %arg5[%c6_71, %c32_72], %354 {strides = array<i32>} : memref<16x64xf32, #tpu.memory_space<vmem>>, vector<2x32xf32>,
    %357 = tpu.concatenate %323, %354 in 1 : vector<2x32xf32>, vector<2x32xf32> -> vector<2x64xf32>
    %cst_73 = arith.constant dense<0.000000e+00> : vector<2x192xf32>
    %358 = tpu.matmul %357, %24, %cst_73 {dimension_numbers = #tpu.dot_dimension_numbers<[1], [0], [0], [1], [0, 0, 1, 1], [], []>} : vector<2x64xf32>, vector<64x192xf32>, vector<2x192xf32> -> vector<2x192xf32>
    %359 = vector.extract_strided_slice %23 {offsets = [10, 0], sizes = [2, 96], strides = [1, 1]} : vector<16x192xf32> to vector<2x96xf32>
    %360 = vector.extract_strided_slice %358 {offsets = [0, 0], sizes = [2, 96], strides = [1, 1]} : vector<2x192xf32> to vector<2x96xf32>
    %361 = vector.extract_strided_slice %357 {offsets = [0, 0], sizes = [2, 32], strides = [1, 1]} : vector<2x64xf32> to vector<2x32xf32>
    %362 = vector.extract_strided_slice %359 {offsets = [0, 0], sizes = [2, 32], strides = [1, 1]} : vector<2x96xf32> to vector<2x32xf32>
    %363 = vector.extract_strided_slice %360 {offsets = [0, 0], sizes = [2, 32], strides = [1, 1]} : vector<2x96xf32> to vector<2x32xf32>
    %364 = arith.addf %362, %363 : vector<2x32xf32>
    %365 = arith.negf %364 : vector<2x32xf32>
    %366 = math.exp %365 : vector<2x32xf32>
    %cst_74 = arith.constant 1.000000e+00 : f32
    %367 = vector.broadcast %cst_74 : f32 to vector<2x32xf32>
    %368 = arith.addf %367, %366 : vector<2x32xf32>
    %369 = arith.divf %367, %368 : vector<2x32xf32>
    %370 = vector.extract_strided_slice %359 {offsets = [0, 32], sizes = [2, 32], strides = [1, 1]} : vector<2x96xf32> to vector<2x32xf32>
    %371 = vector.extract_strided_slice %360 {offsets = [0, 32], sizes = [2, 32], strides = [1, 1]} : vector<2x96xf32> to vector<2x32xf32>
    %372 = arith.addf %370, %371 : vector<2x32xf32>
    %373 = arith.negf %372 : vector<2x32xf32>
    %374 = math.exp %373 : vector<2x32xf32>
    %cst_75 = arith.constant 1.000000e+00 : f32
    %375 = vector.broadcast %cst_75 : f32 to vector<2x32xf32>
    %376 = arith.addf %375, %374 : vector<2x32xf32>
    %377 = arith.divf %375, %376 : vector<2x32xf32>
    %378 = vector.extract_strided_slice %359 {offsets = [0, 64], sizes = [2, 32], strides = [1, 1]} : vector<2x96xf32> to vector<2x32xf32>
    %379 = vector.extract_strided_slice %360 {offsets = [0, 64], sizes = [2, 32], strides = [1, 1]} : vector<2x96xf32> to vector<2x32xf32>
    %380 = vector.broadcast %26 : vector<1x32xf32> to vector<2x32xf32>
    %381 = arith.addf %379, %380 : vector<2x32xf32>
    %382 = arith.mulf %369, %381 : vector<2x32xf32>
    %383 = arith.addf %378, %382 : vector<2x32xf32>
    %384 = math.tanh %383 : vector<2x32xf32>
    %cst_76 = arith.constant 1.000000e+00 : f32
    %385 = vector.broadcast %cst_76 : f32 to vector<2x32xf32>
    %386 = arith.subf %385, %377 : vector<2x32xf32>
    %387 = arith.mulf %386, %384 : vector<2x32xf32>
    %388 = arith.mulf %377, %361 : vector<2x32xf32>
    %389 = arith.addf %387, %388 : vector<2x32xf32>
    %390 = vector.extract_strided_slice %23 {offsets = [4, 96], sizes = [2, 96], strides = [1, 1]} : vector<16x192xf32> to vector<2x96xf32>
    %391 = vector.extract_strided_slice %358 {offsets = [0, 96], sizes = [2, 96], strides = [1, 1]} : vector<2x192xf32> to vector<2x96xf32>
    %392 = vector.extract_strided_slice %357 {offsets = [0, 32], sizes = [2, 32], strides = [1, 1]} : vector<2x64xf32> to vector<2x32xf32>
    %393 = vector.extract_strided_slice %390 {offsets = [0, 0], sizes = [2, 32], strides = [1, 1]} : vector<2x96xf32> to vector<2x32xf32>
    %394 = vector.extract_strided_slice %391 {offsets = [0, 0], sizes = [2, 32], strides = [1, 1]} : vector<2x96xf32> to vector<2x32xf32>
    %395 = arith.addf %393, %394 : vector<2x32xf32>
    %396 = arith.negf %395 : vector<2x32xf32>
    %397 = math.exp %396 : vector<2x32xf32>
    %cst_77 = arith.constant 1.000000e+00 : f32
    %398 = vector.broadcast %cst_77 : f32 to vector<2x32xf32>
    %399 = arith.addf %398, %397 : vector<2x32xf32>
    %400 = arith.divf %398, %399 : vector<2x32xf32>
    %401 = vector.extract_strided_slice %390 {offsets = [0, 32], sizes = [2, 32], strides = [1, 1]} : vector<2x96xf32> to vector<2x32xf32>
    %402 = vector.extract_strided_slice %391 {offsets = [0, 32], sizes = [2, 32], strides = [1, 1]} : vector<2x96xf32> to vector<2x32xf32>
    %403 = arith.addf %401, %402 : vector<2x32xf32>
    %404 = arith.negf %403 : vector<2x32xf32>
    %405 = math.exp %404 : vector<2x32xf32>
    %cst_78 = arith.constant 1.000000e+00 : f32
    %406 = vector.broadcast %cst_78 : f32 to vector<2x32xf32>
    %407 = arith.addf %406, %405 : vector<2x32xf32>
    %408 = arith.divf %406, %407 : vector<2x32xf32>
    %409 = vector.extract_strided_slice %390 {offsets = [0, 64], sizes = [2, 32], strides = [1, 1]} : vector<2x96xf32> to vector<2x32xf32>
    %410 = vector.extract_strided_slice %391 {offsets = [0, 64], sizes = [2, 32], strides = [1, 1]} : vector<2x96xf32> to vector<2x32xf32>
    %411 = vector.broadcast %27 : vector<1x32xf32> to vector<2x32xf32>
    %412 = arith.addf %410, %411 : vector<2x32xf32>
    %413 = arith.mulf %400, %412 : vector<2x32xf32>
    %414 = arith.addf %409, %413 : vector<2x32xf32>
    %415 = math.tanh %414 : vector<2x32xf32>
    %cst_79 = arith.constant 1.000000e+00 : f32
    %416 = vector.broadcast %cst_79 : f32 to vector<2x32xf32>
    %417 = arith.subf %416, %408 : vector<2x32xf32>
    %418 = arith.mulf %417, %415 : vector<2x32xf32>
    %419 = arith.mulf %408, %392 : vector<2x32xf32>
    %420 = arith.addf %418, %419 : vector<2x32xf32>
    %c10_80 = arith.constant 10 : index
    %c0_81 = arith.constant 0 : index
    %421 = vector.load %arg5[%c10_80, %c0_81] : memref<16x64xf32, #tpu.memory_space<vmem>>, vector<2x32xf32>
    tpu.vector_store %arg5[%c10_80, %c0_81], %389 {strides = array<i32>} : memref<16x64xf32, #tpu.memory_space<vmem>>, vector<2x32xf32>,
    %c4_82 = arith.constant 4 : index
    %c32_83 = arith.constant 32 : index
    %422 = vector.load %arg5[%c4_82, %c32_83] : memref<16x64xf32, #tpu.memory_space<vmem>>, vector<2x32xf32>
    tpu.vector_store %arg5[%c4_82, %c32_83], %420 {strides = array<i32>} : memref<16x64xf32, #tpu.memory_space<vmem>>, vector<2x32xf32>,
    %423 = tpu.concatenate %389, %420 in 1 : vector<2x32xf32>, vector<2x32xf32> -> vector<2x64xf32>
    %cst_84 = arith.constant dense<0.000000e+00> : vector<2x192xf32>
    %424 = tpu.matmul %423, %24, %cst_84 {dimension_numbers = #tpu.dot_dimension_numbers<[1], [0], [0], [1], [0, 0, 1, 1], [], []>} : vector<2x64xf32>, vector<64x192xf32>, vector<2x192xf32> -> vector<2x192xf32>
    %425 = vector.extract_strided_slice %23 {offsets = [12, 0], sizes = [2, 96], strides = [1, 1]} : vector<16x192xf32> to vector<2x96xf32>
    %426 = vector.extract_strided_slice %424 {offsets = [0, 0], sizes = [2, 96], strides = [1, 1]} : vector<2x192xf32> to vector<2x96xf32>
    %427 = vector.extract_strided_slice %423 {offsets = [0, 0], sizes = [2, 32], strides = [1, 1]} : vector<2x64xf32> to vector<2x32xf32>
    %428 = vector.extract_strided_slice %425 {offsets = [0, 0], sizes = [2, 32], strides = [1, 1]} : vector<2x96xf32> to vector<2x32xf32>
    %429 = vector.extract_strided_slice %426 {offsets = [0, 0], sizes = [2, 32], strides = [1, 1]} : vector<2x96xf32> to vector<2x32xf32>
    %430 = arith.addf %428, %429 : vector<2x32xf32>
    %431 = arith.negf %430 : vector<2x32xf32>
    %432 = math.exp %431 : vector<2x32xf32>
    %cst_85 = arith.constant 1.000000e+00 : f32
    %433 = vector.broadcast %cst_85 : f32 to vector<2x32xf32>
    %434 = arith.addf %433, %432 : vector<2x32xf32>
    %435 = arith.divf %433, %434 : vector<2x32xf32>
    %436 = vector.extract_strided_slice %425 {offsets = [0, 32], sizes = [2, 32], strides = [1, 1]} : vector<2x96xf32> to vector<2x32xf32>
    %437 = vector.extract_strided_slice %426 {offsets = [0, 32], sizes = [2, 32], strides = [1, 1]} : vector<2x96xf32> to vector<2x32xf32>
    %438 = arith.addf %436, %437 : vector<2x32xf32>
    %439 = arith.negf %438 : vector<2x32xf32>
    %440 = math.exp %439 : vector<2x32xf32>
    %cst_86 = arith.constant 1.000000e+00 : f32
    %441 = vector.broadcast %cst_86 : f32 to vector<2x32xf32>
    %442 = arith.addf %441, %440 : vector<2x32xf32>
    %443 = arith.divf %441, %442 : vector<2x32xf32>
    %444 = vector.extract_strided_slice %425 {offsets = [0, 64], sizes = [2, 32], strides = [1, 1]} : vector<2x96xf32> to vector<2x32xf32>
    %445 = vector.extract_strided_slice %426 {offsets = [0, 64], sizes = [2, 32], strides = [1, 1]} : vector<2x96xf32> to vector<2x32xf32>
    %446 = vector.broadcast %26 : vector<1x32xf32> to vector<2x32xf32>
    %447 = arith.addf %445, %446 : vector<2x32xf32>
    %448 = arith.mulf %435, %447 : vector<2x32xf32>
    %449 = arith.addf %444, %448 : vector<2x32xf32>
    %450 = math.tanh %449 : vector<2x32xf32>
    %cst_87 = arith.constant 1.000000e+00 : f32
    %451 = vector.broadcast %cst_87 : f32 to vector<2x32xf32>
    %452 = arith.subf %451, %443 : vector<2x32xf32>
    %453 = arith.mulf %452, %450 : vector<2x32xf32>
    %454 = arith.mulf %443, %427 : vector<2x32xf32>
    %455 = arith.addf %453, %454 : vector<2x32xf32>
    %456 = vector.extract_strided_slice %23 {offsets = [2, 96], sizes = [2, 96], strides = [1, 1]} : vector<16x192xf32> to vector<2x96xf32>
    %457 = vector.extract_strided_slice %424 {offsets = [0, 96], sizes = [2, 96], strides = [1, 1]} : vector<2x192xf32> to vector<2x96xf32>
    %458 = vector.extract_strided_slice %423 {offsets = [0, 32], sizes = [2, 32], strides = [1, 1]} : vector<2x64xf32> to vector<2x32xf32>
    %459 = vector.extract_strided_slice %456 {offsets = [0, 0], sizes = [2, 32], strides = [1, 1]} : vector<2x96xf32> to vector<2x32xf32>
    %460 = vector.extract_strided_slice %457 {offsets = [0, 0], sizes = [2, 32], strides = [1, 1]} : vector<2x96xf32> to vector<2x32xf32>
    %461 = arith.addf %459, %460 : vector<2x32xf32>
    %462 = arith.negf %461 : vector<2x32xf32>
    %463 = math.exp %462 : vector<2x32xf32>
    %cst_88 = arith.constant 1.000000e+00 : f32
    %464 = vector.broadcast %cst_88 : f32 to vector<2x32xf32>
    %465 = arith.addf %464, %463 : vector<2x32xf32>
    %466 = arith.divf %464, %465 : vector<2x32xf32>
    %467 = vector.extract_strided_slice %456 {offsets = [0, 32], sizes = [2, 32], strides = [1, 1]} : vector<2x96xf32> to vector<2x32xf32>
    %468 = vector.extract_strided_slice %457 {offsets = [0, 32], sizes = [2, 32], strides = [1, 1]} : vector<2x96xf32> to vector<2x32xf32>
    %469 = arith.addf %467, %468 : vector<2x32xf32>
    %470 = arith.negf %469 : vector<2x32xf32>
    %471 = math.exp %470 : vector<2x32xf32>
    %cst_89 = arith.constant 1.000000e+00 : f32
    %472 = vector.broadcast %cst_89 : f32 to vector<2x32xf32>
    %473 = arith.addf %472, %471 : vector<2x32xf32>
    %474 = arith.divf %472, %473 : vector<2x32xf32>
    %475 = vector.extract_strided_slice %456 {offsets = [0, 64], sizes = [2, 32], strides = [1, 1]} : vector<2x96xf32> to vector<2x32xf32>
    %476 = vector.extract_strided_slice %457 {offsets = [0, 64], sizes = [2, 32], strides = [1, 1]} : vector<2x96xf32> to vector<2x32xf32>
    %477 = vector.broadcast %27 : vector<1x32xf32> to vector<2x32xf32>
    %478 = arith.addf %476, %477 : vector<2x32xf32>
    %479 = arith.mulf %466, %478 : vector<2x32xf32>
    %480 = arith.addf %475, %479 : vector<2x32xf32>
    %481 = math.tanh %480 : vector<2x32xf32>
    %cst_90 = arith.constant 1.000000e+00 : f32
    %482 = vector.broadcast %cst_90 : f32 to vector<2x32xf32>
    %483 = arith.subf %482, %474 : vector<2x32xf32>
    %484 = arith.mulf %483, %481 : vector<2x32xf32>
    %485 = arith.mulf %474, %458 : vector<2x32xf32>
    %486 = arith.addf %484, %485 : vector<2x32xf32>
    %c12_91 = arith.constant 12 : index
    %c0_92 = arith.constant 0 : index
    %487 = vector.load %arg5[%c12_91, %c0_92] : memref<16x64xf32, #tpu.memory_space<vmem>>, vector<2x32xf32>
    tpu.vector_store %arg5[%c12_91, %c0_92], %455 {strides = array<i32>} : memref<16x64xf32, #tpu.memory_space<vmem>>, vector<2x32xf32>,
    %c2_93 = arith.constant 2 : index
    %c32_94 = arith.constant 32 : index
    %488 = vector.load %arg5[%c2_93, %c32_94] : memref<16x64xf32, #tpu.memory_space<vmem>>, vector<2x32xf32>
    tpu.vector_store %arg5[%c2_93, %c32_94], %486 {strides = array<i32>} : memref<16x64xf32, #tpu.memory_space<vmem>>, vector<2x32xf32>,
    %489 = tpu.concatenate %455, %486 in 1 : vector<2x32xf32>, vector<2x32xf32> -> vector<2x64xf32>
    %cst_95 = arith.constant dense<0.000000e+00> : vector<2x192xf32>
    %490 = tpu.matmul %489, %24, %cst_95 {dimension_numbers = #tpu.dot_dimension_numbers<[1], [0], [0], [1], [0, 0, 1, 1], [], []>} : vector<2x64xf32>, vector<64x192xf32>, vector<2x192xf32> -> vector<2x192xf32>
    %491 = vector.extract_strided_slice %23 {offsets = [14, 0], sizes = [2, 96], strides = [1, 1]} : vector<16x192xf32> to vector<2x96xf32>
    %492 = vector.extract_strided_slice %490 {offsets = [0, 0], sizes = [2, 96], strides = [1, 1]} : vector<2x192xf32> to vector<2x96xf32>
    %493 = vector.extract_strided_slice %489 {offsets = [0, 0], sizes = [2, 32], strides = [1, 1]} : vector<2x64xf32> to vector<2x32xf32>
    %494 = vector.extract_strided_slice %491 {offsets = [0, 0], sizes = [2, 32], strides = [1, 1]} : vector<2x96xf32> to vector<2x32xf32>
    %495 = vector.extract_strided_slice %492 {offsets = [0, 0], sizes = [2, 32], strides = [1, 1]} : vector<2x96xf32> to vector<2x32xf32>
    %496 = arith.addf %494, %495 : vector<2x32xf32>
    %497 = arith.negf %496 : vector<2x32xf32>
    %498 = math.exp %497 : vector<2x32xf32>
    %cst_96 = arith.constant 1.000000e+00 : f32
    %499 = vector.broadcast %cst_96 : f32 to vector<2x32xf32>
    %500 = arith.addf %499, %498 : vector<2x32xf32>
    %501 = arith.divf %499, %500 : vector<2x32xf32>
    %502 = vector.extract_strided_slice %491 {offsets = [0, 32], sizes = [2, 32], strides = [1, 1]} : vector<2x96xf32> to vector<2x32xf32>
    %503 = vector.extract_strided_slice %492 {offsets = [0, 32], sizes = [2, 32], strides = [1, 1]} : vector<2x96xf32> to vector<2x32xf32>
    %504 = arith.addf %502, %503 : vector<2x32xf32>
    %505 = arith.negf %504 : vector<2x32xf32>
    %506 = math.exp %505 : vector<2x32xf32>
    %cst_97 = arith.constant 1.000000e+00 : f32
    %507 = vector.broadcast %cst_97 : f32 to vector<2x32xf32>
    %508 = arith.addf %507, %506 : vector<2x32xf32>
    %509 = arith.divf %507, %508 : vector<2x32xf32>
    %510 = vector.extract_strided_slice %491 {offsets = [0, 64], sizes = [2, 32], strides = [1, 1]} : vector<2x96xf32> to vector<2x32xf32>
    %511 = vector.extract_strided_slice %492 {offsets = [0, 64], sizes = [2, 32], strides = [1, 1]} : vector<2x96xf32> to vector<2x32xf32>
    %512 = vector.broadcast %26 : vector<1x32xf32> to vector<2x32xf32>
    %513 = arith.addf %511, %512 : vector<2x32xf32>
    %514 = arith.mulf %501, %513 : vector<2x32xf32>
    %515 = arith.addf %510, %514 : vector<2x32xf32>
    %516 = math.tanh %515 : vector<2x32xf32>
    %cst_98 = arith.constant 1.000000e+00 : f32
    %517 = vector.broadcast %cst_98 : f32 to vector<2x32xf32>
    %518 = arith.subf %517, %509 : vector<2x32xf32>
    %519 = arith.mulf %518, %516 : vector<2x32xf32>
    %520 = arith.mulf %509, %493 : vector<2x32xf32>
    %521 = arith.addf %519, %520 : vector<2x32xf32>
    %522 = vector.extract_strided_slice %23 {offsets = [0, 96], sizes = [2, 96], strides = [1, 1]} : vector<16x192xf32> to vector<2x96xf32>
    %523 = vector.extract_strided_slice %490 {offsets = [0, 96], sizes = [2, 96], strides = [1, 1]} : vector<2x192xf32> to vector<2x96xf32>
    %524 = vector.extract_strided_slice %489 {offsets = [0, 32], sizes = [2, 32], strides = [1, 1]} : vector<2x64xf32> to vector<2x32xf32>
    %525 = vector.extract_strided_slice %522 {offsets = [0, 0], sizes = [2, 32], strides = [1, 1]} : vector<2x96xf32> to vector<2x32xf32>
    %526 = vector.extract_strided_slice %523 {offsets = [0, 0], sizes = [2, 32], strides = [1, 1]} : vector<2x96xf32> to vector<2x32xf32>
    %527 = arith.addf %525, %526 : vector<2x32xf32>
    %528 = arith.negf %527 : vector<2x32xf32>
    %529 = math.exp %528 : vector<2x32xf32>
    %cst_99 = arith.constant 1.000000e+00 : f32
    %530 = vector.broadcast %cst_99 : f32 to vector<2x32xf32>
    %531 = arith.addf %530, %529 : vector<2x32xf32>
    %532 = arith.divf %530, %531 : vector<2x32xf32>
    %533 = vector.extract_strided_slice %522 {offsets = [0, 32], sizes = [2, 32], strides = [1, 1]} : vector<2x96xf32> to vector<2x32xf32>
    %534 = vector.extract_strided_slice %523 {offsets = [0, 32], sizes = [2, 32], strides = [1, 1]} : vector<2x96xf32> to vector<2x32xf32>
    %535 = arith.addf %533, %534 : vector<2x32xf32>
    %536 = arith.negf %535 : vector<2x32xf32>
    %537 = math.exp %536 : vector<2x32xf32>
    %cst_100 = arith.constant 1.000000e+00 : f32
    %538 = vector.broadcast %cst_100 : f32 to vector<2x32xf32>
    %539 = arith.addf %538, %537 : vector<2x32xf32>
    %540 = arith.divf %538, %539 : vector<2x32xf32>
    %541 = vector.extract_strided_slice %522 {offsets = [0, 64], sizes = [2, 32], strides = [1, 1]} : vector<2x96xf32> to vector<2x32xf32>
    %542 = vector.extract_strided_slice %523 {offsets = [0, 64], sizes = [2, 32], strides = [1, 1]} : vector<2x96xf32> to vector<2x32xf32>
    %543 = vector.broadcast %27 : vector<1x32xf32> to vector<2x32xf32>
    %544 = arith.addf %542, %543 : vector<2x32xf32>
    %545 = arith.mulf %532, %544 : vector<2x32xf32>
    %546 = arith.addf %541, %545 : vector<2x32xf32>
    %547 = math.tanh %546 : vector<2x32xf32>
    %cst_101 = arith.constant 1.000000e+00 : f32
    %548 = vector.broadcast %cst_101 : f32 to vector<2x32xf32>
    %549 = arith.subf %548, %540 : vector<2x32xf32>
    %550 = arith.mulf %549, %547 : vector<2x32xf32>
    %551 = arith.mulf %540, %524 : vector<2x32xf32>
    %552 = arith.addf %550, %551 : vector<2x32xf32>
    %c14_102 = arith.constant 14 : index
    %c0_103 = arith.constant 0 : index
    %553 = vector.load %arg5[%c14_102, %c0_103] : memref<16x64xf32, #tpu.memory_space<vmem>>, vector<2x32xf32>
    tpu.vector_store %arg5[%c14_102, %c0_103], %521 {strides = array<i32>} : memref<16x64xf32, #tpu.memory_space<vmem>>, vector<2x32xf32>,
    %c0_104 = arith.constant 0 : index
    %c32_105 = arith.constant 32 : index
    %554 = vector.load %arg5[%c0_104, %c32_105] : memref<16x64xf32, #tpu.memory_space<vmem>>, vector<2x32xf32>
    tpu.vector_store %arg5[%c0_104, %c32_105], %552 {strides = array<i32>} : memref<16x64xf32, #tpu.memory_space<vmem>>, vector<2x32xf32>,
    %c0_106 = arith.constant 0 : index
    %c0_107 = arith.constant 0 : index
    %555 = vector.load %arg5[%c0_106, %c0_107] : memref<16x64xf32, #tpu.memory_space<vmem>>, vector<16x64xf32>
    %c72 = arith.constant 72 : index
    %c0_108 = arith.constant 0 : index
    %556 = vector.load %arg2[%c72, %c0_108] : memref<848x192xf32, #tpu.memory_space<vmem>>, vector<64x192xf32>
    %cst_109 = arith.constant dense<0.000000e+00> : vector<16x192xf32>
    %557 = tpu.matmul %555, %556, %cst_109 {dimension_numbers = #tpu.dot_dimension_numbers<[1], [0], [0], [1], [0, 0, 1, 1], [], []>} : vector<16x64xf32>, vector<64x192xf32>, vector<16x192xf32> -> vector<16x192xf32>
    %c822 = arith.constant 822 : index
    %c0_110 = arith.constant 0 : index
    %558 = vector.load %arg2[%c822, %c0_110] : memref<848x192xf32, #tpu.memory_space<vmem>>, vector<1x192xf32>
    %559 = vector.broadcast %558 : vector<1x192xf32> to vector<16x192xf32>
    %560 = arith.addf %557, %559 : vector<16x192xf32>
    %c136 = arith.constant 136 : index
    %c0_111 = arith.constant 0 : index
    %561 = vector.load %arg2[%c136, %c0_111] : memref<848x192xf32, #tpu.memory_space<vmem>>, vector<64x192xf32>
    %c823 = arith.constant 823 : index
    %c0_112 = arith.constant 0 : index
    %562 = vector.load %arg2[%c823, %c0_112] : memref<848x192xf32, #tpu.memory_space<vmem>>, vector<1x64xf32>
    %563 = vector.extract_strided_slice %562 {offsets = [0, 0], sizes = [1, 32], strides = [1, 1]} : vector<1x64xf32> to vector<1x32xf32>
    %564 = vector.extract_strided_slice %562 {offsets = [0, 32], sizes = [1, 32], strides = [1, 1]} : vector<1x64xf32> to vector<1x32xf32>
    %cst_113 = arith.constant dense<0.000000e+00> : vector<2x192xf32>
    %565 = tpu.matmul %17, %561, %cst_113 {dimension_numbers = #tpu.dot_dimension_numbers<[1], [0], [0], [1], [0, 0, 1, 1], [], []>} : vector<2x64xf32>, vector<64x192xf32>, vector<2x192xf32> -> vector<2x192xf32>
    %566 = vector.extract_strided_slice %560 {offsets = [0, 0], sizes = [2, 96], strides = [1, 1]} : vector<16x192xf32> to vector<2x96xf32>
    %567 = vector.extract_strided_slice %565 {offsets = [0, 0], sizes = [2, 96], strides = [1, 1]} : vector<2x192xf32> to vector<2x96xf32>
    %568 = vector.extract_strided_slice %17 {offsets = [0, 0], sizes = [2, 32], strides = [1, 1]} : vector<2x64xf32> to vector<2x32xf32>
    %569 = vector.extract_strided_slice %566 {offsets = [0, 0], sizes = [2, 32], strides = [1, 1]} : vector<2x96xf32> to vector<2x32xf32>
    %570 = vector.extract_strided_slice %567 {offsets = [0, 0], sizes = [2, 32], strides = [1, 1]} : vector<2x96xf32> to vector<2x32xf32>
    %571 = arith.addf %569, %570 : vector<2x32xf32>
    %572 = arith.negf %571 : vector<2x32xf32>
    %573 = math.exp %572 : vector<2x32xf32>
    %cst_114 = arith.constant 1.000000e+00 : f32
    %574 = vector.broadcast %cst_114 : f32 to vector<2x32xf32>
    %575 = arith.addf %574, %573 : vector<2x32xf32>
    %576 = arith.divf %574, %575 : vector<2x32xf32>
    %577 = vector.extract_strided_slice %566 {offsets = [0, 32], sizes = [2, 32], strides = [1, 1]} : vector<2x96xf32> to vector<2x32xf32>
    %578 = vector.extract_strided_slice %567 {offsets = [0, 32], sizes = [2, 32], strides = [1, 1]} : vector<2x96xf32> to vector<2x32xf32>
    %579 = arith.addf %577, %578 : vector<2x32xf32>
    %580 = arith.negf %579 : vector<2x32xf32>
    %581 = math.exp %580 : vector<2x32xf32>
    %cst_115 = arith.constant 1.000000e+00 : f32
    %582 = vector.broadcast %cst_115 : f32 to vector<2x32xf32>
    %583 = arith.addf %582, %581 : vector<2x32xf32>
    %584 = arith.divf %582, %583 : vector<2x32xf32>
    %585 = vector.extract_strided_slice %566 {offsets = [0, 64], sizes = [2, 32], strides = [1, 1]} : vector<2x96xf32> to vector<2x32xf32>
    %586 = vector.extract_strided_slice %567 {offsets = [0, 64], sizes = [2, 32], strides = [1, 1]} : vector<2x96xf32> to vector<2x32xf32>
    %587 = vector.broadcast %563 : vector<1x32xf32> to vector<2x32xf32>
    %588 = arith.addf %586, %587 : vector<2x32xf32>
    %589 = arith.mulf %576, %588 : vector<2x32xf32>
    %590 = arith.addf %585, %589 : vector<2x32xf32>
    %591 = math.tanh %590 : vector<2x32xf32>
    %cst_116 = arith.constant 1.000000e+00 : f32
    %592 = vector.broadcast %cst_116 : f32 to vector<2x32xf32>
    %593 = arith.subf %592, %584 : vector<2x32xf32>
    %594 = arith.mulf %593, %591 : vector<2x32xf32>
    %595 = arith.mulf %584, %568 : vector<2x32xf32>
    %596 = arith.addf %594, %595 : vector<2x32xf32>
    %597 = vector.extract_strided_slice %560 {offsets = [14, 96], sizes = [2, 96], strides = [1, 1]} : vector<16x192xf32> to vector<2x96xf32>
    %598 = vector.extract_strided_slice %565 {offsets = [0, 96], sizes = [2, 96], strides = [1, 1]} : vector<2x192xf32> to vector<2x96xf32>
    %599 = vector.extract_strided_slice %17 {offsets = [0, 32], sizes = [2, 32], strides = [1, 1]} : vector<2x64xf32> to vector<2x32xf32>
    %600 = vector.extract_strided_slice %597 {offsets = [0, 0], sizes = [2, 32], strides = [1, 1]} : vector<2x96xf32> to vector<2x32xf32>
    %601 = vector.extract_strided_slice %598 {offsets = [0, 0], sizes = [2, 32], strides = [1, 1]} : vector<2x96xf32> to vector<2x32xf32>
    %602 = arith.addf %600, %601 : vector<2x32xf32>
    %603 = arith.negf %602 : vector<2x32xf32>
    %604 = math.exp %603 : vector<2x32xf32>
    %cst_117 = arith.constant 1.000000e+00 : f32
    %605 = vector.broadcast %cst_117 : f32 to vector<2x32xf32>
    %606 = arith.addf %605, %604 : vector<2x32xf32>
    %607 = arith.divf %605, %606 : vector<2x32xf32>
    %608 = vector.extract_strided_slice %597 {offsets = [0, 32], sizes = [2, 32], strides = [1, 1]} : vector<2x96xf32> to vector<2x32xf32>
    %609 = vector.extract_strided_slice %598 {offsets = [0, 32], sizes = [2, 32], strides = [1, 1]} : vector<2x96xf32> to vector<2x32xf32>
    %610 = arith.addf %608, %609 : vector<2x32xf32>
    %611 = arith.negf %610 : vector<2x32xf32>
    %612 = math.exp %611 : vector<2x32xf32>
    %cst_118 = arith.constant 1.000000e+00 : f32
    %613 = vector.broadcast %cst_118 : f32 to vector<2x32xf32>
    %614 = arith.addf %613, %612 : vector<2x32xf32>
    %615 = arith.divf %613, %614 : vector<2x32xf32>
    %616 = vector.extract_strided_slice %597 {offsets = [0, 64], sizes = [2, 32], strides = [1, 1]} : vector<2x96xf32> to vector<2x32xf32>
    %617 = vector.extract_strided_slice %598 {offsets = [0, 64], sizes = [2, 32], strides = [1, 1]} : vector<2x96xf32> to vector<2x32xf32>
    %618 = vector.broadcast %564 : vector<1x32xf32> to vector<2x32xf32>
    %619 = arith.addf %617, %618 : vector<2x32xf32>
    %620 = arith.mulf %607, %619 : vector<2x32xf32>
    %621 = arith.addf %616, %620 : vector<2x32xf32>
    %622 = math.tanh %621 : vector<2x32xf32>
    %cst_119 = arith.constant 1.000000e+00 : f32
    %623 = vector.broadcast %cst_119 : f32 to vector<2x32xf32>
    %624 = arith.subf %623, %615 : vector<2x32xf32>
    %625 = arith.mulf %624, %622 : vector<2x32xf32>
    %626 = arith.mulf %615, %599 : vector<2x32xf32>
    %627 = arith.addf %625, %626 : vector<2x32xf32>
    %c0_120 = arith.constant 0 : index
    %c0_121 = arith.constant 0 : index
    %628 = vector.load %arg6[%c0_120, %c0_121] : memref<16x64xf32, #tpu.memory_space<vmem>>, vector<2x32xf32>
    tpu.vector_store %arg6[%c0_120, %c0_121], %596 {strides = array<i32>} : memref<16x64xf32, #tpu.memory_space<vmem>>, vector<2x32xf32>,
    %c14_122 = arith.constant 14 : index
    %c32_123 = arith.constant 32 : index
    %629 = vector.load %arg6[%c14_122, %c32_123] : memref<16x64xf32, #tpu.memory_space<vmem>>, vector<2x32xf32>
    tpu.vector_store %arg6[%c14_122, %c32_123], %627 {strides = array<i32>} : memref<16x64xf32, #tpu.memory_space<vmem>>, vector<2x32xf32>,
    %630 = tpu.concatenate %596, %627 in 1 : vector<2x32xf32>, vector<2x32xf32> -> vector<2x64xf32>
    %cst_124 = arith.constant dense<0.000000e+00> : vector<2x192xf32>
    %631 = tpu.matmul %630, %561, %cst_124 {dimension_numbers = #tpu.dot_dimension_numbers<[1], [0], [0], [1], [0, 0, 1, 1], [], []>} : vector<2x64xf32>, vector<64x192xf32>, vector<2x192xf32> -> vector<2x192xf32>
    %632 = vector.extract_strided_slice %560 {offsets = [2, 0], sizes = [2, 96], strides = [1, 1]} : vector<16x192xf32> to vector<2x96xf32>
    %633 = vector.extract_strided_slice %631 {offsets = [0, 0], sizes = [2, 96], strides = [1, 1]} : vector<2x192xf32> to vector<2x96xf32>
    %634 = vector.extract_strided_slice %630 {offsets = [0, 0], sizes = [2, 32], strides = [1, 1]} : vector<2x64xf32> to vector<2x32xf32>
    %635 = vector.extract_strided_slice %632 {offsets = [0, 0], sizes = [2, 32], strides = [1, 1]} : vector<2x96xf32> to vector<2x32xf32>
    %636 = vector.extract_strided_slice %633 {offsets = [0, 0], sizes = [2, 32], strides = [1, 1]} : vector<2x96xf32> to vector<2x32xf32>
    %637 = arith.addf %635, %636 : vector<2x32xf32>
    %638 = arith.negf %637 : vector<2x32xf32>
    %639 = math.exp %638 : vector<2x32xf32>
    %cst_125 = arith.constant 1.000000e+00 : f32
    %640 = vector.broadcast %cst_125 : f32 to vector<2x32xf32>
    %641 = arith.addf %640, %639 : vector<2x32xf32>
    %642 = arith.divf %640, %641 : vector<2x32xf32>
    %643 = vector.extract_strided_slice %632 {offsets = [0, 32], sizes = [2, 32], strides = [1, 1]} : vector<2x96xf32> to vector<2x32xf32>
    %644 = vector.extract_strided_slice %633 {offsets = [0, 32], sizes = [2, 32], strides = [1, 1]} : vector<2x96xf32> to vector<2x32xf32>
    %645 = arith.addf %643, %644 : vector<2x32xf32>
    %646 = arith.negf %645 : vector<2x32xf32>
    %647 = math.exp %646 : vector<2x32xf32>
    %cst_126 = arith.constant 1.000000e+00 : f32
    %648 = vector.broadcast %cst_126 : f32 to vector<2x32xf32>
    %649 = arith.addf %648, %647 : vector<2x32xf32>
    %650 = arith.divf %648, %649 : vector<2x32xf32>
    %651 = vector.extract_strided_slice %632 {offsets = [0, 64], sizes = [2, 32], strides = [1, 1]} : vector<2x96xf32> to vector<2x32xf32>
    %652 = vector.extract_strided_slice %633 {offsets = [0, 64], sizes = [2, 32], strides = [1, 1]} : vector<2x96xf32> to vector<2x32xf32>
    %653 = vector.broadcast %563 : vector<1x32xf32> to vector<2x32xf32>
    %654 = arith.addf %652, %653 : vector<2x32xf32>
    %655 = arith.mulf %642, %654 : vector<2x32xf32>
    %656 = arith.addf %651, %655 : vector<2x32xf32>
    %657 = math.tanh %656 : vector<2x32xf32>
    %cst_127 = arith.constant 1.000000e+00 : f32
    %658 = vector.broadcast %cst_127 : f32 to vector<2x32xf32>
    %659 = arith.subf %658, %650 : vector<2x32xf32>
    %660 = arith.mulf %659, %657 : vector<2x32xf32>
    %661 = arith.mulf %650, %634 : vector<2x32xf32>
    %662 = arith.addf %660, %661 : vector<2x32xf32>
    %663 = vector.extract_strided_slice %560 {offsets = [12, 96], sizes = [2, 96], strides = [1, 1]} : vector<16x192xf32> to vector<2x96xf32>
    %664 = vector.extract_strided_slice %631 {offsets = [0, 96], sizes = [2, 96], strides = [1, 1]} : vector<2x192xf32> to vector<2x96xf32>
    %665 = vector.extract_strided_slice %630 {offsets = [0, 32], sizes = [2, 32], strides = [1, 1]} : vector<2x64xf32> to vector<2x32xf32>
    %666 = vector.extract_strided_slice %663 {offsets = [0, 0], sizes = [2, 32], strides = [1, 1]} : vector<2x96xf32> to vector<2x32xf32>
    %667 = vector.extract_strided_slice %664 {offsets = [0, 0], sizes = [2, 32], strides = [1, 1]} : vector<2x96xf32> to vector<2x32xf32>
    %668 = arith.addf %666, %667 : vector<2x32xf32>
    %669 = arith.negf %668 : vector<2x32xf32>
    %670 = math.exp %669 : vector<2x32xf32>
    %cst_128 = arith.constant 1.000000e+00 : f32
    %671 = vector.broadcast %cst_128 : f32 to vector<2x32xf32>
    %672 = arith.addf %671, %670 : vector<2x32xf32>
    %673 = arith.divf %671, %672 : vector<2x32xf32>
    %674 = vector.extract_strided_slice %663 {offsets = [0, 32], sizes = [2, 32], strides = [1, 1]} : vector<2x96xf32> to vector<2x32xf32>
    %675 = vector.extract_strided_slice %664 {offsets = [0, 32], sizes = [2, 32], strides = [1, 1]} : vector<2x96xf32> to vector<2x32xf32>
    %676 = arith.addf %674, %675 : vector<2x32xf32>
    %677 = arith.negf %676 : vector<2x32xf32>
    %678 = math.exp %677 : vector<2x32xf32>
    %cst_129 = arith.constant 1.000000e+00 : f32
    %679 = vector.broadcast %cst_129 : f32 to vector<2x32xf32>
    %680 = arith.addf %679, %678 : vector<2x32xf32>
    %681 = arith.divf %679, %680 : vector<2x32xf32>
    %682 = vector.extract_strided_slice %663 {offsets = [0, 64], sizes = [2, 32], strides = [1, 1]} : vector<2x96xf32> to vector<2x32xf32>
    %683 = vector.extract_strided_slice %664 {offsets = [0, 64], sizes = [2, 32], strides = [1, 1]} : vector<2x96xf32> to vector<2x32xf32>
    %684 = vector.broadcast %564 : vector<1x32xf32> to vector<2x32xf32>
    %685 = arith.addf %683, %684 : vector<2x32xf32>
    %686 = arith.mulf %673, %685 : vector<2x32xf32>
    %687 = arith.addf %682, %686 : vector<2x32xf32>
    %688 = math.tanh %687 : vector<2x32xf32>
    %cst_130 = arith.constant 1.000000e+00 : f32
    %689 = vector.broadcast %cst_130 : f32 to vector<2x32xf32>
    %690 = arith.subf %689, %681 : vector<2x32xf32>
    %691 = arith.mulf %690, %688 : vector<2x32xf32>
    %692 = arith.mulf %681, %665 : vector<2x32xf32>
    %693 = arith.addf %691, %692 : vector<2x32xf32>
    %c2_131 = arith.constant 2 : index
    %c0_132 = arith.constant 0 : index
    %694 = vector.load %arg6[%c2_131, %c0_132] : memref<16x64xf32, #tpu.memory_space<vmem>>, vector<2x32xf32>
    tpu.vector_store %arg6[%c2_131, %c0_132], %662 {strides = array<i32>} : memref<16x64xf32, #tpu.memory_space<vmem>>, vector<2x32xf32>,
    %c12_133 = arith.constant 12 : index
    %c32_134 = arith.constant 32 : index
    %695 = vector.load %arg6[%c12_133, %c32_134] : memref<16x64xf32, #tpu.memory_space<vmem>>, vector<2x32xf32>
    tpu.vector_store %arg6[%c12_133, %c32_134], %693 {strides = array<i32>} : memref<16x64xf32, #tpu.memory_space<vmem>>, vector<2x32xf32>,
    %696 = tpu.concatenate %662, %693 in 1 : vector<2x32xf32>, vector<2x32xf32> -> vector<2x64xf32>
    %cst_135 = arith.constant dense<0.000000e+00> : vector<2x192xf32>
    %697 = tpu.matmul %696, %561, %cst_135 {dimension_numbers = #tpu.dot_dimension_numbers<[1], [0], [0], [1], [0, 0, 1, 1], [], []>} : vector<2x64xf32>, vector<64x192xf32>, vector<2x192xf32> -> vector<2x192xf32>
    %698 = vector.extract_strided_slice %560 {offsets = [4, 0], sizes = [2, 96], strides = [1, 1]} : vector<16x192xf32> to vector<2x96xf32>
    %699 = vector.extract_strided_slice %697 {offsets = [0, 0], sizes = [2, 96], strides = [1, 1]} : vector<2x192xf32> to vector<2x96xf32>
    %700 = vector.extract_strided_slice %696 {offsets = [0, 0], sizes = [2, 32], strides = [1, 1]} : vector<2x64xf32> to vector<2x32xf32>
    %701 = vector.extract_strided_slice %698 {offsets = [0, 0], sizes = [2, 32], strides = [1, 1]} : vector<2x96xf32> to vector<2x32xf32>
    %702 = vector.extract_strided_slice %699 {offsets = [0, 0], sizes = [2, 32], strides = [1, 1]} : vector<2x96xf32> to vector<2x32xf32>
    %703 = arith.addf %701, %702 : vector<2x32xf32>
    %704 = arith.negf %703 : vector<2x32xf32>
    %705 = math.exp %704 : vector<2x32xf32>
    %cst_136 = arith.constant 1.000000e+00 : f32
    %706 = vector.broadcast %cst_136 : f32 to vector<2x32xf32>
    %707 = arith.addf %706, %705 : vector<2x32xf32>
    %708 = arith.divf %706, %707 : vector<2x32xf32>
    %709 = vector.extract_strided_slice %698 {offsets = [0, 32], sizes = [2, 32], strides = [1, 1]} : vector<2x96xf32> to vector<2x32xf32>
    %710 = vector.extract_strided_slice %699 {offsets = [0, 32], sizes = [2, 32], strides = [1, 1]} : vector<2x96xf32> to vector<2x32xf32>
    %711 = arith.addf %709, %710 : vector<2x32xf32>
    %712 = arith.negf %711 : vector<2x32xf32>
    %713 = math.exp %712 : vector<2x32xf32>
    %cst_137 = arith.constant 1.000000e+00 : f32
    %714 = vector.broadcast %cst_137 : f32 to vector<2x32xf32>
    %715 = arith.addf %714, %713 : vector<2x32xf32>
    %716 = arith.divf %714, %715 : vector<2x32xf32>
    %717 = vector.extract_strided_slice %698 {offsets = [0, 64], sizes = [2, 32], strides = [1, 1]} : vector<2x96xf32> to vector<2x32xf32>
    %718 = vector.extract_strided_slice %699 {offsets = [0, 64], sizes = [2, 32], strides = [1, 1]} : vector<2x96xf32> to vector<2x32xf32>
    %719 = vector.broadcast %563 : vector<1x32xf32> to vector<2x32xf32>
    %720 = arith.addf %718, %719 : vector<2x32xf32>
    %721 = arith.mulf %708, %720 : vector<2x32xf32>
    %722 = arith.addf %717, %721 : vector<2x32xf32>
    %723 = math.tanh %722 : vector<2x32xf32>
    %cst_138 = arith.constant 1.000000e+00 : f32
    %724 = vector.broadcast %cst_138 : f32 to vector<2x32xf32>
    %725 = arith.subf %724, %716 : vector<2x32xf32>
    %726 = arith.mulf %725, %723 : vector<2x32xf32>
    %727 = arith.mulf %716, %700 : vector<2x32xf32>
    %728 = arith.addf %726, %727 : vector<2x32xf32>
    %729 = vector.extract_strided_slice %560 {offsets = [10, 96], sizes = [2, 96], strides = [1, 1]} : vector<16x192xf32> to vector<2x96xf32>
    %730 = vector.extract_strided_slice %697 {offsets = [0, 96], sizes = [2, 96], strides = [1, 1]} : vector<2x192xf32> to vector<2x96xf32>
    %731 = vector.extract_strided_slice %696 {offsets = [0, 32], sizes = [2, 32], strides = [1, 1]} : vector<2x64xf32> to vector<2x32xf32>
    %732 = vector.extract_strided_slice %729 {offsets = [0, 0], sizes = [2, 32], strides = [1, 1]} : vector<2x96xf32> to vector<2x32xf32>
    %733 = vector.extract_strided_slice %730 {offsets = [0, 0], sizes = [2, 32], strides = [1, 1]} : vector<2x96xf32> to vector<2x32xf32>
    %734 = arith.addf %732, %733 : vector<2x32xf32>
    %735 = arith.negf %734 : vector<2x32xf32>
    %736 = math.exp %735 : vector<2x32xf32>
    %cst_139 = arith.constant 1.000000e+00 : f32
    %737 = vector.broadcast %cst_139 : f32 to vector<2x32xf32>
    %738 = arith.addf %737, %736 : vector<2x32xf32>
    %739 = arith.divf %737, %738 : vector<2x32xf32>
    %740 = vector.extract_strided_slice %729 {offsets = [0, 32], sizes = [2, 32], strides = [1, 1]} : vector<2x96xf32> to vector<2x32xf32>
    %741 = vector.extract_strided_slice %730 {offsets = [0, 32], sizes = [2, 32], strides = [1, 1]} : vector<2x96xf32> to vector<2x32xf32>
    %742 = arith.addf %740, %741 : vector<2x32xf32>
    %743 = arith.negf %742 : vector<2x32xf32>
    %744 = math.exp %743 : vector<2x32xf32>
    %cst_140 = arith.constant 1.000000e+00 : f32
    %745 = vector.broadcast %cst_140 : f32 to vector<2x32xf32>
    %746 = arith.addf %745, %744 : vector<2x32xf32>
    %747 = arith.divf %745, %746 : vector<2x32xf32>
    %748 = vector.extract_strided_slice %729 {offsets = [0, 64], sizes = [2, 32], strides = [1, 1]} : vector<2x96xf32> to vector<2x32xf32>
    %749 = vector.extract_strided_slice %730 {offsets = [0, 64], sizes = [2, 32], strides = [1, 1]} : vector<2x96xf32> to vector<2x32xf32>
    %750 = vector.broadcast %564 : vector<1x32xf32> to vector<2x32xf32>
    %751 = arith.addf %749, %750 : vector<2x32xf32>
    %752 = arith.mulf %739, %751 : vector<2x32xf32>
    %753 = arith.addf %748, %752 : vector<2x32xf32>
    %754 = math.tanh %753 : vector<2x32xf32>
    %cst_141 = arith.constant 1.000000e+00 : f32
    %755 = vector.broadcast %cst_141 : f32 to vector<2x32xf32>
    %756 = arith.subf %755, %747 : vector<2x32xf32>
    %757 = arith.mulf %756, %754 : vector<2x32xf32>
    %758 = arith.mulf %747, %731 : vector<2x32xf32>
    %759 = arith.addf %757, %758 : vector<2x32xf32>
    %c4_142 = arith.constant 4 : index
    %c0_143 = arith.constant 0 : index
    %760 = vector.load %arg6[%c4_142, %c0_143] : memref<16x64xf32, #tpu.memory_space<vmem>>, vector<2x32xf32>
    tpu.vector_store %arg6[%c4_142, %c0_143], %728 {strides = array<i32>} : memref<16x64xf32, #tpu.memory_space<vmem>>, vector<2x32xf32>,
    %c10_144 = arith.constant 10 : index
    %c32_145 = arith.constant 32 : index
    %761 = vector.load %arg6[%c10_144, %c32_145] : memref<16x64xf32, #tpu.memory_space<vmem>>, vector<2x32xf32>
    tpu.vector_store %arg6[%c10_144, %c32_145], %759 {strides = array<i32>} : memref<16x64xf32, #tpu.memory_space<vmem>>, vector<2x32xf32>,
    %762 = tpu.concatenate %728, %759 in 1 : vector<2x32xf32>, vector<2x32xf32> -> vector<2x64xf32>
    %cst_146 = arith.constant dense<0.000000e+00> : vector<2x192xf32>
    %763 = tpu.matmul %762, %561, %cst_146 {dimension_numbers = #tpu.dot_dimension_numbers<[1], [0], [0], [1], [0, 0, 1, 1], [], []>} : vector<2x64xf32>, vector<64x192xf32>, vector<2x192xf32> -> vector<2x192xf32>
    %764 = vector.extract_strided_slice %560 {offsets = [6, 0], sizes = [2, 96], strides = [1, 1]} : vector<16x192xf32> to vector<2x96xf32>
    %765 = vector.extract_strided_slice %763 {offsets = [0, 0], sizes = [2, 96], strides = [1, 1]} : vector<2x192xf32> to vector<2x96xf32>
    %766 = vector.extract_strided_slice %762 {offsets = [0, 0], sizes = [2, 32], strides = [1, 1]} : vector<2x64xf32> to vector<2x32xf32>
    %767 = vector.extract_strided_slice %764 {offsets = [0, 0], sizes = [2, 32], strides = [1, 1]} : vector<2x96xf32> to vector<2x32xf32>
    %768 = vector.extract_strided_slice %765 {offsets = [0, 0], sizes = [2, 32], strides = [1, 1]} : vector<2x96xf32> to vector<2x32xf32>
    %769 = arith.addf %767, %768 : vector<2x32xf32>
    %770 = arith.negf %769 : vector<2x32xf32>
    %771 = math.exp %770 : vector<2x32xf32>
    %cst_147 = arith.constant 1.000000e+00 : f32
    %772 = vector.broadcast %cst_147 : f32 to vector<2x32xf32>
    %773 = arith.addf %772, %771 : vector<2x32xf32>
    %774 = arith.divf %772, %773 : vector<2x32xf32>
    %775 = vector.extract_strided_slice %764 {offsets = [0, 32], sizes = [2, 32], strides = [1, 1]} : vector<2x96xf32> to vector<2x32xf32>
    %776 = vector.extract_strided_slice %765 {offsets = [0, 32], sizes = [2, 32], strides = [1, 1]} : vector<2x96xf32> to vector<2x32xf32>
    %777 = arith.addf %775, %776 : vector<2x32xf32>
    %778 = arith.negf %777 : vector<2x32xf32>
    %779 = math.exp %778 : vector<2x32xf32>
    %cst_148 = arith.constant 1.000000e+00 : f32
    %780 = vector.broadcast %cst_148 : f32 to vector<2x32xf32>
    %781 = arith.addf %780, %779 : vector<2x32xf32>
    %782 = arith.divf %780, %781 : vector<2x32xf32>
    %783 = vector.extract_strided_slice %764 {offsets = [0, 64], sizes = [2, 32], strides = [1, 1]} : vector<2x96xf32> to vector<2x32xf32>
    %784 = vector.extract_strided_slice %765 {offsets = [0, 64], sizes = [2, 32], strides = [1, 1]} : vector<2x96xf32> to vector<2x32xf32>
    %785 = vector.broadcast %563 : vector<1x32xf32> to vector<2x32xf32>
    %786 = arith.addf %784, %785 : vector<2x32xf32>
    %787 = arith.mulf %774, %786 : vector<2x32xf32>
    %788 = arith.addf %783, %787 : vector<2x32xf32>
    %789 = math.tanh %788 : vector<2x32xf32>
    %cst_149 = arith.constant 1.000000e+00 : f32
    %790 = vector.broadcast %cst_149 : f32 to vector<2x32xf32>
    %791 = arith.subf %790, %782 : vector<2x32xf32>
    %792 = arith.mulf %791, %789 : vector<2x32xf32>
    %793 = arith.mulf %782, %766 : vector<2x32xf32>
    %794 = arith.addf %792, %793 : vector<2x32xf32>
    %795 = vector.extract_strided_slice %560 {offsets = [8, 96], sizes = [2, 96], strides = [1, 1]} : vector<16x192xf32> to vector<2x96xf32>
    %796 = vector.extract_strided_slice %763 {offsets = [0, 96], sizes = [2, 96], strides = [1, 1]} : vector<2x192xf32> to vector<2x96xf32>
    %797 = vector.extract_strided_slice %762 {offsets = [0, 32], sizes = [2, 32], strides = [1, 1]} : vector<2x64xf32> to vector<2x32xf32>
    %798 = vector.extract_strided_slice %795 {offsets = [0, 0], sizes = [2, 32], strides = [1, 1]} : vector<2x96xf32> to vector<2x32xf32>
    %799 = vector.extract_strided_slice %796 {offsets = [0, 0], sizes = [2, 32], strides = [1, 1]} : vector<2x96xf32> to vector<2x32xf32>
    %800 = arith.addf %798, %799 : vector<2x32xf32>
    %801 = arith.negf %800 : vector<2x32xf32>
    %802 = math.exp %801 : vector<2x32xf32>
    %cst_150 = arith.constant 1.000000e+00 : f32
    %803 = vector.broadcast %cst_150 : f32 to vector<2x32xf32>
    %804 = arith.addf %803, %802 : vector<2x32xf32>
    %805 = arith.divf %803, %804 : vector<2x32xf32>
    %806 = vector.extract_strided_slice %795 {offsets = [0, 32], sizes = [2, 32], strides = [1, 1]} : vector<2x96xf32> to vector<2x32xf32>
    %807 = vector.extract_strided_slice %796 {offsets = [0, 32], sizes = [2, 32], strides = [1, 1]} : vector<2x96xf32> to vector<2x32xf32>
    %808 = arith.addf %806, %807 : vector<2x32xf32>
    %809 = arith.negf %808 : vector<2x32xf32>
    %810 = math.exp %809 : vector<2x32xf32>
    %cst_151 = arith.constant 1.000000e+00 : f32
    %811 = vector.broadcast %cst_151 : f32 to vector<2x32xf32>
    %812 = arith.addf %811, %810 : vector<2x32xf32>
    %813 = arith.divf %811, %812 : vector<2x32xf32>
    %814 = vector.extract_strided_slice %795 {offsets = [0, 64], sizes = [2, 32], strides = [1, 1]} : vector<2x96xf32> to vector<2x32xf32>
    %815 = vector.extract_strided_slice %796 {offsets = [0, 64], sizes = [2, 32], strides = [1, 1]} : vector<2x96xf32> to vector<2x32xf32>
    %816 = vector.broadcast %564 : vector<1x32xf32> to vector<2x32xf32>
    %817 = arith.addf %815, %816 : vector<2x32xf32>
    %818 = arith.mulf %805, %817 : vector<2x32xf32>
    %819 = arith.addf %814, %818 : vector<2x32xf32>
    %820 = math.tanh %819 : vector<2x32xf32>
    %cst_152 = arith.constant 1.000000e+00 : f32
    %821 = vector.broadcast %cst_152 : f32 to vector<2x32xf32>
    %822 = arith.subf %821, %813 : vector<2x32xf32>
    %823 = arith.mulf %822, %820 : vector<2x32xf32>
    %824 = arith.mulf %813, %797 : vector<2x32xf32>
    %825 = arith.addf %823, %824 : vector<2x32xf32>
    %c6_153 = arith.constant 6 : index
    %c0_154 = arith.constant 0 : index
    %826 = vector.load %arg6[%c6_153, %c0_154] : memref<16x64xf32, #tpu.memory_space<vmem>>, vector<2x32xf32>
    tpu.vector_store %arg6[%c6_153, %c0_154], %794 {strides = array<i32>} : memref<16x64xf32, #tpu.memory_space<vmem>>, vector<2x32xf32>,
    %c8_155 = arith.constant 8 : index
    %c32_156 = arith.constant 32 : index
    %827 = vector.load %arg6[%c8_155, %c32_156] : memref<16x64xf32, #tpu.memory_space<vmem>>, vector<2x32xf32>
    tpu.vector_store %arg6[%c8_155, %c32_156], %825 {strides = array<i32>} : memref<16x64xf32, #tpu.memory_space<vmem>>, vector<2x32xf32>,
    %828 = tpu.concatenate %794, %825 in 1 : vector<2x32xf32>, vector<2x32xf32> -> vector<2x64xf32>
    %cst_157 = arith.constant dense<0.000000e+00> : vector<2x192xf32>
    %829 = tpu.matmul %828, %561, %cst_157 {dimension_numbers = #tpu.dot_dimension_numbers<[1], [0], [0], [1], [0, 0, 1, 1], [], []>} : vector<2x64xf32>, vector<64x192xf32>, vector<2x192xf32> -> vector<2x192xf32>
    %830 = vector.extract_strided_slice %560 {offsets = [8, 0], sizes = [2, 96], strides = [1, 1]} : vector<16x192xf32> to vector<2x96xf32>
    %831 = vector.extract_strided_slice %829 {offsets = [0, 0], sizes = [2, 96], strides = [1, 1]} : vector<2x192xf32> to vector<2x96xf32>
    %832 = vector.extract_strided_slice %828 {offsets = [0, 0], sizes = [2, 32], strides = [1, 1]} : vector<2x64xf32> to vector<2x32xf32>
    %833 = vector.extract_strided_slice %830 {offsets = [0, 0], sizes = [2, 32], strides = [1, 1]} : vector<2x96xf32> to vector<2x32xf32>
    %834 = vector.extract_strided_slice %831 {offsets = [0, 0], sizes = [2, 32], strides = [1, 1]} : vector<2x96xf32> to vector<2x32xf32>
    %835 = arith.addf %833, %834 : vector<2x32xf32>
    %836 = arith.negf %835 : vector<2x32xf32>
    %837 = math.exp %836 : vector<2x32xf32>
    %cst_158 = arith.constant 1.000000e+00 : f32
    %838 = vector.broadcast %cst_158 : f32 to vector<2x32xf32>
    %839 = arith.addf %838, %837 : vector<2x32xf32>
    %840 = arith.divf %838, %839 : vector<2x32xf32>
    %841 = vector.extract_strided_slice %830 {offsets = [0, 32], sizes = [2, 32], strides = [1, 1]} : vector<2x96xf32> to vector<2x32xf32>
    %842 = vector.extract_strided_slice %831 {offsets = [0, 32], sizes = [2, 32], strides = [1, 1]} : vector<2x96xf32> to vector<2x32xf32>
    %843 = arith.addf %841, %842 : vector<2x32xf32>
    %844 = arith.negf %843 : vector<2x32xf32>
    %845 = math.exp %844 : vector<2x32xf32>
    %cst_159 = arith.constant 1.000000e+00 : f32
    %846 = vector.broadcast %cst_159 : f32 to vector<2x32xf32>
    %847 = arith.addf %846, %845 : vector<2x32xf32>
    %848 = arith.divf %846, %847 : vector<2x32xf32>
    %849 = vector.extract_strided_slice %830 {offsets = [0, 64], sizes = [2, 32], strides = [1, 1]} : vector<2x96xf32> to vector<2x32xf32>
    %850 = vector.extract_strided_slice %831 {offsets = [0, 64], sizes = [2, 32], strides = [1, 1]} : vector<2x96xf32> to vector<2x32xf32>
    %851 = vector.broadcast %563 : vector<1x32xf32> to vector<2x32xf32>
    %852 = arith.addf %850, %851 : vector<2x32xf32>
    %853 = arith.mulf %840, %852 : vector<2x32xf32>
    %854 = arith.addf %849, %853 : vector<2x32xf32>
    %855 = math.tanh %854 : vector<2x32xf32>
    %cst_160 = arith.constant 1.000000e+00 : f32
    %856 = vector.broadcast %cst_160 : f32 to vector<2x32xf32>
    %857 = arith.subf %856, %848 : vector<2x32xf32>
    %858 = arith.mulf %857, %855 : vector<2x32xf32>
    %859 = arith.mulf %848, %832 : vector<2x32xf32>
    %860 = arith.addf %858, %859 : vector<2x32xf32>
    %861 = vector.extract_strided_slice %560 {offsets = [6, 96], sizes = [2, 96], strides = [1, 1]} : vector<16x192xf32> to vector<2x96xf32>
    %862 = vector.extract_strided_slice %829 {offsets = [0, 96], sizes = [2, 96], strides = [1, 1]} : vector<2x192xf32> to vector<2x96xf32>
    %863 = vector.extract_strided_slice %828 {offsets = [0, 32], sizes = [2, 32], strides = [1, 1]} : vector<2x64xf32> to vector<2x32xf32>
    %864 = vector.extract_strided_slice %861 {offsets = [0, 0], sizes = [2, 32], strides = [1, 1]} : vector<2x96xf32> to vector<2x32xf32>
    %865 = vector.extract_strided_slice %862 {offsets = [0, 0], sizes = [2, 32], strides = [1, 1]} : vector<2x96xf32> to vector<2x32xf32>
    %866 = arith.addf %864, %865 : vector<2x32xf32>
    %867 = arith.negf %866 : vector<2x32xf32>
    %868 = math.exp %867 : vector<2x32xf32>
    %cst_161 = arith.constant 1.000000e+00 : f32
    %869 = vector.broadcast %cst_161 : f32 to vector<2x32xf32>
    %870 = arith.addf %869, %868 : vector<2x32xf32>
    %871 = arith.divf %869, %870 : vector<2x32xf32>
    %872 = vector.extract_strided_slice %861 {offsets = [0, 32], sizes = [2, 32], strides = [1, 1]} : vector<2x96xf32> to vector<2x32xf32>
    %873 = vector.extract_strided_slice %862 {offsets = [0, 32], sizes = [2, 32], strides = [1, 1]} : vector<2x96xf32> to vector<2x32xf32>
    %874 = arith.addf %872, %873 : vector<2x32xf32>
    %875 = arith.negf %874 : vector<2x32xf32>
    %876 = math.exp %875 : vector<2x32xf32>
    %cst_162 = arith.constant 1.000000e+00 : f32
    %877 = vector.broadcast %cst_162 : f32 to vector<2x32xf32>
    %878 = arith.addf %877, %876 : vector<2x32xf32>
    %879 = arith.divf %877, %878 : vector<2x32xf32>
    %880 = vector.extract_strided_slice %861 {offsets = [0, 64], sizes = [2, 32], strides = [1, 1]} : vector<2x96xf32> to vector<2x32xf32>
    %881 = vector.extract_strided_slice %862 {offsets = [0, 64], sizes = [2, 32], strides = [1, 1]} : vector<2x96xf32> to vector<2x32xf32>
    %882 = vector.broadcast %564 : vector<1x32xf32> to vector<2x32xf32>
    %883 = arith.addf %881, %882 : vector<2x32xf32>
    %884 = arith.mulf %871, %883 : vector<2x32xf32>
    %885 = arith.addf %880, %884 : vector<2x32xf32>
    %886 = math.tanh %885 : vector<2x32xf32>
    %cst_163 = arith.constant 1.000000e+00 : f32
    %887 = vector.broadcast %cst_163 : f32 to vector<2x32xf32>
    %888 = arith.subf %887, %879 : vector<2x32xf32>
    %889 = arith.mulf %888, %886 : vector<2x32xf32>
    %890 = arith.mulf %879, %863 : vector<2x32xf32>
    %891 = arith.addf %889, %890 : vector<2x32xf32>
    %c8_164 = arith.constant 8 : index
    %c0_165 = arith.constant 0 : index
    %892 = vector.load %arg6[%c8_164, %c0_165] : memref<16x64xf32, #tpu.memory_space<vmem>>, vector<2x32xf32>
    tpu.vector_store %arg6[%c8_164, %c0_165], %860 {strides = array<i32>} : memref<16x64xf32, #tpu.memory_space<vmem>>, vector<2x32xf32>,
    %c6_166 = arith.constant 6 : index
    %c32_167 = arith.constant 32 : index
    %893 = vector.load %arg6[%c6_166, %c32_167] : memref<16x64xf32, #tpu.memory_space<vmem>>, vector<2x32xf32>
    tpu.vector_store %arg6[%c6_166, %c32_167], %891 {strides = array<i32>} : memref<16x64xf32, #tpu.memory_space<vmem>>, vector<2x32xf32>,
    %894 = tpu.concatenate %860, %891 in 1 : vector<2x32xf32>, vector<2x32xf32> -> vector<2x64xf32>
    %cst_168 = arith.constant dense<0.000000e+00> : vector<2x192xf32>
    %895 = tpu.matmul %894, %561, %cst_168 {dimension_numbers = #tpu.dot_dimension_numbers<[1], [0], [0], [1], [0, 0, 1, 1], [], []>} : vector<2x64xf32>, vector<64x192xf32>, vector<2x192xf32> -> vector<2x192xf32>
    %896 = vector.extract_strided_slice %560 {offsets = [10, 0], sizes = [2, 96], strides = [1, 1]} : vector<16x192xf32> to vector<2x96xf32>
    %897 = vector.extract_strided_slice %895 {offsets = [0, 0], sizes = [2, 96], strides = [1, 1]} : vector<2x192xf32> to vector<2x96xf32>
    %898 = vector.extract_strided_slice %894 {offsets = [0, 0], sizes = [2, 32], strides = [1, 1]} : vector<2x64xf32> to vector<2x32xf32>
    %899 = vector.extract_strided_slice %896 {offsets = [0, 0], sizes = [2, 32], strides = [1, 1]} : vector<2x96xf32> to vector<2x32xf32>
    %900 = vector.extract_strided_slice %897 {offsets = [0, 0], sizes = [2, 32], strides = [1, 1]} : vector<2x96xf32> to vector<2x32xf32>
    %901 = arith.addf %899, %900 : vector<2x32xf32>
    %902 = arith.negf %901 : vector<2x32xf32>
    %903 = math.exp %902 : vector<2x32xf32>
    %cst_169 = arith.constant 1.000000e+00 : f32
    %904 = vector.broadcast %cst_169 : f32 to vector<2x32xf32>
    %905 = arith.addf %904, %903 : vector<2x32xf32>
    %906 = arith.divf %904, %905 : vector<2x32xf32>
    %907 = vector.extract_strided_slice %896 {offsets = [0, 32], sizes = [2, 32], strides = [1, 1]} : vector<2x96xf32> to vector<2x32xf32>
    %908 = vector.extract_strided_slice %897 {offsets = [0, 32], sizes = [2, 32], strides = [1, 1]} : vector<2x96xf32> to vector<2x32xf32>
    %909 = arith.addf %907, %908 : vector<2x32xf32>
    %910 = arith.negf %909 : vector<2x32xf32>
    %911 = math.exp %910 : vector<2x32xf32>
    %cst_170 = arith.constant 1.000000e+00 : f32
    %912 = vector.broadcast %cst_170 : f32 to vector<2x32xf32>
    %913 = arith.addf %912, %911 : vector<2x32xf32>
    %914 = arith.divf %912, %913 : vector<2x32xf32>
    %915 = vector.extract_strided_slice %896 {offsets = [0, 64], sizes = [2, 32], strides = [1, 1]} : vector<2x96xf32> to vector<2x32xf32>
    %916 = vector.extract_strided_slice %897 {offsets = [0, 64], sizes = [2, 32], strides = [1, 1]} : vector<2x96xf32> to vector<2x32xf32>
    %917 = vector.broadcast %563 : vector<1x32xf32> to vector<2x32xf32>
    %918 = arith.addf %916, %917 : vector<2x32xf32>
    %919 = arith.mulf %906, %918 : vector<2x32xf32>
    %920 = arith.addf %915, %919 : vector<2x32xf32>
    %921 = math.tanh %920 : vector<2x32xf32>
    %cst_171 = arith.constant 1.000000e+00 : f32
    %922 = vector.broadcast %cst_171 : f32 to vector<2x32xf32>
    %923 = arith.subf %922, %914 : vector<2x32xf32>
    %924 = arith.mulf %923, %921 : vector<2x32xf32>
    %925 = arith.mulf %914, %898 : vector<2x32xf32>
    %926 = arith.addf %924, %925 : vector<2x32xf32>
    %927 = vector.extract_strided_slice %560 {offsets = [4, 96], sizes = [2, 96], strides = [1, 1]} : vector<16x192xf32> to vector<2x96xf32>
    %928 = vector.extract_strided_slice %895 {offsets = [0, 96], sizes = [2, 96], strides = [1, 1]} : vector<2x192xf32> to vector<2x96xf32>
    %929 = vector.extract_strided_slice %894 {offsets = [0, 32], sizes = [2, 32], strides = [1, 1]} : vector<2x64xf32> to vector<2x32xf32>
    %930 = vector.extract_strided_slice %927 {offsets = [0, 0], sizes = [2, 32], strides = [1, 1]} : vector<2x96xf32> to vector<2x32xf32>
    %931 = vector.extract_strided_slice %928 {offsets = [0, 0], sizes = [2, 32], strides = [1, 1]} : vector<2x96xf32> to vector<2x32xf32>
    %932 = arith.addf %930, %931 : vector<2x32xf32>
    %933 = arith.negf %932 : vector<2x32xf32>
    %934 = math.exp %933 : vector<2x32xf32>
    %cst_172 = arith.constant 1.000000e+00 : f32
    %935 = vector.broadcast %cst_172 : f32 to vector<2x32xf32>
    %936 = arith.addf %935, %934 : vector<2x32xf32>
    %937 = arith.divf %935, %936 : vector<2x32xf32>
    %938 = vector.extract_strided_slice %927 {offsets = [0, 32], sizes = [2, 32], strides = [1, 1]} : vector<2x96xf32> to vector<2x32xf32>
    %939 = vector.extract_strided_slice %928 {offsets = [0, 32], sizes = [2, 32], strides = [1, 1]} : vector<2x96xf32> to vector<2x32xf32>
    %940 = arith.addf %938, %939 : vector<2x32xf32>
    %941 = arith.negf %940 : vector<2x32xf32>
    %942 = math.exp %941 : vector<2x32xf32>
    %cst_173 = arith.constant 1.000000e+00 : f32
    %943 = vector.broadcast %cst_173 : f32 to vector<2x32xf32>
    %944 = arith.addf %943, %942 : vector<2x32xf32>
    %945 = arith.divf %943, %944 : vector<2x32xf32>
    %946 = vector.extract_strided_slice %927 {offsets = [0, 64], sizes = [2, 32], strides = [1, 1]} : vector<2x96xf32> to vector<2x32xf32>
    %947 = vector.extract_strided_slice %928 {offsets = [0, 64], sizes = [2, 32], strides = [1, 1]} : vector<2x96xf32> to vector<2x32xf32>
    %948 = vector.broadcast %564 : vector<1x32xf32> to vector<2x32xf32>
    %949 = arith.addf %947, %948 : vector<2x32xf32>
    %950 = arith.mulf %937, %949 : vector<2x32xf32>
    %951 = arith.addf %946, %950 : vector<2x32xf32>
    %952 = math.tanh %951 : vector<2x32xf32>
    %cst_174 = arith.constant 1.000000e+00 : f32
    %953 = vector.broadcast %cst_174 : f32 to vector<2x32xf32>
    %954 = arith.subf %953, %945 : vector<2x32xf32>
    %955 = arith.mulf %954, %952 : vector<2x32xf32>
    %956 = arith.mulf %945, %929 : vector<2x32xf32>
    %957 = arith.addf %955, %956 : vector<2x32xf32>
    %c10_175 = arith.constant 10 : index
    %c0_176 = arith.constant 0 : index
    %958 = vector.load %arg6[%c10_175, %c0_176] : memref<16x64xf32, #tpu.memory_space<vmem>>, vector<2x32xf32>
    tpu.vector_store %arg6[%c10_175, %c0_176], %926 {strides = array<i32>} : memref<16x64xf32, #tpu.memory_space<vmem>>, vector<2x32xf32>,
    %c4_177 = arith.constant 4 : index
    %c32_178 = arith.constant 32 : index
    %959 = vector.load %arg6[%c4_177, %c32_178] : memref<16x64xf32, #tpu.memory_space<vmem>>, vector<2x32xf32>
    tpu.vector_store %arg6[%c4_177, %c32_178], %957 {strides = array<i32>} : memref<16x64xf32, #tpu.memory_space<vmem>>, vector<2x32xf32>,
    %960 = tpu.concatenate %926, %957 in 1 : vector<2x32xf32>, vector<2x32xf32> -> vector<2x64xf32>
    %cst_179 = arith.constant dense<0.000000e+00> : vector<2x192xf32>
    %961 = tpu.matmul %960, %561, %cst_179 {dimension_numbers = #tpu.dot_dimension_numbers<[1], [0], [0], [1], [0, 0, 1, 1], [], []>} : vector<2x64xf32>, vector<64x192xf32>, vector<2x192xf32> -> vector<2x192xf32>
    %962 = vector.extract_strided_slice %560 {offsets = [12, 0], sizes = [2, 96], strides = [1, 1]} : vector<16x192xf32> to vector<2x96xf32>
    %963 = vector.extract_strided_slice %961 {offsets = [0, 0], sizes = [2, 96], strides = [1, 1]} : vector<2x192xf32> to vector<2x96xf32>
    %964 = vector.extract_strided_slice %960 {offsets = [0, 0], sizes = [2, 32], strides = [1, 1]} : vector<2x64xf32> to vector<2x32xf32>
    %965 = vector.extract_strided_slice %962 {offsets = [0, 0], sizes = [2, 32], strides = [1, 1]} : vector<2x96xf32> to vector<2x32xf32>
    %966 = vector.extract_strided_slice %963 {offsets = [0, 0], sizes = [2, 32], strides = [1, 1]} : vector<2x96xf32> to vector<2x32xf32>
    %967 = arith.addf %965, %966 : vector<2x32xf32>
    %968 = arith.negf %967 : vector<2x32xf32>
    %969 = math.exp %968 : vector<2x32xf32>
    %cst_180 = arith.constant 1.000000e+00 : f32
    %970 = vector.broadcast %cst_180 : f32 to vector<2x32xf32>
    %971 = arith.addf %970, %969 : vector<2x32xf32>
    %972 = arith.divf %970, %971 : vector<2x32xf32>
    %973 = vector.extract_strided_slice %962 {offsets = [0, 32], sizes = [2, 32], strides = [1, 1]} : vector<2x96xf32> to vector<2x32xf32>
    %974 = vector.extract_strided_slice %963 {offsets = [0, 32], sizes = [2, 32], strides = [1, 1]} : vector<2x96xf32> to vector<2x32xf32>
    %975 = arith.addf %973, %974 : vector<2x32xf32>
    %976 = arith.negf %975 : vector<2x32xf32>
    %977 = math.exp %976 : vector<2x32xf32>
    %cst_181 = arith.constant 1.000000e+00 : f32
    %978 = vector.broadcast %cst_181 : f32 to vector<2x32xf32>
    %979 = arith.addf %978, %977 : vector<2x32xf32>
    %980 = arith.divf %978, %979 : vector<2x32xf32>
    %981 = vector.extract_strided_slice %962 {offsets = [0, 64], sizes = [2, 32], strides = [1, 1]} : vector<2x96xf32> to vector<2x32xf32>
    %982 = vector.extract_strided_slice %963 {offsets = [0, 64], sizes = [2, 32], strides = [1, 1]} : vector<2x96xf32> to vector<2x32xf32>
    %983 = vector.broadcast %563 : vector<1x32xf32> to vector<2x32xf32>
    %984 = arith.addf %982, %983 : vector<2x32xf32>
    %985 = arith.mulf %972, %984 : vector<2x32xf32>
    %986 = arith.addf %981, %985 : vector<2x32xf32>
    %987 = math.tanh %986 : vector<2x32xf32>
    %cst_182 = arith.constant 1.000000e+00 : f32
    %988 = vector.broadcast %cst_182 : f32 to vector<2x32xf32>
    %989 = arith.subf %988, %980 : vector<2x32xf32>
    %990 = arith.mulf %989, %987 : vector<2x32xf32>
    %991 = arith.mulf %980, %964 : vector<2x32xf32>
    %992 = arith.addf %990, %991 : vector<2x32xf32>
    %993 = vector.extract_strided_slice %560 {offsets = [2, 96], sizes = [2, 96], strides = [1, 1]} : vector<16x192xf32> to vector<2x96xf32>
    %994 = vector.extract_strided_slice %961 {offsets = [0, 96], sizes = [2, 96], strides = [1, 1]} : vector<2x192xf32> to vector<2x96xf32>
    %995 = vector.extract_strided_slice %960 {offsets = [0, 32], sizes = [2, 32], strides = [1, 1]} : vector<2x64xf32> to vector<2x32xf32>
    %996 = vector.extract_strided_slice %993 {offsets = [0, 0], sizes = [2, 32], strides = [1, 1]} : vector<2x96xf32> to vector<2x32xf32>
    %997 = vector.extract_strided_slice %994 {offsets = [0, 0], sizes = [2, 32], strides = [1, 1]} : vector<2x96xf32> to vector<2x32xf32>
    %998 = arith.addf %996, %997 : vector<2x32xf32>
    %999 = arith.negf %998 : vector<2x32xf32>
    %1000 = math.exp %999 : vector<2x32xf32>
    %cst_183 = arith.constant 1.000000e+00 : f32
    %1001 = vector.broadcast %cst_183 : f32 to vector<2x32xf32>
    %1002 = arith.addf %1001, %1000 : vector<2x32xf32>
    %1003 = arith.divf %1001, %1002 : vector<2x32xf32>
    %1004 = vector.extract_strided_slice %993 {offsets = [0, 32], sizes = [2, 32], strides = [1, 1]} : vector<2x96xf32> to vector<2x32xf32>
    %1005 = vector.extract_strided_slice %994 {offsets = [0, 32], sizes = [2, 32], strides = [1, 1]} : vector<2x96xf32> to vector<2x32xf32>
    %1006 = arith.addf %1004, %1005 : vector<2x32xf32>
    %1007 = arith.negf %1006 : vector<2x32xf32>
    %1008 = math.exp %1007 : vector<2x32xf32>
    %cst_184 = arith.constant 1.000000e+00 : f32
    %1009 = vector.broadcast %cst_184 : f32 to vector<2x32xf32>
    %1010 = arith.addf %1009, %1008 : vector<2x32xf32>
    %1011 = arith.divf %1009, %1010 : vector<2x32xf32>
    %1012 = vector.extract_strided_slice %993 {offsets = [0, 64], sizes = [2, 32], strides = [1, 1]} : vector<2x96xf32> to vector<2x32xf32>
    %1013 = vector.extract_strided_slice %994 {offsets = [0, 64], sizes = [2, 32], strides = [1, 1]} : vector<2x96xf32> to vector<2x32xf32>
    %1014 = vector.broadcast %564 : vector<1x32xf32> to vector<2x32xf32>
    %1015 = arith.addf %1013, %1014 : vector<2x32xf32>
    %1016 = arith.mulf %1003, %1015 : vector<2x32xf32>
    %1017 = arith.addf %1012, %1016 : vector<2x32xf32>
    %1018 = math.tanh %1017 : vector<2x32xf32>
    %cst_185 = arith.constant 1.000000e+00 : f32
    %1019 = vector.broadcast %cst_185 : f32 to vector<2x32xf32>
    %1020 = arith.subf %1019, %1011 : vector<2x32xf32>
    %1021 = arith.mulf %1020, %1018 : vector<2x32xf32>
    %1022 = arith.mulf %1011, %995 : vector<2x32xf32>
    %1023 = arith.addf %1021, %1022 : vector<2x32xf32>
    %c12_186 = arith.constant 12 : index
    %c0_187 = arith.constant 0 : index
    %1024 = vector.load %arg6[%c12_186, %c0_187] : memref<16x64xf32, #tpu.memory_space<vmem>>, vector<2x32xf32>
    tpu.vector_store %arg6[%c12_186, %c0_187], %992 {strides = array<i32>} : memref<16x64xf32, #tpu.memory_space<vmem>>, vector<2x32xf32>,
    %c2_188 = arith.constant 2 : index
    %c32_189 = arith.constant 32 : index
    %1025 = vector.load %arg6[%c2_188, %c32_189] : memref<16x64xf32, #tpu.memory_space<vmem>>, vector<2x32xf32>
    tpu.vector_store %arg6[%c2_188, %c32_189], %1023 {strides = array<i32>} : memref<16x64xf32, #tpu.memory_space<vmem>>, vector<2x32xf32>,
    %1026 = tpu.concatenate %992, %1023 in 1 : vector<2x32xf32>, vector<2x32xf32> -> vector<2x64xf32>
    %cst_190 = arith.constant dense<0.000000e+00> : vector<2x192xf32>
    %1027 = tpu.matmul %1026, %561, %cst_190 {dimension_numbers = #tpu.dot_dimension_numbers<[1], [0], [0], [1], [0, 0, 1, 1], [], []>} : vector<2x64xf32>, vector<64x192xf32>, vector<2x192xf32> -> vector<2x192xf32>
    %1028 = vector.extract_strided_slice %560 {offsets = [14, 0], sizes = [2, 96], strides = [1, 1]} : vector<16x192xf32> to vector<2x96xf32>
    %1029 = vector.extract_strided_slice %1027 {offsets = [0, 0], sizes = [2, 96], strides = [1, 1]} : vector<2x192xf32> to vector<2x96xf32>
    %1030 = vector.extract_strided_slice %1026 {offsets = [0, 0], sizes = [2, 32], strides = [1, 1]} : vector<2x64xf32> to vector<2x32xf32>
    %1031 = vector.extract_strided_slice %1028 {offsets = [0, 0], sizes = [2, 32], strides = [1, 1]} : vector<2x96xf32> to vector<2x32xf32>
    %1032 = vector.extract_strided_slice %1029 {offsets = [0, 0], sizes = [2, 32], strides = [1, 1]} : vector<2x96xf32> to vector<2x32xf32>
    %1033 = arith.addf %1031, %1032 : vector<2x32xf32>
    %1034 = arith.negf %1033 : vector<2x32xf32>
    %1035 = math.exp %1034 : vector<2x32xf32>
    %cst_191 = arith.constant 1.000000e+00 : f32
    %1036 = vector.broadcast %cst_191 : f32 to vector<2x32xf32>
    %1037 = arith.addf %1036, %1035 : vector<2x32xf32>
    %1038 = arith.divf %1036, %1037 : vector<2x32xf32>
    %1039 = vector.extract_strided_slice %1028 {offsets = [0, 32], sizes = [2, 32], strides = [1, 1]} : vector<2x96xf32> to vector<2x32xf32>
    %1040 = vector.extract_strided_slice %1029 {offsets = [0, 32], sizes = [2, 32], strides = [1, 1]} : vector<2x96xf32> to vector<2x32xf32>
    %1041 = arith.addf %1039, %1040 : vector<2x32xf32>
    %1042 = arith.negf %1041 : vector<2x32xf32>
    %1043 = math.exp %1042 : vector<2x32xf32>
    %cst_192 = arith.constant 1.000000e+00 : f32
    %1044 = vector.broadcast %cst_192 : f32 to vector<2x32xf32>
    %1045 = arith.addf %1044, %1043 : vector<2x32xf32>
    %1046 = arith.divf %1044, %1045 : vector<2x32xf32>
    %1047 = vector.extract_strided_slice %1028 {offsets = [0, 64], sizes = [2, 32], strides = [1, 1]} : vector<2x96xf32> to vector<2x32xf32>
    %1048 = vector.extract_strided_slice %1029 {offsets = [0, 64], sizes = [2, 32], strides = [1, 1]} : vector<2x96xf32> to vector<2x32xf32>
    %1049 = vector.broadcast %563 : vector<1x32xf32> to vector<2x32xf32>
    %1050 = arith.addf %1048, %1049 : vector<2x32xf32>
    %1051 = arith.mulf %1038, %1050 : vector<2x32xf32>
    %1052 = arith.addf %1047, %1051 : vector<2x32xf32>
    %1053 = math.tanh %1052 : vector<2x32xf32>
    %cst_193 = arith.constant 1.000000e+00 : f32
    %1054 = vector.broadcast %cst_193 : f32 to vector<2x32xf32>
    %1055 = arith.subf %1054, %1046 : vector<2x32xf32>
    %1056 = arith.mulf %1055, %1053 : vector<2x32xf32>
    %1057 = arith.mulf %1046, %1030 : vector<2x32xf32>
    %1058 = arith.addf %1056, %1057 : vector<2x32xf32>
    %1059 = vector.extract_strided_slice %560 {offsets = [0, 96], sizes = [2, 96], strides = [1, 1]} : vector<16x192xf32> to vector<2x96xf32>
    %1060 = vector.extract_strided_slice %1027 {offsets = [0, 96], sizes = [2, 96], strides = [1, 1]} : vector<2x192xf32> to vector<2x96xf32>
    %1061 = vector.extract_strided_slice %1026 {offsets = [0, 32], sizes = [2, 32], strides = [1, 1]} : vector<2x64xf32> to vector<2x32xf32>
    %1062 = vector.extract_strided_slice %1059 {offsets = [0, 0], sizes = [2, 32], strides = [1, 1]} : vector<2x96xf32> to vector<2x32xf32>
    %1063 = vector.extract_strided_slice %1060 {offsets = [0, 0], sizes = [2, 32], strides = [1, 1]} : vector<2x96xf32> to vector<2x32xf32>
    %1064 = arith.addf %1062, %1063 : vector<2x32xf32>
    %1065 = arith.negf %1064 : vector<2x32xf32>
    %1066 = math.exp %1065 : vector<2x32xf32>
    %cst_194 = arith.constant 1.000000e+00 : f32
    %1067 = vector.broadcast %cst_194 : f32 to vector<2x32xf32>
    %1068 = arith.addf %1067, %1066 : vector<2x32xf32>
    %1069 = arith.divf %1067, %1068 : vector<2x32xf32>
    %1070 = vector.extract_strided_slice %1059 {offsets = [0, 32], sizes = [2, 32], strides = [1, 1]} : vector<2x96xf32> to vector<2x32xf32>
    %1071 = vector.extract_strided_slice %1060 {offsets = [0, 32], sizes = [2, 32], strides = [1, 1]} : vector<2x96xf32> to vector<2x32xf32>
    %1072 = arith.addf %1070, %1071 : vector<2x32xf32>
    %1073 = arith.negf %1072 : vector<2x32xf32>
    %1074 = math.exp %1073 : vector<2x32xf32>
    %cst_195 = arith.constant 1.000000e+00 : f32
    %1075 = vector.broadcast %cst_195 : f32 to vector<2x32xf32>
    %1076 = arith.addf %1075, %1074 : vector<2x32xf32>
    %1077 = arith.divf %1075, %1076 : vector<2x32xf32>
    %1078 = vector.extract_strided_slice %1059 {offsets = [0, 64], sizes = [2, 32], strides = [1, 1]} : vector<2x96xf32> to vector<2x32xf32>
    %1079 = vector.extract_strided_slice %1060 {offsets = [0, 64], sizes = [2, 32], strides = [1, 1]} : vector<2x96xf32> to vector<2x32xf32>
    %1080 = vector.broadcast %564 : vector<1x32xf32> to vector<2x32xf32>
    %1081 = arith.addf %1079, %1080 : vector<2x32xf32>
    %1082 = arith.mulf %1069, %1081 : vector<2x32xf32>
    %1083 = arith.addf %1078, %1082 : vector<2x32xf32>
    %1084 = math.tanh %1083 : vector<2x32xf32>
    %cst_196 = arith.constant 1.000000e+00 : f32
    %1085 = vector.broadcast %cst_196 : f32 to vector<2x32xf32>
    %1086 = arith.subf %1085, %1077 : vector<2x32xf32>
    %1087 = arith.mulf %1086, %1084 : vector<2x32xf32>
    %1088 = arith.mulf %1077, %1061 : vector<2x32xf32>
    %1089 = arith.addf %1087, %1088 : vector<2x32xf32>
    %c14_197 = arith.constant 14 : index
    %c0_198 = arith.constant 0 : index
    %1090 = vector.load %arg6[%c14_197, %c0_198] : memref<16x64xf32, #tpu.memory_space<vmem>>, vector<2x32xf32>
    tpu.vector_store %arg6[%c14_197, %c0_198], %1058 {strides = array<i32>} : memref<16x64xf32, #tpu.memory_space<vmem>>, vector<2x32xf32>,
    %c0_199 = arith.constant 0 : index
    %c32_200 = arith.constant 32 : index
    %1091 = vector.load %arg6[%c0_199, %c32_200] : memref<16x64xf32, #tpu.memory_space<vmem>>, vector<2x32xf32>
    tpu.vector_store %arg6[%c0_199, %c32_200], %1089 {strides = array<i32>} : memref<16x64xf32, #tpu.memory_space<vmem>>, vector<2x32xf32>,
    %1092 = tpu.concatenate %1058, %1089 in 1 : vector<2x32xf32>, vector<2x32xf32> -> vector<2x64xf32>
    %c0_201 = arith.constant 0 : index
    %c0_202 = arith.constant 0 : index
    %1093 = vector.load %arg6[%c0_201, %c0_202] : memref<16x64xf32, #tpu.memory_space<vmem>>, vector<16x64xf32>
    %c328 = arith.constant 328 : index
    %c0_203 = arith.constant 0 : index
    %1094 = vector.load %arg2[%c328, %c0_203] : memref<848x192xf32, #tpu.memory_space<vmem>>, vector<64x192xf32>
    %cst_204 = arith.constant dense<0.000000e+00> : vector<16x192xf32>
    %1095 = tpu.matmul %1093, %1094, %cst_204 {dimension_numbers = #tpu.dot_dimension_numbers<[1], [0], [0], [1], [0, 0, 1, 1], [], []>} : vector<16x64xf32>, vector<64x192xf32>, vector<16x192xf32> -> vector<16x192xf32>
    %c826 = arith.constant 826 : index
    %c0_205 = arith.constant 0 : index
    %1096 = vector.load %arg2[%c826, %c0_205] : memref<848x192xf32, #tpu.memory_space<vmem>>, vector<1x192xf32>
    %1097 = vector.broadcast %1096 : vector<1x192xf32> to vector<16x192xf32>
    %1098 = arith.addf %1095, %1097 : vector<16x192xf32>
    %1099 = vector.extract_strided_slice %1098 {offsets = [0, 0], sizes = [16, 64], strides = [1, 1]} : vector<16x192xf32> to vector<16x64xf32>
    %1100 = vector.extract_strided_slice %1098 {offsets = [0, 64], sizes = [16, 64], strides = [1, 1]} : vector<16x192xf32> to vector<16x64xf32>
    %1101 = vector.extract_strided_slice %1098 {offsets = [0, 128], sizes = [16, 64], strides = [1, 1]} : vector<16x192xf32> to vector<16x64xf32>
    %1102 = tpu.transpose %1100, [1, 0] : vector<16x64xf32> -> vector<64x16xf32>
    %cst_206 = arith.constant dense<0.000000e+00> : vector<16x16xf32>
    %1103 = tpu.matmul %1099, %1102, %cst_206 {dimension_numbers = #tpu.dot_dimension_numbers<[1], [0], [0], [1], [0, 0, 1, 1], [], []>} : vector<16x64xf32>, vector<64x16xf32>, vector<16x16xf32> -> vector<16x16xf32>
    %cst_207 = arith.constant 1.250000e-01 : f32
    %1104 = vector.broadcast %cst_207 : f32 to vector<16x16xf32>
    %1105 = arith.mulf %1103, %1104 : vector<16x16xf32>
    %c800 = arith.constant 800 : index
    %c0_208 = arith.constant 0 : index
    %1106 = vector.load %arg2[%c800, %c0_208] : memref<848x192xf32, #tpu.memory_space<vmem>>, vector<16x16xf32>
    %1107 = arith.addf %1105, %1106 : vector<16x16xf32>
    %cst_209 = arith.constant dense<0xFF800000> : vector<16xf32>
    %1108 = vector.multi_reduction <maximumf>, %1107, %cst_209 [1] : vector<16x16xf32> to vector<16xf32>
    %1109 = vector.shape_cast %1108 : vector<16xf32> to vector<16x1xf32>
    %1110 = vector.broadcast %1109 : vector<16x1xf32> to vector<16x16xf32>
    %1111 = arith.subf %1107, %1110 : vector<16x16xf32>
    %1112 = math.exp %1111 : vector<16x16xf32>
    %cst_210 = arith.constant dense<0.000000e+00> : vector<16xf32>
    %1113 = vector.multi_reduction <add>, %1112, %cst_210 [1] : vector<16x16xf32> to vector<16xf32>
    %1114 = vector.shape_cast %1113 : vector<16xf32> to vector<16x1xf32>
    %1115 = tpu.reciprocal %1114 {approx = true} : vector<16x1xf32> -> vector<16x1xf32>
    %1116 = vector.broadcast %1115 : vector<16x1xf32> to vector<16x16xf32>
    %1117 = arith.mulf %1112, %1116 : vector<16x16xf32>
    %cst_211 = arith.constant dense<0.000000e+00> : vector<16x64xf32>
    %1118 = tpu.matmul %1117, %1101, %cst_211 {dimension_numbers = #tpu.dot_dimension_numbers<[1], [0], [0], [1], [0, 0, 1, 1], [], []>} : vector<16x16xf32>, vector<16x64xf32>, vector<16x64xf32> -> vector<16x64xf32>
    %c816 = arith.constant 816 : index
    %c0_212 = arith.constant 0 : index
    %1119 = vector.load %arg2[%c816, %c0_212] : memref<848x192xf32, #tpu.memory_space<vmem>>, vector<2x16xf32>
    %cst_213 = arith.constant dense<0.000000e+00> : vector<2x64xf32>
    %1120 = tpu.matmul %1119, %1118, %cst_213 {dimension_numbers = #tpu.dot_dimension_numbers<[1], [0], [0], [1], [0, 0, 1, 1], [], []>} : vector<2x16xf32>, vector<16x64xf32>, vector<2x64xf32> -> vector<2x64xf32>
    %c520 = arith.constant 520 : index
    %c0_214 = arith.constant 0 : index
    %1121 = vector.load %arg2[%c520, %c0_214] : memref<848x192xf32, #tpu.memory_space<vmem>>, vector<64x64xf32>
    %cst_215 = arith.constant dense<0.000000e+00> : vector<2x64xf32>
    %1122 = tpu.matmul %1120, %1121, %cst_215 {dimension_numbers = #tpu.dot_dimension_numbers<[1], [0], [0], [1], [0, 0, 1, 1], [], []>} : vector<2x64xf32>, vector<64x64xf32>, vector<2x64xf32> -> vector<2x64xf32>
    %c0_216 = arith.constant 0 : index
    %c0_217 = arith.constant 0 : index
    %1123 = vector.load %arg1[%c0_216, %c0_217] : memref<2x4xf32, #tpu.memory_space<vmem>>, vector<2x4xf32>
    %c584 = arith.constant 584 : index
    %c0_218 = arith.constant 0 : index
    %1124 = vector.load %arg2[%c584, %c0_218] : memref<848x192xf32, #tpu.memory_space<vmem>>, vector<4x64xf32>
    %cst_219 = arith.constant dense<0.000000e+00> : vector<2x64xf32>
    %1125 = tpu.matmul %1123, %1124, %cst_219 {dimension_numbers = #tpu.dot_dimension_numbers<[1], [0], [0], [1], [0, 0, 1, 1], [], []>} : vector<2x4xf32>, vector<4x64xf32>, vector<2x64xf32> -> vector<2x64xf32>
    %1126 = arith.addf %1122, %1125 : vector<2x64xf32>
    %c827 = arith.constant 827 : index
    %c0_220 = arith.constant 0 : index
    %1127 = vector.load %arg2[%c827, %c0_220] : memref<848x192xf32, #tpu.memory_space<vmem>>, vector<1x64xf32>
    %1128 = vector.broadcast %1127 : vector<1x64xf32> to vector<2x64xf32>
    %1129 = arith.addf %1126, %1128 : vector<2x64xf32>
    %1130 = math.tanh %1129 : vector<2x64xf32>
    %c392 = arith.constant 392 : index
    %c0_221 = arith.constant 0 : index
    %1131 = vector.load %arg2[%c392, %c0_221] : memref<848x192xf32, #tpu.memory_space<vmem>>, vector<128x64xf32>
    %1132 = vector.extract_strided_slice %1131 {offsets = [0, 0], sizes = [64, 64], strides = [1, 1]} : vector<128x64xf32> to vector<64x64xf32>
    %1133 = vector.extract_strided_slice %1131 {offsets = [64, 0], sizes = [64, 64], strides = [1, 1]} : vector<128x64xf32> to vector<64x64xf32>
    %c828 = arith.constant 828 : index
    %c0_222 = arith.constant 0 : index
    %1134 = vector.load %arg2[%c828, %c0_222] : memref<848x192xf32, #tpu.memory_space<vmem>>, vector<1x64xf32>
    %cst_223 = arith.constant dense<0.000000e+00> : vector<1x64xf32>
    %1135 = tpu.matmul %1134, %1132, %cst_223 {dimension_numbers = #tpu.dot_dimension_numbers<[1], [0], [0], [1], [0, 0, 1, 1], [], []>} : vector<1x64xf32>, vector<64x64xf32>, vector<1x64xf32> -> vector<1x64xf32>
    %c829 = arith.constant 829 : index
    %c0_224 = arith.constant 0 : index
    %1136 = vector.load %arg2[%c829, %c0_224] : memref<848x192xf32, #tpu.memory_space<vmem>>, vector<1x64xf32>
    %cst_225 = arith.constant dense<0.000000e+00> : vector<1x64xf32>
    %1137 = tpu.matmul %1136, %1132, %cst_225 {dimension_numbers = #tpu.dot_dimension_numbers<[1], [0], [0], [1], [0, 0, 1, 1], [], []>} : vector<1x64xf32>, vector<64x64xf32>, vector<1x64xf32> -> vector<1x64xf32>
    %cst_226 = arith.constant dense<0.000000e+00> : vector<2x64xf32>
    %1138 = tpu.matmul %1130, %1133, %cst_226 {dimension_numbers = #tpu.dot_dimension_numbers<[1], [0], [0], [1], [0, 0, 1, 1], [], []>} : vector<2x64xf32>, vector<64x64xf32>, vector<2x64xf32> -> vector<2x64xf32>
    %1139 = vector.broadcast %1137 : vector<1x64xf32> to vector<2x64xf32>
    %1140 = arith.addf %1139, %1138 : vector<2x64xf32>
    %c830 = arith.constant 830 : index
    %c0_227 = arith.constant 0 : index
    %1141 = vector.load %arg2[%c830, %c0_227] : memref<848x192xf32, #tpu.memory_space<vmem>>, vector<1x64xf32>
    %1142 = vector.broadcast %1141 : vector<1x64xf32> to vector<2x64xf32>
    %1143 = arith.addf %1140, %1142 : vector<2x64xf32>
    %c200 = arith.constant 200 : index
    %c0_228 = arith.constant 0 : index
    %1144 = vector.load %arg2[%c200, %c0_228] : memref<848x192xf32, #tpu.memory_space<vmem>>, vector<64x192xf32>
    %cst_229 = arith.constant dense<0.000000e+00> : vector<1x192xf32>
    %1145 = tpu.matmul %1135, %1144, %cst_229 {dimension_numbers = #tpu.dot_dimension_numbers<[1], [0], [0], [1], [0, 0, 1, 1], [], []>} : vector<1x64xf32>, vector<64x192xf32>, vector<1x192xf32> -> vector<1x192xf32>
    %cst_230 = arith.constant dense<0.000000e+00> : vector<2x192xf32>
    %1146 = tpu.matmul %1143, %1144, %cst_230 {dimension_numbers = #tpu.dot_dimension_numbers<[1], [0], [0], [1], [0, 0, 1, 1], [], []>} : vector<2x64xf32>, vector<64x192xf32>, vector<2x192xf32> -> vector<2x192xf32>
    %c824 = arith.constant 824 : index
    %c0_231 = arith.constant 0 : index
    %1147 = vector.load %arg2[%c824, %c0_231] : memref<848x192xf32, #tpu.memory_space<vmem>>, vector<1x192xf32>
    %1148 = vector.broadcast %1147 : vector<1x192xf32> to vector<2x192xf32>
    %1149 = arith.addf %1146, %1148 : vector<2x192xf32>
    %c264 = arith.constant 264 : index
    %c0_232 = arith.constant 0 : index
    %1150 = vector.load %arg2[%c264, %c0_232] : memref<848x192xf32, #tpu.memory_space<vmem>>, vector<64x192xf32>
    %c825 = arith.constant 825 : index
    %c0_233 = arith.constant 0 : index
    %1151 = vector.load %arg2[%c825, %c0_233] : memref<848x192xf32, #tpu.memory_space<vmem>>, vector<1x64xf32>
    %1152 = vector.extract_strided_slice %1151 {offsets = [0, 0], sizes = [1, 32], strides = [1, 1]} : vector<1x64xf32> to vector<1x32xf32>
    %1153 = vector.extract_strided_slice %1151 {offsets = [0, 32], sizes = [1, 32], strides = [1, 1]} : vector<1x64xf32> to vector<1x32xf32>
    %cst_234 = arith.constant dense<0.000000e+00> : vector<2x192xf32>
    %1154 = tpu.matmul %1092, %1150, %cst_234 {dimension_numbers = #tpu.dot_dimension_numbers<[1], [0], [0], [1], [0, 0, 1, 1], [], []>} : vector<2x64xf32>, vector<64x192xf32>, vector<2x192xf32> -> vector<2x192xf32>
    %1155 = vector.extract_strided_slice %1145 {offsets = [0, 0], sizes = [1, 96], strides = [1, 1]} : vector<1x192xf32> to vector<1x96xf32>
    %cst_235 = arith.constant 0.000000e+00 : f32
    %1156 = vector.broadcast %cst_235 : f32 to vector<1x96xf32>
    %1157 = arith.mulf %1156, %1155 : vector<1x96xf32>
    %1158 = vector.extract_strided_slice %1149 {offsets = [0, 0], sizes = [2, 96], strides = [1, 1]} : vector<2x192xf32> to vector<2x96xf32>
    %1159 = vector.broadcast %1157 : vector<1x96xf32> to vector<2x96xf32>
    %1160 = arith.addf %1159, %1158 : vector<2x96xf32>
    %1161 = vector.extract_strided_slice %1154 {offsets = [0, 0], sizes = [2, 96], strides = [1, 1]} : vector<2x192xf32> to vector<2x96xf32>
    %1162 = vector.extract_strided_slice %1092 {offsets = [0, 0], sizes = [2, 32], strides = [1, 1]} : vector<2x64xf32> to vector<2x32xf32>
    %1163 = vector.extract_strided_slice %1160 {offsets = [0, 0], sizes = [2, 32], strides = [1, 1]} : vector<2x96xf32> to vector<2x32xf32>
    %1164 = vector.extract_strided_slice %1161 {offsets = [0, 0], sizes = [2, 32], strides = [1, 1]} : vector<2x96xf32> to vector<2x32xf32>
    %1165 = arith.addf %1163, %1164 : vector<2x32xf32>
    %1166 = arith.negf %1165 : vector<2x32xf32>
    %1167 = math.exp %1166 : vector<2x32xf32>
    %cst_236 = arith.constant 1.000000e+00 : f32
    %1168 = vector.broadcast %cst_236 : f32 to vector<2x32xf32>
    %1169 = arith.addf %1168, %1167 : vector<2x32xf32>
    %1170 = arith.divf %1168, %1169 : vector<2x32xf32>
    %1171 = vector.extract_strided_slice %1160 {offsets = [0, 32], sizes = [2, 32], strides = [1, 1]} : vector<2x96xf32> to vector<2x32xf32>
    %1172 = vector.extract_strided_slice %1161 {offsets = [0, 32], sizes = [2, 32], strides = [1, 1]} : vector<2x96xf32> to vector<2x32xf32>
    %1173 = arith.addf %1171, %1172 : vector<2x32xf32>
    %1174 = arith.negf %1173 : vector<2x32xf32>
    %1175 = math.exp %1174 : vector<2x32xf32>
    %cst_237 = arith.constant 1.000000e+00 : f32
    %1176 = vector.broadcast %cst_237 : f32 to vector<2x32xf32>
    %1177 = arith.addf %1176, %1175 : vector<2x32xf32>
    %1178 = arith.divf %1176, %1177 : vector<2x32xf32>
    %1179 = vector.extract_strided_slice %1160 {offsets = [0, 64], sizes = [2, 32], strides = [1, 1]} : vector<2x96xf32> to vector<2x32xf32>
    %1180 = vector.extract_strided_slice %1161 {offsets = [0, 64], sizes = [2, 32], strides = [1, 1]} : vector<2x96xf32> to vector<2x32xf32>
    %1181 = vector.broadcast %1152 : vector<1x32xf32> to vector<2x32xf32>
    %1182 = arith.addf %1180, %1181 : vector<2x32xf32>
    %1183 = arith.mulf %1170, %1182 : vector<2x32xf32>
    %1184 = arith.addf %1179, %1183 : vector<2x32xf32>
    %1185 = math.tanh %1184 : vector<2x32xf32>
    %cst_238 = arith.constant 1.000000e+00 : f32
    %1186 = vector.broadcast %cst_238 : f32 to vector<2x32xf32>
    %1187 = arith.subf %1186, %1178 : vector<2x32xf32>
    %1188 = arith.mulf %1187, %1185 : vector<2x32xf32>
    %1189 = arith.mulf %1178, %1162 : vector<2x32xf32>
    %1190 = arith.addf %1188, %1189 : vector<2x32xf32>
    %1191 = vector.extract_strided_slice %1145 {offsets = [0, 96], sizes = [1, 96], strides = [1, 1]} : vector<1x192xf32> to vector<1x96xf32>
    %cst_239 = arith.constant 1.000000e+00 : f32
    %1192 = vector.broadcast %cst_239 : f32 to vector<1x96xf32>
    %1193 = arith.mulf %1192, %1191 : vector<1x96xf32>
    %1194 = vector.extract_strided_slice %1149 {offsets = [0, 96], sizes = [2, 96], strides = [1, 1]} : vector<2x192xf32> to vector<2x96xf32>
    %1195 = vector.broadcast %1193 : vector<1x96xf32> to vector<2x96xf32>
    %1196 = arith.addf %1195, %1194 : vector<2x96xf32>
    %1197 = vector.extract_strided_slice %1154 {offsets = [0, 96], sizes = [2, 96], strides = [1, 1]} : vector<2x192xf32> to vector<2x96xf32>
    %1198 = vector.extract_strided_slice %1092 {offsets = [0, 32], sizes = [2, 32], strides = [1, 1]} : vector<2x64xf32> to vector<2x32xf32>
    %1199 = vector.extract_strided_slice %1196 {offsets = [0, 0], sizes = [2, 32], strides = [1, 1]} : vector<2x96xf32> to vector<2x32xf32>
    %1200 = vector.extract_strided_slice %1197 {offsets = [0, 0], sizes = [2, 32], strides = [1, 1]} : vector<2x96xf32> to vector<2x32xf32>
    %1201 = arith.addf %1199, %1200 : vector<2x32xf32>
    %1202 = arith.negf %1201 : vector<2x32xf32>
    %1203 = math.exp %1202 : vector<2x32xf32>
    %cst_240 = arith.constant 1.000000e+00 : f32
    %1204 = vector.broadcast %cst_240 : f32 to vector<2x32xf32>
    %1205 = arith.addf %1204, %1203 : vector<2x32xf32>
    %1206 = arith.divf %1204, %1205 : vector<2x32xf32>
    %1207 = vector.extract_strided_slice %1196 {offsets = [0, 32], sizes = [2, 32], strides = [1, 1]} : vector<2x96xf32> to vector<2x32xf32>
    %1208 = vector.extract_strided_slice %1197 {offsets = [0, 32], sizes = [2, 32], strides = [1, 1]} : vector<2x96xf32> to vector<2x32xf32>
    %1209 = arith.addf %1207, %1208 : vector<2x32xf32>
    %1210 = arith.negf %1209 : vector<2x32xf32>
    %1211 = math.exp %1210 : vector<2x32xf32>
    %cst_241 = arith.constant 1.000000e+00 : f32
    %1212 = vector.broadcast %cst_241 : f32 to vector<2x32xf32>
    %1213 = arith.addf %1212, %1211 : vector<2x32xf32>
    %1214 = arith.divf %1212, %1213 : vector<2x32xf32>
    %1215 = vector.extract_strided_slice %1196 {offsets = [0, 64], sizes = [2, 32], strides = [1, 1]} : vector<2x96xf32> to vector<2x32xf32>
    %1216 = vector.extract_strided_slice %1197 {offsets = [0, 64], sizes = [2, 32], strides = [1, 1]} : vector<2x96xf32> to vector<2x32xf32>
    %1217 = vector.broadcast %1153 : vector<1x32xf32> to vector<2x32xf32>
    %1218 = arith.addf %1216, %1217 : vector<2x32xf32>
    %1219 = arith.mulf %1206, %1218 : vector<2x32xf32>
    %1220 = arith.addf %1215, %1219 : vector<2x32xf32>
    %1221 = math.tanh %1220 : vector<2x32xf32>
    %cst_242 = arith.constant 1.000000e+00 : f32
    %1222 = vector.broadcast %cst_242 : f32 to vector<2x32xf32>
    %1223 = arith.subf %1222, %1214 : vector<2x32xf32>
    %1224 = arith.mulf %1223, %1221 : vector<2x32xf32>
    %1225 = arith.mulf %1214, %1198 : vector<2x32xf32>
    %1226 = arith.addf %1224, %1225 : vector<2x32xf32>
    %c0_243 = arith.constant 0 : index
    %c0_244 = arith.constant 0 : index
    %1227 = vector.load %arg7[%c0_243, %c0_244] : memref<24x64xf32, #tpu.memory_space<vmem>>, vector<2x32xf32>
    tpu.vector_store %arg7[%c0_243, %c0_244], %1190 {strides = array<i32>} : memref<24x64xf32, #tpu.memory_space<vmem>>, vector<2x32xf32>,
    %c22 = arith.constant 22 : index
    %c32_245 = arith.constant 32 : index
    %1228 = vector.load %arg7[%c22, %c32_245] : memref<24x64xf32, #tpu.memory_space<vmem>>, vector<2x32xf32>
    tpu.vector_store %arg7[%c22, %c32_245], %1226 {strides = array<i32>} : memref<24x64xf32, #tpu.memory_space<vmem>>, vector<2x32xf32>,
    %1229 = tpu.concatenate %1190, %1226 in 1 : vector<2x32xf32>, vector<2x32xf32> -> vector<2x64xf32>
    %cst_246 = arith.constant dense<0.000000e+00> : vector<2x192xf32>
    %1230 = tpu.matmul %1229, %1150, %cst_246 {dimension_numbers = #tpu.dot_dimension_numbers<[1], [0], [0], [1], [0, 0, 1, 1], [], []>} : vector<2x64xf32>, vector<64x192xf32>, vector<2x192xf32> -> vector<2x192xf32>
    %1231 = vector.extract_strided_slice %1145 {offsets = [0, 0], sizes = [1, 96], strides = [1, 1]} : vector<1x192xf32> to vector<1x96xf32>
    %cst_247 = arith.constant 0.0909090936 : f32
    %1232 = vector.broadcast %cst_247 : f32 to vector<1x96xf32>
    %1233 = arith.mulf %1232, %1231 : vector<1x96xf32>
    %1234 = vector.extract_strided_slice %1149 {offsets = [0, 0], sizes = [2, 96], strides = [1, 1]} : vector<2x192xf32> to vector<2x96xf32>
    %1235 = vector.broadcast %1233 : vector<1x96xf32> to vector<2x96xf32>
    %1236 = arith.addf %1235, %1234 : vector<2x96xf32>
    %1237 = vector.extract_strided_slice %1230 {offsets = [0, 0], sizes = [2, 96], strides = [1, 1]} : vector<2x192xf32> to vector<2x96xf32>
    %1238 = vector.extract_strided_slice %1229 {offsets = [0, 0], sizes = [2, 32], strides = [1, 1]} : vector<2x64xf32> to vector<2x32xf32>
    %1239 = vector.extract_strided_slice %1236 {offsets = [0, 0], sizes = [2, 32], strides = [1, 1]} : vector<2x96xf32> to vector<2x32xf32>
    %1240 = vector.extract_strided_slice %1237 {offsets = [0, 0], sizes = [2, 32], strides = [1, 1]} : vector<2x96xf32> to vector<2x32xf32>
    %1241 = arith.addf %1239, %1240 : vector<2x32xf32>
    %1242 = arith.negf %1241 : vector<2x32xf32>
    %1243 = math.exp %1242 : vector<2x32xf32>
    %cst_248 = arith.constant 1.000000e+00 : f32
    %1244 = vector.broadcast %cst_248 : f32 to vector<2x32xf32>
    %1245 = arith.addf %1244, %1243 : vector<2x32xf32>
    %1246 = arith.divf %1244, %1245 : vector<2x32xf32>
    %1247 = vector.extract_strided_slice %1236 {offsets = [0, 32], sizes = [2, 32], strides = [1, 1]} : vector<2x96xf32> to vector<2x32xf32>
    %1248 = vector.extract_strided_slice %1237 {offsets = [0, 32], sizes = [2, 32], strides = [1, 1]} : vector<2x96xf32> to vector<2x32xf32>
    %1249 = arith.addf %1247, %1248 : vector<2x32xf32>
    %1250 = arith.negf %1249 : vector<2x32xf32>
    %1251 = math.exp %1250 : vector<2x32xf32>
    %cst_249 = arith.constant 1.000000e+00 : f32
    %1252 = vector.broadcast %cst_249 : f32 to vector<2x32xf32>
    %1253 = arith.addf %1252, %1251 : vector<2x32xf32>
    %1254 = arith.divf %1252, %1253 : vector<2x32xf32>
    %1255 = vector.extract_strided_slice %1236 {offsets = [0, 64], sizes = [2, 32], strides = [1, 1]} : vector<2x96xf32> to vector<2x32xf32>
    %1256 = vector.extract_strided_slice %1237 {offsets = [0, 64], sizes = [2, 32], strides = [1, 1]} : vector<2x96xf32> to vector<2x32xf32>
    %1257 = vector.broadcast %1152 : vector<1x32xf32> to vector<2x32xf32>
    %1258 = arith.addf %1256, %1257 : vector<2x32xf32>
    %1259 = arith.mulf %1246, %1258 : vector<2x32xf32>
    %1260 = arith.addf %1255, %1259 : vector<2x32xf32>
    %1261 = math.tanh %1260 : vector<2x32xf32>
    %cst_250 = arith.constant 1.000000e+00 : f32
    %1262 = vector.broadcast %cst_250 : f32 to vector<2x32xf32>
    %1263 = arith.subf %1262, %1254 : vector<2x32xf32>
    %1264 = arith.mulf %1263, %1261 : vector<2x32xf32>
    %1265 = arith.mulf %1254, %1238 : vector<2x32xf32>
    %1266 = arith.addf %1264, %1265 : vector<2x32xf32>
    %1267 = vector.extract_strided_slice %1145 {offsets = [0, 96], sizes = [1, 96], strides = [1, 1]} : vector<1x192xf32> to vector<1x96xf32>
    %cst_251 = arith.constant 0.909090936 : f32
    %1268 = vector.broadcast %cst_251 : f32 to vector<1x96xf32>
    %1269 = arith.mulf %1268, %1267 : vector<1x96xf32>
    %1270 = vector.extract_strided_slice %1149 {offsets = [0, 96], sizes = [2, 96], strides = [1, 1]} : vector<2x192xf32> to vector<2x96xf32>
    %1271 = vector.broadcast %1269 : vector<1x96xf32> to vector<2x96xf32>
    %1272 = arith.addf %1271, %1270 : vector<2x96xf32>
    %1273 = vector.extract_strided_slice %1230 {offsets = [0, 96], sizes = [2, 96], strides = [1, 1]} : vector<2x192xf32> to vector<2x96xf32>
    %1274 = vector.extract_strided_slice %1229 {offsets = [0, 32], sizes = [2, 32], strides = [1, 1]} : vector<2x64xf32> to vector<2x32xf32>
    %1275 = vector.extract_strided_slice %1272 {offsets = [0, 0], sizes = [2, 32], strides = [1, 1]} : vector<2x96xf32> to vector<2x32xf32>
    %1276 = vector.extract_strided_slice %1273 {offsets = [0, 0], sizes = [2, 32], strides = [1, 1]} : vector<2x96xf32> to vector<2x32xf32>
    %1277 = arith.addf %1275, %1276 : vector<2x32xf32>
    %1278 = arith.negf %1277 : vector<2x32xf32>
    %1279 = math.exp %1278 : vector<2x32xf32>
    %cst_252 = arith.constant 1.000000e+00 : f32
    %1280 = vector.broadcast %cst_252 : f32 to vector<2x32xf32>
    %1281 = arith.addf %1280, %1279 : vector<2x32xf32>
    %1282 = arith.divf %1280, %1281 : vector<2x32xf32>
    %1283 = vector.extract_strided_slice %1272 {offsets = [0, 32], sizes = [2, 32], strides = [1, 1]} : vector<2x96xf32> to vector<2x32xf32>
    %1284 = vector.extract_strided_slice %1273 {offsets = [0, 32], sizes = [2, 32], strides = [1, 1]} : vector<2x96xf32> to vector<2x32xf32>
    %1285 = arith.addf %1283, %1284 : vector<2x32xf32>
    %1286 = arith.negf %1285 : vector<2x32xf32>
    %1287 = math.exp %1286 : vector<2x32xf32>
    %cst_253 = arith.constant 1.000000e+00 : f32
    %1288 = vector.broadcast %cst_253 : f32 to vector<2x32xf32>
    %1289 = arith.addf %1288, %1287 : vector<2x32xf32>
    %1290 = arith.divf %1288, %1289 : vector<2x32xf32>
    %1291 = vector.extract_strided_slice %1272 {offsets = [0, 64], sizes = [2, 32], strides = [1, 1]} : vector<2x96xf32> to vector<2x32xf32>
    %1292 = vector.extract_strided_slice %1273 {offsets = [0, 64], sizes = [2, 32], strides = [1, 1]} : vector<2x96xf32> to vector<2x32xf32>
    %1293 = vector.broadcast %1153 : vector<1x32xf32> to vector<2x32xf32>
    %1294 = arith.addf %1292, %1293 : vector<2x32xf32>
    %1295 = arith.mulf %1282, %1294 : vector<2x32xf32>
    %1296 = arith.addf %1291, %1295 : vector<2x32xf32>
    %1297 = math.tanh %1296 : vector<2x32xf32>
    %cst_254 = arith.constant 1.000000e+00 : f32
    %1298 = vector.broadcast %cst_254 : f32 to vector<2x32xf32>
    %1299 = arith.subf %1298, %1290 : vector<2x32xf32>
    %1300 = arith.mulf %1299, %1297 : vector<2x32xf32>
    %1301 = arith.mulf %1290, %1274 : vector<2x32xf32>
    %1302 = arith.addf %1300, %1301 : vector<2x32xf32>
    %c2_255 = arith.constant 2 : index
    %c0_256 = arith.constant 0 : index
    %1303 = vector.load %arg7[%c2_255, %c0_256] : memref<24x64xf32, #tpu.memory_space<vmem>>, vector<2x32xf32>
    tpu.vector_store %arg7[%c2_255, %c0_256], %1266 {strides = array<i32>} : memref<24x64xf32, #tpu.memory_space<vmem>>, vector<2x32xf32>,
    %c20 = arith.constant 20 : index
    %c32_257 = arith.constant 32 : index
    %1304 = vector.load %arg7[%c20, %c32_257] : memref<24x64xf32, #tpu.memory_space<vmem>>, vector<2x32xf32>
    tpu.vector_store %arg7[%c20, %c32_257], %1302 {strides = array<i32>} : memref<24x64xf32, #tpu.memory_space<vmem>>, vector<2x32xf32>,
    %1305 = tpu.concatenate %1266, %1302 in 1 : vector<2x32xf32>, vector<2x32xf32> -> vector<2x64xf32>
    %cst_258 = arith.constant dense<0.000000e+00> : vector<2x192xf32>
    %1306 = tpu.matmul %1305, %1150, %cst_258 {dimension_numbers = #tpu.dot_dimension_numbers<[1], [0], [0], [1], [0, 0, 1, 1], [], []>} : vector<2x64xf32>, vector<64x192xf32>, vector<2x192xf32> -> vector<2x192xf32>
    %1307 = vector.extract_strided_slice %1145 {offsets = [0, 0], sizes = [1, 96], strides = [1, 1]} : vector<1x192xf32> to vector<1x96xf32>
    %cst_259 = arith.constant 0.181818187 : f32
    %1308 = vector.broadcast %cst_259 : f32 to vector<1x96xf32>
    %1309 = arith.mulf %1308, %1307 : vector<1x96xf32>
    %1310 = vector.extract_strided_slice %1149 {offsets = [0, 0], sizes = [2, 96], strides = [1, 1]} : vector<2x192xf32> to vector<2x96xf32>
    %1311 = vector.broadcast %1309 : vector<1x96xf32> to vector<2x96xf32>
    %1312 = arith.addf %1311, %1310 : vector<2x96xf32>
    %1313 = vector.extract_strided_slice %1306 {offsets = [0, 0], sizes = [2, 96], strides = [1, 1]} : vector<2x192xf32> to vector<2x96xf32>
    %1314 = vector.extract_strided_slice %1305 {offsets = [0, 0], sizes = [2, 32], strides = [1, 1]} : vector<2x64xf32> to vector<2x32xf32>
    %1315 = vector.extract_strided_slice %1312 {offsets = [0, 0], sizes = [2, 32], strides = [1, 1]} : vector<2x96xf32> to vector<2x32xf32>
    %1316 = vector.extract_strided_slice %1313 {offsets = [0, 0], sizes = [2, 32], strides = [1, 1]} : vector<2x96xf32> to vector<2x32xf32>
    %1317 = arith.addf %1315, %1316 : vector<2x32xf32>
    %1318 = arith.negf %1317 : vector<2x32xf32>
    %1319 = math.exp %1318 : vector<2x32xf32>
    %cst_260 = arith.constant 1.000000e+00 : f32
    %1320 = vector.broadcast %cst_260 : f32 to vector<2x32xf32>
    %1321 = arith.addf %1320, %1319 : vector<2x32xf32>
    %1322 = arith.divf %1320, %1321 : vector<2x32xf32>
    %1323 = vector.extract_strided_slice %1312 {offsets = [0, 32], sizes = [2, 32], strides = [1, 1]} : vector<2x96xf32> to vector<2x32xf32>
    %1324 = vector.extract_strided_slice %1313 {offsets = [0, 32], sizes = [2, 32], strides = [1, 1]} : vector<2x96xf32> to vector<2x32xf32>
    %1325 = arith.addf %1323, %1324 : vector<2x32xf32>
    %1326 = arith.negf %1325 : vector<2x32xf32>
    %1327 = math.exp %1326 : vector<2x32xf32>
    %cst_261 = arith.constant 1.000000e+00 : f32
    %1328 = vector.broadcast %cst_261 : f32 to vector<2x32xf32>
    %1329 = arith.addf %1328, %1327 : vector<2x32xf32>
    %1330 = arith.divf %1328, %1329 : vector<2x32xf32>
    %1331 = vector.extract_strided_slice %1312 {offsets = [0, 64], sizes = [2, 32], strides = [1, 1]} : vector<2x96xf32> to vector<2x32xf32>
    %1332 = vector.extract_strided_slice %1313 {offsets = [0, 64], sizes = [2, 32], strides = [1, 1]} : vector<2x96xf32> to vector<2x32xf32>
    %1333 = vector.broadcast %1152 : vector<1x32xf32> to vector<2x32xf32>
    %1334 = arith.addf %1332, %1333 : vector<2x32xf32>
    %1335 = arith.mulf %1322, %1334 : vector<2x32xf32>
    %1336 = arith.addf %1331, %1335 : vector<2x32xf32>
    %1337 = math.tanh %1336 : vector<2x32xf32>
    %cst_262 = arith.constant 1.000000e+00 : f32
    %1338 = vector.broadcast %cst_262 : f32 to vector<2x32xf32>
    %1339 = arith.subf %1338, %1330 : vector<2x32xf32>
    %1340 = arith.mulf %1339, %1337 : vector<2x32xf32>
    %1341 = arith.mulf %1330, %1314 : vector<2x32xf32>
    %1342 = arith.addf %1340, %1341 : vector<2x32xf32>
    %1343 = vector.extract_strided_slice %1145 {offsets = [0, 96], sizes = [1, 96], strides = [1, 1]} : vector<1x192xf32> to vector<1x96xf32>
    %cst_263 = arith.constant 0.818181812 : f32
    %1344 = vector.broadcast %cst_263 : f32 to vector<1x96xf32>
    %1345 = arith.mulf %1344, %1343 : vector<1x96xf32>
    %1346 = vector.extract_strided_slice %1149 {offsets = [0, 96], sizes = [2, 96], strides = [1, 1]} : vector<2x192xf32> to vector<2x96xf32>
    %1347 = vector.broadcast %1345 : vector<1x96xf32> to vector<2x96xf32>
    %1348 = arith.addf %1347, %1346 : vector<2x96xf32>
    %1349 = vector.extract_strided_slice %1306 {offsets = [0, 96], sizes = [2, 96], strides = [1, 1]} : vector<2x192xf32> to vector<2x96xf32>
    %1350 = vector.extract_strided_slice %1305 {offsets = [0, 32], sizes = [2, 32], strides = [1, 1]} : vector<2x64xf32> to vector<2x32xf32>
    %1351 = vector.extract_strided_slice %1348 {offsets = [0, 0], sizes = [2, 32], strides = [1, 1]} : vector<2x96xf32> to vector<2x32xf32>
    %1352 = vector.extract_strided_slice %1349 {offsets = [0, 0], sizes = [2, 32], strides = [1, 1]} : vector<2x96xf32> to vector<2x32xf32>
    %1353 = arith.addf %1351, %1352 : vector<2x32xf32>
    %1354 = arith.negf %1353 : vector<2x32xf32>
    %1355 = math.exp %1354 : vector<2x32xf32>
    %cst_264 = arith.constant 1.000000e+00 : f32
    %1356 = vector.broadcast %cst_264 : f32 to vector<2x32xf32>
    %1357 = arith.addf %1356, %1355 : vector<2x32xf32>
    %1358 = arith.divf %1356, %1357 : vector<2x32xf32>
    %1359 = vector.extract_strided_slice %1348 {offsets = [0, 32], sizes = [2, 32], strides = [1, 1]} : vector<2x96xf32> to vector<2x32xf32>
    %1360 = vector.extract_strided_slice %1349 {offsets = [0, 32], sizes = [2, 32], strides = [1, 1]} : vector<2x96xf32> to vector<2x32xf32>
    %1361 = arith.addf %1359, %1360 : vector<2x32xf32>
    %1362 = arith.negf %1361 : vector<2x32xf32>
    %1363 = math.exp %1362 : vector<2x32xf32>
    %cst_265 = arith.constant 1.000000e+00 : f32
    %1364 = vector.broadcast %cst_265 : f32 to vector<2x32xf32>
    %1365 = arith.addf %1364, %1363 : vector<2x32xf32>
    %1366 = arith.divf %1364, %1365 : vector<2x32xf32>
    %1367 = vector.extract_strided_slice %1348 {offsets = [0, 64], sizes = [2, 32], strides = [1, 1]} : vector<2x96xf32> to vector<2x32xf32>
    %1368 = vector.extract_strided_slice %1349 {offsets = [0, 64], sizes = [2, 32], strides = [1, 1]} : vector<2x96xf32> to vector<2x32xf32>
    %1369 = vector.broadcast %1153 : vector<1x32xf32> to vector<2x32xf32>
    %1370 = arith.addf %1368, %1369 : vector<2x32xf32>
    %1371 = arith.mulf %1358, %1370 : vector<2x32xf32>
    %1372 = arith.addf %1367, %1371 : vector<2x32xf32>
    %1373 = math.tanh %1372 : vector<2x32xf32>
    %cst_266 = arith.constant 1.000000e+00 : f32
    %1374 = vector.broadcast %cst_266 : f32 to vector<2x32xf32>
    %1375 = arith.subf %1374, %1366 : vector<2x32xf32>
    %1376 = arith.mulf %1375, %1373 : vector<2x32xf32>
    %1377 = arith.mulf %1366, %1350 : vector<2x32xf32>
    %1378 = arith.addf %1376, %1377 : vector<2x32xf32>
    %c4_267 = arith.constant 4 : index
    %c0_268 = arith.constant 0 : index
    %1379 = vector.load %arg7[%c4_267, %c0_268] : memref<24x64xf32, #tpu.memory_space<vmem>>, vector<2x32xf32>
    tpu.vector_store %arg7[%c4_267, %c0_268], %1342 {strides = array<i32>} : memref<24x64xf32, #tpu.memory_space<vmem>>, vector<2x32xf32>,
    %c18 = arith.constant 18 : index
    %c32_269 = arith.constant 32 : index
    %1380 = vector.load %arg7[%c18, %c32_269] : memref<24x64xf32, #tpu.memory_space<vmem>>, vector<2x32xf32>
    tpu.vector_store %arg7[%c18, %c32_269], %1378 {strides = array<i32>} : memref<24x64xf32, #tpu.memory_space<vmem>>, vector<2x32xf32>,
    %1381 = tpu.concatenate %1342, %1378 in 1 : vector<2x32xf32>, vector<2x32xf32> -> vector<2x64xf32>
    %cst_270 = arith.constant dense<0.000000e+00> : vector<2x192xf32>
    %1382 = tpu.matmul %1381, %1150, %cst_270 {dimension_numbers = #tpu.dot_dimension_numbers<[1], [0], [0], [1], [0, 0, 1, 1], [], []>} : vector<2x64xf32>, vector<64x192xf32>, vector<2x192xf32> -> vector<2x192xf32>
    %1383 = vector.extract_strided_slice %1145 {offsets = [0, 0], sizes = [1, 96], strides = [1, 1]} : vector<1x192xf32> to vector<1x96xf32>
    %cst_271 = arith.constant 0.272727281 : f32
    %1384 = vector.broadcast %cst_271 : f32 to vector<1x96xf32>
    %1385 = arith.mulf %1384, %1383 : vector<1x96xf32>
    %1386 = vector.extract_strided_slice %1149 {offsets = [0, 0], sizes = [2, 96], strides = [1, 1]} : vector<2x192xf32> to vector<2x96xf32>
    %1387 = vector.broadcast %1385 : vector<1x96xf32> to vector<2x96xf32>
    %1388 = arith.addf %1387, %1386 : vector<2x96xf32>
    %1389 = vector.extract_strided_slice %1382 {offsets = [0, 0], sizes = [2, 96], strides = [1, 1]} : vector<2x192xf32> to vector<2x96xf32>
    %1390 = vector.extract_strided_slice %1381 {offsets = [0, 0], sizes = [2, 32], strides = [1, 1]} : vector<2x64xf32> to vector<2x32xf32>
    %1391 = vector.extract_strided_slice %1388 {offsets = [0, 0], sizes = [2, 32], strides = [1, 1]} : vector<2x96xf32> to vector<2x32xf32>
    %1392 = vector.extract_strided_slice %1389 {offsets = [0, 0], sizes = [2, 32], strides = [1, 1]} : vector<2x96xf32> to vector<2x32xf32>
    %1393 = arith.addf %1391, %1392 : vector<2x32xf32>
    %1394 = arith.negf %1393 : vector<2x32xf32>
    %1395 = math.exp %1394 : vector<2x32xf32>
    %cst_272 = arith.constant 1.000000e+00 : f32
    %1396 = vector.broadcast %cst_272 : f32 to vector<2x32xf32>
    %1397 = arith.addf %1396, %1395 : vector<2x32xf32>
    %1398 = arith.divf %1396, %1397 : vector<2x32xf32>
    %1399 = vector.extract_strided_slice %1388 {offsets = [0, 32], sizes = [2, 32], strides = [1, 1]} : vector<2x96xf32> to vector<2x32xf32>
    %1400 = vector.extract_strided_slice %1389 {offsets = [0, 32], sizes = [2, 32], strides = [1, 1]} : vector<2x96xf32> to vector<2x32xf32>
    %1401 = arith.addf %1399, %1400 : vector<2x32xf32>
    %1402 = arith.negf %1401 : vector<2x32xf32>
    %1403 = math.exp %1402 : vector<2x32xf32>
    %cst_273 = arith.constant 1.000000e+00 : f32
    %1404 = vector.broadcast %cst_273 : f32 to vector<2x32xf32>
    %1405 = arith.addf %1404, %1403 : vector<2x32xf32>
    %1406 = arith.divf %1404, %1405 : vector<2x32xf32>
    %1407 = vector.extract_strided_slice %1388 {offsets = [0, 64], sizes = [2, 32], strides = [1, 1]} : vector<2x96xf32> to vector<2x32xf32>
    %1408 = vector.extract_strided_slice %1389 {offsets = [0, 64], sizes = [2, 32], strides = [1, 1]} : vector<2x96xf32> to vector<2x32xf32>
    %1409 = vector.broadcast %1152 : vector<1x32xf32> to vector<2x32xf32>
    %1410 = arith.addf %1408, %1409 : vector<2x32xf32>
    %1411 = arith.mulf %1398, %1410 : vector<2x32xf32>
    %1412 = arith.addf %1407, %1411 : vector<2x32xf32>
    %1413 = math.tanh %1412 : vector<2x32xf32>
    %cst_274 = arith.constant 1.000000e+00 : f32
    %1414 = vector.broadcast %cst_274 : f32 to vector<2x32xf32>
    %1415 = arith.subf %1414, %1406 : vector<2x32xf32>
    %1416 = arith.mulf %1415, %1413 : vector<2x32xf32>
    %1417 = arith.mulf %1406, %1390 : vector<2x32xf32>
    %1418 = arith.addf %1416, %1417 : vector<2x32xf32>
    %1419 = vector.extract_strided_slice %1145 {offsets = [0, 96], sizes = [1, 96], strides = [1, 1]} : vector<1x192xf32> to vector<1x96xf32>
    %cst_275 = arith.constant 0.727272749 : f32
    %1420 = vector.broadcast %cst_275 : f32 to vector<1x96xf32>
    %1421 = arith.mulf %1420, %1419 : vector<1x96xf32>
    %1422 = vector.extract_strided_slice %1149 {offsets = [0, 96], sizes = [2, 96], strides = [1, 1]} : vector<2x192xf32> to vector<2x96xf32>
    %1423 = vector.broadcast %1421 : vector<1x96xf32> to vector<2x96xf32>
    %1424 = arith.addf %1423, %1422 : vector<2x96xf32>
    %1425 = vector.extract_strided_slice %1382 {offsets = [0, 96], sizes = [2, 96], strides = [1, 1]} : vector<2x192xf32> to vector<2x96xf32>
    %1426 = vector.extract_strided_slice %1381 {offsets = [0, 32], sizes = [2, 32], strides = [1, 1]} : vector<2x64xf32> to vector<2x32xf32>
    %1427 = vector.extract_strided_slice %1424 {offsets = [0, 0], sizes = [2, 32], strides = [1, 1]} : vector<2x96xf32> to vector<2x32xf32>
    %1428 = vector.extract_strided_slice %1425 {offsets = [0, 0], sizes = [2, 32], strides = [1, 1]} : vector<2x96xf32> to vector<2x32xf32>
    %1429 = arith.addf %1427, %1428 : vector<2x32xf32>
    %1430 = arith.negf %1429 : vector<2x32xf32>
    %1431 = math.exp %1430 : vector<2x32xf32>
    %cst_276 = arith.constant 1.000000e+00 : f32
    %1432 = vector.broadcast %cst_276 : f32 to vector<2x32xf32>
    %1433 = arith.addf %1432, %1431 : vector<2x32xf32>
    %1434 = arith.divf %1432, %1433 : vector<2x32xf32>
    %1435 = vector.extract_strided_slice %1424 {offsets = [0, 32], sizes = [2, 32], strides = [1, 1]} : vector<2x96xf32> to vector<2x32xf32>
    %1436 = vector.extract_strided_slice %1425 {offsets = [0, 32], sizes = [2, 32], strides = [1, 1]} : vector<2x96xf32> to vector<2x32xf32>
    %1437 = arith.addf %1435, %1436 : vector<2x32xf32>
    %1438 = arith.negf %1437 : vector<2x32xf32>
    %1439 = math.exp %1438 : vector<2x32xf32>
    %cst_277 = arith.constant 1.000000e+00 : f32
    %1440 = vector.broadcast %cst_277 : f32 to vector<2x32xf32>
    %1441 = arith.addf %1440, %1439 : vector<2x32xf32>
    %1442 = arith.divf %1440, %1441 : vector<2x32xf32>
    %1443 = vector.extract_strided_slice %1424 {offsets = [0, 64], sizes = [2, 32], strides = [1, 1]} : vector<2x96xf32> to vector<2x32xf32>
    %1444 = vector.extract_strided_slice %1425 {offsets = [0, 64], sizes = [2, 32], strides = [1, 1]} : vector<2x96xf32> to vector<2x32xf32>
    %1445 = vector.broadcast %1153 : vector<1x32xf32> to vector<2x32xf32>
    %1446 = arith.addf %1444, %1445 : vector<2x32xf32>
    %1447 = arith.mulf %1434, %1446 : vector<2x32xf32>
    %1448 = arith.addf %1443, %1447 : vector<2x32xf32>
    %1449 = math.tanh %1448 : vector<2x32xf32>
    %cst_278 = arith.constant 1.000000e+00 : f32
    %1450 = vector.broadcast %cst_278 : f32 to vector<2x32xf32>
    %1451 = arith.subf %1450, %1442 : vector<2x32xf32>
    %1452 = arith.mulf %1451, %1449 : vector<2x32xf32>
    %1453 = arith.mulf %1442, %1426 : vector<2x32xf32>
    %1454 = arith.addf %1452, %1453 : vector<2x32xf32>
    %c6_279 = arith.constant 6 : index
    %c0_280 = arith.constant 0 : index
    %1455 = vector.load %arg7[%c6_279, %c0_280] : memref<24x64xf32, #tpu.memory_space<vmem>>, vector<2x32xf32>
    tpu.vector_store %arg7[%c6_279, %c0_280], %1418 {strides = array<i32>} : memref<24x64xf32, #tpu.memory_space<vmem>>, vector<2x32xf32>,
    %c16 = arith.constant 16 : index
    %c32_281 = arith.constant 32 : index
    %1456 = vector.load %arg7[%c16, %c32_281] : memref<24x64xf32, #tpu.memory_space<vmem>>, vector<2x32xf32>
    tpu.vector_store %arg7[%c16, %c32_281], %1454 {strides = array<i32>} : memref<24x64xf32, #tpu.memory_space<vmem>>, vector<2x32xf32>,
    %1457 = tpu.concatenate %1418, %1454 in 1 : vector<2x32xf32>, vector<2x32xf32> -> vector<2x64xf32>
    %cst_282 = arith.constant dense<0.000000e+00> : vector<2x192xf32>
    %1458 = tpu.matmul %1457, %1150, %cst_282 {dimension_numbers = #tpu.dot_dimension_numbers<[1], [0], [0], [1], [0, 0, 1, 1], [], []>} : vector<2x64xf32>, vector<64x192xf32>, vector<2x192xf32> -> vector<2x192xf32>
    %1459 = vector.extract_strided_slice %1145 {offsets = [0, 0], sizes = [1, 96], strides = [1, 1]} : vector<1x192xf32> to vector<1x96xf32>
    %cst_283 = arith.constant 0.363636374 : f32
    %1460 = vector.broadcast %cst_283 : f32 to vector<1x96xf32>
    %1461 = arith.mulf %1460, %1459 : vector<1x96xf32>
    %1462 = vector.extract_strided_slice %1149 {offsets = [0, 0], sizes = [2, 96], strides = [1, 1]} : vector<2x192xf32> to vector<2x96xf32>
    %1463 = vector.broadcast %1461 : vector<1x96xf32> to vector<2x96xf32>
    %1464 = arith.addf %1463, %1462 : vector<2x96xf32>
    %1465 = vector.extract_strided_slice %1458 {offsets = [0, 0], sizes = [2, 96], strides = [1, 1]} : vector<2x192xf32> to vector<2x96xf32>
    %1466 = vector.extract_strided_slice %1457 {offsets = [0, 0], sizes = [2, 32], strides = [1, 1]} : vector<2x64xf32> to vector<2x32xf32>
    %1467 = vector.extract_strided_slice %1464 {offsets = [0, 0], sizes = [2, 32], strides = [1, 1]} : vector<2x96xf32> to vector<2x32xf32>
    %1468 = vector.extract_strided_slice %1465 {offsets = [0, 0], sizes = [2, 32], strides = [1, 1]} : vector<2x96xf32> to vector<2x32xf32>
    %1469 = arith.addf %1467, %1468 : vector<2x32xf32>
    %1470 = arith.negf %1469 : vector<2x32xf32>
    %1471 = math.exp %1470 : vector<2x32xf32>
    %cst_284 = arith.constant 1.000000e+00 : f32
    %1472 = vector.broadcast %cst_284 : f32 to vector<2x32xf32>
    %1473 = arith.addf %1472, %1471 : vector<2x32xf32>
    %1474 = arith.divf %1472, %1473 : vector<2x32xf32>
    %1475 = vector.extract_strided_slice %1464 {offsets = [0, 32], sizes = [2, 32], strides = [1, 1]} : vector<2x96xf32> to vector<2x32xf32>
    %1476 = vector.extract_strided_slice %1465 {offsets = [0, 32], sizes = [2, 32], strides = [1, 1]} : vector<2x96xf32> to vector<2x32xf32>
    %1477 = arith.addf %1475, %1476 : vector<2x32xf32>
    %1478 = arith.negf %1477 : vector<2x32xf32>
    %1479 = math.exp %1478 : vector<2x32xf32>
    %cst_285 = arith.constant 1.000000e+00 : f32
    %1480 = vector.broadcast %cst_285 : f32 to vector<2x32xf32>
    %1481 = arith.addf %1480, %1479 : vector<2x32xf32>
    %1482 = arith.divf %1480, %1481 : vector<2x32xf32>
    %1483 = vector.extract_strided_slice %1464 {offsets = [0, 64], sizes = [2, 32], strides = [1, 1]} : vector<2x96xf32> to vector<2x32xf32>
    %1484 = vector.extract_strided_slice %1465 {offsets = [0, 64], sizes = [2, 32], strides = [1, 1]} : vector<2x96xf32> to vector<2x32xf32>
    %1485 = vector.broadcast %1152 : vector<1x32xf32> to vector<2x32xf32>
    %1486 = arith.addf %1484, %1485 : vector<2x32xf32>
    %1487 = arith.mulf %1474, %1486 : vector<2x32xf32>
    %1488 = arith.addf %1483, %1487 : vector<2x32xf32>
    %1489 = math.tanh %1488 : vector<2x32xf32>
    %cst_286 = arith.constant 1.000000e+00 : f32
    %1490 = vector.broadcast %cst_286 : f32 to vector<2x32xf32>
    %1491 = arith.subf %1490, %1482 : vector<2x32xf32>
    %1492 = arith.mulf %1491, %1489 : vector<2x32xf32>
    %1493 = arith.mulf %1482, %1466 : vector<2x32xf32>
    %1494 = arith.addf %1492, %1493 : vector<2x32xf32>
    %1495 = vector.extract_strided_slice %1145 {offsets = [0, 96], sizes = [1, 96], strides = [1, 1]} : vector<1x192xf32> to vector<1x96xf32>
    %cst_287 = arith.constant 0.636363626 : f32
    %1496 = vector.broadcast %cst_287 : f32 to vector<1x96xf32>
    %1497 = arith.mulf %1496, %1495 : vector<1x96xf32>
    %1498 = vector.extract_strided_slice %1149 {offsets = [0, 96], sizes = [2, 96], strides = [1, 1]} : vector<2x192xf32> to vector<2x96xf32>
    %1499 = vector.broadcast %1497 : vector<1x96xf32> to vector<2x96xf32>
    %1500 = arith.addf %1499, %1498 : vector<2x96xf32>
    %1501 = vector.extract_strided_slice %1458 {offsets = [0, 96], sizes = [2, 96], strides = [1, 1]} : vector<2x192xf32> to vector<2x96xf32>
    %1502 = vector.extract_strided_slice %1457 {offsets = [0, 32], sizes = [2, 32], strides = [1, 1]} : vector<2x64xf32> to vector<2x32xf32>
    %1503 = vector.extract_strided_slice %1500 {offsets = [0, 0], sizes = [2, 32], strides = [1, 1]} : vector<2x96xf32> to vector<2x32xf32>
    %1504 = vector.extract_strided_slice %1501 {offsets = [0, 0], sizes = [2, 32], strides = [1, 1]} : vector<2x96xf32> to vector<2x32xf32>
    %1505 = arith.addf %1503, %1504 : vector<2x32xf32>
    %1506 = arith.negf %1505 : vector<2x32xf32>
    %1507 = math.exp %1506 : vector<2x32xf32>
    %cst_288 = arith.constant 1.000000e+00 : f32
    %1508 = vector.broadcast %cst_288 : f32 to vector<2x32xf32>
    %1509 = arith.addf %1508, %1507 : vector<2x32xf32>
    %1510 = arith.divf %1508, %1509 : vector<2x32xf32>
    %1511 = vector.extract_strided_slice %1500 {offsets = [0, 32], sizes = [2, 32], strides = [1, 1]} : vector<2x96xf32> to vector<2x32xf32>
    %1512 = vector.extract_strided_slice %1501 {offsets = [0, 32], sizes = [2, 32], strides = [1, 1]} : vector<2x96xf32> to vector<2x32xf32>
    %1513 = arith.addf %1511, %1512 : vector<2x32xf32>
    %1514 = arith.negf %1513 : vector<2x32xf32>
    %1515 = math.exp %1514 : vector<2x32xf32>
    %cst_289 = arith.constant 1.000000e+00 : f32
    %1516 = vector.broadcast %cst_289 : f32 to vector<2x32xf32>
    %1517 = arith.addf %1516, %1515 : vector<2x32xf32>
    %1518 = arith.divf %1516, %1517 : vector<2x32xf32>
    %1519 = vector.extract_strided_slice %1500 {offsets = [0, 64], sizes = [2, 32], strides = [1, 1]} : vector<2x96xf32> to vector<2x32xf32>
    %1520 = vector.extract_strided_slice %1501 {offsets = [0, 64], sizes = [2, 32], strides = [1, 1]} : vector<2x96xf32> to vector<2x32xf32>
    %1521 = vector.broadcast %1153 : vector<1x32xf32> to vector<2x32xf32>
    %1522 = arith.addf %1520, %1521 : vector<2x32xf32>
    %1523 = arith.mulf %1510, %1522 : vector<2x32xf32>
    %1524 = arith.addf %1519, %1523 : vector<2x32xf32>
    %1525 = math.tanh %1524 : vector<2x32xf32>
    %cst_290 = arith.constant 1.000000e+00 : f32
    %1526 = vector.broadcast %cst_290 : f32 to vector<2x32xf32>
    %1527 = arith.subf %1526, %1518 : vector<2x32xf32>
    %1528 = arith.mulf %1527, %1525 : vector<2x32xf32>
    %1529 = arith.mulf %1518, %1502 : vector<2x32xf32>
    %1530 = arith.addf %1528, %1529 : vector<2x32xf32>
    %c8_291 = arith.constant 8 : index
    %c0_292 = arith.constant 0 : index
    %1531 = vector.load %arg7[%c8_291, %c0_292] : memref<24x64xf32, #tpu.memory_space<vmem>>, vector<2x32xf32>
    tpu.vector_store %arg7[%c8_291, %c0_292], %1494 {strides = array<i32>} : memref<24x64xf32, #tpu.memory_space<vmem>>, vector<2x32xf32>,
    %c14_293 = arith.constant 14 : index
    %c32_294 = arith.constant 32 : index
    %1532 = vector.load %arg7[%c14_293, %c32_294] : memref<24x64xf32, #tpu.memory_space<vmem>>, vector<2x32xf32>
    tpu.vector_store %arg7[%c14_293, %c32_294], %1530 {strides = array<i32>} : memref<24x64xf32, #tpu.memory_space<vmem>>, vector<2x32xf32>,
    %1533 = tpu.concatenate %1494, %1530 in 1 : vector<2x32xf32>, vector<2x32xf32> -> vector<2x64xf32>
    %cst_295 = arith.constant dense<0.000000e+00> : vector<2x192xf32>
    %1534 = tpu.matmul %1533, %1150, %cst_295 {dimension_numbers = #tpu.dot_dimension_numbers<[1], [0], [0], [1], [0, 0, 1, 1], [], []>} : vector<2x64xf32>, vector<64x192xf32>, vector<2x192xf32> -> vector<2x192xf32>
    %1535 = vector.extract_strided_slice %1145 {offsets = [0, 0], sizes = [1, 96], strides = [1, 1]} : vector<1x192xf32> to vector<1x96xf32>
    %cst_296 = arith.constant 0.454545468 : f32
    %1536 = vector.broadcast %cst_296 : f32 to vector<1x96xf32>
    %1537 = arith.mulf %1536, %1535 : vector<1x96xf32>
    %1538 = vector.extract_strided_slice %1149 {offsets = [0, 0], sizes = [2, 96], strides = [1, 1]} : vector<2x192xf32> to vector<2x96xf32>
    %1539 = vector.broadcast %1537 : vector<1x96xf32> to vector<2x96xf32>
    %1540 = arith.addf %1539, %1538 : vector<2x96xf32>
    %1541 = vector.extract_strided_slice %1534 {offsets = [0, 0], sizes = [2, 96], strides = [1, 1]} : vector<2x192xf32> to vector<2x96xf32>
    %1542 = vector.extract_strided_slice %1533 {offsets = [0, 0], sizes = [2, 32], strides = [1, 1]} : vector<2x64xf32> to vector<2x32xf32>
    %1543 = vector.extract_strided_slice %1540 {offsets = [0, 0], sizes = [2, 32], strides = [1, 1]} : vector<2x96xf32> to vector<2x32xf32>
    %1544 = vector.extract_strided_slice %1541 {offsets = [0, 0], sizes = [2, 32], strides = [1, 1]} : vector<2x96xf32> to vector<2x32xf32>
    %1545 = arith.addf %1543, %1544 : vector<2x32xf32>
    %1546 = arith.negf %1545 : vector<2x32xf32>
    %1547 = math.exp %1546 : vector<2x32xf32>
    %cst_297 = arith.constant 1.000000e+00 : f32
    %1548 = vector.broadcast %cst_297 : f32 to vector<2x32xf32>
    %1549 = arith.addf %1548, %1547 : vector<2x32xf32>
    %1550 = arith.divf %1548, %1549 : vector<2x32xf32>
    %1551 = vector.extract_strided_slice %1540 {offsets = [0, 32], sizes = [2, 32], strides = [1, 1]} : vector<2x96xf32> to vector<2x32xf32>
    %1552 = vector.extract_strided_slice %1541 {offsets = [0, 32], sizes = [2, 32], strides = [1, 1]} : vector<2x96xf32> to vector<2x32xf32>
    %1553 = arith.addf %1551, %1552 : vector<2x32xf32>
    %1554 = arith.negf %1553 : vector<2x32xf32>
    %1555 = math.exp %1554 : vector<2x32xf32>
    %cst_298 = arith.constant 1.000000e+00 : f32
    %1556 = vector.broadcast %cst_298 : f32 to vector<2x32xf32>
    %1557 = arith.addf %1556, %1555 : vector<2x32xf32>
    %1558 = arith.divf %1556, %1557 : vector<2x32xf32>
    %1559 = vector.extract_strided_slice %1540 {offsets = [0, 64], sizes = [2, 32], strides = [1, 1]} : vector<2x96xf32> to vector<2x32xf32>
    %1560 = vector.extract_strided_slice %1541 {offsets = [0, 64], sizes = [2, 32], strides = [1, 1]} : vector<2x96xf32> to vector<2x32xf32>
    %1561 = vector.broadcast %1152 : vector<1x32xf32> to vector<2x32xf32>
    %1562 = arith.addf %1560, %1561 : vector<2x32xf32>
    %1563 = arith.mulf %1550, %1562 : vector<2x32xf32>
    %1564 = arith.addf %1559, %1563 : vector<2x32xf32>
    %1565 = math.tanh %1564 : vector<2x32xf32>
    %cst_299 = arith.constant 1.000000e+00 : f32
    %1566 = vector.broadcast %cst_299 : f32 to vector<2x32xf32>
    %1567 = arith.subf %1566, %1558 : vector<2x32xf32>
    %1568 = arith.mulf %1567, %1565 : vector<2x32xf32>
    %1569 = arith.mulf %1558, %1542 : vector<2x32xf32>
    %1570 = arith.addf %1568, %1569 : vector<2x32xf32>
    %1571 = vector.extract_strided_slice %1145 {offsets = [0, 96], sizes = [1, 96], strides = [1, 1]} : vector<1x192xf32> to vector<1x96xf32>
    %cst_300 = arith.constant 0.545454562 : f32
    %1572 = vector.broadcast %cst_300 : f32 to vector<1x96xf32>
    %1573 = arith.mulf %1572, %1571 : vector<1x96xf32>
    %1574 = vector.extract_strided_slice %1149 {offsets = [0, 96], sizes = [2, 96], strides = [1, 1]} : vector<2x192xf32> to vector<2x96xf32>
    %1575 = vector.broadcast %1573 : vector<1x96xf32> to vector<2x96xf32>
    %1576 = arith.addf %1575, %1574 : vector<2x96xf32>
    %1577 = vector.extract_strided_slice %1534 {offsets = [0, 96], sizes = [2, 96], strides = [1, 1]} : vector<2x192xf32> to vector<2x96xf32>
    %1578 = vector.extract_strided_slice %1533 {offsets = [0, 32], sizes = [2, 32], strides = [1, 1]} : vector<2x64xf32> to vector<2x32xf32>
    %1579 = vector.extract_strided_slice %1576 {offsets = [0, 0], sizes = [2, 32], strides = [1, 1]} : vector<2x96xf32> to vector<2x32xf32>
    %1580 = vector.extract_strided_slice %1577 {offsets = [0, 0], sizes = [2, 32], strides = [1, 1]} : vector<2x96xf32> to vector<2x32xf32>
    %1581 = arith.addf %1579, %1580 : vector<2x32xf32>
    %1582 = arith.negf %1581 : vector<2x32xf32>
    %1583 = math.exp %1582 : vector<2x32xf32>
    %cst_301 = arith.constant 1.000000e+00 : f32
    %1584 = vector.broadcast %cst_301 : f32 to vector<2x32xf32>
    %1585 = arith.addf %1584, %1583 : vector<2x32xf32>
    %1586 = arith.divf %1584, %1585 : vector<2x32xf32>
    %1587 = vector.extract_strided_slice %1576 {offsets = [0, 32], sizes = [2, 32], strides = [1, 1]} : vector<2x96xf32> to vector<2x32xf32>
    %1588 = vector.extract_strided_slice %1577 {offsets = [0, 32], sizes = [2, 32], strides = [1, 1]} : vector<2x96xf32> to vector<2x32xf32>
    %1589 = arith.addf %1587, %1588 : vector<2x32xf32>
    %1590 = arith.negf %1589 : vector<2x32xf32>
    %1591 = math.exp %1590 : vector<2x32xf32>
    %cst_302 = arith.constant 1.000000e+00 : f32
    %1592 = vector.broadcast %cst_302 : f32 to vector<2x32xf32>
    %1593 = arith.addf %1592, %1591 : vector<2x32xf32>
    %1594 = arith.divf %1592, %1593 : vector<2x32xf32>
    %1595 = vector.extract_strided_slice %1576 {offsets = [0, 64], sizes = [2, 32], strides = [1, 1]} : vector<2x96xf32> to vector<2x32xf32>
    %1596 = vector.extract_strided_slice %1577 {offsets = [0, 64], sizes = [2, 32], strides = [1, 1]} : vector<2x96xf32> to vector<2x32xf32>
    %1597 = vector.broadcast %1153 : vector<1x32xf32> to vector<2x32xf32>
    %1598 = arith.addf %1596, %1597 : vector<2x32xf32>
    %1599 = arith.mulf %1586, %1598 : vector<2x32xf32>
    %1600 = arith.addf %1595, %1599 : vector<2x32xf32>
    %1601 = math.tanh %1600 : vector<2x32xf32>
    %cst_303 = arith.constant 1.000000e+00 : f32
    %1602 = vector.broadcast %cst_303 : f32 to vector<2x32xf32>
    %1603 = arith.subf %1602, %1594 : vector<2x32xf32>
    %1604 = arith.mulf %1603, %1601 : vector<2x32xf32>
    %1605 = arith.mulf %1594, %1578 : vector<2x32xf32>
    %1606 = arith.addf %1604, %1605 : vector<2x32xf32>
    %c10_304 = arith.constant 10 : index
    %c0_305 = arith.constant 0 : index
    %1607 = vector.load %arg7[%c10_304, %c0_305] : memref<24x64xf32, #tpu.memory_space<vmem>>, vector<2x32xf32>
    tpu.vector_store %arg7[%c10_304, %c0_305], %1570 {strides = array<i32>} : memref<24x64xf32, #tpu.memory_space<vmem>>, vector<2x32xf32>,
    %c12_306 = arith.constant 12 : index
    %c32_307 = arith.constant 32 : index
    %1608 = vector.load %arg7[%c12_306, %c32_307] : memref<24x64xf32, #tpu.memory_space<vmem>>, vector<2x32xf32>
    tpu.vector_store %arg7[%c12_306, %c32_307], %1606 {strides = array<i32>} : memref<24x64xf32, #tpu.memory_space<vmem>>, vector<2x32xf32>,
    %1609 = tpu.concatenate %1570, %1606 in 1 : vector<2x32xf32>, vector<2x32xf32> -> vector<2x64xf32>
    %cst_308 = arith.constant dense<0.000000e+00> : vector<2x192xf32>
    %1610 = tpu.matmul %1609, %1150, %cst_308 {dimension_numbers = #tpu.dot_dimension_numbers<[1], [0], [0], [1], [0, 0, 1, 1], [], []>} : vector<2x64xf32>, vector<64x192xf32>, vector<2x192xf32> -> vector<2x192xf32>
    %1611 = vector.extract_strided_slice %1145 {offsets = [0, 0], sizes = [1, 96], strides = [1, 1]} : vector<1x192xf32> to vector<1x96xf32>
    %cst_309 = arith.constant 0.545454562 : f32
    %1612 = vector.broadcast %cst_309 : f32 to vector<1x96xf32>
    %1613 = arith.mulf %1612, %1611 : vector<1x96xf32>
    %1614 = vector.extract_strided_slice %1149 {offsets = [0, 0], sizes = [2, 96], strides = [1, 1]} : vector<2x192xf32> to vector<2x96xf32>
    %1615 = vector.broadcast %1613 : vector<1x96xf32> to vector<2x96xf32>
    %1616 = arith.addf %1615, %1614 : vector<2x96xf32>
    %1617 = vector.extract_strided_slice %1610 {offsets = [0, 0], sizes = [2, 96], strides = [1, 1]} : vector<2x192xf32> to vector<2x96xf32>
    %1618 = vector.extract_strided_slice %1609 {offsets = [0, 0], sizes = [2, 32], strides = [1, 1]} : vector<2x64xf32> to vector<2x32xf32>
    %1619 = vector.extract_strided_slice %1616 {offsets = [0, 0], sizes = [2, 32], strides = [1, 1]} : vector<2x96xf32> to vector<2x32xf32>
    %1620 = vector.extract_strided_slice %1617 {offsets = [0, 0], sizes = [2, 32], strides = [1, 1]} : vector<2x96xf32> to vector<2x32xf32>
    %1621 = arith.addf %1619, %1620 : vector<2x32xf32>
    %1622 = arith.negf %1621 : vector<2x32xf32>
    %1623 = math.exp %1622 : vector<2x32xf32>
    %cst_310 = arith.constant 1.000000e+00 : f32
    %1624 = vector.broadcast %cst_310 : f32 to vector<2x32xf32>
    %1625 = arith.addf %1624, %1623 : vector<2x32xf32>
    %1626 = arith.divf %1624, %1625 : vector<2x32xf32>
    %1627 = vector.extract_strided_slice %1616 {offsets = [0, 32], sizes = [2, 32], strides = [1, 1]} : vector<2x96xf32> to vector<2x32xf32>
    %1628 = vector.extract_strided_slice %1617 {offsets = [0, 32], sizes = [2, 32], strides = [1, 1]} : vector<2x96xf32> to vector<2x32xf32>
    %1629 = arith.addf %1627, %1628 : vector<2x32xf32>
    %1630 = arith.negf %1629 : vector<2x32xf32>
    %1631 = math.exp %1630 : vector<2x32xf32>
    %cst_311 = arith.constant 1.000000e+00 : f32
    %1632 = vector.broadcast %cst_311 : f32 to vector<2x32xf32>
    %1633 = arith.addf %1632, %1631 : vector<2x32xf32>
    %1634 = arith.divf %1632, %1633 : vector<2x32xf32>
    %1635 = vector.extract_strided_slice %1616 {offsets = [0, 64], sizes = [2, 32], strides = [1, 1]} : vector<2x96xf32> to vector<2x32xf32>
    %1636 = vector.extract_strided_slice %1617 {offsets = [0, 64], sizes = [2, 32], strides = [1, 1]} : vector<2x96xf32> to vector<2x32xf32>
    %1637 = vector.broadcast %1152 : vector<1x32xf32> to vector<2x32xf32>
    %1638 = arith.addf %1636, %1637 : vector<2x32xf32>
    %1639 = arith.mulf %1626, %1638 : vector<2x32xf32>
    %1640 = arith.addf %1635, %1639 : vector<2x32xf32>
    %1641 = math.tanh %1640 : vector<2x32xf32>
    %cst_312 = arith.constant 1.000000e+00 : f32
    %1642 = vector.broadcast %cst_312 : f32 to vector<2x32xf32>
    %1643 = arith.subf %1642, %1634 : vector<2x32xf32>
    %1644 = arith.mulf %1643, %1641 : vector<2x32xf32>
    %1645 = arith.mulf %1634, %1618 : vector<2x32xf32>
    %1646 = arith.addf %1644, %1645 : vector<2x32xf32>
    %1647 = vector.extract_strided_slice %1145 {offsets = [0, 96], sizes = [1, 96], strides = [1, 1]} : vector<1x192xf32> to vector<1x96xf32>
    %cst_313 = arith.constant 0.454545468 : f32
    %1648 = vector.broadcast %cst_313 : f32 to vector<1x96xf32>
    %1649 = arith.mulf %1648, %1647 : vector<1x96xf32>
    %1650 = vector.extract_strided_slice %1149 {offsets = [0, 96], sizes = [2, 96], strides = [1, 1]} : vector<2x192xf32> to vector<2x96xf32>
    %1651 = vector.broadcast %1649 : vector<1x96xf32> to vector<2x96xf32>
    %1652 = arith.addf %1651, %1650 : vector<2x96xf32>
    %1653 = vector.extract_strided_slice %1610 {offsets = [0, 96], sizes = [2, 96], strides = [1, 1]} : vector<2x192xf32> to vector<2x96xf32>
    %1654 = vector.extract_strided_slice %1609 {offsets = [0, 32], sizes = [2, 32], strides = [1, 1]} : vector<2x64xf32> to vector<2x32xf32>
    %1655 = vector.extract_strided_slice %1652 {offsets = [0, 0], sizes = [2, 32], strides = [1, 1]} : vector<2x96xf32> to vector<2x32xf32>
    %1656 = vector.extract_strided_slice %1653 {offsets = [0, 0], sizes = [2, 32], strides = [1, 1]} : vector<2x96xf32> to vector<2x32xf32>
    %1657 = arith.addf %1655, %1656 : vector<2x32xf32>
    %1658 = arith.negf %1657 : vector<2x32xf32>
    %1659 = math.exp %1658 : vector<2x32xf32>
    %cst_314 = arith.constant 1.000000e+00 : f32
    %1660 = vector.broadcast %cst_314 : f32 to vector<2x32xf32>
    %1661 = arith.addf %1660, %1659 : vector<2x32xf32>
    %1662 = arith.divf %1660, %1661 : vector<2x32xf32>
    %1663 = vector.extract_strided_slice %1652 {offsets = [0, 32], sizes = [2, 32], strides = [1, 1]} : vector<2x96xf32> to vector<2x32xf32>
    %1664 = vector.extract_strided_slice %1653 {offsets = [0, 32], sizes = [2, 32], strides = [1, 1]} : vector<2x96xf32> to vector<2x32xf32>
    %1665 = arith.addf %1663, %1664 : vector<2x32xf32>
    %1666 = arith.negf %1665 : vector<2x32xf32>
    %1667 = math.exp %1666 : vector<2x32xf32>
    %cst_315 = arith.constant 1.000000e+00 : f32
    %1668 = vector.broadcast %cst_315 : f32 to vector<2x32xf32>
    %1669 = arith.addf %1668, %1667 : vector<2x32xf32>
    %1670 = arith.divf %1668, %1669 : vector<2x32xf32>
    %1671 = vector.extract_strided_slice %1652 {offsets = [0, 64], sizes = [2, 32], strides = [1, 1]} : vector<2x96xf32> to vector<2x32xf32>
    %1672 = vector.extract_strided_slice %1653 {offsets = [0, 64], sizes = [2, 32], strides = [1, 1]} : vector<2x96xf32> to vector<2x32xf32>
    %1673 = vector.broadcast %1153 : vector<1x32xf32> to vector<2x32xf32>
    %1674 = arith.addf %1672, %1673 : vector<2x32xf32>
    %1675 = arith.mulf %1662, %1674 : vector<2x32xf32>
    %1676 = arith.addf %1671, %1675 : vector<2x32xf32>
    %1677 = math.tanh %1676 : vector<2x32xf32>
    %cst_316 = arith.constant 1.000000e+00 : f32
    %1678 = vector.broadcast %cst_316 : f32 to vector<2x32xf32>
    %1679 = arith.subf %1678, %1670 : vector<2x32xf32>
    %1680 = arith.mulf %1679, %1677 : vector<2x32xf32>
    %1681 = arith.mulf %1670, %1654 : vector<2x32xf32>
    %1682 = arith.addf %1680, %1681 : vector<2x32xf32>
    %c12_317 = arith.constant 12 : index
    %c0_318 = arith.constant 0 : index
    %1683 = vector.load %arg7[%c12_317, %c0_318] : memref<24x64xf32, #tpu.memory_space<vmem>>, vector<2x32xf32>
    tpu.vector_store %arg7[%c12_317, %c0_318], %1646 {strides = array<i32>} : memref<24x64xf32, #tpu.memory_space<vmem>>, vector<2x32xf32>,
    %c10_319 = arith.constant 10 : index
    %c32_320 = arith.constant 32 : index
    %1684 = vector.load %arg7[%c10_319, %c32_320] : memref<24x64xf32, #tpu.memory_space<vmem>>, vector<2x32xf32>
    tpu.vector_store %arg7[%c10_319, %c32_320], %1682 {strides = array<i32>} : memref<24x64xf32, #tpu.memory_space<vmem>>, vector<2x32xf32>,
    %1685 = tpu.concatenate %1646, %1682 in 1 : vector<2x32xf32>, vector<2x32xf32> -> vector<2x64xf32>
    %cst_321 = arith.constant dense<0.000000e+00> : vector<2x192xf32>
    %1686 = tpu.matmul %1685, %1150, %cst_321 {dimension_numbers = #tpu.dot_dimension_numbers<[1], [0], [0], [1], [0, 0, 1, 1], [], []>} : vector<2x64xf32>, vector<64x192xf32>, vector<2x192xf32> -> vector<2x192xf32>
    %1687 = vector.extract_strided_slice %1145 {offsets = [0, 0], sizes = [1, 96], strides = [1, 1]} : vector<1x192xf32> to vector<1x96xf32>
    %cst_322 = arith.constant 0.636363626 : f32
    %1688 = vector.broadcast %cst_322 : f32 to vector<1x96xf32>
    %1689 = arith.mulf %1688, %1687 : vector<1x96xf32>
    %1690 = vector.extract_strided_slice %1149 {offsets = [0, 0], sizes = [2, 96], strides = [1, 1]} : vector<2x192xf32> to vector<2x96xf32>
    %1691 = vector.broadcast %1689 : vector<1x96xf32> to vector<2x96xf32>
    %1692 = arith.addf %1691, %1690 : vector<2x96xf32>
    %1693 = vector.extract_strided_slice %1686 {offsets = [0, 0], sizes = [2, 96], strides = [1, 1]} : vector<2x192xf32> to vector<2x96xf32>
    %1694 = vector.extract_strided_slice %1685 {offsets = [0, 0], sizes = [2, 32], strides = [1, 1]} : vector<2x64xf32> to vector<2x32xf32>
    %1695 = vector.extract_strided_slice %1692 {offsets = [0, 0], sizes = [2, 32], strides = [1, 1]} : vector<2x96xf32> to vector<2x32xf32>
    %1696 = vector.extract_strided_slice %1693 {offsets = [0, 0], sizes = [2, 32], strides = [1, 1]} : vector<2x96xf32> to vector<2x32xf32>
    %1697 = arith.addf %1695, %1696 : vector<2x32xf32>
    %1698 = arith.negf %1697 : vector<2x32xf32>
    %1699 = math.exp %1698 : vector<2x32xf32>
    %cst_323 = arith.constant 1.000000e+00 : f32
    %1700 = vector.broadcast %cst_323 : f32 to vector<2x32xf32>
    %1701 = arith.addf %1700, %1699 : vector<2x32xf32>
    %1702 = arith.divf %1700, %1701 : vector<2x32xf32>
    %1703 = vector.extract_strided_slice %1692 {offsets = [0, 32], sizes = [2, 32], strides = [1, 1]} : vector<2x96xf32> to vector<2x32xf32>
    %1704 = vector.extract_strided_slice %1693 {offsets = [0, 32], sizes = [2, 32], strides = [1, 1]} : vector<2x96xf32> to vector<2x32xf32>
    %1705 = arith.addf %1703, %1704 : vector<2x32xf32>
    %1706 = arith.negf %1705 : vector<2x32xf32>
    %1707 = math.exp %1706 : vector<2x32xf32>
    %cst_324 = arith.constant 1.000000e+00 : f32
    %1708 = vector.broadcast %cst_324 : f32 to vector<2x32xf32>
    %1709 = arith.addf %1708, %1707 : vector<2x32xf32>
    %1710 = arith.divf %1708, %1709 : vector<2x32xf32>
    %1711 = vector.extract_strided_slice %1692 {offsets = [0, 64], sizes = [2, 32], strides = [1, 1]} : vector<2x96xf32> to vector<2x32xf32>
    %1712 = vector.extract_strided_slice %1693 {offsets = [0, 64], sizes = [2, 32], strides = [1, 1]} : vector<2x96xf32> to vector<2x32xf32>
    %1713 = vector.broadcast %1152 : vector<1x32xf32> to vector<2x32xf32>
    %1714 = arith.addf %1712, %1713 : vector<2x32xf32>
    %1715 = arith.mulf %1702, %1714 : vector<2x32xf32>
    %1716 = arith.addf %1711, %1715 : vector<2x32xf32>
    %1717 = math.tanh %1716 : vector<2x32xf32>
    %cst_325 = arith.constant 1.000000e+00 : f32
    %1718 = vector.broadcast %cst_325 : f32 to vector<2x32xf32>
    %1719 = arith.subf %1718, %1710 : vector<2x32xf32>
    %1720 = arith.mulf %1719, %1717 : vector<2x32xf32>
    %1721 = arith.mulf %1710, %1694 : vector<2x32xf32>
    %1722 = arith.addf %1720, %1721 : vector<2x32xf32>
    %1723 = vector.extract_strided_slice %1145 {offsets = [0, 96], sizes = [1, 96], strides = [1, 1]} : vector<1x192xf32> to vector<1x96xf32>
    %cst_326 = arith.constant 0.363636374 : f32
    %1724 = vector.broadcast %cst_326 : f32 to vector<1x96xf32>
    %1725 = arith.mulf %1724, %1723 : vector<1x96xf32>
    %1726 = vector.extract_strided_slice %1149 {offsets = [0, 96], sizes = [2, 96], strides = [1, 1]} : vector<2x192xf32> to vector<2x96xf32>
    %1727 = vector.broadcast %1725 : vector<1x96xf32> to vector<2x96xf32>
    %1728 = arith.addf %1727, %1726 : vector<2x96xf32>
    %1729 = vector.extract_strided_slice %1686 {offsets = [0, 96], sizes = [2, 96], strides = [1, 1]} : vector<2x192xf32> to vector<2x96xf32>
    %1730 = vector.extract_strided_slice %1685 {offsets = [0, 32], sizes = [2, 32], strides = [1, 1]} : vector<2x64xf32> to vector<2x32xf32>
    %1731 = vector.extract_strided_slice %1728 {offsets = [0, 0], sizes = [2, 32], strides = [1, 1]} : vector<2x96xf32> to vector<2x32xf32>
    %1732 = vector.extract_strided_slice %1729 {offsets = [0, 0], sizes = [2, 32], strides = [1, 1]} : vector<2x96xf32> to vector<2x32xf32>
    %1733 = arith.addf %1731, %1732 : vector<2x32xf32>
    %1734 = arith.negf %1733 : vector<2x32xf32>
    %1735 = math.exp %1734 : vector<2x32xf32>
    %cst_327 = arith.constant 1.000000e+00 : f32
    %1736 = vector.broadcast %cst_327 : f32 to vector<2x32xf32>
    %1737 = arith.addf %1736, %1735 : vector<2x32xf32>
    %1738 = arith.divf %1736, %1737 : vector<2x32xf32>
    %1739 = vector.extract_strided_slice %1728 {offsets = [0, 32], sizes = [2, 32], strides = [1, 1]} : vector<2x96xf32> to vector<2x32xf32>
    %1740 = vector.extract_strided_slice %1729 {offsets = [0, 32], sizes = [2, 32], strides = [1, 1]} : vector<2x96xf32> to vector<2x32xf32>
    %1741 = arith.addf %1739, %1740 : vector<2x32xf32>
    %1742 = arith.negf %1741 : vector<2x32xf32>
    %1743 = math.exp %1742 : vector<2x32xf32>
    %cst_328 = arith.constant 1.000000e+00 : f32
    %1744 = vector.broadcast %cst_328 : f32 to vector<2x32xf32>
    %1745 = arith.addf %1744, %1743 : vector<2x32xf32>
    %1746 = arith.divf %1744, %1745 : vector<2x32xf32>
    %1747 = vector.extract_strided_slice %1728 {offsets = [0, 64], sizes = [2, 32], strides = [1, 1]} : vector<2x96xf32> to vector<2x32xf32>
    %1748 = vector.extract_strided_slice %1729 {offsets = [0, 64], sizes = [2, 32], strides = [1, 1]} : vector<2x96xf32> to vector<2x32xf32>
    %1749 = vector.broadcast %1153 : vector<1x32xf32> to vector<2x32xf32>
    %1750 = arith.addf %1748, %1749 : vector<2x32xf32>
    %1751 = arith.mulf %1738, %1750 : vector<2x32xf32>
    %1752 = arith.addf %1747, %1751 : vector<2x32xf32>
    %1753 = math.tanh %1752 : vector<2x32xf32>
    %cst_329 = arith.constant 1.000000e+00 : f32
    %1754 = vector.broadcast %cst_329 : f32 to vector<2x32xf32>
    %1755 = arith.subf %1754, %1746 : vector<2x32xf32>
    %1756 = arith.mulf %1755, %1753 : vector<2x32xf32>
    %1757 = arith.mulf %1746, %1730 : vector<2x32xf32>
    %1758 = arith.addf %1756, %1757 : vector<2x32xf32>
    %c14_330 = arith.constant 14 : index
    %c0_331 = arith.constant 0 : index
    %1759 = vector.load %arg7[%c14_330, %c0_331] : memref<24x64xf32, #tpu.memory_space<vmem>>, vector<2x32xf32>
    tpu.vector_store %arg7[%c14_330, %c0_331], %1722 {strides = array<i32>} : memref<24x64xf32, #tpu.memory_space<vmem>>, vector<2x32xf32>,
    %c8_332 = arith.constant 8 : index
    %c32_333 = arith.constant 32 : index
    %1760 = vector.load %arg7[%c8_332, %c32_333] : memref<24x64xf32, #tpu.memory_space<vmem>>, vector<2x32xf32>
    tpu.vector_store %arg7[%c8_332, %c32_333], %1758 {strides = array<i32>} : memref<24x64xf32, #tpu.memory_space<vmem>>, vector<2x32xf32>,
    %1761 = tpu.concatenate %1722, %1758 in 1 : vector<2x32xf32>, vector<2x32xf32> -> vector<2x64xf32>
    %cst_334 = arith.constant dense<0.000000e+00> : vector<2x192xf32>
    %1762 = tpu.matmul %1761, %1150, %cst_334 {dimension_numbers = #tpu.dot_dimension_numbers<[1], [0], [0], [1], [0, 0, 1, 1], [], []>} : vector<2x64xf32>, vector<64x192xf32>, vector<2x192xf32> -> vector<2x192xf32>
    %1763 = vector.extract_strided_slice %1145 {offsets = [0, 0], sizes = [1, 96], strides = [1, 1]} : vector<1x192xf32> to vector<1x96xf32>
    %cst_335 = arith.constant 0.727272749 : f32
    %1764 = vector.broadcast %cst_335 : f32 to vector<1x96xf32>
    %1765 = arith.mulf %1764, %1763 : vector<1x96xf32>
    %1766 = vector.extract_strided_slice %1149 {offsets = [0, 0], sizes = [2, 96], strides = [1, 1]} : vector<2x192xf32> to vector<2x96xf32>
    %1767 = vector.broadcast %1765 : vector<1x96xf32> to vector<2x96xf32>
    %1768 = arith.addf %1767, %1766 : vector<2x96xf32>
    %1769 = vector.extract_strided_slice %1762 {offsets = [0, 0], sizes = [2, 96], strides = [1, 1]} : vector<2x192xf32> to vector<2x96xf32>
    %1770 = vector.extract_strided_slice %1761 {offsets = [0, 0], sizes = [2, 32], strides = [1, 1]} : vector<2x64xf32> to vector<2x32xf32>
    %1771 = vector.extract_strided_slice %1768 {offsets = [0, 0], sizes = [2, 32], strides = [1, 1]} : vector<2x96xf32> to vector<2x32xf32>
    %1772 = vector.extract_strided_slice %1769 {offsets = [0, 0], sizes = [2, 32], strides = [1, 1]} : vector<2x96xf32> to vector<2x32xf32>
    %1773 = arith.addf %1771, %1772 : vector<2x32xf32>
    %1774 = arith.negf %1773 : vector<2x32xf32>
    %1775 = math.exp %1774 : vector<2x32xf32>
    %cst_336 = arith.constant 1.000000e+00 : f32
    %1776 = vector.broadcast %cst_336 : f32 to vector<2x32xf32>
    %1777 = arith.addf %1776, %1775 : vector<2x32xf32>
    %1778 = arith.divf %1776, %1777 : vector<2x32xf32>
    %1779 = vector.extract_strided_slice %1768 {offsets = [0, 32], sizes = [2, 32], strides = [1, 1]} : vector<2x96xf32> to vector<2x32xf32>
    %1780 = vector.extract_strided_slice %1769 {offsets = [0, 32], sizes = [2, 32], strides = [1, 1]} : vector<2x96xf32> to vector<2x32xf32>
    %1781 = arith.addf %1779, %1780 : vector<2x32xf32>
    %1782 = arith.negf %1781 : vector<2x32xf32>
    %1783 = math.exp %1782 : vector<2x32xf32>
    %cst_337 = arith.constant 1.000000e+00 : f32
    %1784 = vector.broadcast %cst_337 : f32 to vector<2x32xf32>
    %1785 = arith.addf %1784, %1783 : vector<2x32xf32>
    %1786 = arith.divf %1784, %1785 : vector<2x32xf32>
    %1787 = vector.extract_strided_slice %1768 {offsets = [0, 64], sizes = [2, 32], strides = [1, 1]} : vector<2x96xf32> to vector<2x32xf32>
    %1788 = vector.extract_strided_slice %1769 {offsets = [0, 64], sizes = [2, 32], strides = [1, 1]} : vector<2x96xf32> to vector<2x32xf32>
    %1789 = vector.broadcast %1152 : vector<1x32xf32> to vector<2x32xf32>
    %1790 = arith.addf %1788, %1789 : vector<2x32xf32>
    %1791 = arith.mulf %1778, %1790 : vector<2x32xf32>
    %1792 = arith.addf %1787, %1791 : vector<2x32xf32>
    %1793 = math.tanh %1792 : vector<2x32xf32>
    %cst_338 = arith.constant 1.000000e+00 : f32
    %1794 = vector.broadcast %cst_338 : f32 to vector<2x32xf32>
    %1795 = arith.subf %1794, %1786 : vector<2x32xf32>
    %1796 = arith.mulf %1795, %1793 : vector<2x32xf32>
    %1797 = arith.mulf %1786, %1770 : vector<2x32xf32>
    %1798 = arith.addf %1796, %1797 : vector<2x32xf32>
    %1799 = vector.extract_strided_slice %1145 {offsets = [0, 96], sizes = [1, 96], strides = [1, 1]} : vector<1x192xf32> to vector<1x96xf32>
    %cst_339 = arith.constant 0.272727281 : f32
    %1800 = vector.broadcast %cst_339 : f32 to vector<1x96xf32>
    %1801 = arith.mulf %1800, %1799 : vector<1x96xf32>
    %1802 = vector.extract_strided_slice %1149 {offsets = [0, 96], sizes = [2, 96], strides = [1, 1]} : vector<2x192xf32> to vector<2x96xf32>
    %1803 = vector.broadcast %1801 : vector<1x96xf32> to vector<2x96xf32>
    %1804 = arith.addf %1803, %1802 : vector<2x96xf32>
    %1805 = vector.extract_strided_slice %1762 {offsets = [0, 96], sizes = [2, 96], strides = [1, 1]} : vector<2x192xf32> to vector<2x96xf32>
    %1806 = vector.extract_strided_slice %1761 {offsets = [0, 32], sizes = [2, 32], strides = [1, 1]} : vector<2x64xf32> to vector<2x32xf32>
    %1807 = vector.extract_strided_slice %1804 {offsets = [0, 0], sizes = [2, 32], strides = [1, 1]} : vector<2x96xf32> to vector<2x32xf32>
    %1808 = vector.extract_strided_slice %1805 {offsets = [0, 0], sizes = [2, 32], strides = [1, 1]} : vector<2x96xf32> to vector<2x32xf32>
    %1809 = arith.addf %1807, %1808 : vector<2x32xf32>
    %1810 = arith.negf %1809 : vector<2x32xf32>
    %1811 = math.exp %1810 : vector<2x32xf32>
    %cst_340 = arith.constant 1.000000e+00 : f32
    %1812 = vector.broadcast %cst_340 : f32 to vector<2x32xf32>
    %1813 = arith.addf %1812, %1811 : vector<2x32xf32>
    %1814 = arith.divf %1812, %1813 : vector<2x32xf32>
    %1815 = vector.extract_strided_slice %1804 {offsets = [0, 32], sizes = [2, 32], strides = [1, 1]} : vector<2x96xf32> to vector<2x32xf32>
    %1816 = vector.extract_strided_slice %1805 {offsets = [0, 32], sizes = [2, 32], strides = [1, 1]} : vector<2x96xf32> to vector<2x32xf32>
    %1817 = arith.addf %1815, %1816 : vector<2x32xf32>
    %1818 = arith.negf %1817 : vector<2x32xf32>
    %1819 = math.exp %1818 : vector<2x32xf32>
    %cst_341 = arith.constant 1.000000e+00 : f32
    %1820 = vector.broadcast %cst_341 : f32 to vector<2x32xf32>
    %1821 = arith.addf %1820, %1819 : vector<2x32xf32>
    %1822 = arith.divf %1820, %1821 : vector<2x32xf32>
    %1823 = vector.extract_strided_slice %1804 {offsets = [0, 64], sizes = [2, 32], strides = [1, 1]} : vector<2x96xf32> to vector<2x32xf32>
    %1824 = vector.extract_strided_slice %1805 {offsets = [0, 64], sizes = [2, 32], strides = [1, 1]} : vector<2x96xf32> to vector<2x32xf32>
    %1825 = vector.broadcast %1153 : vector<1x32xf32> to vector<2x32xf32>
    %1826 = arith.addf %1824, %1825 : vector<2x32xf32>
    %1827 = arith.mulf %1814, %1826 : vector<2x32xf32>
    %1828 = arith.addf %1823, %1827 : vector<2x32xf32>
    %1829 = math.tanh %1828 : vector<2x32xf32>
    %cst_342 = arith.constant 1.000000e+00 : f32
    %1830 = vector.broadcast %cst_342 : f32 to vector<2x32xf32>
    %1831 = arith.subf %1830, %1822 : vector<2x32xf32>
    %1832 = arith.mulf %1831, %1829 : vector<2x32xf32>
    %1833 = arith.mulf %1822, %1806 : vector<2x32xf32>
    %1834 = arith.addf %1832, %1833 : vector<2x32xf32>
    %c16_343 = arith.constant 16 : index
    %c0_344 = arith.constant 0 : index
    %1835 = vector.load %arg7[%c16_343, %c0_344] : memref<24x64xf32, #tpu.memory_space<vmem>>, vector<2x32xf32>
    tpu.vector_store %arg7[%c16_343, %c0_344], %1798 {strides = array<i32>} : memref<24x64xf32, #tpu.memory_space<vmem>>, vector<2x32xf32>,
    %c6_345 = arith.constant 6 : index
    %c32_346 = arith.constant 32 : index
    %1836 = vector.load %arg7[%c6_345, %c32_346] : memref<24x64xf32, #tpu.memory_space<vmem>>, vector<2x32xf32>
    tpu.vector_store %arg7[%c6_345, %c32_346], %1834 {strides = array<i32>} : memref<24x64xf32, #tpu.memory_space<vmem>>, vector<2x32xf32>,
    %1837 = tpu.concatenate %1798, %1834 in 1 : vector<2x32xf32>, vector<2x32xf32> -> vector<2x64xf32>
    %cst_347 = arith.constant dense<0.000000e+00> : vector<2x192xf32>
    %1838 = tpu.matmul %1837, %1150, %cst_347 {dimension_numbers = #tpu.dot_dimension_numbers<[1], [0], [0], [1], [0, 0, 1, 1], [], []>} : vector<2x64xf32>, vector<64x192xf32>, vector<2x192xf32> -> vector<2x192xf32>
    %1839 = vector.extract_strided_slice %1145 {offsets = [0, 0], sizes = [1, 96], strides = [1, 1]} : vector<1x192xf32> to vector<1x96xf32>
    %cst_348 = arith.constant 0.818181812 : f32
    %1840 = vector.broadcast %cst_348 : f32 to vector<1x96xf32>
    %1841 = arith.mulf %1840, %1839 : vector<1x96xf32>
    %1842 = vector.extract_strided_slice %1149 {offsets = [0, 0], sizes = [2, 96], strides = [1, 1]} : vector<2x192xf32> to vector<2x96xf32>
    %1843 = vector.broadcast %1841 : vector<1x96xf32> to vector<2x96xf32>
    %1844 = arith.addf %1843, %1842 : vector<2x96xf32>
    %1845 = vector.extract_strided_slice %1838 {offsets = [0, 0], sizes = [2, 96], strides = [1, 1]} : vector<2x192xf32> to vector<2x96xf32>
    %1846 = vector.extract_strided_slice %1837 {offsets = [0, 0], sizes = [2, 32], strides = [1, 1]} : vector<2x64xf32> to vector<2x32xf32>
    %1847 = vector.extract_strided_slice %1844 {offsets = [0, 0], sizes = [2, 32], strides = [1, 1]} : vector<2x96xf32> to vector<2x32xf32>
    %1848 = vector.extract_strided_slice %1845 {offsets = [0, 0], sizes = [2, 32], strides = [1, 1]} : vector<2x96xf32> to vector<2x32xf32>
    %1849 = arith.addf %1847, %1848 : vector<2x32xf32>
    %1850 = arith.negf %1849 : vector<2x32xf32>
    %1851 = math.exp %1850 : vector<2x32xf32>
    %cst_349 = arith.constant 1.000000e+00 : f32
    %1852 = vector.broadcast %cst_349 : f32 to vector<2x32xf32>
    %1853 = arith.addf %1852, %1851 : vector<2x32xf32>
    %1854 = arith.divf %1852, %1853 : vector<2x32xf32>
    %1855 = vector.extract_strided_slice %1844 {offsets = [0, 32], sizes = [2, 32], strides = [1, 1]} : vector<2x96xf32> to vector<2x32xf32>
    %1856 = vector.extract_strided_slice %1845 {offsets = [0, 32], sizes = [2, 32], strides = [1, 1]} : vector<2x96xf32> to vector<2x32xf32>
    %1857 = arith.addf %1855, %1856 : vector<2x32xf32>
    %1858 = arith.negf %1857 : vector<2x32xf32>
    %1859 = math.exp %1858 : vector<2x32xf32>
    %cst_350 = arith.constant 1.000000e+00 : f32
    %1860 = vector.broadcast %cst_350 : f32 to vector<2x32xf32>
    %1861 = arith.addf %1860, %1859 : vector<2x32xf32>
    %1862 = arith.divf %1860, %1861 : vector<2x32xf32>
    %1863 = vector.extract_strided_slice %1844 {offsets = [0, 64], sizes = [2, 32], strides = [1, 1]} : vector<2x96xf32> to vector<2x32xf32>
    %1864 = vector.extract_strided_slice %1845 {offsets = [0, 64], sizes = [2, 32], strides = [1, 1]} : vector<2x96xf32> to vector<2x32xf32>
    %1865 = vector.broadcast %1152 : vector<1x32xf32> to vector<2x32xf32>
    %1866 = arith.addf %1864, %1865 : vector<2x32xf32>
    %1867 = arith.mulf %1854, %1866 : vector<2x32xf32>
    %1868 = arith.addf %1863, %1867 : vector<2x32xf32>
    %1869 = math.tanh %1868 : vector<2x32xf32>
    %cst_351 = arith.constant 1.000000e+00 : f32
    %1870 = vector.broadcast %cst_351 : f32 to vector<2x32xf32>
    %1871 = arith.subf %1870, %1862 : vector<2x32xf32>
    %1872 = arith.mulf %1871, %1869 : vector<2x32xf32>
    %1873 = arith.mulf %1862, %1846 : vector<2x32xf32>
    %1874 = arith.addf %1872, %1873 : vector<2x32xf32>
    %1875 = vector.extract_strided_slice %1145 {offsets = [0, 96], sizes = [1, 96], strides = [1, 1]} : vector<1x192xf32> to vector<1x96xf32>
    %cst_352 = arith.constant 0.181818187 : f32
    %1876 = vector.broadcast %cst_352 : f32 to vector<1x96xf32>
    %1877 = arith.mulf %1876, %1875 : vector<1x96xf32>
    %1878 = vector.extract_strided_slice %1149 {offsets = [0, 96], sizes = [2, 96], strides = [1, 1]} : vector<2x192xf32> to vector<2x96xf32>
    %1879 = vector.broadcast %1877 : vector<1x96xf32> to vector<2x96xf32>
    %1880 = arith.addf %1879, %1878 : vector<2x96xf32>
    %1881 = vector.extract_strided_slice %1838 {offsets = [0, 96], sizes = [2, 96], strides = [1, 1]} : vector<2x192xf32> to vector<2x96xf32>
    %1882 = vector.extract_strided_slice %1837 {offsets = [0, 32], sizes = [2, 32], strides = [1, 1]} : vector<2x64xf32> to vector<2x32xf32>
    %1883 = vector.extract_strided_slice %1880 {offsets = [0, 0], sizes = [2, 32], strides = [1, 1]} : vector<2x96xf32> to vector<2x32xf32>
    %1884 = vector.extract_strided_slice %1881 {offsets = [0, 0], sizes = [2, 32], strides = [1, 1]} : vector<2x96xf32> to vector<2x32xf32>
    %1885 = arith.addf %1883, %1884 : vector<2x32xf32>
    %1886 = arith.negf %1885 : vector<2x32xf32>
    %1887 = math.exp %1886 : vector<2x32xf32>
    %cst_353 = arith.constant 1.000000e+00 : f32
    %1888 = vector.broadcast %cst_353 : f32 to vector<2x32xf32>
    %1889 = arith.addf %1888, %1887 : vector<2x32xf32>
    %1890 = arith.divf %1888, %1889 : vector<2x32xf32>
    %1891 = vector.extract_strided_slice %1880 {offsets = [0, 32], sizes = [2, 32], strides = [1, 1]} : vector<2x96xf32> to vector<2x32xf32>
    %1892 = vector.extract_strided_slice %1881 {offsets = [0, 32], sizes = [2, 32], strides = [1, 1]} : vector<2x96xf32> to vector<2x32xf32>
    %1893 = arith.addf %1891, %1892 : vector<2x32xf32>
    %1894 = arith.negf %1893 : vector<2x32xf32>
    %1895 = math.exp %1894 : vector<2x32xf32>
    %cst_354 = arith.constant 1.000000e+00 : f32
    %1896 = vector.broadcast %cst_354 : f32 to vector<2x32xf32>
    %1897 = arith.addf %1896, %1895 : vector<2x32xf32>
    %1898 = arith.divf %1896, %1897 : vector<2x32xf32>
    %1899 = vector.extract_strided_slice %1880 {offsets = [0, 64], sizes = [2, 32], strides = [1, 1]} : vector<2x96xf32> to vector<2x32xf32>
    %1900 = vector.extract_strided_slice %1881 {offsets = [0, 64], sizes = [2, 32], strides = [1, 1]} : vector<2x96xf32> to vector<2x32xf32>
    %1901 = vector.broadcast %1153 : vector<1x32xf32> to vector<2x32xf32>
    %1902 = arith.addf %1900, %1901 : vector<2x32xf32>
    %1903 = arith.mulf %1890, %1902 : vector<2x32xf32>
    %1904 = arith.addf %1899, %1903 : vector<2x32xf32>
    %1905 = math.tanh %1904 : vector<2x32xf32>
    %cst_355 = arith.constant 1.000000e+00 : f32
    %1906 = vector.broadcast %cst_355 : f32 to vector<2x32xf32>
    %1907 = arith.subf %1906, %1898 : vector<2x32xf32>
    %1908 = arith.mulf %1907, %1905 : vector<2x32xf32>
    %1909 = arith.mulf %1898, %1882 : vector<2x32xf32>
    %1910 = arith.addf %1908, %1909 : vector<2x32xf32>
    %c18_356 = arith.constant 18 : index
    %c0_357 = arith.constant 0 : index
    %1911 = vector.load %arg7[%c18_356, %c0_357] : memref<24x64xf32, #tpu.memory_space<vmem>>, vector<2x32xf32>
    tpu.vector_store %arg7[%c18_356, %c0_357], %1874 {strides = array<i32>} : memref<24x64xf32, #tpu.memory_space<vmem>>, vector<2x32xf32>,
    %c4_358 = arith.constant 4 : index
    %c32_359 = arith.constant 32 : index
    %1912 = vector.load %arg7[%c4_358, %c32_359] : memref<24x64xf32, #tpu.memory_space<vmem>>, vector<2x32xf32>
    tpu.vector_store %arg7[%c4_358, %c32_359], %1910 {strides = array<i32>} : memref<24x64xf32, #tpu.memory_space<vmem>>, vector<2x32xf32>,
    %1913 = tpu.concatenate %1874, %1910 in 1 : vector<2x32xf32>, vector<2x32xf32> -> vector<2x64xf32>
    %cst_360 = arith.constant dense<0.000000e+00> : vector<2x192xf32>
    %1914 = tpu.matmul %1913, %1150, %cst_360 {dimension_numbers = #tpu.dot_dimension_numbers<[1], [0], [0], [1], [0, 0, 1, 1], [], []>} : vector<2x64xf32>, vector<64x192xf32>, vector<2x192xf32> -> vector<2x192xf32>
    %1915 = vector.extract_strided_slice %1145 {offsets = [0, 0], sizes = [1, 96], strides = [1, 1]} : vector<1x192xf32> to vector<1x96xf32>
    %cst_361 = arith.constant 0.909090936 : f32
    %1916 = vector.broadcast %cst_361 : f32 to vector<1x96xf32>
    %1917 = arith.mulf %1916, %1915 : vector<1x96xf32>
    %1918 = vector.extract_strided_slice %1149 {offsets = [0, 0], sizes = [2, 96], strides = [1, 1]} : vector<2x192xf32> to vector<2x96xf32>
    %1919 = vector.broadcast %1917 : vector<1x96xf32> to vector<2x96xf32>
    %1920 = arith.addf %1919, %1918 : vector<2x96xf32>
    %1921 = vector.extract_strided_slice %1914 {offsets = [0, 0], sizes = [2, 96], strides = [1, 1]} : vector<2x192xf32> to vector<2x96xf32>
    %1922 = vector.extract_strided_slice %1913 {offsets = [0, 0], sizes = [2, 32], strides = [1, 1]} : vector<2x64xf32> to vector<2x32xf32>
    %1923 = vector.extract_strided_slice %1920 {offsets = [0, 0], sizes = [2, 32], strides = [1, 1]} : vector<2x96xf32> to vector<2x32xf32>
    %1924 = vector.extract_strided_slice %1921 {offsets = [0, 0], sizes = [2, 32], strides = [1, 1]} : vector<2x96xf32> to vector<2x32xf32>
    %1925 = arith.addf %1923, %1924 : vector<2x32xf32>
    %1926 = arith.negf %1925 : vector<2x32xf32>
    %1927 = math.exp %1926 : vector<2x32xf32>
    %cst_362 = arith.constant 1.000000e+00 : f32
    %1928 = vector.broadcast %cst_362 : f32 to vector<2x32xf32>
    %1929 = arith.addf %1928, %1927 : vector<2x32xf32>
    %1930 = arith.divf %1928, %1929 : vector<2x32xf32>
    %1931 = vector.extract_strided_slice %1920 {offsets = [0, 32], sizes = [2, 32], strides = [1, 1]} : vector<2x96xf32> to vector<2x32xf32>
    %1932 = vector.extract_strided_slice %1921 {offsets = [0, 32], sizes = [2, 32], strides = [1, 1]} : vector<2x96xf32> to vector<2x32xf32>
    %1933 = arith.addf %1931, %1932 : vector<2x32xf32>
    %1934 = arith.negf %1933 : vector<2x32xf32>
    %1935 = math.exp %1934 : vector<2x32xf32>
    %cst_363 = arith.constant 1.000000e+00 : f32
    %1936 = vector.broadcast %cst_363 : f32 to vector<2x32xf32>
    %1937 = arith.addf %1936, %1935 : vector<2x32xf32>
    %1938 = arith.divf %1936, %1937 : vector<2x32xf32>
    %1939 = vector.extract_strided_slice %1920 {offsets = [0, 64], sizes = [2, 32], strides = [1, 1]} : vector<2x96xf32> to vector<2x32xf32>
    %1940 = vector.extract_strided_slice %1921 {offsets = [0, 64], sizes = [2, 32], strides = [1, 1]} : vector<2x96xf32> to vector<2x32xf32>
    %1941 = vector.broadcast %1152 : vector<1x32xf32> to vector<2x32xf32>
    %1942 = arith.addf %1940, %1941 : vector<2x32xf32>
    %1943 = arith.mulf %1930, %1942 : vector<2x32xf32>
    %1944 = arith.addf %1939, %1943 : vector<2x32xf32>
    %1945 = math.tanh %1944 : vector<2x32xf32>
    %cst_364 = arith.constant 1.000000e+00 : f32
    %1946 = vector.broadcast %cst_364 : f32 to vector<2x32xf32>
    %1947 = arith.subf %1946, %1938 : vector<2x32xf32>
    %1948 = arith.mulf %1947, %1945 : vector<2x32xf32>
    %1949 = arith.mulf %1938, %1922 : vector<2x32xf32>
    %1950 = arith.addf %1948, %1949 : vector<2x32xf32>
    %1951 = vector.extract_strided_slice %1145 {offsets = [0, 96], sizes = [1, 96], strides = [1, 1]} : vector<1x192xf32> to vector<1x96xf32>
    %cst_365 = arith.constant 0.0909090936 : f32
    %1952 = vector.broadcast %cst_365 : f32 to vector<1x96xf32>
    %1953 = arith.mulf %1952, %1951 : vector<1x96xf32>
    %1954 = vector.extract_strided_slice %1149 {offsets = [0, 96], sizes = [2, 96], strides = [1, 1]} : vector<2x192xf32> to vector<2x96xf32>
    %1955 = vector.broadcast %1953 : vector<1x96xf32> to vector<2x96xf32>
    %1956 = arith.addf %1955, %1954 : vector<2x96xf32>
    %1957 = vector.extract_strided_slice %1914 {offsets = [0, 96], sizes = [2, 96], strides = [1, 1]} : vector<2x192xf32> to vector<2x96xf32>
    %1958 = vector.extract_strided_slice %1913 {offsets = [0, 32], sizes = [2, 32], strides = [1, 1]} : vector<2x64xf32> to vector<2x32xf32>
    %1959 = vector.extract_strided_slice %1956 {offsets = [0, 0], sizes = [2, 32], strides = [1, 1]} : vector<2x96xf32> to vector<2x32xf32>
    %1960 = vector.extract_strided_slice %1957 {offsets = [0, 0], sizes = [2, 32], strides = [1, 1]} : vector<2x96xf32> to vector<2x32xf32>
    %1961 = arith.addf %1959, %1960 : vector<2x32xf32>
    %1962 = arith.negf %1961 : vector<2x32xf32>
    %1963 = math.exp %1962 : vector<2x32xf32>
    %cst_366 = arith.constant 1.000000e+00 : f32
    %1964 = vector.broadcast %cst_366 : f32 to vector<2x32xf32>
    %1965 = arith.addf %1964, %1963 : vector<2x32xf32>
    %1966 = arith.divf %1964, %1965 : vector<2x32xf32>
    %1967 = vector.extract_strided_slice %1956 {offsets = [0, 32], sizes = [2, 32], strides = [1, 1]} : vector<2x96xf32> to vector<2x32xf32>
    %1968 = vector.extract_strided_slice %1957 {offsets = [0, 32], sizes = [2, 32], strides = [1, 1]} : vector<2x96xf32> to vector<2x32xf32>
    %1969 = arith.addf %1967, %1968 : vector<2x32xf32>
    %1970 = arith.negf %1969 : vector<2x32xf32>
    %1971 = math.exp %1970 : vector<2x32xf32>
    %cst_367 = arith.constant 1.000000e+00 : f32
    %1972 = vector.broadcast %cst_367 : f32 to vector<2x32xf32>
    %1973 = arith.addf %1972, %1971 : vector<2x32xf32>
    %1974 = arith.divf %1972, %1973 : vector<2x32xf32>
    %1975 = vector.extract_strided_slice %1956 {offsets = [0, 64], sizes = [2, 32], strides = [1, 1]} : vector<2x96xf32> to vector<2x32xf32>
    %1976 = vector.extract_strided_slice %1957 {offsets = [0, 64], sizes = [2, 32], strides = [1, 1]} : vector<2x96xf32> to vector<2x32xf32>
    %1977 = vector.broadcast %1153 : vector<1x32xf32> to vector<2x32xf32>
    %1978 = arith.addf %1976, %1977 : vector<2x32xf32>
    %1979 = arith.mulf %1966, %1978 : vector<2x32xf32>
    %1980 = arith.addf %1975, %1979 : vector<2x32xf32>
    %1981 = math.tanh %1980 : vector<2x32xf32>
    %cst_368 = arith.constant 1.000000e+00 : f32
    %1982 = vector.broadcast %cst_368 : f32 to vector<2x32xf32>
    %1983 = arith.subf %1982, %1974 : vector<2x32xf32>
    %1984 = arith.mulf %1983, %1981 : vector<2x32xf32>
    %1985 = arith.mulf %1974, %1958 : vector<2x32xf32>
    %1986 = arith.addf %1984, %1985 : vector<2x32xf32>
    %c20_369 = arith.constant 20 : index
    %c0_370 = arith.constant 0 : index
    %1987 = vector.load %arg7[%c20_369, %c0_370] : memref<24x64xf32, #tpu.memory_space<vmem>>, vector<2x32xf32>
    tpu.vector_store %arg7[%c20_369, %c0_370], %1950 {strides = array<i32>} : memref<24x64xf32, #tpu.memory_space<vmem>>, vector<2x32xf32>,
    %c2_371 = arith.constant 2 : index
    %c32_372 = arith.constant 32 : index
    %1988 = vector.load %arg7[%c2_371, %c32_372] : memref<24x64xf32, #tpu.memory_space<vmem>>, vector<2x32xf32>
    tpu.vector_store %arg7[%c2_371, %c32_372], %1986 {strides = array<i32>} : memref<24x64xf32, #tpu.memory_space<vmem>>, vector<2x32xf32>,
    %1989 = tpu.concatenate %1950, %1986 in 1 : vector<2x32xf32>, vector<2x32xf32> -> vector<2x64xf32>
    %cst_373 = arith.constant dense<0.000000e+00> : vector<2x192xf32>
    %1990 = tpu.matmul %1989, %1150, %cst_373 {dimension_numbers = #tpu.dot_dimension_numbers<[1], [0], [0], [1], [0, 0, 1, 1], [], []>} : vector<2x64xf32>, vector<64x192xf32>, vector<2x192xf32> -> vector<2x192xf32>
    %1991 = vector.extract_strided_slice %1145 {offsets = [0, 0], sizes = [1, 96], strides = [1, 1]} : vector<1x192xf32> to vector<1x96xf32>
    %cst_374 = arith.constant 1.000000e+00 : f32
    %1992 = vector.broadcast %cst_374 : f32 to vector<1x96xf32>
    %1993 = arith.mulf %1992, %1991 : vector<1x96xf32>
    %1994 = vector.extract_strided_slice %1149 {offsets = [0, 0], sizes = [2, 96], strides = [1, 1]} : vector<2x192xf32> to vector<2x96xf32>
    %1995 = vector.broadcast %1993 : vector<1x96xf32> to vector<2x96xf32>
    %1996 = arith.addf %1995, %1994 : vector<2x96xf32>
    %1997 = vector.extract_strided_slice %1990 {offsets = [0, 0], sizes = [2, 96], strides = [1, 1]} : vector<2x192xf32> to vector<2x96xf32>
    %1998 = vector.extract_strided_slice %1989 {offsets = [0, 0], sizes = [2, 32], strides = [1, 1]} : vector<2x64xf32> to vector<2x32xf32>
    %1999 = vector.extract_strided_slice %1996 {offsets = [0, 0], sizes = [2, 32], strides = [1, 1]} : vector<2x96xf32> to vector<2x32xf32>
    %2000 = vector.extract_strided_slice %1997 {offsets = [0, 0], sizes = [2, 32], strides = [1, 1]} : vector<2x96xf32> to vector<2x32xf32>
    %2001 = arith.addf %1999, %2000 : vector<2x32xf32>
    %2002 = arith.negf %2001 : vector<2x32xf32>
    %2003 = math.exp %2002 : vector<2x32xf32>
    %cst_375 = arith.constant 1.000000e+00 : f32
    %2004 = vector.broadcast %cst_375 : f32 to vector<2x32xf32>
    %2005 = arith.addf %2004, %2003 : vector<2x32xf32>
    %2006 = arith.divf %2004, %2005 : vector<2x32xf32>
    %2007 = vector.extract_strided_slice %1996 {offsets = [0, 32], sizes = [2, 32], strides = [1, 1]} : vector<2x96xf32> to vector<2x32xf32>
    %2008 = vector.extract_strided_slice %1997 {offsets = [0, 32], sizes = [2, 32], strides = [1, 1]} : vector<2x96xf32> to vector<2x32xf32>
    %2009 = arith.addf %2007, %2008 : vector<2x32xf32>
    %2010 = arith.negf %2009 : vector<2x32xf32>
    %2011 = math.exp %2010 : vector<2x32xf32>
    %cst_376 = arith.constant 1.000000e+00 : f32
    %2012 = vector.broadcast %cst_376 : f32 to vector<2x32xf32>
    %2013 = arith.addf %2012, %2011 : vector<2x32xf32>
    %2014 = arith.divf %2012, %2013 : vector<2x32xf32>
    %2015 = vector.extract_strided_slice %1996 {offsets = [0, 64], sizes = [2, 32], strides = [1, 1]} : vector<2x96xf32> to vector<2x32xf32>
    %2016 = vector.extract_strided_slice %1997 {offsets = [0, 64], sizes = [2, 32], strides = [1, 1]} : vector<2x96xf32> to vector<2x32xf32>
    %2017 = vector.broadcast %1152 : vector<1x32xf32> to vector<2x32xf32>
    %2018 = arith.addf %2016, %2017 : vector<2x32xf32>
    %2019 = arith.mulf %2006, %2018 : vector<2x32xf32>
    %2020 = arith.addf %2015, %2019 : vector<2x32xf32>
    %2021 = math.tanh %2020 : vector<2x32xf32>
    %cst_377 = arith.constant 1.000000e+00 : f32
    %2022 = vector.broadcast %cst_377 : f32 to vector<2x32xf32>
    %2023 = arith.subf %2022, %2014 : vector<2x32xf32>
    %2024 = arith.mulf %2023, %2021 : vector<2x32xf32>
    %2025 = arith.mulf %2014, %1998 : vector<2x32xf32>
    %2026 = arith.addf %2024, %2025 : vector<2x32xf32>
    %2027 = vector.extract_strided_slice %1145 {offsets = [0, 96], sizes = [1, 96], strides = [1, 1]} : vector<1x192xf32> to vector<1x96xf32>
    %cst_378 = arith.constant 0.000000e+00 : f32
    %2028 = vector.broadcast %cst_378 : f32 to vector<1x96xf32>
    %2029 = arith.mulf %2028, %2027 : vector<1x96xf32>
    %2030 = vector.extract_strided_slice %1149 {offsets = [0, 96], sizes = [2, 96], strides = [1, 1]} : vector<2x192xf32> to vector<2x96xf32>
    %2031 = vector.broadcast %2029 : vector<1x96xf32> to vector<2x96xf32>
    %2032 = arith.addf %2031, %2030 : vector<2x96xf32>
    %2033 = vector.extract_strided_slice %1990 {offsets = [0, 96], sizes = [2, 96], strides = [1, 1]} : vector<2x192xf32> to vector<2x96xf32>
    %2034 = vector.extract_strided_slice %1989 {offsets = [0, 32], sizes = [2, 32], strides = [1, 1]} : vector<2x64xf32> to vector<2x32xf32>
    %2035 = vector.extract_strided_slice %2032 {offsets = [0, 0], sizes = [2, 32], strides = [1, 1]} : vector<2x96xf32> to vector<2x32xf32>
    %2036 = vector.extract_strided_slice %2033 {offsets = [0, 0], sizes = [2, 32], strides = [1, 1]} : vector<2x96xf32> to vector<2x32xf32>
    %2037 = arith.addf %2035, %2036 : vector<2x32xf32>
    %2038 = arith.negf %2037 : vector<2x32xf32>
    %2039 = math.exp %2038 : vector<2x32xf32>
    %cst_379 = arith.constant 1.000000e+00 : f32
    %2040 = vector.broadcast %cst_379 : f32 to vector<2x32xf32>
    %2041 = arith.addf %2040, %2039 : vector<2x32xf32>
    %2042 = arith.divf %2040, %2041 : vector<2x32xf32>
    %2043 = vector.extract_strided_slice %2032 {offsets = [0, 32], sizes = [2, 32], strides = [1, 1]} : vector<2x96xf32> to vector<2x32xf32>
    %2044 = vector.extract_strided_slice %2033 {offsets = [0, 32], sizes = [2, 32], strides = [1, 1]} : vector<2x96xf32> to vector<2x32xf32>
    %2045 = arith.addf %2043, %2044 : vector<2x32xf32>
    %2046 = arith.negf %2045 : vector<2x32xf32>
    %2047 = math.exp %2046 : vector<2x32xf32>
    %cst_380 = arith.constant 1.000000e+00 : f32
    %2048 = vector.broadcast %cst_380 : f32 to vector<2x32xf32>
    %2049 = arith.addf %2048, %2047 : vector<2x32xf32>
    %2050 = arith.divf %2048, %2049 : vector<2x32xf32>
    %2051 = vector.extract_strided_slice %2032 {offsets = [0, 64], sizes = [2, 32], strides = [1, 1]} : vector<2x96xf32> to vector<2x32xf32>
    %2052 = vector.extract_strided_slice %2033 {offsets = [0, 64], sizes = [2, 32], strides = [1, 1]} : vector<2x96xf32> to vector<2x32xf32>
    %2053 = vector.broadcast %1153 : vector<1x32xf32> to vector<2x32xf32>
    %2054 = arith.addf %2052, %2053 : vector<2x32xf32>
    %2055 = arith.mulf %2042, %2054 : vector<2x32xf32>
    %2056 = arith.addf %2051, %2055 : vector<2x32xf32>
    %2057 = math.tanh %2056 : vector<2x32xf32>
    %cst_381 = arith.constant 1.000000e+00 : f32
    %2058 = vector.broadcast %cst_381 : f32 to vector<2x32xf32>
    %2059 = arith.subf %2058, %2050 : vector<2x32xf32>
    %2060 = arith.mulf %2059, %2057 : vector<2x32xf32>
    %2061 = arith.mulf %2050, %2034 : vector<2x32xf32>
    %2062 = arith.addf %2060, %2061 : vector<2x32xf32>
    %c22_382 = arith.constant 22 : index
    %c0_383 = arith.constant 0 : index
    %2063 = vector.load %arg7[%c22_382, %c0_383] : memref<24x64xf32, #tpu.memory_space<vmem>>, vector<2x32xf32>
    tpu.vector_store %arg7[%c22_382, %c0_383], %2026 {strides = array<i32>} : memref<24x64xf32, #tpu.memory_space<vmem>>, vector<2x32xf32>,
    %c0_384 = arith.constant 0 : index
    %c32_385 = arith.constant 32 : index
    %2064 = vector.load %arg7[%c0_384, %c32_385] : memref<24x64xf32, #tpu.memory_space<vmem>>, vector<2x32xf32>
    tpu.vector_store %arg7[%c0_384, %c32_385], %2062 {strides = array<i32>} : memref<24x64xf32, #tpu.memory_space<vmem>>, vector<2x32xf32>,
    %c0_386 = arith.constant 0 : index
    %c0_387 = arith.constant 0 : index
    %2065 = vector.load %arg7[%c0_386, %c0_387] : memref<24x64xf32, #tpu.memory_space<vmem>>, vector<24x64xf32>
    %c592 = arith.constant 592 : index
    %c0_388 = arith.constant 0 : index
    %2066 = vector.load %arg2[%c592, %c0_388] : memref<848x192xf32, #tpu.memory_space<vmem>>, vector<64x32xf32>
    %cst_389 = arith.constant dense<0.000000e+00> : vector<24x32xf32>
    %2067 = tpu.matmul %2065, %2066, %cst_389 {dimension_numbers = #tpu.dot_dimension_numbers<[1], [0], [0], [1], [0, 0, 1, 1], [], []>} : vector<24x64xf32>, vector<64x32xf32>, vector<24x32xf32> -> vector<24x32xf32>
    %c831 = arith.constant 831 : index
    %c0_390 = arith.constant 0 : index
    %2068 = vector.load %arg2[%c831, %c0_390] : memref<848x192xf32, #tpu.memory_space<vmem>>, vector<1x32xf32>
    %2069 = vector.broadcast %2068 : vector<1x32xf32> to vector<24x32xf32>
    %2070 = arith.addf %2067, %2069 : vector<24x32xf32>
    %2071 = math.tanh %2070 : vector<24x32xf32>
    %c818 = arith.constant 818 : index
    %c0_391 = arith.constant 0 : index
    %2072 = vector.load %arg2[%c818, %c0_391] : memref<848x192xf32, #tpu.memory_space<vmem>>, vector<2x24xf32>
    %c656 = arith.constant 656 : index
    %c0_392 = arith.constant 0 : index
    %2073 = vector.load %arg2[%c656, %c0_392] : memref<848x192xf32, #tpu.memory_space<vmem>>, vector<32x16xf32>
    %cst_393 = arith.constant dense<0.000000e+00> : vector<24x16xf32>
    %2074 = tpu.matmul %2071, %2073, %cst_393 {dimension_numbers = #tpu.dot_dimension_numbers<[1], [0], [0], [1], [0, 0, 1, 1], [], []>} : vector<24x32xf32>, vector<32x16xf32>, vector<24x16xf32> -> vector<24x16xf32>
    %c832 = arith.constant 832 : index
    %c0_394 = arith.constant 0 : index
    %2075 = vector.load %arg2[%c832, %c0_394] : memref<848x192xf32, #tpu.memory_space<vmem>>, vector<1x16xf32>
    %2076 = vector.broadcast %2075 : vector<1x16xf32> to vector<24x16xf32>
    %2077 = arith.addf %2074, %2076 : vector<24x16xf32>
    %cst_395 = arith.constant 0.000000e+00 : f32
    %2078 = vector.broadcast %cst_395 : f32 to vector<24x16xf32>
    %2079 = arith.maximumf %2077, %2078 : vector<24x16xf32>
    %c688 = arith.constant 688 : index
    %c0_396 = arith.constant 0 : index
    %2080 = vector.load %arg2[%c688, %c0_396] : memref<848x192xf32, #tpu.memory_space<vmem>>, vector<16x3xf32>
    %cst_397 = arith.constant dense<0.000000e+00> : vector<24x3xf32>
    %2081 = tpu.matmul %2079, %2080, %cst_397 {dimension_numbers = #tpu.dot_dimension_numbers<[1], [0], [0], [1], [0, 0, 1, 1], [], []>} : vector<24x16xf32>, vector<16x3xf32>, vector<24x3xf32> -> vector<24x3xf32>
    %c833 = arith.constant 833 : index
    %c0_398 = arith.constant 0 : index
    %2082 = vector.load %arg2[%c833, %c0_398] : memref<848x192xf32, #tpu.memory_space<vmem>>, vector<1x3xf32>
    %2083 = vector.broadcast %2082 : vector<1x3xf32> to vector<24x3xf32>
    %2084 = arith.addf %2081, %2083 : vector<24x3xf32>
    %cst_399 = arith.constant dense<0.000000e+00> : vector<2x3xf32>
    %2085 = tpu.matmul %2072, %2084, %cst_399 {dimension_numbers = #tpu.dot_dimension_numbers<[1], [0], [0], [1], [0, 0, 1, 1], [], []>} : vector<2x24xf32>, vector<24x3xf32>, vector<2x3xf32> -> vector<2x3xf32>
    %c838 = arith.constant 838 : index
    %c0_400 = arith.constant 0 : index
    %2086 = vector.load %arg2[%c838, %c0_400] : memref<848x192xf32, #tpu.memory_space<vmem>>, vector<1x3xf32>
    %c839 = arith.constant 839 : index
    %c0_401 = arith.constant 0 : index
    %2087 = vector.load %arg2[%c839, %c0_401] : memref<848x192xf32, #tpu.memory_space<vmem>>, vector<1x3xf32>
    %2088 = arith.subf %2087, %2086 : vector<1x3xf32>
    %2089 = arith.negf %2085 : vector<2x3xf32>
    %2090 = math.exp %2089 : vector<2x3xf32>
    %cst_402 = arith.constant 1.000000e+00 : f32
    %2091 = vector.broadcast %cst_402 : f32 to vector<2x3xf32>
    %2092 = arith.addf %2091, %2090 : vector<2x3xf32>
    %2093 = arith.divf %2091, %2092 : vector<2x3xf32>
    %2094 = vector.broadcast %2088 : vector<1x3xf32> to vector<2x3xf32>
    %2095 = arith.mulf %2094, %2093 : vector<2x3xf32>
    %2096 = vector.broadcast %2086 : vector<1x3xf32> to vector<2x3xf32>
    %2097 = arith.addf %2096, %2095 : vector<2x3xf32>
    %cst_403 = arith.constant dense<0.000000e+00> : vector<2x32xf32>
    %2098 = tpu.matmul %2072, %2071, %cst_403 {dimension_numbers = #tpu.dot_dimension_numbers<[1], [0], [0], [1], [0, 0, 1, 1], [], []>} : vector<2x24xf32>, vector<24x32xf32>, vector<2x32xf32> -> vector<2x32xf32>
    %2099 = vector.extract_strided_slice %2098 {offsets = [1, 0], sizes = [1, 32], strides = [1, 1]} : vector<2x32xf32> to vector<1x32xf32>
    %c704 = arith.constant 704 : index
    %c0_404 = arith.constant 0 : index
    %2100 = vector.load %arg2[%c704, %c0_404] : memref<848x192xf32, #tpu.memory_space<vmem>>, vector<32x16xf32>
    %cst_405 = arith.constant dense<0.000000e+00> : vector<1x16xf32>
    %2101 = tpu.matmul %2099, %2100, %cst_405 {dimension_numbers = #tpu.dot_dimension_numbers<[1], [0], [0], [1], [0, 0, 1, 1], [], []>} : vector<1x32xf32>, vector<32x16xf32>, vector<1x16xf32> -> vector<1x16xf32>
    %c834 = arith.constant 834 : index
    %c0_406 = arith.constant 0 : index
    %2102 = vector.load %arg2[%c834, %c0_406] : memref<848x192xf32, #tpu.memory_space<vmem>>, vector<1x16xf32>
    %2103 = arith.addf %2101, %2102 : vector<1x16xf32>
    %cst_407 = arith.constant 0.000000e+00 : f32
    %2104 = vector.broadcast %cst_407 : f32 to vector<1x16xf32>
    %2105 = arith.maximumf %2103, %2104 : vector<1x16xf32>
    %c736 = arith.constant 736 : index
    %c0_408 = arith.constant 0 : index
    %2106 = vector.load %arg2[%c736, %c0_408] : memref<848x192xf32, #tpu.memory_space<vmem>>, vector<16x16xf32>
    %cst_409 = arith.constant dense<0.000000e+00> : vector<1x16xf32>
    %2107 = tpu.matmul %2105, %2106, %cst_409 {dimension_numbers = #tpu.dot_dimension_numbers<[1], [0], [0], [1], [0, 0, 1, 1], [], []>} : vector<1x16xf32>, vector<16x16xf32>, vector<1x16xf32> -> vector<1x16xf32>
    %c835 = arith.constant 835 : index
    %c0_410 = arith.constant 0 : index
    %2108 = vector.load %arg2[%c835, %c0_410] : memref<848x192xf32, #tpu.memory_space<vmem>>, vector<1x16xf32>
    %2109 = arith.addf %2107, %2108 : vector<1x16xf32>
    %c840 = arith.constant 840 : index
    %c0_411 = arith.constant 0 : index
    %2110 = vector.load %arg2[%c840, %c0_411] : memref<848x192xf32, #tpu.memory_space<vmem>>, vector<1x16xf32>
    %c841 = arith.constant 841 : index
    %c0_412 = arith.constant 0 : index
    %2111 = vector.load %arg2[%c841, %c0_412] : memref<848x192xf32, #tpu.memory_space<vmem>>, vector<1x16xf32>
    %2112 = arith.subf %2111, %2110 : vector<1x16xf32>
    %2113 = arith.negf %2109 : vector<1x16xf32>
    %2114 = math.exp %2113 : vector<1x16xf32>
    %cst_413 = arith.constant 1.000000e+00 : f32
    %2115 = vector.broadcast %cst_413 : f32 to vector<1x16xf32>
    %2116 = arith.addf %2115, %2114 : vector<1x16xf32>
    %2117 = arith.divf %2115, %2116 : vector<1x16xf32>
    %2118 = arith.mulf %2112, %2117 : vector<1x16xf32>
    %2119 = arith.addf %2110, %2118 : vector<1x16xf32>
    %c752 = arith.constant 752 : index
    %c0_414 = arith.constant 0 : index
    %2120 = vector.load %arg2[%c752, %c0_414] : memref<848x192xf32, #tpu.memory_space<vmem>>, vector<32x16xf32>
    %cst_415 = arith.constant dense<0.000000e+00> : vector<1x16xf32>
    %2121 = tpu.matmul %2099, %2120, %cst_415 {dimension_numbers = #tpu.dot_dimension_numbers<[1], [0], [0], [1], [0, 0, 1, 1], [], []>} : vector<1x32xf32>, vector<32x16xf32>, vector<1x16xf32> -> vector<1x16xf32>
    %c836 = arith.constant 836 : index
    %c0_416 = arith.constant 0 : index
    %2122 = vector.load %arg2[%c836, %c0_416] : memref<848x192xf32, #tpu.memory_space<vmem>>, vector<1x16xf32>
    %2123 = arith.addf %2121, %2122 : vector<1x16xf32>
    %cst_417 = arith.constant 0.000000e+00 : f32
    %2124 = vector.broadcast %cst_417 : f32 to vector<1x16xf32>
    %2125 = arith.maximumf %2123, %2124 : vector<1x16xf32>
    %c784 = arith.constant 784 : index
    %c0_418 = arith.constant 0 : index
    %2126 = vector.load %arg2[%c784, %c0_418] : memref<848x192xf32, #tpu.memory_space<vmem>>, vector<16x16xf32>
    %cst_419 = arith.constant dense<0.000000e+00> : vector<1x16xf32>
    %2127 = tpu.matmul %2125, %2126, %cst_419 {dimension_numbers = #tpu.dot_dimension_numbers<[1], [0], [0], [1], [0, 0, 1, 1], [], []>} : vector<1x16xf32>, vector<16x16xf32>, vector<1x16xf32> -> vector<1x16xf32>
    %c837 = arith.constant 837 : index
    %c0_420 = arith.constant 0 : index
    %2128 = vector.load %arg2[%c837, %c0_420] : memref<848x192xf32, #tpu.memory_space<vmem>>, vector<1x16xf32>
    %2129 = arith.addf %2127, %2128 : vector<1x16xf32>
    %2130 = arith.negf %2129 : vector<1x16xf32>
    %2131 = math.exp %2130 : vector<1x16xf32>
    %cst_421 = arith.constant 1.000000e+00 : f32
    %2132 = vector.broadcast %cst_421 : f32 to vector<1x16xf32>
    %2133 = arith.addf %2132, %2131 : vector<1x16xf32>
    %2134 = arith.divf %2132, %2133 : vector<1x16xf32>
    %cst_422 = arith.constant 0.000000e+00 : f32
    %2135 = vector.broadcast %cst_422 : f32 to vector<1x16xf32>
    %2136 = arith.subf %2135, %2134 : vector<1x16xf32>
    %cst_423 = arith.constant 0.000000e+00 : f32
    %2137 = vector.broadcast %cst_423 : f32 to vector<8x128xf32>
    %c0_424 = arith.constant 0 : index
    %c0_425 = arith.constant 0 : index
    %2138 = vector.load %arg3[%c0_424, %c0_425] : memref<8x128xf32, #tpu.memory_space<vmem>>, vector<8x128xf32>
    tpu.vector_store %arg3[%c0_424, %c0_425], %2137 {strides = array<i32>} : memref<8x128xf32, #tpu.memory_space<vmem>>, vector<8x128xf32>,
    %c0_426 = arith.constant 0 : index
    %c0_427 = arith.constant 0 : index
    %2139 = vector.load %arg3[%c0_426, %c0_427] : memref<8x128xf32, #tpu.memory_space<vmem>>, vector<2x3xf32>
    tpu.vector_store %arg3[%c0_426, %c0_427], %2097 {strides = array<i32>} : memref<8x128xf32, #tpu.memory_space<vmem>>, vector<2x3xf32>,
    %c2_428 = arith.constant 2 : index
    %c0_429 = arith.constant 0 : index
    %2140 = vector.load %arg3[%c2_428, %c0_429] : memref<8x128xf32, #tpu.memory_space<vmem>>, vector<1x16xf32>
    tpu.vector_store %arg3[%c2_428, %c0_429], %2119 {strides = array<i32>} : memref<8x128xf32, #tpu.memory_space<vmem>>, vector<1x16xf32>,
    %c3 = arith.constant 3 : index
    %c0_430 = arith.constant 0 : index
    %2141 = vector.load %arg3[%c3, %c0_430] : memref<8x128xf32, #tpu.memory_space<vmem>>, vector<1x16xf32>
    tpu.vector_store %arg3[%c3, %c0_430], %2136 {strides = array<i32>} : memref<8x128xf32, #tpu.memory_space<vmem>>, vector<1x16xf32>,
    return
  }
}

</mosaic_0001>

<llo_original>
// kernel: calibnn_forward.1
$region0: #{calibnn_forward.1}
  #allocation0 [shape = 'u32[]', space=smem, size = 0x4, offset = 0x4, fixed_abs, tag = 'smem constant byte address 0x4 - core index']
  #allocation1 [shape = 'u32[72,128]{1,0:T(1,128)}', space=vmem, size = 0x9000, scoped, tag = 'internal scratch']
  #allocation2 [shape = 'f32[16,5]{1,0:T(8,128)}', space=vmem, size = 0x2000, scoped, tag = 'scratch operand']
  #allocation3 [shape = 'f32[16,64]{1,0:T(8,128)}', space=vmem, size = 0x2000, scoped, tag = 'scratch operand']
  #allocation4 [shape = 'f32[16,64]{1,0:T(8,128)}', space=vmem, size = 0x2000, scoped, tag = 'scratch operand']
  #allocation5 [shape = 'f32[24,64]{1,0:T(8,128)}', space=vmem, size = 0x3000, scoped, tag = 'scratch operand']
  %s0 = inlined_call_operand.vmem [shape: f32[2,40], index: 0, kind: input, shape index: {}]
  %s1 = inlined_call_operand.vmem [shape: f32[2,4], index: 1, kind: input, shape index: {}]
  %s2 = inlined_call_operand.vmem [shape: f32[848,192], index: 2, kind: input, shape index: {}]
  %s3 = inlined_call_operand.vmem [shape: f32[8,128], index: 3, kind: output, shape index: {}]
  %s4 = sld [smem:[#allocation0]]
  $region22: #{calibnn_forward.1} parent=0
    _
  %s6 = ssub.s32 1, %s4
  %s7 = scalar_select 0, %s6, %s4
  // Predicated region
  $region2: #{calibnn_forward.1} parent=0 // pred_check
    _
  $region3: #{calibnn_forward.1} parent=0 // pred_check_branch
    %9 = sbr.rel (0) target = $region5
  $region4: #{calibnn_forward.1} parent=0 // pred_region
    _
  $region5: #{calibnn_forward.1} parent=0 // pred_fallthru
    _
  // Predicated region
  $region6: #{calibnn_forward.1} parent=0 // pred_check
    _
  $region7: #{calibnn_forward.1} parent=0 // pred_check_branch
    %11 = sbr.rel (0) target = $region9
  $region8: #{calibnn_forward.1} parent=0 // pred_region
    _
  $region9: #{calibnn_forward.1} parent=0 // pred_fallthru
    _
  // Predicated region
  $region10: #{calibnn_forward.1} parent=0 // pred_check
    _
  $region11: #{calibnn_forward.1} parent=0 // pred_check_branch
    %13 = sbr.rel (0) target = $region13
  $region12: #{calibnn_forward.1} parent=0 // pred_region
    _
  $region13: #{calibnn_forward.1} parent=0 // pred_fallthru
    _
  %v14 = vld [vmem:[%s0] sm:$0x3]
  %vm15 = vcmask 33792
  %16 = vst.msk [vmem:[#allocation2] sm:$0x3] %vm15, %v14
  %18 = vrot.lane.b32.xlu0 %v14, 123
  %v19 = vpop.permute.xlu0 %18
  %21 = vst.msk [vmem:[#allocation2 + $0x2] sm:$0x3] %vm15, %v19
  %22 = vrot.lane.b32.xlu0 %v14, 118
  %v23 = vpop.permute.xlu0 %22
  %25 = vst.msk [vmem:[#allocation2 + $0x4] sm:$0x3] %vm15, %v23
  %26 = vrot.lane.b32.xlu0 %v14, 113
  %v27 = vpop.permute.xlu0 %26
  %29 = vst.msk [vmem:[#allocation2 + $0x6] sm:$0x3] %vm15, %v27
  %30 = vrot.lane.b32.xlu0 %v14, 108
  %v31 = vpop.permute.xlu0 %30
  %33 = vst.msk [vmem:[#allocation2 + $0x8] sm:$0x3] %vm15, %v31
  %34 = vrot.lane.b32.xlu0 %v14, 103
  %v35 = vpop.permute.xlu0 %34
  %37 = vst.msk [vmem:[#allocation2 + $0xa] sm:$0x3] %vm15, %v35
  %38 = vrot.lane.b32.xlu0 %v14, 98
  %v39 = vpop.permute.xlu0 %38
  %41 = vst.msk [vmem:[#allocation2 + $0xc] sm:$0x3] %vm15, %v39
  %42 = vrot.lane.b32.xlu0 %v14, 93
  %v43 = vpop.permute.xlu0 %42
  %45 = vst.msk [vmem:[#allocation2 + $0xe] sm:$0x3] %vm15, %v43
  %v46 = vld [vmem:[#allocation2] sm:$0xff]
  %v47 = vld [vmem:[#allocation2 + $0x8] sm:$0xff]
  %v48 = vld [vmem:[%s2] sm:$0x1f]
  %v49 = vld [vmem:[%s2 + $0x8] sm:$0x1f]
  %s50 = scalar_lea.vmem %s2, 1636
  %v51 = vld [vmem:[%s50] ss:$8 sm:$0x3]
  %v53 = vperm.slane %v51, 0
  %v54 = vperm.slane %v51, 1
  %vm57 = vcmask 39936
  %v59 = vsel %vm57, %v46, 0
  %v62 = vsel %vm57, %v47, 0
  %vm64 = vcmask 1044480
  %v66 = vsel %vm64, %v48, 0
  %v69 = vsel %vm64, %v49, 0
  %71 = vmatpush.msra.mxu0 0.0
  %72 = vmatpush.msra.mxu0 0.0
  %73 = vmatpush.msra.mxu0 0.0
  %74 = vmatpush.msra.mxu0 0.0
  %75 = vmatpush.msra.mxu0 0.0
  %76 = vmatpush.msra.mxu0 0.0
  %77 = vmatpush.msra.mxu0 0.0
  %78 = vmatpush.msra.mxu0 0.0
  %79 = vmatpush.msra.mxu0 0.0
  %80 = vmatpush.msra.mxu0 0.0
  %81 = vmatpush.msra.mxu0 0.0
  %82 = vmatpush.msra.mxu0 0.0
  %83 = vmatpush.msra.mxu0 0.0
  %84 = vmatpush.msra.mxu0 0.0
  %85 = vmatpush.msra.mxu0 0.0
  %86 = vmatpush.msra.mxu0 %v66
  %87 = vmatmul.f32.gmra.mxu0 %v59
  %v88 = vpop.f32.mrf.mxu0
  %v89 = vadd.f32 %v53, %v88
  %90 = vmatmul.f32.gmra.mxu0 %v62
  %v91 = vpop.f32.mrf.mxu0
  %v92 = vadd.f32 %v53, %v91
  %93 = vdwg.mxu0
  %94 = vmatpush.msra.mxu0 0.0
  %95 = vmatpush.msra.mxu0 0.0
  %96 = vmatpush.msra.mxu0 0.0
  %97 = vmatpush.msra.mxu0 0.0
  %98 = vmatpush.msra.mxu0 0.0
  %99 = vmatpush.msra.mxu0 0.0
  %100 = vmatpush.msra.mxu0 0.0
  %101 = vmatpush.msra.mxu0 0.0
  %102 = vmatpush.msra.mxu0 0.0
  %103 = vmatpush.msra.mxu0 0.0
  %104 = vmatpush.msra.mxu0 0.0
  %105 = vmatpush.msra.mxu0 0.0
  %106 = vmatpush.msra.mxu0 0.0
  %107 = vmatpush.msra.mxu0 0.0
  %108 = vmatpush.msra.mxu0 0.0
  %109 = vmatpush.msra.mxu0 %v69
  %110 = vmatmul.f32.gmra.mxu0 %v59
  %v111 = vpop.f32.mrf.mxu0
  %v112 = vadd.f32 %v54, %v111
  %113 = vmatmul.f32.gmra.mxu0 %v62
  %v114 = vpop.f32.mrf.mxu0
  %v115 = vadd.f32 %v54, %v114
  %116 = vdwg.mxu0
  %v117 = vld [vmem:[%s2 + $0x10] sm:$0xff]
  %v118 = vld [vmem:[%s2 + $0x18] sm:$0xff]
  %v119 = vld [vmem:[%s2 + $0x20] sm:$0xff]
  %v120 = vld [vmem:[%s2 + $0x28] sm:$0xff]
  %v121 = vld [vmem:[%s2 + $0x30] sm:$0xff]
  %v122 = vld [vmem:[%s2 + $0x38] sm:$0xff]
  %v123 = vld [vmem:[%s2 + $0x40] sm:$0xff]
  %v124 = vld [vmem:[%s2 + $0x48] sm:$0xff]
  %v125 = vld [vmem:[%s2 + $0x50] sm:$0xff]
  %v126 = vld [vmem:[%s2 + $0x58] sm:$0xff]
  %v127 = vld [vmem:[%s2 + $0x60] sm:$0xff]
  %v128 = vld [vmem:[%s2 + $0x68] sm:$0xff]
  %v129 = vld [vmem:[%s2 + $0x70] sm:$0xff]
  %v130 = vld [vmem:[%s2 + $0x78] sm:$0xff]
  %v131 = vld [vmem:[%s2 + $0x80] sm:$0xff]
  %v132 = vld [vmem:[%s2 + $0x88] sm:$0xff]
  %v133 = vld [vmem:[%s2 + $0x665] ss:$0 sm:$0xff]
  %vm134 = vcmask 523264
  %v136 = vsel %vm134, 0.0, 0
  %138 = vmatpush.msra.mxu0 0.0
  %139 = vmatpush.msra.mxu0 0.0
  %140 = vmatpush.msra.mxu0 0.0
  %141 = vmatpush.msra.mxu0 0.0
  %142 = vmatpush.msra.mxu0 0.0
  %143 = vmatpush.msra.mxu0 0.0
  %144 = vmatpush.msra.mxu0 0.0
  %145 = vmatpush.msra.mxu0 0.0
  %146 = vmatpush.msra.mxu0 %v131
  %147 = vmatpush.msra.mxu0 %v129
  %148 = vmatpush.msra.mxu0 %v127
  %149 = vmatpush.msra.mxu0 %v125
  %150 = vmatpush.msra.mxu0 %v123
  %151 = vmatpush.msra.mxu0 %v121
  %152 = vmatpush.msra.mxu0 %v119
  %153 = vmatpush.msra.mxu0 %v117
  %154 = vmatmul.f32.gmra.mxu0 %v136
  %v155 = vpop.f32.mrf.mxu0
  %v156 = vadd.f32 0.0, %v155
  %157 = vdwg.mxu0
  %158 = vmatpush.msra.mxu0 0.0
  %159 = vmatpush.msra.mxu0 0.0
  %160 = vmatpush.msra.mxu0 0.0
  %161 = vmatpush.msra.mxu0 0.0
  %162 = vmatpush.msra.mxu0 0.0
  %163 = vmatpush.msra.mxu0 0.0
  %164 = vmatpush.msra.mxu0 0.0
  %165 = vmatpush.msra.mxu0 0.0
  %166 = vmatpush.msra.mxu0 %v132
  %167 = vmatpush.msra.mxu0 %v130
  %168 = vmatpush.msra.mxu0 %v128
  %169 = vmatpush.msra.mxu0 %v126
  %170 = vmatpush.msra.mxu0 %v124
  %171 = vmatpush.msra.mxu0 %v122
  %172 = vmatpush.msra.mxu0 %v120
  %173 = vmatpush.msra.mxu0 %v118
  %174 = vmatmul.f32.gmra.mxu0 %v136
  %v175 = vpop.f32.mrf.mxu0
  %v176 = vadd.f32 0.0, %v175
  %177 = vdwg.mxu0
  %v178 = vadd.f32 %v89, %v156
  %v179 = vxor.u32 %v178, 2147483648
  %v180 = vmul.f32 %v179, 1.442695
  %v181 = vpow.pop %v180
  %v182 = vadd.f32 %v181, 1.0
  %v183 = vrcp.pop %v182
  %v184 = vmul.f32 %v182, %v183
  %v185 = vsub.f32 1.0, %v184
  %v186 = vmul.f32 %v183, %v185
  %v187 = vadd.f32 %v183, %v186
  %vm188 = vweird.f32 %v182
  %vm189 = vweird.f32 %v183
  %vm190 = vmor %vm188, %vm189
  %v191 = vsel %vm190, %v183, %v187
  %v192 = vand.u32 2147483647, %v182
  %vm193 = vcmp.eq.f32.partialorder %v192, 8.507059e+37
  %v194 = vand.u32 %v182, 2147483648
  %v195 = vor.u32 1.1754944e-38, %v194
  %v196 = vsel %vm193, %v195, %v191
  %v197 = vmul.f32 1.0, %v196
  %199 = vrot.lane.b32.xlu0 %v133, 64
  %v200 = vpop.permute.xlu0 %199
  %v202 = vadd.f32 %v156, %v200
  %204 = vrot.lane.b32.xlu0 %v202, 64
  %v205 = vpop.permute.xlu0 %204
  %v207 = vmul.f32 %v197, %v205
  %209 = vrot.lane.b32.xlu0 %v207, 64
  %v210 = vpop.permute.xlu0 %209
  %v212 = vadd.f32 %v89, %v210
  %v213 = vtanh.pop %v212
  %v214 = vsub.f32 1.0, %v197
  %216 = vrot.lane.b32.xlu0 %v213, 96
  %v217 = vpop.permute.xlu0 %216
  %v219 = vmul.f32 %v214, %v217
  %v220 = vmul.f32 %v197, 0.0
  %v221 = vadd.f32 %v219, %v220
  %v223 = vrot.slane %v156, 2
  %v225 = vadd.f32 %v92, %v223
  %v226 = vxor.u32 %v225, 2147483648
  %v227 = vmul.f32 %v226, 1.442695
  %v228 = vpow.pop %v227
  %v229 = vadd.f32 %v228, 1.0
  %v230 = vrcp.pop %v229
  %v231 = vmul.f32 %v229, %v230
  %v232 = vsub.f32 1.0, %v231
  %v233 = vmul.f32 %v230, %v232
  %v234 = vadd.f32 %v230, %v233
  %vm235 = vweird.f32 %v229
  %vm236 = vweird.f32 %v230
  %vm237 = vmor %vm235, %vm236
  %v238 = vsel %vm237, %v230, %v234
  %v239 = vand.u32 2147483647, %v229
  %vm240 = vcmp.eq.f32.partialorder %v239, 8.507059e+37
  %v241 = vand.u32 %v229, 2147483648
  %v242 = vor.u32 1.1754944e-38, %v241
  %v243 = vsel %vm240, %v242, %v238
  %v244 = vmul.f32 1.0, %v243
  %v246 = vrot.slane %v176, 2
  %v248 = vadd.f32 %v115, %v246
  %v249 = vxor.u32 %v248, 2147483648
  %v250 = vmul.f32 %v249, 1.442695
  %v251 = vpow.pop %v250
  %v252 = vadd.f32 %v251, 1.0
  %v253 = vrcp.pop %v252
  %v254 = vmul.f32 %v252, %v253
  %v255 = vsub.f32 1.0, %v254
  %v256 = vmul.f32 %v253, %v255
  %v257 = vadd.f32 %v253, %v256
  %vm258 = vweird.f32 %v252
  %vm259 = vweird.f32 %v253
  %vm260 = vmor %vm258, %vm259
  %v261 = vsel %vm260, %v253, %v257
  %v262 = vand.u32 2147483647, %v252
  %vm263 = vcmp.eq.f32.partialorder %v262, 8.507059e+37
  %v264 = vand.u32 %v252, 2147483648
  %v265 = vor.u32 1.1754944e-38, %v264
  %v266 = vsel %vm263, %v265, %v261
  %v267 = vmul.f32 1.0, %v266
  %v268 = vadd.f32 %v176, %v133
  %v270 = vrot.slane %v268, 2
  %271 = vrot.lane.b32.xlu0 %v270, 64
  %v272 = vpop.permute.xlu0 %271
  %v274 = vmul.f32 %v244, %v272
  %276 = vrot.lane.b32.xlu0 %v274, 64
  %v277 = vpop.permute.xlu0 %276
  %v279 = vadd.f32 %v115, %v277
  %v280 = vtanh.pop %v279
  %v281 = vsub.f32 1.0, %v267
  %283 = vrot.lane.b32.xlu0 %v280, 96
  %v284 = vpop.permute.xlu0 %283
  %v286 = vmul.f32 %v281, %v284
  %v287 = vmul.f32 %v267, 0.0
  %v288 = vadd.f32 %v286, %v287
  %290 = vrot.lane.b32.xlu0 %v221, 96
  %v291 = vpop.permute.xlu0 %290
  %vm293 = vcmask 254976
  %294 = vst.msk [vmem:[#allocation3] sm:$0x3] %vm293, %v291
  %296 = vrot.lane.b32.xlu0 %v288, 32
  %v297 = vpop.permute.xlu0 %296
  %vm299 = vcmask 523526
  %300 = vst.msk [vmem:[#allocation3 + $0x8] sm:$0xc0] %vm299, %v297
  %v301 = vrot.slane %v288, 6
  %302 = vrot.lane.b32.xlu0 %v301, 32
  %v303 = vpop.permute.xlu0 %302
  %vm305 = vcmask 261120
  %v306 = vsel %vm305, %v291, %v303
  %v308 = vsel %vm134, %v306, 0
  %310 = vmatpush.msra.mxu0 0.0
  %311 = vmatpush.msra.mxu0 0.0
  %312 = vmatpush.msra.mxu0 0.0
  %313 = vmatpush.msra.mxu0 0.0
  %314 = vmatpush.msra.mxu0 0.0
  %315 = vmatpush.msra.mxu0 0.0
  %316 = vmatpush.msra.mxu0 0.0
  %317 = vmatpush.msra.mxu0 0.0
  %318 = vmatpush.msra.mxu0 %v131
  %319 = vmatpush.msra.mxu0 %v129
  %320 = vmatpush.msra.mxu0 %v127
  %321 = vmatpush.msra.mxu0 %v125
  %322 = vmatpush.msra.mxu0 %v123
  %323 = vmatpush.msra.mxu0 %v121
  %324 = vmatpush.msra.mxu0 %v119
  %325 = vmatpush.msra.mxu0 %v117
  %326 = vmatmul.f32.gmra.mxu0 %v308
  %v327 = vpop.f32.mrf.mxu0
  %v328 = vadd.f32 0.0, %v327
  %329 = vdwg.mxu0
  %330 = vmatpush.msra.mxu0 0.0
  %331 = vmatpush.msra.mxu0 0.0
  %332 = vmatpush.msra.mxu0 0.0
  %333 = vmatpush.msra.mxu0 0.0
  %334 = vmatpush.msra.mxu0 0.0
  %335 = vmatpush.msra.mxu0 0.0
  %336 = vmatpush.msra.mxu0 0.0
  %337 = vmatpush.msra.mxu0 0.0
  %338 = vmatpush.msra.mxu0 %v132
  %339 = vmatpush.msra.mxu0 %v130
  %340 = vmatpush.msra.mxu0 %v128
  %341 = vmatpush.msra.mxu0 %v126
  %342 = vmatpush.msra.mxu0 %v124
  %343 = vmatpush.msra.mxu0 %v122
  %344 = vmatpush.msra.mxu0 %v120
  %345 = vmatpush.msra.mxu0 %v118
  %346 = vmatmul.f32.gmra.mxu0 %v308
  %v347 = vpop.f32.mrf.mxu0
  %v348 = vadd.f32 0.0, %v347
  %349 = vdwg.mxu0
  %v351 = vrot.slane %v328, 6
  %v353 = vadd.f32 %v89, %v351
  %v354 = vxor.u32 %v353, 2147483648
  %v355 = vmul.f32 %v354, 1.442695
  %v356 = vpow.pop %v355
  %v357 = vadd.f32 %v356, 1.0
  %v358 = vrcp.pop %v357
  %v359 = vmul.f32 %v357, %v358
  %v360 = vsub.f32 1.0, %v359
  %v361 = vmul.f32 %v358, %v360
  %v362 = vadd.f32 %v358, %v361
  %vm363 = vweird.f32 %v357
  %vm364 = vweird.f32 %v358
  %vm365 = vmor %vm363, %vm364
  %v366 = vsel %vm365, %v358, %v362
  %v367 = vand.u32 2147483647, %v357
  %vm368 = vcmp.eq.f32.partialorder %v367, 8.507059e+37
  %v369 = vand.u32 %v357, 2147483648
  %v370 = vor.u32 1.1754944e-38, %v369
  %v371 = vsel %vm368, %v370, %v366
  %v372 = vmul.f32 1.0, %v371
  %v373 = vadd.f32 %v328, %v200
  %v375 = vrot.slane %v373, 6
  %376 = vrot.lane.b32.xlu0 %v375, 64
  %v377 = vpop.permute.xlu0 %376
  %v379 = vmul.f32 %v372, %v377
  %381 = vrot.lane.b32.xlu0 %v379, 64
  %v382 = vpop.permute.xlu0 %381
  %v384 = vadd.f32 %v89, %v382
  %v385 = vtanh.pop %v384
  %v386 = vsub.f32 1.0, %v372
  %388 = vrot.lane.b32.xlu0 %v385, 96
  %v389 = vpop.permute.xlu0 %388
  %v391 = vmul.f32 %v386, %v389
  %v392 = vrot.slane %v306, 6
  %393 = vrot.lane.b32.xlu0 %v392, 32
  %v394 = vpop.permute.xlu0 %393
  %v396 = vmul.f32 %v372, %v394
  %v397 = vadd.f32 %v391, %v396
  %v398 = vrot.slane %v328, 4
  %v400 = vadd.f32 %v92, %v398
  %v401 = vxor.u32 %v400, 2147483648
  %v402 = vmul.f32 %v401, 1.442695
  %v403 = vpow.pop %v402
  %v404 = vadd.f32 %v403, 1.0
  %v405 = vrcp.pop %v404
  %v406 = vmul.f32 %v404, %v405
  %v407 = vsub.f32 1.0, %v406
  %v408 = vmul.f32 %v405, %v407
  %v409 = vadd.f32 %v405, %v408
  %vm410 = vweird.f32 %v404
  %vm411 = vweird.f32 %v405
  %vm412 = vmor %vm410, %vm411
  %v413 = vsel %vm412, %v405, %v409
  %v414 = vand.u32 2147483647, %v404
  %vm415 = vcmp.eq.f32.partialorder %v414, 8.507059e+37
  %v416 = vand.u32 %v404, 2147483648
  %v417 = vor.u32 1.1754944e-38, %v416
  %v418 = vsel %vm415, %v417, %v413
  %v419 = vmul.f32 1.0, %v418
  %v421 = vrot.slane %v348, 4
  %v423 = vadd.f32 %v115, %v421
  %v424 = vxor.u32 %v423, 2147483648
  %v425 = vmul.f32 %v424, 1.442695
  %v426 = vpow.pop %v425
  %v427 = vadd.f32 %v426, 1.0
  %v428 = vrcp.pop %v427
  %v429 = vmul.f32 %v427, %v428
  %v430 = vsub.f32 1.0, %v429
  %v431 = vmul.f32 %v428, %v430
  %v432 = vadd.f32 %v428, %v431
  %vm433 = vweird.f32 %v427
  %vm434 = vweird.f32 %v428
  %vm435 = vmor %vm433, %vm434
  %v436 = vsel %vm435, %v428, %v432
  %v437 = vand.u32 2147483647, %v427
  %vm438 = vcmp.eq.f32.partialorder %v437, 8.507059e+37
  %v439 = vand.u32 %v427, 2147483648
  %v440 = vor.u32 1.1754944e-38, %v439
  %v441 = vsel %vm438, %v440, %v436
  %v442 = vmul.f32 1.0, %v441
  %v443 = vadd.f32 %v348, %v133
  %v445 = vrot.slane %v443, 4
  %446 = vrot.lane.b32.xlu0 %v445, 64
  %v447 = vpop.permute.xlu0 %446
  %v449 = vmul.f32 %v419, %v447
  %451 = vrot.lane.b32.xlu0 %v449, 64
  %v452 = vpop.permute.xlu0 %451
  %v454 = vadd.f32 %v115, %v452
  %v455 = vtanh.pop %v454
  %v456 = vsub.f32 1.0, %v442
  %458 = vrot.lane.b32.xlu0 %v455, 96
  %v459 = vpop.permute.xlu0 %458
  %v461 = vmul.f32 %v456, %v459
  %v462 = vrot.slane %v306, 4
  %463 = vrot.lane.b32.xlu0 %v462, 96
  %v464 = vpop.permute.xlu0 %463
  %v466 = vmul.f32 %v442, %v464
  %v467 = vadd.f32 %v461, %v466
  %469 = vrot.lane.b32.xlu0 %v397, 96
  %v470 = vpop.permute.xlu0 %469
  %vm472 = vcmask 257026
  %473 = vst.msk [vmem:[#allocation3] sm:$0xc] %vm472, %v470
  %475 = vrot.lane.b32.xlu0 %v467, 32
  %v476 = vpop.permute.xlu0 %475
  %vm478 = vcmask 521476
  %479 = vst.msk [vmem:[#allocation3 + $0x8] sm:$0x30] %vm478, %v476
  %v480 = vrot.slane %v467, 2
  %481 = vrot.lane.b32.xlu0 %v480, 32
  %v482 = vpop.permute.xlu0 %481
  %v484 = vsel %vm305, %v470, %v482
  %v486 = vrot.slane %v484, 2
  %v487 = vsel %vm134, %v486, 0
  %489 = vmatpush.msra.mxu0 0.0
  %490 = vmatpush.msra.mxu0 0.0
  %491 = vmatpush.msra.mxu0 0.0
  %492 = vmatpush.msra.mxu0 0.0
  %493 = vmatpush.msra.mxu0 0.0
  %494 = vmatpush.msra.mxu0 0.0
  %495 = vmatpush.msra.mxu0 0.0
  %496 = vmatpush.msra.mxu0 0.0
  %497 = vmatpush.msra.mxu0 %v131
  %498 = vmatpush.msra.mxu0 %v129
  %499 = vmatpush.msra.mxu0 %v127
  %500 = vmatpush.msra.mxu0 %v125
  %501 = vmatpush.msra.mxu0 %v123
  %502 = vmatpush.msra.mxu0 %v121
  %503 = vmatpush.msra.mxu0 %v119
  %504 = vmatpush.msra.mxu0 %v117
  %505 = vmatmul.f32.gmra.mxu0 %v487
  %v506 = vpop.f32.mrf.mxu0
  %v507 = vadd.f32 0.0, %v506
  %508 = vdwg.mxu0
  %509 = vmatpush.msra.mxu0 0.0
  %510 = vmatpush.msra.mxu0 0.0
  %511 = vmatpush.msra.mxu0 0.0
  %512 = vmatpush.msra.mxu0 0.0
  %513 = vmatpush.msra.mxu0 0.0
  %514 = vmatpush.msra.mxu0 0.0
  %515 = vmatpush.msra.mxu0 0.0
  %516 = vmatpush.msra.mxu0 0.0
  %517 = vmatpush.msra.mxu0 %v132
  %518 = vmatpush.msra.mxu0 %v130
  %519 = vmatpush.msra.mxu0 %v128
  %520 = vmatpush.msra.mxu0 %v126
  %521 = vmatpush.msra.mxu0 %v124
  %522 = vmatpush.msra.mxu0 %v122
  %523 = vmatpush.msra.mxu0 %v120
  %524 = vmatpush.msra.mxu0 %v118
  %525 = vmatmul.f32.gmra.mxu0 %v487
  %v526 = vpop.f32.mrf.mxu0
  %v527 = vadd.f32 0.0, %v526
  %528 = vdwg.mxu0
  %v530 = vrot.slane %v507, 4
  %v532 = vadd.f32 %v89, %v530
  %v533 = vxor.u32 %v532, 2147483648
  %v534 = vmul.f32 %v533, 1.442695
  %v535 = vpow.pop %v534
  %v536 = vadd.f32 %v535, 1.0
  %v537 = vrcp.pop %v536
  %v538 = vmul.f32 %v536, %v537
  %v539 = vsub.f32 1.0, %v538
  %v540 = vmul.f32 %v537, %v539
  %v541 = vadd.f32 %v537, %v540
  %vm542 = vweird.f32 %v536
  %vm543 = vweird.f32 %v537
  %vm544 = vmor %vm542, %vm543
  %v545 = vsel %vm544, %v537, %v541
  %v546 = vand.u32 2147483647, %v536
  %vm547 = vcmp.eq.f32.partialorder %v546, 8.507059e+37
  %v548 = vand.u32 %v536, 2147483648
  %v549 = vor.u32 1.1754944e-38, %v548
  %v550 = vsel %vm547, %v549, %v545
  %v551 = vmul.f32 1.0, %v550
  %v552 = vadd.f32 %v507, %v200
  %v554 = vrot.slane %v552, 4
  %555 = vrot.lane.b32.xlu0 %v554, 64
  %v556 = vpop.permute.xlu0 %555
  %v558 = vmul.f32 %v551, %v556
  %560 = vrot.lane.b32.xlu0 %v558, 64
  %v561 = vpop.permute.xlu0 %560
  %v563 = vadd.f32 %v89, %v561
  %v564 = vtanh.pop %v563
  %v565 = vsub.f32 1.0, %v551
  %567 = vrot.lane.b32.xlu0 %v564, 96
  %v568 = vpop.permute.xlu0 %567
  %v570 = vmul.f32 %v565, %v568
  %v571 = vrot.slane %v484, 6
  %572 = vrot.lane.b32.xlu0 %v571, 32
  %v573 = vpop.permute.xlu0 %572
  %v575 = vmul.f32 %v551, %v573
  %v576 = vadd.f32 %v570, %v575
  %v577 = vrot.slane %v507, 6
  %v579 = vadd.f32 %v92, %v577
  %v580 = vxor.u32 %v579, 2147483648
  %v581 = vmul.f32 %v580, 1.442695
  %v582 = vpow.pop %v581
  %v583 = vadd.f32 %v582, 1.0
  %v584 = vrcp.pop %v583
  %v585 = vmul.f32 %v583, %v584
  %v586 = vsub.f32 1.0, %v585
  %v587 = vmul.f32 %v584, %v586
  %v588 = vadd.f32 %v584, %v587
  %vm589 = vweird.f32 %v583
  %vm590 = vweird.f32 %v584
  %vm591 = vmor %vm589, %vm590
  %v592 = vsel %vm591, %v584, %v588
  %v593 = vand.u32 2147483647, %v583
  %vm594 = vcmp.eq.f32.partialorder %v593, 8.507059e+37
  %v595 = vand.u32 %v583, 2147483648
  %v596 = vor.u32 1.1754944e-38, %v595
  %v597 = vsel %vm594, %v596, %v592
  %v598 = vmul.f32 1.0, %v597
  %v600 = vrot.slane %v527, 6
  %v602 = vadd.f32 %v115, %v600
  %v603 = vxor.u32 %v602, 2147483648
  %v604 = vmul.f32 %v603, 1.442695
  %v605 = vpow.pop %v604
  %v606 = vadd.f32 %v605, 1.0
  %v607 = vrcp.pop %v606
  %v608 = vmul.f32 %v606, %v607
  %v609 = vsub.f32 1.0, %v608
  %v610 = vmul.f32 %v607, %v609
  %v611 = vadd.f32 %v607, %v610
  %vm612 = vweird.f32 %v606
  %vm613 = vweird.f32 %v607
  %vm614 = vmor %vm612, %vm613
  %v615 = vsel %vm614, %v607, %v611
  %v616 = vand.u32 2147483647, %v606
  %vm617 = vcmp.eq.f32.partialorder %v616, 8.507059e+37
  %v618 = vand.u32 %v606, 2147483648
  %v619 = vor.u32 1.1754944e-38, %v618
  %v620 = vsel %vm617, %v619, %v615
  %v621 = vmul.f32 1.0, %v620
  %v622 = vadd.f32 %v527, %v133
  %v624 = vrot.slane %v622, 6
  %625 = vrot.lane.b32.xlu0 %v624, 64
  %v626 = vpop.permute.xlu0 %625
  %v628 = vmul.f32 %v598, %v626
  %630 = vrot.lane.b32.xlu0 %v628, 64
  %v631 = vpop.permute.xlu0 %630
  %v633 = vadd.f32 %v115, %v631
  %v634 = vtanh.pop %v633
  %v635 = vsub.f32 1.0, %v621
  %637 = vrot.lane.b32.xlu0 %v634, 96
  %v638 = vpop.permute.xlu0 %637
  %v640 = vmul.f32 %v635, %v638
  %641 = vrot.lane.b32.xlu0 %v484, 96
  %v642 = vpop.permute.xlu0 %641
  %v644 = vmul.f32 %v621, %v642
  %v645 = vadd.f32 %v640, %v644
  %647 = vrot.lane.b32.xlu0 %v576, 96
  %v648 = vpop.permute.xlu0 %647
  %vm650 = vcmask 259076
  %651 = vst.msk [vmem:[#allocation3] sm:$0x30] %vm650, %v648
  %653 = vrot.lane.b32.xlu0 %v645, 32
  %v654 = vpop.permute.xlu0 %653
  %vm656 = vcmask 519426
  %657 = vst.msk [vmem:[#allocation3 + $0x8] sm:$0xc] %vm656, %v654
  %v658 = vrot.slane %v645, 6
  %659 = vrot.lane.b32.xlu0 %v658, 32
  %v660 = vpop.permute.xlu0 %659
  %v662 = vsel %vm305, %v648, %v660
  %v664 = vrot.slane %v662, 4
  %v665 = vsel %vm134, %v664, 0
  %667 = vmatpush.msra.mxu0 0.0
  %668 = vmatpush.msra.mxu0 0.0
  %669 = vmatpush.msra.mxu0 0.0
  %670 = vmatpush.msra.mxu0 0.0
  %671 = vmatpush.msra.mxu0 0.0
  %672 = vmatpush.msra.mxu0 0.0
  %673 = vmatpush.msra.mxu0 0.0
  %674 = vmatpush.msra.mxu0 0.0
  %675 = vmatpush.msra.mxu0 %v131
  %676 = vmatpush.msra.mxu0 %v129
  %677 = vmatpush.msra.mxu0 %v127
  %678 = vmatpush.msra.mxu0 %v125
  %679 = vmatpush.msra.mxu0 %v123
  %680 = vmatpush.msra.mxu0 %v121
  %681 = vmatpush.msra.mxu0 %v119
  %682 = vmatpush.msra.mxu0 %v117
  %683 = vmatmul.f32.gmra.mxu0 %v665
  %v684 = vpop.f32.mrf.mxu0
  %v685 = vadd.f32 0.0, %v684
  %686 = vdwg.mxu0
  %687 = vmatpush.msra.mxu0 0.0
  %688 = vmatpush.msra.mxu0 0.0
  %689 = vmatpush.msra.mxu0 0.0
  %690 = vmatpush.msra.mxu0 0.0
  %691 = vmatpush.msra.mxu0 0.0
  %692 = vmatpush.msra.mxu0 0.0
  %693 = vmatpush.msra.mxu0 0.0
  %694 = vmatpush.msra.mxu0 0.0
  %695 = vmatpush.msra.mxu0 %v132
  %696 = vmatpush.msra.mxu0 %v130
  %697 = vmatpush.msra.mxu0 %v128
  %698 = vmatpush.msra.mxu0 %v126
  %699 = vmatpush.msra.mxu0 %v124
  %700 = vmatpush.msra.mxu0 %v122
  %701 = vmatpush.msra.mxu0 %v120
  %702 = vmatpush.msra.mxu0 %v118
  %703 = vmatmul.f32.gmra.mxu0 %v665
  %v704 = vpop.f32.mrf.mxu0
  %v705 = vadd.f32 0.0, %v704
  %706 = vdwg.mxu0
  %v708 = vrot.slane %v685, 2
  %v710 = vadd.f32 %v89, %v708
  %v711 = vxor.u32 %v710, 2147483648
  %v712 = vmul.f32 %v711, 1.442695
  %v713 = vpow.pop %v712
  %v714 = vadd.f32 %v713, 1.0
  %v715 = vrcp.pop %v714
  %v716 = vmul.f32 %v714, %v715
  %v717 = vsub.f32 1.0, %v716
  %v718 = vmul.f32 %v715, %v717
  %v719 = vadd.f32 %v715, %v718
  %vm720 = vweird.f32 %v714
  %vm721 = vweird.f32 %v715
  %vm722 = vmor %vm720, %vm721
  %v723 = vsel %vm722, %v715, %v719
  %v724 = vand.u32 2147483647, %v714
  %vm725 = vcmp.eq.f32.partialorder %v724, 8.507059e+37
  %v726 = vand.u32 %v714, 2147483648
  %v727 = vor.u32 1.1754944e-38, %v726
  %v728 = vsel %vm725, %v727, %v723
  %v729 = vmul.f32 1.0, %v728
  %v730 = vadd.f32 %v685, %v200
  %v732 = vrot.slane %v730, 2
  %733 = vrot.lane.b32.xlu0 %v732, 64
  %v734 = vpop.permute.xlu0 %733
  %v736 = vmul.f32 %v729, %v734
  %738 = vrot.lane.b32.xlu0 %v736, 64
  %v739 = vpop.permute.xlu0 %738
  %v741 = vadd.f32 %v89, %v739
  %v742 = vtanh.pop %v741
  %v743 = vsub.f32 1.0, %v729
  %745 = vrot.lane.b32.xlu0 %v742, 96
  %v746 = vpop.permute.xlu0 %745
  %v748 = vmul.f32 %v743, %v746
  %v749 = vrot.slane %v662, 6
  %750 = vrot.lane.b32.xlu0 %v749, 32
  %v751 = vpop.permute.xlu0 %750
  %v753 = vmul.f32 %v729, %v751
  %v754 = vadd.f32 %v748, %v753
  %v755 = vadd.f32 %v92, %v685
  %v756 = vxor.u32 %v755, 2147483648
  %v757 = vmul.f32 %v756, 1.442695
  %v758 = vpow.pop %v757
  %v759 = vadd.f32 %v758, 1.0
  %v760 = vrcp.pop %v759
  %v761 = vmul.f32 %v759, %v760
  %v762 = vsub.f32 1.0, %v761
  %v763 = vmul.f32 %v760, %v762
  %v764 = vadd.f32 %v760, %v763
  %vm765 = vweird.f32 %v759
  %vm766 = vweird.f32 %v760
  %vm767 = vmor %vm765, %vm766
  %v768 = vsel %vm767, %v760, %v764
  %v769 = vand.u32 2147483647, %v759
  %vm770 = vcmp.eq.f32.partialorder %v769, 8.507059e+37
  %v771 = vand.u32 %v759, 2147483648
  %v772 = vor.u32 1.1754944e-38, %v771
  %v773 = vsel %vm770, %v772, %v768
  %v774 = vmul.f32 1.0, %v773
  %v775 = vadd.f32 %v115, %v705
  %v776 = vxor.u32 %v775, 2147483648
  %v777 = vmul.f32 %v776, 1.442695
  %v778 = vpow.pop %v777
  %v779 = vadd.f32 %v778, 1.0
  %v780 = vrcp.pop %v779
  %v781 = vmul.f32 %v779, %v780
  %v782 = vsub.f32 1.0, %v781
  %v783 = vmul.f32 %v780, %v782
  %v784 = vadd.f32 %v780, %v783
  %vm785 = vweird.f32 %v779
  %vm786 = vweird.f32 %v780
  %vm787 = vmor %vm785, %vm786
  %v788 = vsel %vm787, %v780, %v784
  %v789 = vand.u32 2147483647, %v779
  %vm790 = vcmp.eq.f32.partialorder %v789, 8.507059e+37
  %v791 = vand.u32 %v779, 2147483648
  %v792 = vor.u32 1.1754944e-38, %v791
  %v793 = vsel %vm790, %v792, %v788
  %v794 = vmul.f32 1.0, %v793
  %v795 = vadd.f32 %v705, %v133
  %797 = vrot.lane.b32.xlu0 %v795, 64
  %v798 = vpop.permute.xlu0 %797
  %v800 = vmul.f32 %v774, %v798
  %802 = vrot.lane.b32.xlu0 %v800, 64
  %v803 = vpop.permute.xlu0 %802
  %v805 = vadd.f32 %v115, %v803
  %v806 = vtanh.pop %v805
  %v807 = vsub.f32 1.0, %v794
  %809 = vrot.lane.b32.xlu0 %v806, 96
  %v810 = vpop.permute.xlu0 %809
  %v812 = vmul.f32 %v807, %v810
  %813 = vrot.lane.b32.xlu0 %v664, 96
  %v814 = vpop.permute.xlu0 %813
  %v816 = vmul.f32 %v794, %v814
  %v817 = vadd.f32 %v812, %v816
  %819 = vrot.lane.b32.xlu0 %v754, 96
  %v820 = vpop.permute.xlu0 %819
  %vm822 = vcmask 261126
  %823 = vst.msk [vmem:[#allocation3] sm:$0xc0] %vm822, %v820
  %825 = vrot.lane.b32.xlu0 %v817, 32
  %v826 = vpop.permute.xlu0 %825
  %vm828 = vcmask 517376
  %829 = vst.msk [vmem:[#allocation3 + $0x8] sm:$0x3] %vm828, %v826
  %v830 = vrot.slane %v817, 2
  %831 = vrot.lane.b32.xlu0 %v830, 32
  %v832 = vpop.permute.xlu0 %831
  %v834 = vsel %vm305, %v820, %v832
  %v836 = vrot.slane %v834, 6
  %v837 = vsel %vm134, %v836, 0
  %839 = vmatpush.msra.mxu0 0.0
  %840 = vmatpush.msra.mxu0 0.0
  %841 = vmatpush.msra.mxu0 0.0
  %842 = vmatpush.msra.mxu0 0.0
  %843 = vmatpush.msra.mxu0 0.0
  %844 = vmatpush.msra.mxu0 0.0
  %845 = vmatpush.msra.mxu0 0.0
  %846 = vmatpush.msra.mxu0 0.0
  %847 = vmatpush.msra.mxu0 %v131
  %848 = vmatpush.msra.mxu0 %v129
  %849 = vmatpush.msra.mxu0 %v127
  %850 = vmatpush.msra.mxu0 %v125
  %851 = vmatpush.msra.mxu0 %v123
  %852 = vmatpush.msra.mxu0 %v121
  %853 = vmatpush.msra.mxu0 %v119
  %854 = vmatpush.msra.mxu0 %v117
  %855 = vmatmul.f32.gmra.mxu0 %v837
  %v856 = vpop.f32.mrf.mxu0
  %v857 = vadd.f32 0.0, %v856
  %858 = vdwg.mxu0
  %859 = vmatpush.msra.mxu0 0.0
  %860 = vmatpush.msra.mxu0 0.0
  %861 = vmatpush.msra.mxu0 0.0
  %862 = vmatpush.msra.mxu0 0.0
  %863 = vmatpush.msra.mxu0 0.0
  %864 = vmatpush.msra.mxu0 0.0
  %865 = vmatpush.msra.mxu0 0.0
  %866 = vmatpush.msra.mxu0 0.0
  %867 = vmatpush.msra.mxu0 %v132
  %868 = vmatpush.msra.mxu0 %v130
  %869 = vmatpush.msra.mxu0 %v128
  %870 = vmatpush.msra.mxu0 %v126
  %871 = vmatpush.msra.mxu0 %v124
  %872 = vmatpush.msra.mxu0 %v122
  %873 = vmatpush.msra.mxu0 %v120
  %874 = vmatpush.msra.mxu0 %v118
  %875 = vmatmul.f32.gmra.mxu0 %v837
  %v876 = vpop.f32.mrf.mxu0
  %v877 = vadd.f32 0.0, %v876
  %878 = vdwg.mxu0
  %v879 = vadd.f32 %v92, %v857
  %v880 = vxor.u32 %v879, 2147483648
  %v881 = vmul.f32 %v880, 1.442695
  %v882 = vpow.pop %v881
  %v883 = vadd.f32 %v882, 1.0
  %v884 = vrcp.pop %v883
  %v885 = vmul.f32 %v883, %v884
  %v886 = vsub.f32 1.0, %v885
  %v887 = vmul.f32 %v884, %v886
  %v888 = vadd.f32 %v884, %v887
  %vm889 = vweird.f32 %v883
  %vm890 = vweird.f32 %v884
  %vm891 = vmor %vm889, %vm890
  %v892 = vsel %vm891, %v884, %v888
  %v893 = vand.u32 2147483647, %v883
  %vm894 = vcmp.eq.f32.partialorder %v893, 8.507059e+37
  %v895 = vand.u32 %v883, 2147483648
  %v896 = vor.u32 1.1754944e-38, %v895
  %v897 = vsel %vm894, %v896, %v892
  %v898 = vmul.f32 1.0, %v897
  %v899 = vadd.f32 %v857, %v200
  %901 = vrot.lane.b32.xlu0 %v899, 64
  %v902 = vpop.permute.xlu0 %901
  %v904 = vmul.f32 %v898, %v902
  %906 = vrot.lane.b32.xlu0 %v904, 64
  %v907 = vpop.permute.xlu0 %906
  %v909 = vadd.f32 %v92, %v907
  %v910 = vtanh.pop %v909
  %v911 = vsub.f32 1.0, %v898
  %913 = vrot.lane.b32.xlu0 %v910, 96
  %v914 = vpop.permute.xlu0 %913
  %v916 = vmul.f32 %v911, %v914
  %917 = vrot.lane.b32.xlu0 %v836, 32
  %v918 = vpop.permute.xlu0 %917
  %v920 = vmul.f32 %v898, %v918
  %v921 = vadd.f32 %v916, %v920
  %v923 = vrot.slane %v857, 2
  %v925 = vadd.f32 %v89, %v923
  %v926 = vxor.u32 %v925, 2147483648
  %v927 = vmul.f32 %v926, 1.442695
  %v928 = vpow.pop %v927
  %v929 = vadd.f32 %v928, 1.0
  %v930 = vrcp.pop %v929
  %v931 = vmul.f32 %v929, %v930
  %v932 = vsub.f32 1.0, %v931
  %v933 = vmul.f32 %v930, %v932
  %v934 = vadd.f32 %v930, %v933
  %vm935 = vweird.f32 %v929
  %vm936 = vweird.f32 %v930
  %vm937 = vmor %vm935, %vm936
  %v938 = vsel %vm937, %v930, %v934
  %v939 = vand.u32 2147483647, %v929
  %vm940 = vcmp.eq.f32.partialorder %v939, 8.507059e+37
  %v941 = vand.u32 %v929, 2147483648
  %v942 = vor.u32 1.1754944e-38, %v941
  %v943 = vsel %vm940, %v942, %v938
  %v944 = vmul.f32 1.0, %v943
  %v946 = vrot.slane %v877, 2
  %v948 = vadd.f32 %v112, %v946
  %v949 = vxor.u32 %v948, 2147483648
  %v950 = vmul.f32 %v949, 1.442695
  %v951 = vpow.pop %v950
  %v952 = vadd.f32 %v951, 1.0
  %v953 = vrcp.pop %v952
  %v954 = vmul.f32 %v952, %v953
  %v955 = vsub.f32 1.0, %v954
  %v956 = vmul.f32 %v953, %v955
  %v957 = vadd.f32 %v953, %v956
  %vm958 = vweird.f32 %v952
  %vm959 = vweird.f32 %v953
  %vm960 = vmor %vm958, %vm959
  %v961 = vsel %vm960, %v953, %v957
  %v962 = vand.u32 2147483647, %v952
  %vm963 = vcmp.eq.f32.partialorder %v962, 8.507059e+37
  %v964 = vand.u32 %v952, 2147483648
  %v965 = vor.u32 1.1754944e-38, %v964
  %v966 = vsel %vm963, %v965, %v961
  %v967 = vmul.f32 1.0, %v966
  %v968 = vadd.f32 %v877, %v133
  %v970 = vrot.slane %v968, 2
  %971 = vrot.lane.b32.xlu0 %v970, 64
  %v972 = vpop.permute.xlu0 %971
  %v974 = vmul.f32 %v944, %v972
  %976 = vrot.lane.b32.xlu0 %v974, 64
  %v977 = vpop.permute.xlu0 %976
  %v979 = vadd.f32 %v112, %v977
  %v980 = vtanh.pop %v979
  %v981 = vsub.f32 1.0, %v967
  %983 = vrot.lane.b32.xlu0 %v980, 96
  %v984 = vpop.permute.xlu0 %983
  %v986 = vmul.f32 %v981, %v984
  %987 = vrot.lane.b32.xlu0 %v834, 96
  %v988 = vpop.permute.xlu0 %987
  %v990 = vmul.f32 %v967, %v988
  %v991 = vadd.f32 %v986, %v990
  %993 = vrot.lane.b32.xlu0 %v921, 96
  %v994 = vpop.permute.xlu0 %993
  %996 = vst.msk [vmem:[#allocation3 + $0x8] sm:$0x3] %vm293, %v994
  %998 = vrot.lane.b32.xlu0 %v991, 32
  %v999 = vpop.permute.xlu0 %998
  %1001 = vst.msk [vmem:[#allocation3] sm:$0xc0] %vm299, %v999
  %v1002 = vrot.slane %v991, 6
  %1003 = vrot.lane.b32.xlu0 %v1002, 32
  %v1004 = vpop.permute.xlu0 %1003
  %v1006 = vsel %vm305, %v994, %v1004
  %v1008 = vsel %vm134, %v1006, 0
  %1010 = vmatpush.msra.mxu0 0.0
  %1011 = vmatpush.msra.mxu0 0.0
  %1012 = vmatpush.msra.mxu0 0.0
  %1013 = vmatpush.msra.mxu0 0.0
  %1014 = vmatpush.msra.mxu0 0.0
  %1015 = vmatpush.msra.mxu0 0.0
  %1016 = vmatpush.msra.mxu0 0.0
  %1017 = vmatpush.msra.mxu0 0.0
  %1018 = vmatpush.msra.mxu0 %v131
  %1019 = vmatpush.msra.mxu0 %v129
  %1020 = vmatpush.msra.mxu0 %v127
  %1021 = vmatpush.msra.mxu0 %v125
  %1022 = vmatpush.msra.mxu0 %v123
  %1023 = vmatpush.msra.mxu0 %v121
  %1024 = vmatpush.msra.mxu0 %v119
  %1025 = vmatpush.msra.mxu0 %v117
  %1026 = vmatmul.f32.gmra.mxu0 %v1008
  %v1027 = vpop.f32.mrf.mxu0
  %v1028 = vadd.f32 0.0, %v1027
  %1029 = vdwg.mxu0
  %1030 = vmatpush.msra.mxu0 0.0
  %1031 = vmatpush.msra.mxu0 0.0
  %1032 = vmatpush.msra.mxu0 0.0
  %1033 = vmatpush.msra.mxu0 0.0
  %1034 = vmatpush.msra.mxu0 0.0
  %1035 = vmatpush.msra.mxu0 0.0
  %1036 = vmatpush.msra.mxu0 0.0
  %1037 = vmatpush.msra.mxu0 0.0
  %1038 = vmatpush.msra.mxu0 %v132
  %1039 = vmatpush.msra.mxu0 %v130
  %1040 = vmatpush.msra.mxu0 %v128
  %1041 = vmatpush.msra.mxu0 %v126
  %1042 = vmatpush.msra.mxu0 %v124
  %1043 = vmatpush.msra.mxu0 %v122
  %1044 = vmatpush.msra.mxu0 %v120
  %1045 = vmatpush.msra.mxu0 %v118
  %1046 = vmatmul.f32.gmra.mxu0 %v1008
  %v1047 = vpop.f32.mrf.mxu0
  %v1048 = vadd.f32 0.0, %v1047
  %1049 = vdwg.mxu0
  %v1051 = vrot.slane %v1028, 6
  %v1053 = vadd.f32 %v92, %v1051
  %v1054 = vxor.u32 %v1053, 2147483648
  %v1055 = vmul.f32 %v1054, 1.442695
  %v1056 = vpow.pop %v1055
  %v1057 = vadd.f32 %v1056, 1.0
  %v1058 = vrcp.pop %v1057
  %v1059 = vmul.f32 %v1057, %v1058
  %v1060 = vsub.f32 1.0, %v1059
  %v1061 = vmul.f32 %v1058, %v1060
  %v1062 = vadd.f32 %v1058, %v1061
  %vm1063 = vweird.f32 %v1057
  %vm1064 = vweird.f32 %v1058
  %vm1065 = vmor %vm1063, %vm1064
  %v1066 = vsel %vm1065, %v1058, %v1062
  %v1067 = vand.u32 2147483647, %v1057
  %vm1068 = vcmp.eq.f32.partialorder %v1067, 8.507059e+37
  %v1069 = vand.u32 %v1057, 2147483648
  %v1070 = vor.u32 1.1754944e-38, %v1069
  %v1071 = vsel %vm1068, %v1070, %v1066
  %v1072 = vmul.f32 1.0, %v1071
  %v1073 = vadd.f32 %v1028, %v200
  %v1075 = vrot.slane %v1073, 6
  %1076 = vrot.lane.b32.xlu0 %v1075, 64
  %v1077 = vpop.permute.xlu0 %1076
  %v1079 = vmul.f32 %v1072, %v1077
  %1081 = vrot.lane.b32.xlu0 %v1079, 64
  %v1082 = vpop.permute.xlu0 %1081
  %v1084 = vadd.f32 %v92, %v1082
  %v1085 = vtanh.pop %v1084
  %v1086 = vsub.f32 1.0, %v1072
  %1088 = vrot.lane.b32.xlu0 %v1085, 96
  %v1089 = vpop.permute.xlu0 %1088
  %v1091 = vmul.f32 %v1086, %v1089
  %v1092 = vrot.slane %v1006, 6
  %1093 = vrot.lane.b32.xlu0 %v1092, 32
  %v1094 = vpop.permute.xlu0 %1093
  %v1096 = vmul.f32 %v1072, %v1094
  %v1097 = vadd.f32 %v1091, %v1096
  %v1098 = vrot.slane %v1028, 4
  %v1100 = vadd.f32 %v89, %v1098
  %v1101 = vxor.u32 %v1100, 2147483648
  %v1102 = vmul.f32 %v1101, 1.442695
  %v1103 = vpow.pop %v1102
  %v1104 = vadd.f32 %v1103, 1.0
  %v1105 = vrcp.pop %v1104
  %v1106 = vmul.f32 %v1104, %v1105
  %v1107 = vsub.f32 1.0, %v1106
  %v1108 = vmul.f32 %v1105, %v1107
  %v1109 = vadd.f32 %v1105, %v1108
  %vm1110 = vweird.f32 %v1104
  %vm1111 = vweird.f32 %v1105
  %vm1112 = vmor %vm1110, %vm1111
  %v1113 = vsel %vm1112, %v1105, %v1109
  %v1114 = vand.u32 2147483647, %v1104
  %vm1115 = vcmp.eq.f32.partialorder %v1114, 8.507059e+37
  %v1116 = vand.u32 %v1104, 2147483648
  %v1117 = vor.u32 1.1754944e-38, %v1116
  %v1118 = vsel %vm1115, %v1117, %v1113
  %v1119 = vmul.f32 1.0, %v1118
  %v1121 = vrot.slane %v1048, 4
  %v1123 = vadd.f32 %v112, %v1121
  %v1124 = vxor.u32 %v1123, 2147483648
  %v1125 = vmul.f32 %v1124, 1.442695
  %v1126 = vpow.pop %v1125
  %v1127 = vadd.f32 %v1126, 1.0
  %v1128 = vrcp.pop %v1127
  %v1129 = vmul.f32 %v1127, %v1128
  %v1130 = vsub.f32 1.0, %v1129
  %v1131 = vmul.f32 %v1128, %v1130
  %v1132 = vadd.f32 %v1128, %v1131
  %vm1133 = vweird.f32 %v1127
  %vm1134 = vweird.f32 %v1128
  %vm1135 = vmor %vm1133, %vm1134
  %v1136 = vsel %vm1135, %v1128, %v1132
  %v1137 = vand.u32 2147483647, %v1127
  %vm1138 = vcmp.eq.f32.partialorder %v1137, 8.507059e+37
  %v1139 = vand.u32 %v1127, 2147483648
  %v1140 = vor.u32 1.1754944e-38, %v1139
  %v1141 = vsel %vm1138, %v1140, %v1136
  %v1142 = vmul.f32 1.0, %v1141
  %v1143 = vadd.f32 %v1048, %v133
  %v1145 = vrot.slane %v1143, 4
  %1146 = vrot.lane.b32.xlu0 %v1145, 64
  %v1147 = vpop.permute.xlu0 %1146
  %v1149 = vmul.f32 %v1119, %v1147
  %1151 = vrot.lane.b32.xlu0 %v1149, 64
  %v1152 = vpop.permute.xlu0 %1151
  %v1154 = vadd.f32 %v112, %v1152
  %v1155 = vtanh.pop %v1154
  %v1156 = vsub.f32 1.0, %v1142
  %1158 = vrot.lane.b32.xlu0 %v1155, 96
  %v1159 = vpop.permute.xlu0 %1158
  %v1161 = vmul.f32 %v1156, %v1159
  %v1162 = vrot.slane %v1006, 4
  %1163 = vrot.lane.b32.xlu0 %v1162, 96
  %v1164 = vpop.permute.xlu0 %1163
  %v1166 = vmul.f32 %v1142, %v1164
  %v1167 = vadd.f32 %v1161, %v1166
  %1169 = vrot.lane.b32.xlu0 %v1097, 96
  %v1170 = vpop.permute.xlu0 %1169
  %1172 = vst.msk [vmem:[#allocation3 + $0x8] sm:$0xc] %vm472, %v1170
  %1174 = vrot.lane.b32.xlu0 %v1167, 32
  %v1175 = vpop.permute.xlu0 %1174
  %1177 = vst.msk [vmem:[#allocation3] sm:$0x30] %vm478, %v1175
  %v1178 = vrot.slane %v1167, 2
  %1179 = vrot.lane.b32.xlu0 %v1178, 32
  %v1180 = vpop.permute.xlu0 %1179
  %v1182 = vsel %vm305, %v1170, %v1180
  %v1184 = vrot.slane %v1182, 2
  %v1185 = vsel %vm134, %v1184, 0
  %1187 = vmatpush.msra.mxu0 0.0
  %1188 = vmatpush.msra.mxu0 0.0
  %1189 = vmatpush.msra.mxu0 0.0
  %1190 = vmatpush.msra.mxu0 0.0
  %1191 = vmatpush.msra.mxu0 0.0
  %1192 = vmatpush.msra.mxu0 0.0
  %1193 = vmatpush.msra.mxu0 0.0
  %1194 = vmatpush.msra.mxu0 0.0
  %1195 = vmatpush.msra.mxu0 %v131
  %1196 = vmatpush.msra.mxu0 %v129
  %1197 = vmatpush.msra.mxu0 %v127
  %1198 = vmatpush.msra.mxu0 %v125
  %1199 = vmatpush.msra.mxu0 %v123
  %1200 = vmatpush.msra.mxu0 %v121
  %1201 = vmatpush.msra.mxu0 %v119
  %1202 = vmatpush.msra.mxu0 %v117
  %1203 = vmatmul.f32.gmra.mxu0 %v1185
  %v1204 = vpop.f32.mrf.mxu0
  %v1205 = vadd.f32 0.0, %v1204
  %1206 = vdwg.mxu0
  %1207 = vmatpush.msra.mxu0 0.0
  %1208 = vmatpush.msra.mxu0 0.0
  %1209 = vmatpush.msra.mxu0 0.0
  %1210 = vmatpush.msra.mxu0 0.0
  %1211 = vmatpush.msra.mxu0 0.0
  %1212 = vmatpush.msra.mxu0 0.0
  %1213 = vmatpush.msra.mxu0 0.0
  %1214 = vmatpush.msra.mxu0 0.0
  %1215 = vmatpush.msra.mxu0 %v132
  %1216 = vmatpush.msra.mxu0 %v130
  %1217 = vmatpush.msra.mxu0 %v128
  %1218 = vmatpush.msra.mxu0 %v126
  %1219 = vmatpush.msra.mxu0 %v124
  %1220 = vmatpush.msra.mxu0 %v122
  %1221 = vmatpush.msra.mxu0 %v120
  %1222 = vmatpush.msra.mxu0 %v118
  %1223 = vmatmul.f32.gmra.mxu0 %v1185
  %v1224 = vpop.f32.mrf.mxu0
  %v1225 = vadd.f32 0.0, %v1224
  %1226 = vdwg.mxu0
  %v1228 = vrot.slane %v1205, 4
  %v1230 = vadd.f32 %v92, %v1228
  %v1231 = vxor.u32 %v1230, 2147483648
  %v1232 = vmul.f32 %v1231, 1.442695
  %v1233 = vpow.pop %v1232
  %v1234 = vadd.f32 %v1233, 1.0
  %v1235 = vrcp.pop %v1234
  %v1236 = vmul.f32 %v1234, %v1235
  %v1237 = vsub.f32 1.0, %v1236
  %v1238 = vmul.f32 %v1235, %v1237
  %v1239 = vadd.f32 %v1235, %v1238
  %vm1240 = vweird.f32 %v1234
  %vm1241 = vweird.f32 %v1235
  %vm1242 = vmor %vm1240, %vm1241
  %v1243 = vsel %vm1242, %v1235, %v1239
  %v1244 = vand.u32 2147483647, %v1234
  %vm1245 = vcmp.eq.f32.partialorder %v1244, 8.507059e+37
  %v1246 = vand.u32 %v1234, 2147483648
  %v1247 = vor.u32 1.1754944e-38, %v1246
  %v1248 = vsel %vm1245, %v1247, %v1243
  %v1249 = vmul.f32 1.0, %v1248
  %v1250 = vadd.f32 %v1205, %v200
  %v1252 = vrot.slane %v1250, 4
  %1253 = vrot.lane.b32.xlu0 %v1252, 64
  %v1254 = vpop.permute.xlu0 %1253
  %v1256 = vmul.f32 %v1249, %v1254
  %1258 = vrot.lane.b32.xlu0 %v1256, 64
  %v1259 = vpop.permute.xlu0 %1258
  %v1261 = vadd.f32 %v92, %v1259
  %v1262 = vtanh.pop %v1261
  %v1263 = vsub.f32 1.0, %v1249
  %1265 = vrot.lane.b32.xlu0 %v1262, 96
  %v1266 = vpop.permute.xlu0 %1265
  %v1268 = vmul.f32 %v1263, %v1266
  %v1269 = vrot.slane %v1182, 6
  %1270 = vrot.lane.b32.xlu0 %v1269, 32
  %v1271 = vpop.permute.xlu0 %1270
  %v1273 = vmul.f32 %v1249, %v1271
  %v1274 = vadd.f32 %v1268, %v1273
  %v1275 = vrot.slane %v1205, 6
  %v1277 = vadd.f32 %v89, %v1275
  %v1278 = vxor.u32 %v1277, 2147483648
  %v1279 = vmul.f32 %v1278, 1.442695
  %v1280 = vpow.pop %v1279
  %v1281 = vadd.f32 %v1280, 1.0
  %v1282 = vrcp.pop %v1281
  %v1283 = vmul.f32 %v1281, %v1282
  %v1284 = vsub.f32 1.0, %v1283
  %v1285 = vmul.f32 %v1282, %v1284
  %v1286 = vadd.f32 %v1282, %v1285
  %vm1287 = vweird.f32 %v1281
  %vm1288 = vweird.f32 %v1282
  %vm1289 = vmor %vm1287, %vm1288
  %v1290 = vsel %vm1289, %v1282, %v1286
  %v1291 = vand.u32 2147483647, %v1281
  %vm1292 = vcmp.eq.f32.partialorder %v1291, 8.507059e+37
  %v1293 = vand.u32 %v1281, 2147483648
  %v1294 = vor.u32 1.1754944e-38, %v1293
  %v1295 = vsel %vm1292, %v1294, %v1290
  %v1296 = vmul.f32 1.0, %v1295
  %v1298 = vrot.slane %v1225, 6
  %v1300 = vadd.f32 %v112, %v1298
  %v1301 = vxor.u32 %v1300, 2147483648
  %v1302 = vmul.f32 %v1301, 1.442695
  %v1303 = vpow.pop %v1302
  %v1304 = vadd.f32 %v1303, 1.0
  %v1305 = vrcp.pop %v1304
  %v1306 = vmul.f32 %v1304, %v1305
  %v1307 = vsub.f32 1.0, %v1306
  %v1308 = vmul.f32 %v1305, %v1307
  %v1309 = vadd.f32 %v1305, %v1308
  %vm1310 = vweird.f32 %v1304
  %vm1311 = vweird.f32 %v1305
  %vm1312 = vmor %vm1310, %vm1311
  %v1313 = vsel %vm1312, %v1305, %v1309
  %v1314 = vand.u32 2147483647, %v1304
  %vm1315 = vcmp.eq.f32.partialorder %v1314, 8.507059e+37
  %v1316 = vand.u32 %v1304, 2147483648
  %v1317 = vor.u32 1.1754944e-38, %v1316
  %v1318 = vsel %vm1315, %v1317, %v1313
  %v1319 = vmul.f32 1.0, %v1318
  %v1320 = vadd.f32 %v1225, %v133
  %v1322 = vrot.slane %v1320, 6
  %1323 = vrot.lane.b32.xlu0 %v1322, 64
  %v1324 = vpop.permute.xlu0 %1323
  %v1326 = vmul.f32 %v1296, %v1324
  %1328 = vrot.lane.b32.xlu0 %v1326, 64
  %v1329 = vpop.permute.xlu0 %1328
  %v1331 = vadd.f32 %v112, %v1329
  %v1332 = vtanh.pop %v1331
  %v1333 = vsub.f32 1.0, %v1319
  %1335 = vrot.lane.b32.xlu0 %v1332, 96
  %v1336 = vpop.permute.xlu0 %1335
  %v1338 = vmul.f32 %v1333, %v1336
  %1339 = vrot.lane.b32.xlu0 %v1182, 96
  %v1340 = vpop.permute.xlu0 %1339
  %v1342 = vmul.f32 %v1319, %v1340
  %v1343 = vadd.f32 %v1338, %v1342
  %1345 = vrot.lane.b32.xlu0 %v1274, 96
  %v1346 = vpop.permute.xlu0 %1345
  %1348 = vst.msk [vmem:[#allocation3 + $0x8] sm:$0x30] %vm650, %v1346
  %1350 = vrot.lane.b32.xlu0 %v1343, 32
  %v1351 = vpop.permute.xlu0 %1350
  %1353 = vst.msk [vmem:[#allocation3] sm:$0xc] %vm656, %v1351
  %v1354 = vrot.slane %v1343, 6
  %1355 = vrot.lane.b32.xlu0 %v1354, 32
  %v1356 = vpop.permute.xlu0 %1355
  %v1358 = vsel %vm305, %v1346, %v1356
  %v1360 = vrot.slane %v1358, 4
  %v1361 = vsel %vm134, %v1360, 0
  %1363 = vmatpush.msra.mxu0 0.0
  %1364 = vmatpush.msra.mxu0 0.0
  %1365 = vmatpush.msra.mxu0 0.0
  %1366 = vmatpush.msra.mxu0 0.0
  %1367 = vmatpush.msra.mxu0 0.0
  %1368 = vmatpush.msra.mxu0 0.0
  %1369 = vmatpush.msra.mxu0 0.0
  %1370 = vmatpush.msra.mxu0 0.0
  %1371 = vmatpush.msra.mxu0 %v131
  %1372 = vmatpush.msra.mxu0 %v129
  %1373 = vmatpush.msra.mxu0 %v127
  %1374 = vmatpush.msra.mxu0 %v125
  %1375 = vmatpush.msra.mxu0 %v123
  %1376 = vmatpush.msra.mxu0 %v121
  %1377 = vmatpush.msra.mxu0 %v119
  %1378 = vmatpush.msra.mxu0 %v117
  %1379 = vmatmul.f32.gmra.mxu0 %v1361
  %v1380 = vpop.f32.mrf.mxu0
  %v1381 = vadd.f32 0.0, %v1380
  %1382 = vdwg.mxu0
  %1383 = vmatpush.msra.mxu0 0.0
  %1384 = vmatpush.msra.mxu0 0.0
  %1385 = vmatpush.msra.mxu0 0.0
  %1386 = vmatpush.msra.mxu0 0.0
  %1387 = vmatpush.msra.mxu0 0.0
  %1388 = vmatpush.msra.mxu0 0.0
  %1389 = vmatpush.msra.mxu0 0.0
  %1390 = vmatpush.msra.mxu0 0.0
  %1391 = vmatpush.msra.mxu0 %v132
  %1392 = vmatpush.msra.mxu0 %v130
  %1393 = vmatpush.msra.mxu0 %v128
  %1394 = vmatpush.msra.mxu0 %v126
  %1395 = vmatpush.msra.mxu0 %v124
  %1396 = vmatpush.msra.mxu0 %v122
  %1397 = vmatpush.msra.mxu0 %v120
  %1398 = vmatpush.msra.mxu0 %v118
  %1399 = vmatmul.f32.gmra.mxu0 %v1361
  %v1400 = vpop.f32.mrf.mxu0
  %v1401 = vadd.f32 0.0, %v1400
  %1402 = vdwg.mxu0
  %v1404 = vrot.slane %v1381, 2
  %v1406 = vadd.f32 %v92, %v1404
  %v1407 = vxor.u32 %v1406, 2147483648
  %v1408 = vmul.f32 %v1407, 1.442695
  %v1409 = vpow.pop %v1408
  %v1410 = vadd.f32 %v1409, 1.0
  %v1411 = vrcp.pop %v1410
  %v1412 = vmul.f32 %v1410, %v1411
  %v1413 = vsub.f32 1.0, %v1412
  %v1414 = vmul.f32 %v1411, %v1413
  %v1415 = vadd.f32 %v1411, %v1414
  %vm1416 = vweird.f32 %v1410
  %vm1417 = vweird.f32 %v1411
  %vm1418 = vmor %vm1416, %vm1417
  %v1419 = vsel %vm1418, %v1411, %v1415
  %v1420 = vand.u32 2147483647, %v1410
  %vm1421 = vcmp.eq.f32.partialorder %v1420, 8.507059e+37
  %v1422 = vand.u32 %v1410, 2147483648
  %v1423 = vor.u32 1.1754944e-38, %v1422
  %v1424 = vsel %vm1421, %v1423, %v1419
  %v1425 = vmul.f32 1.0, %v1424
  %v1426 = vadd.f32 %v1381, %v200
  %v1428 = vrot.slane %v1426, 2
  %1429 = vrot.lane.b32.xlu0 %v1428, 64
  %v1430 = vpop.permute.xlu0 %1429
  %v1432 = vmul.f32 %v1425, %v1430
  %1434 = vrot.lane.b32.xlu0 %v1432, 64
  %v1435 = vpop.permute.xlu0 %1434
  %v1437 = vadd.f32 %v92, %v1435
  %v1438 = vtanh.pop %v1437
  %v1439 = vsub.f32 1.0, %v1425
  %1441 = vrot.lane.b32.xlu0 %v1438, 96
  %v1442 = vpop.permute.xlu0 %1441
  %v1444 = vmul.f32 %v1439, %v1442
  %v1445 = vrot.slane %v1358, 6
  %1446 = vrot.lane.b32.xlu0 %v1445, 32
  %v1447 = vpop.permute.xlu0 %1446
  %v1449 = vmul.f32 %v1425, %v1447
  %v1450 = vadd.f32 %v1444, %v1449
  %v1451 = vadd.f32 %v89, %v1381
  %v1452 = vxor.u32 %v1451, 2147483648
  %v1453 = vmul.f32 %v1452, 1.442695
  %v1454 = vpow.pop %v1453
  %v1455 = vadd.f32 %v1454, 1.0
  %v1456 = vrcp.pop %v1455
  %v1457 = vmul.f32 %v1455, %v1456
  %v1458 = vsub.f32 1.0, %v1457
  %v1459 = vmul.f32 %v1456, %v1458
  %v1460 = vadd.f32 %v1456, %v1459
  %vm1461 = vweird.f32 %v1455
  %vm1462 = vweird.f32 %v1456
  %vm1463 = vmor %vm1461, %vm1462
  %v1464 = vsel %vm1463, %v1456, %v1460
  %v1465 = vand.u32 2147483647, %v1455
  %vm1466 = vcmp.eq.f32.partialorder %v1465, 8.507059e+37
  %v1467 = vand.u32 %v1455, 2147483648
  %v1468 = vor.u32 1.1754944e-38, %v1467
  %v1469 = vsel %vm1466, %v1468, %v1464
  %v1470 = vmul.f32 1.0, %v1469
  %v1471 = vadd.f32 %v112, %v1401
  %v1472 = vxor.u32 %v1471, 2147483648
  %v1473 = vmul.f32 %v1472, 1.442695
  %v1474 = vpow.pop %v1473
  %v1475 = vadd.f32 %v1474, 1.0
  %v1476 = vrcp.pop %v1475
  %v1477 = vmul.f32 %v1475, %v1476
  %v1478 = vsub.f32 1.0, %v1477
  %v1479 = vmul.f32 %v1476, %v1478
  %v1480 = vadd.f32 %v1476, %v1479
  %vm1481 = vweird.f32 %v1475
  %vm1482 = vweird.f32 %v1476
  %vm1483 = vmor %vm1481, %vm1482
  %v1484 = vsel %vm1483, %v1476, %v1480
  %v1485 = vand.u32 2147483647, %v1475
  %vm1486 = vcmp.eq.f32.partialorder %v1485, 8.507059e+37
  %v1487 = vand.u32 %v1475, 2147483648
  %v1488 = vor.u32 1.1754944e-38, %v1487
  %v1489 = vsel %vm1486, %v1488, %v1484
  %v1490 = vmul.f32 1.0, %v1489
  %v1491 = vadd.f32 %v1401, %v133
  %1493 = vrot.lane.b32.xlu0 %v1491, 64
  %v1494 = vpop.permute.xlu0 %1493
  %v1496 = vmul.f32 %v1470, %v1494
  %1498 = vrot.lane.b32.xlu0 %v1496, 64
  %v1499 = vpop.permute.xlu0 %1498
  %v1501 = vadd.f32 %v112, %v1499
  %v1502 = vtanh.pop %v1501
  %v1503 = vsub.f32 1.0, %v1490
  %1505 = vrot.lane.b32.xlu0 %v1502, 96
  %v1506 = vpop.permute.xlu0 %1505
  %v1508 = vmul.f32 %v1503, %v1506
  %1509 = vrot.lane.b32.xlu0 %v1360, 96
  %v1510 = vpop.permute.xlu0 %1509
  %v1512 = vmul.f32 %v1490, %v1510
  %v1513 = vadd.f32 %v1508, %v1512
  %1515 = vrot.lane.b32.xlu0 %v1450, 96
  %v1516 = vpop.permute.xlu0 %1515
  %1518 = vst.msk [vmem:[#allocation3 + $0x8] sm:$0xc0] %vm822, %v1516
  %1520 = vrot.lane.b32.xlu0 %v1513, 32
  %v1521 = vpop.permute.xlu0 %1520
  %1523 = vst.msk [vmem:[#allocation3] sm:$0x3] %vm828, %v1521
  %v1524 = vld [vmem:[#allocation3] sm:$0xff]
  %v1525 = vld [vmem:[#allocation3 + $0x8] sm:$0xff]
  %v1526 = vld [vmem:[%s2 + $0x90] sm:$0xff]
  %v1527 = vld [vmem:[%s2 + $0x98] sm:$0xff]
  %v1528 = vld [vmem:[%s2 + $0xa0] sm:$0xff]
  %v1529 = vld [vmem:[%s2 + $0xa8] sm:$0xff]
  %v1530 = vld [vmem:[%s2 + $0xb0] sm:$0xff]
  %v1531 = vld [vmem:[%s2 + $0xb8] sm:$0xff]
  %v1532 = vld [vmem:[%s2 + $0xc0] sm:$0xff]
  %v1533 = vld [vmem:[%s2 + $0xc8] sm:$0xff]
  %v1534 = vld [vmem:[%s2 + $0xd0] sm:$0xff]
  %v1535 = vld [vmem:[%s2 + $0xd8] sm:$0xff]
  %v1536 = vld [vmem:[%s2 + $0xe0] sm:$0xff]
  %v1537 = vld [vmem:[%s2 + $0xe8] sm:$0xff]
  %v1538 = vld [vmem:[%s2 + $0xf0] sm:$0xff]
  %v1539 = vld [vmem:[%s2 + $0xf8] sm:$0xff]
  %v1540 = vld [vmem:[%s2 + $0x100] sm:$0xff]
  %v1541 = vld [vmem:[%s2 + $0x108] sm:$0xff]
  %s1542 = scalar_lea.vmem %s2, 1638
  %v1543 = vld [vmem:[%s1542] ss:$8 sm:$0x3]
  %v1545 = vperm.slane %v1543, 0
  %v1546 = vperm.slane %v1543, 1
  %v1550 = vsel %vm134, %v1524, 0
  %v1553 = vsel %vm134, %v1525, 0
  %1555 = vmatpush.msra.mxu0 0.0
  %1556 = vmatpush.msra.mxu0 0.0
  %1557 = vmatpush.msra.mxu0 0.0
  %1558 = vmatpush.msra.mxu0 0.0
  %1559 = vmatpush.msra.mxu0 0.0
  %1560 = vmatpush.msra.mxu0 0.0
  %1561 = vmatpush.msra.mxu0 0.0
  %1562 = vmatpush.msra.mxu0 0.0
  %1563 = vmatpush.msra.mxu0 %v1540
  %1564 = vmatpush.msra.mxu0 %v1538
  %1565 = vmatpush.msra.mxu0 %v1536
  %1566 = vmatpush.msra.mxu0 %v1534
  %1567 = vmatpush.msra.mxu0 %v1532
  %1568 = vmatpush.msra.mxu0 %v1530
  %1569 = vmatpush.msra.mxu0 %v1528
  %1570 = vmatpush.msra.mxu0 %v1526
  %1571 = vmatmul.f32.gmra.mxu0 %v1550
  %v1572 = vpop.f32.mrf.mxu0
  %v1573 = vadd.f32 %v1545, %v1572
  %1574 = vmatmul.f32.gmra.mxu0 %v1553
  %v1575 = vpop.f32.mrf.mxu0
  %v1576 = vadd.f32 %v1545, %v1575
  %1577 = vdwg.mxu0
  %1578 = vmatpush.msra.mxu0 0.0
  %1579 = vmatpush.msra.mxu0 0.0
  %1580 = vmatpush.msra.mxu0 0.0
  %1581 = vmatpush.msra.mxu0 0.0
  %1582 = vmatpush.msra.mxu0 0.0
  %1583 = vmatpush.msra.mxu0 0.0
  %1584 = vmatpush.msra.mxu0 0.0
  %1585 = vmatpush.msra.mxu0 0.0
  %1586 = vmatpush.msra.mxu0 %v1541
  %1587 = vmatpush.msra.mxu0 %v1539
  %1588 = vmatpush.msra.mxu0 %v1537
  %1589 = vmatpush.msra.mxu0 %v1535
  %1590 = vmatpush.msra.mxu0 %v1533
  %1591 = vmatpush.msra.mxu0 %v1531
  %1592 = vmatpush.msra.mxu0 %v1529
  %1593 = vmatpush.msra.mxu0 %v1527
  %1594 = vmatmul.f32.gmra.mxu0 %v1550
  %v1595 = vpop.f32.mrf.mxu0
  %v1596 = vadd.f32 %v1546, %v1595
  %1597 = vmatmul.f32.gmra.mxu0 %v1553
  %v1598 = vpop.f32.mrf.mxu0
  %v1599 = vadd.f32 %v1546, %v1598
  %1600 = vdwg.mxu0
  %v1601 = vld [vmem:[%s2 + $0x110] sm:$0xff]
  %v1602 = vld [vmem:[%s2 + $0x118] sm:$0xff]
  %v1603 = vld [vmem:[%s2 + $0x120] sm:$0xff]
  %v1604 = vld [vmem:[%s2 + $0x128] sm:$0xff]
  %v1605 = vld [vmem:[%s2 + $0x130] sm:$0xff]
  %v1606 = vld [vmem:[%s2 + $0x138] sm:$0xff]
  %v1607 = vld [vmem:[%s2 + $0x140] sm:$0xff]
  %v1608 = vld [vmem:[%s2 + $0x148] sm:$0xff]
  %v1609 = vld [vmem:[%s2 + $0x150] sm:$0xff]
  %v1610 = vld [vmem:[%s2 + $0x158] sm:$0xff]
  %v1611 = vld [vmem:[%s2 + $0x160] sm:$0xff]
  %v1612 = vld [vmem:[%s2 + $0x168] sm:$0xff]
  %v1613 = vld [vmem:[%s2 + $0x170] sm:$0xff]
  %v1614 = vld [vmem:[%s2 + $0x178] sm:$0xff]
  %v1615 = vld [vmem:[%s2 + $0x180] sm:$0xff]
  %v1616 = vld [vmem:[%s2 + $0x188] sm:$0xff]
  %v1617 = vld [vmem:[%s2 + $0x667] ss:$0 sm:$0xff]
  %1618 = vmatpush.msra.mxu0 0.0
  %1619 = vmatpush.msra.mxu0 0.0
  %1620 = vmatpush.msra.mxu0 0.0
  %1621 = vmatpush.msra.mxu0 0.0
  %1622 = vmatpush.msra.mxu0 0.0
  %1623 = vmatpush.msra.mxu0 0.0
  %1624 = vmatpush.msra.mxu0 0.0
  %1625 = vmatpush.msra.mxu0 0.0
  %1626 = vmatpush.msra.mxu0 %v1615
  %1627 = vmatpush.msra.mxu0 %v1613
  %1628 = vmatpush.msra.mxu0 %v1611
  %1629 = vmatpush.msra.mxu0 %v1609
  %1630 = vmatpush.msra.mxu0 %v1607
  %1631 = vmatpush.msra.mxu0 %v1605
  %1632 = vmatpush.msra.mxu0 %v1603
  %1633 = vmatpush.msra.mxu0 %v1601
  %1634 = vmatmul.f32.gmra.mxu0 %v136
  %v1635 = vpop.f32.mrf.mxu0
  %v1636 = vadd.f32 0.0, %v1635
  %1637 = vdwg.mxu0
  %1638 = vmatpush.msra.mxu0 0.0
  %1639 = vmatpush.msra.mxu0 0.0
  %1640 = vmatpush.msra.mxu0 0.0
  %1641 = vmatpush.msra.mxu0 0.0
  %1642 = vmatpush.msra.mxu0 0.0
  %1643 = vmatpush.msra.mxu0 0.0
  %1644 = vmatpush.msra.mxu0 0.0
  %1645 = vmatpush.msra.mxu0 0.0
  %1646 = vmatpush.msra.mxu0 %v1616
  %1647 = vmatpush.msra.mxu0 %v1614
  %1648 = vmatpush.msra.mxu0 %v1612
  %1649 = vmatpush.msra.mxu0 %v1610
  %1650 = vmatpush.msra.mxu0 %v1608
  %1651 = vmatpush.msra.mxu0 %v1606
  %1652 = vmatpush.msra.mxu0 %v1604
  %1653 = vmatpush.msra.mxu0 %v1602
  %1654 = vmatmul.f32.gmra.mxu0 %v136
  %v1655 = vpop.f32.mrf.mxu0
  %v1656 = vadd.f32 0.0, %v1655
  %1657 = vdwg.mxu0
  %v1658 = vadd.f32 %v1573, %v1636
  %v1659 = vxor.u32 %v1658, 2147483648
  %v1660 = vmul.f32 %v1659, 1.442695
  %v1661 = vpow.pop %v1660
  %v1662 = vadd.f32 %v1661, 1.0
  %v1663 = vrcp.pop %v1662
  %v1664 = vmul.f32 %v1662, %v1663
  %v1665 = vsub.f32 1.0, %v1664
  %v1666 = vmul.f32 %v1663, %v1665
  %v1667 = vadd.f32 %v1663, %v1666
  %vm1668 = vweird.f32 %v1662
  %vm1669 = vweird.f32 %v1663
  %vm1670 = vmor %vm1668, %vm1669
  %v1671 = vsel %vm1670, %v1663, %v1667
  %v1672 = vand.u32 2147483647, %v1662
  %vm1673 = vcmp.eq.f32.partialorder %v1672, 8.507059e+37
  %v1674 = vand.u32 %v1662, 2147483648
  %v1675 = vor.u32 1.1754944e-38, %v1674
  %v1676 = vsel %vm1673, %v1675, %v1671
  %v1677 = vmul.f32 1.0, %v1676
  %1679 = vrot.lane.b32.xlu0 %v1617, 64
  %v1680 = vpop.permute.xlu0 %1679
  %v1682 = vadd.f32 %v1636, %v1680
  %1684 = vrot.lane.b32.xlu0 %v1682, 64
  %v1685 = vpop.permute.xlu0 %1684
  %v1687 = vmul.f32 %v1677, %v1685
  %1689 = vrot.lane.b32.xlu0 %v1687, 64
  %v1690 = vpop.permute.xlu0 %1689
  %v1692 = vadd.f32 %v1573, %v1690
  %v1693 = vtanh.pop %v1692
  %v1694 = vsub.f32 1.0, %v1677
  %1696 = vrot.lane.b32.xlu0 %v1693, 96
  %v1697 = vpop.permute.xlu0 %1696
  %v1699 = vmul.f32 %v1694, %v1697
  %v1700 = vmul.f32 %v1677, 0.0
  %v1701 = vadd.f32 %v1699, %v1700
  %v1703 = vrot.slane %v1636, 2
  %v1705 = vadd.f32 %v1576, %v1703
  %v1706 = vxor.u32 %v1705, 2147483648
  %v1707 = vmul.f32 %v1706, 1.442695
  %v1708 = vpow.pop %v1707
  %v1709 = vadd.f32 %v1708, 1.0
  %v1710 = vrcp.pop %v1709
  %v1711 = vmul.f32 %v1709, %v1710
  %v1712 = vsub.f32 1.0, %v1711
  %v1713 = vmul.f32 %v1710, %v1712
  %v1714 = vadd.f32 %v1710, %v1713
  %vm1715 = vweird.f32 %v1709
  %vm1716 = vweird.f32 %v1710
  %vm1717 = vmor %vm1715, %vm1716
  %v1718 = vsel %vm1717, %v1710, %v1714
  %v1719 = vand.u32 2147483647, %v1709
  %vm1720 = vcmp.eq.f32.partialorder %v1719, 8.507059e+37
  %v1721 = vand.u32 %v1709, 2147483648
  %v1722 = vor.u32 1.1754944e-38, %v1721
  %v1723 = vsel %vm1720, %v1722, %v1718
  %v1724 = vmul.f32 1.0, %v1723
  %v1726 = vrot.slane %v1656, 2
  %v1728 = vadd.f32 %v1599, %v1726
  %v1729 = vxor.u32 %v1728, 2147483648
  %v1730 = vmul.f32 %v1729, 1.442695
  %v1731 = vpow.pop %v1730
  %v1732 = vadd.f32 %v1731, 1.0
  %v1733 = vrcp.pop %v1732
  %v1734 = vmul.f32 %v1732, %v1733
  %v1735 = vsub.f32 1.0, %v1734
  %v1736 = vmul.f32 %v1733, %v1735
  %v1737 = vadd.f32 %v1733, %v1736
  %vm1738 = vweird.f32 %v1732
  %vm1739 = vweird.f32 %v1733
  %vm1740 = vmor %vm1738, %vm1739
  %v1741 = vsel %vm1740, %v1733, %v1737
  %v1742 = vand.u32 2147483647, %v1732
  %vm1743 = vcmp.eq.f32.partialorder %v1742, 8.507059e+37
  %v1744 = vand.u32 %v1732, 2147483648
  %v1745 = vor.u32 1.1754944e-38, %v1744
  %v1746 = vsel %vm1743, %v1745, %v1741
  %v1747 = vmul.f32 1.0, %v1746
  %v1748 = vadd.f32 %v1656, %v1617
  %v1750 = vrot.slane %v1748, 2
  %1751 = vrot.lane.b32.xlu0 %v1750, 64
  %v1752 = vpop.permute.xlu0 %1751
  %v1754 = vmul.f32 %v1724, %v1752
  %1756 = vrot.lane.b32.xlu0 %v1754, 64
  %v1757 = vpop.permute.xlu0 %1756
  %v1759 = vadd.f32 %v1599, %v1757
  %v1760 = vtanh.pop %v1759
  %v1761 = vsub.f32 1.0, %v1747
  %1763 = vrot.lane.b32.xlu0 %v1760, 96
  %v1764 = vpop.permute.xlu0 %1763
  %v1766 = vmul.f32 %v1761, %v1764
  %v1767 = vmul.f32 %v1747, 0.0
  %v1768 = vadd.f32 %v1766, %v1767
  %1770 = vrot.lane.b32.xlu0 %v1701, 96
  %v1771 = vpop.permute.xlu0 %1770
  %1773 = vst.msk [vmem:[#allocation4] sm:$0x3] %vm293, %v1771
  %1775 = vrot.lane.b32.xlu0 %v1768, 32
  %v1776 = vpop.permute.xlu0 %1775
  %1778 = vst.msk [vmem:[#allocation4 + $0x8] sm:$0xc0] %vm299, %v1776
  %v1779 = vrot.slane %v1768, 6
  %1780 = vrot.lane.b32.xlu0 %v1779, 32
  %v1781 = vpop.permute.xlu0 %1780
  %v1783 = vsel %vm305, %v1771, %v1781
  %v1785 = vsel %vm134, %v1783, 0
  %1787 = vmatpush.msra.mxu0 0.0
  %1788 = vmatpush.msra.mxu0 0.0
  %1789 = vmatpush.msra.mxu0 0.0
  %1790 = vmatpush.msra.mxu0 0.0
  %1791 = vmatpush.msra.mxu0 0.0
  %1792 = vmatpush.msra.mxu0 0.0
  %1793 = vmatpush.msra.mxu0 0.0
  %1794 = vmatpush.msra.mxu0 0.0
  %1795 = vmatpush.msra.mxu0 %v1615
  %1796 = vmatpush.msra.mxu0 %v1613
  %1797 = vmatpush.msra.mxu0 %v1611
  %1798 = vmatpush.msra.mxu0 %v1609
  %1799 = vmatpush.msra.mxu0 %v1607
  %1800 = vmatpush.msra.mxu0 %v1605
  %1801 = vmatpush.msra.mxu0 %v1603
  %1802 = vmatpush.msra.mxu0 %v1601
  %1803 = vmatmul.f32.gmra.mxu0 %v1785
  %v1804 = vpop.f32.mrf.mxu0
  %v1805 = vadd.f32 0.0, %v1804
  %1806 = vdwg.mxu0
  %1807 = vmatpush.msra.mxu0 0.0
  %1808 = vmatpush.msra.mxu0 0.0
  %1809 = vmatpush.msra.mxu0 0.0
  %1810 = vmatpush.msra.mxu0 0.0
  %1811 = vmatpush.msra.mxu0 0.0
  %1812 = vmatpush.msra.mxu0 0.0
  %1813 = vmatpush.msra.mxu0 0.0
  %1814 = vmatpush.msra.mxu0 0.0
  %1815 = vmatpush.msra.mxu0 %v1616
  %1816 = vmatpush.msra.mxu0 %v1614
  %1817 = vmatpush.msra.mxu0 %v1612
  %1818 = vmatpush.msra.mxu0 %v1610
  %1819 = vmatpush.msra.mxu0 %v1608
  %1820 = vmatpush.msra.mxu0 %v1606
  %1821 = vmatpush.msra.mxu0 %v1604
  %1822 = vmatpush.msra.mxu0 %v1602
  %1823 = vmatmul.f32.gmra.mxu0 %v1785
  %v1824 = vpop.f32.mrf.mxu0
  %v1825 = vadd.f32 0.0, %v1824
  %1826 = vdwg.mxu0
  %v1828 = vrot.slane %v1805, 6
  %v1830 = vadd.f32 %v1573, %v1828
  %v1831 = vxor.u32 %v1830, 2147483648
  %v1832 = vmul.f32 %v1831, 1.442695
  %v1833 = vpow.pop %v1832
  %v1834 = vadd.f32 %v1833, 1.0
  %v1835 = vrcp.pop %v1834
  %v1836 = vmul.f32 %v1834, %v1835
  %v1837 = vsub.f32 1.0, %v1836
  %v1838 = vmul.f32 %v1835, %v1837
  %v1839 = vadd.f32 %v1835, %v1838
  %vm1840 = vweird.f32 %v1834
  %vm1841 = vweird.f32 %v1835
  %vm1842 = vmor %vm1840, %vm1841
  %v1843 = vsel %vm1842, %v1835, %v1839
  %v1844 = vand.u32 2147483647, %v1834
  %vm1845 = vcmp.eq.f32.partialorder %v1844, 8.507059e+37
  %v1846 = vand.u32 %v1834, 2147483648
  %v1847 = vor.u32 1.1754944e-38, %v1846
  %v1848 = vsel %vm1845, %v1847, %v1843
  %v1849 = vmul.f32 1.0, %v1848
  %v1850 = vadd.f32 %v1805, %v1680
  %v1852 = vrot.slane %v1850, 6
  %1853 = vrot.lane.b32.xlu0 %v1852, 64
  %v1854 = vpop.permute.xlu0 %1853
  %v1856 = vmul.f32 %v1849, %v1854
  %1858 = vrot.lane.b32.xlu0 %v1856, 64
  %v1859 = vpop.permute.xlu0 %1858
  %v1861 = vadd.f32 %v1573, %v1859
  %v1862 = vtanh.pop %v1861
  %v1863 = vsub.f32 1.0, %v1849
  %1865 = vrot.lane.b32.xlu0 %v1862, 96
  %v1866 = vpop.permute.xlu0 %1865
  %v1868 = vmul.f32 %v1863, %v1866
  %v1869 = vrot.slane %v1783, 6
  %1870 = vrot.lane.b32.xlu0 %v1869, 32
  %v1871 = vpop.permute.xlu0 %1870
  %v1873 = vmul.f32 %v1849, %v1871
  %v1874 = vadd.f32 %v1868, %v1873
  %v1875 = vrot.slane %v1805, 4
  %v1877 = vadd.f32 %v1576, %v1875
  %v1878 = vxor.u32 %v1877, 2147483648
  %v1879 = vmul.f32 %v1878, 1.442695
  %v1880 = vpow.pop %v1879
  %v1881 = vadd.f32 %v1880, 1.0
  %v1882 = vrcp.pop %v1881
  %v1883 = vmul.f32 %v1881, %v1882
  %v1884 = vsub.f32 1.0, %v1883
  %v1885 = vmul.f32 %v1882, %v1884
  %v1886 = vadd.f32 %v1882, %v1885
  %vm1887 = vweird.f32 %v1881
  %vm1888 = vweird.f32 %v1882
  %vm1889 = vmor %vm1887, %vm1888
  %v1890 = vsel %vm1889, %v1882, %v1886
  %v1891 = vand.u32 2147483647, %v1881
  %vm1892 = vcmp.eq.f32.partialorder %v1891, 8.507059e+37
  %v1893 = vand.u32 %v1881, 2147483648
  %v1894 = vor.u32 1.1754944e-38, %v1893
  %v1895 = vsel %vm1892, %v1894, %v1890
  %v1896 = vmul.f32 1.0, %v1895
  %v1898 = vrot.slane %v1825, 4
  %v1900 = vadd.f32 %v1599, %v1898
  %v1901 = vxor.u32 %v1900, 2147483648
  %v1902 = vmul.f32 %v1901, 1.442695
  %v1903 = vpow.pop %v1902
  %v1904 = vadd.f32 %v1903, 1.0
  %v1905 = vrcp.pop %v1904
  %v1906 = vmul.f32 %v1904, %v1905
  %v1907 = vsub.f32 1.0, %v1906
  %v1908 = vmul.f32 %v1905, %v1907
  %v1909 = vadd.f32 %v1905, %v1908
  %vm1910 = vweird.f32 %v1904
  %vm1911 = vweird.f32 %v1905
  %vm1912 = vmor %vm1910, %vm1911
  %v1913 = vsel %vm1912, %v1905, %v1909
  %v1914 = vand.u32 2147483647, %v1904
  %vm1915 = vcmp.eq.f32.partialorder %v1914, 8.507059e+37
  %v1916 = vand.u32 %v1904, 2147483648
  %v1917 = vor.u32 1.1754944e-38, %v1916
  %v1918 = vsel %vm1915, %v1917, %v1913
  %v1919 = vmul.f32 1.0, %v1918
  %v1920 = vadd.f32 %v1825, %v1617
  %v1922 = vrot.slane %v1920, 4
  %1923 = vrot.lane.b32.xlu0 %v1922, 64
  %v1924 = vpop.permute.xlu0 %1923
  %v1926 = vmul.f32 %v1896, %v1924
  %1928 = vrot.lane.b32.xlu0 %v1926, 64
  %v1929 = vpop.permute.xlu0 %1928
  %v1931 = vadd.f32 %v1599, %v1929
  %v1932 = vtanh.pop %v1931
  %v1933 = vsub.f32 1.0, %v1919
  %1935 = vrot.lane.b32.xlu0 %v1932, 96
  %v1936 = vpop.permute.xlu0 %1935
  %v1938 = vmul.f32 %v1933, %v1936
  %v1939 = vrot.slane %v1783, 4
  %1940 = vrot.lane.b32.xlu0 %v1939, 96
  %v1941 = vpop.permute.xlu0 %1940
  %v1943 = vmul.f32 %v1919, %v1941
  %v1944 = vadd.f32 %v1938, %v1943
  %1946 = vrot.lane.b32.xlu0 %v1874, 96
  %v1947 = vpop.permute.xlu0 %1946
  %1949 = vst.msk [vmem:[#allocation4] sm:$0xc] %vm472, %v1947
  %1951 = vrot.lane.b32.xlu0 %v1944, 32
  %v1952 = vpop.permute.xlu0 %1951
  %1954 = vst.msk [vmem:[#allocation4 + $0x8] sm:$0x30] %vm478, %v1952
  %v1955 = vrot.slane %v1944, 2
  %1956 = vrot.lane.b32.xlu0 %v1955, 32
  %v1957 = vpop.permute.xlu0 %1956
  %v1959 = vsel %vm305, %v1947, %v1957
  %v1961 = vrot.slane %v1959, 2
  %v1962 = vsel %vm134, %v1961, 0
  %1964 = vmatpush.msra.mxu0 0.0
  %1965 = vmatpush.msra.mxu0 0.0
  %1966 = vmatpush.msra.mxu0 0.0
  %1967 = vmatpush.msra.mxu0 0.0
  %1968 = vmatpush.msra.mxu0 0.0
  %1969 = vmatpush.msra.mxu0 0.0
  %1970 = vmatpush.msra.mxu0 0.0
  %1971 = vmatpush.msra.mxu0 0.0
  %1972 = vmatpush.msra.mxu0 %v1615
  %1973 = vmatpush.msra.mxu0 %v1613
  %1974 = vmatpush.msra.mxu0 %v1611
  %1975 = vmatpush.msra.mxu0 %v1609
  %1976 = vmatpush.msra.mxu0 %v1607
  %1977 = vmatpush.msra.mxu0 %v1605
  %1978 = vmatpush.msra.mxu0 %v1603
  %1979 = vmatpush.msra.mxu0 %v1601
  %1980 = vmatmul.f32.gmra.mxu0 %v1962
  %v1981 = vpop.f32.mrf.mxu0
  %v1982 = vadd.f32 0.0, %v1981
  %1983 = vdwg.mxu0
  %1984 = vmatpush.msra.mxu0 0.0
  %1985 = vmatpush.msra.mxu0 0.0
  %1986 = vmatpush.msra.mxu0 0.0
  %1987 = vmatpush.msra.mxu0 0.0
  %1988 = vmatpush.msra.mxu0 0.0
  %1989 = vmatpush.msra.mxu0 0.0
  %1990 = vmatpush.msra.mxu0 0.0
  %1991 = vmatpush.msra.mxu0 0.0
  %1992 = vmatpush.msra.mxu0 %v1616
  %1993 = vmatpush.msra.mxu0 %v1614
  %1994 = vmatpush.msra.mxu0 %v1612
  %1995 = vmatpush.msra.mxu0 %v1610
  %1996 = vmatpush.msra.mxu0 %v1608
  %1997 = vmatpush.msra.mxu0 %v1606
  %1998 = vmatpush.msra.mxu0 %v1604
  %1999 = vmatpush.msra.mxu0 %v1602
  %2000 = vmatmul.f32.gmra.mxu0 %v1962
  %v2001 = vpop.f32.mrf.mxu0
  %v2002 = vadd.f32 0.0, %v2001
  %2003 = vdwg.mxu0
  %v2005 = vrot.slane %v1982, 4
  %v2007 = vadd.f32 %v1573, %v2005
  %v2008 = vxor.u32 %v2007, 2147483648
  %v2009 = vmul.f32 %v2008, 1.442695
  %v2010 = vpow.pop %v2009
  %v2011 = vadd.f32 %v2010, 1.0
  %v2012 = vrcp.pop %v2011
  %v2013 = vmul.f32 %v2011, %v2012
  %v2014 = vsub.f32 1.0, %v2013
  %v2015 = vmul.f32 %v2012, %v2014
  %v2016 = vadd.f32 %v2012, %v2015
  %vm2017 = vweird.f32 %v2011
  %vm2018 = vweird.f32 %v2012
  %vm2019 = vmor %vm2017, %vm2018
  %v2020 = vsel %vm2019, %v2012, %v2016
  %v2021 = vand.u32 2147483647, %v2011
  %vm2022 = vcmp.eq.f32.partialorder %v2021, 8.507059e+37
  %v2023 = vand.u32 %v2011, 2147483648
  %v2024 = vor.u32 1.1754944e-38, %v2023
  %v2025 = vsel %vm2022, %v2024, %v2020
  %v2026 = vmul.f32 1.0, %v2025
  %v2027 = vadd.f32 %v1982, %v1680
  %v2029 = vrot.slane %v2027, 4
  %2030 = vrot.lane.b32.xlu0 %v2029, 64
  %v2031 = vpop.permute.xlu0 %2030
  %v2033 = vmul.f32 %v2026, %v2031
  %2035 = vrot.lane.b32.xlu0 %v2033, 64
  %v2036 = vpop.permute.xlu0 %2035
  %v2038 = vadd.f32 %v1573, %v2036
  %v2039 = vtanh.pop %v2038
  %v2040 = vsub.f32 1.0, %v2026
  %2042 = vrot.lane.b32.xlu0 %v2039, 96
  %v2043 = vpop.permute.xlu0 %2042
  %v2045 = vmul.f32 %v2040, %v2043
  %v2046 = vrot.slane %v1959, 6
  %2047 = vrot.lane.b32.xlu0 %v2046, 32
  %v2048 = vpop.permute.xlu0 %2047
  %v2050 = vmul.f32 %v2026, %v2048
  %v2051 = vadd.f32 %v2045, %v2050
  %v2052 = vrot.slane %v1982, 6
  %v2054 = vadd.f32 %v1576, %v2052
  %v2055 = vxor.u32 %v2054, 2147483648
  %v2056 = vmul.f32 %v2055, 1.442695
  %v2057 = vpow.pop %v2056
  %v2058 = vadd.f32 %v2057, 1.0
  %v2059 = vrcp.pop %v2058
  %v2060 = vmul.f32 %v2058, %v2059
  %v2061 = vsub.f32 1.0, %v2060
  %v2062 = vmul.f32 %v2059, %v2061
  %v2063 = vadd.f32 %v2059, %v2062
  %vm2064 = vweird.f32 %v2058
  %vm2065 = vweird.f32 %v2059
  %vm2066 = vmor %vm2064, %vm2065
  %v2067 = vsel %vm2066, %v2059, %v2063
  %v2068 = vand.u32 2147483647, %v2058
  %vm2069 = vcmp.eq.f32.partialorder %v2068, 8.507059e+37
  %v2070 = vand.u32 %v2058, 2147483648
  %v2071 = vor.u32 1.1754944e-38, %v2070
  %v2072 = vsel %vm2069, %v2071, %v2067
  %v2073 = vmul.f32 1.0, %v2072
  %v2075 = vrot.slane %v2002, 6
  %v2077 = vadd.f32 %v1599, %v2075
  %v2078 = vxor.u32 %v2077, 2147483648
  %v2079 = vmul.f32 %v2078, 1.442695
  %v2080 = vpow.pop %v2079
  %v2081 = vadd.f32 %v2080, 1.0
  %v2082 = vrcp.pop %v2081
  %v2083 = vmul.f32 %v2081, %v2082
  %v2084 = vsub.f32 1.0, %v2083
  %v2085 = vmul.f32 %v2082, %v2084
  %v2086 = vadd.f32 %v2082, %v2085
  %vm2087 = vweird.f32 %v2081
  %vm2088 = vweird.f32 %v2082
  %vm2089 = vmor %vm2087, %vm2088
  %v2090 = vsel %vm2089, %v2082, %v2086
  %v2091 = vand.u32 2147483647, %v2081
  %vm2092 = vcmp.eq.f32.partialorder %v2091, 8.507059e+37
  %v2093 = vand.u32 %v2081, 2147483648
  %v2094 = vor.u32 1.1754944e-38, %v2093
  %v2095 = vsel %vm2092, %v2094, %v2090
  %v2096 = vmul.f32 1.0, %v2095
  %v2097 = vadd.f32 %v2002, %v1617
  %v2099 = vrot.slane %v2097, 6
  %2100 = vrot.lane.b32.xlu0 %v2099, 64
  %v2101 = vpop.permute.xlu0 %2100
  %v2103 = vmul.f32 %v2073, %v2101
  %2105 = vrot.lane.b32.xlu0 %v2103, 64
  %v2106 = vpop.permute.xlu0 %2105
  %v2108 = vadd.f32 %v1599, %v2106
  %v2109 = vtanh.pop %v2108
  %v2110 = vsub.f32 1.0, %v2096
  %2112 = vrot.lane.b32.xlu0 %v2109, 96
  %v2113 = vpop.permute.xlu0 %2112
  %v2115 = vmul.f32 %v2110, %v2113
  %2116 = vrot.lane.b32.xlu0 %v1959, 96
  %v2117 = vpop.permute.xlu0 %2116
  %v2119 = vmul.f32 %v2096, %v2117
  %v2120 = vadd.f32 %v2115, %v2119
  %2122 = vrot.lane.b32.xlu0 %v2051, 96
  %v2123 = vpop.permute.xlu0 %2122
  %2125 = vst.msk [vmem:[#allocation4] sm:$0x30] %vm650, %v2123
  %2127 = vrot.lane.b32.xlu0 %v2120, 32
  %v2128 = vpop.permute.xlu0 %2127
  %2130 = vst.msk [vmem:[#allocation4 + $0x8] sm:$0xc] %vm656, %v2128
  %v2131 = vrot.slane %v2120, 6
  %2132 = vrot.lane.b32.xlu0 %v2131, 32
  %v2133 = vpop.permute.xlu0 %2132
  %v2135 = vsel %vm305, %v2123, %v2133
  %v2137 = vrot.slane %v2135, 4
  %v2138 = vsel %vm134, %v2137, 0
  %2140 = vmatpush.msra.mxu0 0.0
  %2141 = vmatpush.msra.mxu0 0.0
  %2142 = vmatpush.msra.mxu0 0.0
  %2143 = vmatpush.msra.mxu0 0.0
  %2144 = vmatpush.msra.mxu0 0.0
  %2145 = vmatpush.msra.mxu0 0.0
  %2146 = vmatpush.msra.mxu0 0.0
  %2147 = vmatpush.msra.mxu0 0.0
  %2148 = vmatpush.msra.mxu0 %v1615
  %2149 = vmatpush.msra.mxu0 %v1613
  %2150 = vmatpush.msra.mxu0 %v1611
  %2151 = vmatpush.msra.mxu0 %v1609
  %2152 = vmatpush.msra.mxu0 %v1607
  %2153 = vmatpush.msra.mxu0 %v1605
  %2154 = vmatpush.msra.mxu0 %v1603
  %2155 = vmatpush.msra.mxu0 %v1601
  %2156 = vmatmul.f32.gmra.mxu0 %v2138
  %v2157 = vpop.f32.mrf.mxu0
  %v2158 = vadd.f32 0.0, %v2157
  %2159 = vdwg.mxu0
  %2160 = vmatpush.msra.mxu0 0.0
  %2161 = vmatpush.msra.mxu0 0.0
  %2162 = vmatpush.msra.mxu0 0.0
  %2163 = vmatpush.msra.mxu0 0.0
  %2164 = vmatpush.msra.mxu0 0.0
  %2165 = vmatpush.msra.mxu0 0.0
  %2166 = vmatpush.msra.mxu0 0.0
  %2167 = vmatpush.msra.mxu0 0.0
  %2168 = vmatpush.msra.mxu0 %v1616
  %2169 = vmatpush.msra.mxu0 %v1614
  %2170 = vmatpush.msra.mxu0 %v1612
  %2171 = vmatpush.msra.mxu0 %v1610
  %2172 = vmatpush.msra.mxu0 %v1608
  %2173 = vmatpush.msra.mxu0 %v1606
  %2174 = vmatpush.msra.mxu0 %v1604
  %2175 = vmatpush.msra.mxu0 %v1602
  %2176 = vmatmul.f32.gmra.mxu0 %v2138
  %v2177 = vpop.f32.mrf.mxu0
  %v2178 = vadd.f32 0.0, %v2177
  %2179 = vdwg.mxu0
  %v2181 = vrot.slane %v2158, 2
  %v2183 = vadd.f32 %v1573, %v2181
  %v2184 = vxor.u32 %v2183, 2147483648
  %v2185 = vmul.f32 %v2184, 1.442695
  %v2186 = vpow.pop %v2185
  %v2187 = vadd.f32 %v2186, 1.0
  %v2188 = vrcp.pop %v2187
  %v2189 = vmul.f32 %v2187, %v2188
  %v2190 = vsub.f32 1.0, %v2189
  %v2191 = vmul.f32 %v2188, %v2190
  %v2192 = vadd.f32 %v2188, %v2191
  %vm2193 = vweird.f32 %v2187
  %vm2194 = vweird.f32 %v2188
  %vm2195 = vmor %vm2193, %vm2194
  %v2196 = vsel %vm2195, %v2188, %v2192
  %v2197 = vand.u32 2147483647, %v2187
  %vm2198 = vcmp.eq.f32.partialorder %v2197, 8.507059e+37
  %v2199 = vand.u32 %v2187, 2147483648
  %v2200 = vor.u32 1.1754944e-38, %v2199
  %v2201 = vsel %vm2198, %v2200, %v2196
  %v2202 = vmul.f32 1.0, %v2201
  %v2203 = vadd.f32 %v2158, %v1680
  %v2205 = vrot.slane %v2203, 2
  %2206 = vrot.lane.b32.xlu0 %v2205, 64
  %v2207 = vpop.permute.xlu0 %2206
  %v2209 = vmul.f32 %v2202, %v2207
  %2211 = vrot.lane.b32.xlu0 %v2209, 64
  %v2212 = vpop.permute.xlu0 %2211
  %v2214 = vadd.f32 %v1573, %v2212
  %v2215 = vtanh.pop %v2214
  %v2216 = vsub.f32 1.0, %v2202
  %2218 = vrot.lane.b32.xlu0 %v2215, 96
  %v2219 = vpop.permute.xlu0 %2218
  %v2221 = vmul.f32 %v2216, %v2219
  %v2222 = vrot.slane %v2135, 6
  %2223 = vrot.lane.b32.xlu0 %v2222, 32
  %v2224 = vpop.permute.xlu0 %2223
  %v2226 = vmul.f32 %v2202, %v2224
  %v2227 = vadd.f32 %v2221, %v2226
  %v2228 = vadd.f32 %v1576, %v2158
  %v2229 = vxor.u32 %v2228, 2147483648
  %v2230 = vmul.f32 %v2229, 1.442695
  %v2231 = vpow.pop %v2230
  %v2232 = vadd.f32 %v2231, 1.0
  %v2233 = vrcp.pop %v2232
  %v2234 = vmul.f32 %v2232, %v2233
  %v2235 = vsub.f32 1.0, %v2234
  %v2236 = vmul.f32 %v2233, %v2235
  %v2237 = vadd.f32 %v2233, %v2236
  %vm2238 = vweird.f32 %v2232
  %vm2239 = vweird.f32 %v2233
  %vm2240 = vmor %vm2238, %vm2239
  %v2241 = vsel %vm2240, %v2233, %v2237
  %v2242 = vand.u32 2147483647, %v2232
  %vm2243 = vcmp.eq.f32.partialorder %v2242, 8.507059e+37
  %v2244 = vand.u32 %v2232, 2147483648
  %v2245 = vor.u32 1.1754944e-38, %v2244
  %v2246 = vsel %vm2243, %v2245, %v2241
  %v2247 = vmul.f32 1.0, %v2246
  %v2248 = vadd.f32 %v1599, %v2178
  %v2249 = vxor.u32 %v2248, 2147483648
  %v2250 = vmul.f32 %v2249, 1.442695
  %v2251 = vpow.pop %v2250
  %v2252 = vadd.f32 %v2251, 1.0
  %v2253 = vrcp.pop %v2252
  %v2254 = vmul.f32 %v2252, %v2253
  %v2255 = vsub.f32 1.0, %v2254
  %v2256 = vmul.f32 %v2253, %v2255
  %v2257 = vadd.f32 %v2253, %v2256
  %vm2258 = vweird.f32 %v2252
  %vm2259 = vweird.f32 %v2253
  %vm2260 = vmor %vm2258, %vm2259
  %v2261 = vsel %vm2260, %v2253, %v2257
  %v2262 = vand.u32 2147483647, %v2252
  %vm2263 = vcmp.eq.f32.partialorder %v2262, 8.507059e+37
  %v2264 = vand.u32 %v2252, 2147483648
  %v2265 = vor.u32 1.1754944e-38, %v2264
  %v2266 = vsel %vm2263, %v2265, %v2261
  %v2267 = vmul.f32 1.0, %v2266
  %v2268 = vadd.f32 %v2178, %v1617
  %2270 = vrot.lane.b32.xlu0 %v2268, 64
  %v2271 = vpop.permute.xlu0 %2270
  %v2273 = vmul.f32 %v2247, %v2271
  %2275 = vrot.lane.b32.xlu0 %v2273, 64
  %v2276 = vpop.permute.xlu0 %2275
  %v2278 = vadd.f32 %v1599, %v2276
  %v2279 = vtanh.pop %v2278
  %v2280 = vsub.f32 1.0, %v2267
  %2282 = vrot.lane.b32.xlu0 %v2279, 96
  %v2283 = vpop.permute.xlu0 %2282
  %v2285 = vmul.f32 %v2280, %v2283
  %2286 = vrot.lane.b32.xlu0 %v2137, 96
  %v2287 = vpop.permute.xlu0 %2286
  %v2289 = vmul.f32 %v2267, %v2287
  %v2290 = vadd.f32 %v2285, %v2289
  %2292 = vrot.lane.b32.xlu0 %v2227, 96
  %v2293 = vpop.permute.xlu0 %2292
  %2295 = vst.msk [vmem:[#allocation4] sm:$0xc0] %vm822, %v2293
  %2297 = vrot.lane.b32.xlu0 %v2290, 32
  %v2298 = vpop.permute.xlu0 %2297
  %2300 = vst.msk [vmem:[#allocation4 + $0x8] sm:$0x3] %vm828, %v2298
  %v2301 = vrot.slane %v2290, 2
  %2302 = vrot.lane.b32.xlu0 %v2301, 32
  %v2303 = vpop.permute.xlu0 %2302
  %v2305 = vsel %vm305, %v2293, %v2303
  %v2307 = vrot.slane %v2305, 6
  %v2308 = vsel %vm134, %v2307, 0
  %2310 = vmatpush.msra.mxu0 0.0
  %2311 = vmatpush.msra.mxu0 0.0
  %2312 = vmatpush.msra.mxu0 0.0
  %2313 = vmatpush.msra.mxu0 0.0
  %2314 = vmatpush.msra.mxu0 0.0
  %2315 = vmatpush.msra.mxu0 0.0
  %2316 = vmatpush.msra.mxu0 0.0
  %2317 = vmatpush.msra.mxu0 0.0
  %2318 = vmatpush.msra.mxu0 %v1615
  %2319 = vmatpush.msra.mxu0 %v1613
  %2320 = vmatpush.msra.mxu0 %v1611
  %2321 = vmatpush.msra.mxu0 %v1609
  %2322 = vmatpush.msra.mxu0 %v1607
  %2323 = vmatpush.msra.mxu0 %v1605
  %2324 = vmatpush.msra.mxu0 %v1603
  %2325 = vmatpush.msra.mxu0 %v1601
  %2326 = vmatmul.f32.gmra.mxu0 %v2308
  %v2327 = vpop.f32.mrf.mxu0
  %v2328 = vadd.f32 0.0, %v2327
  %2329 = vdwg.mxu0
  %2330 = vmatpush.msra.mxu0 0.0
  %2331 = vmatpush.msra.mxu0 0.0
  %2332 = vmatpush.msra.mxu0 0.0
  %2333 = vmatpush.msra.mxu0 0.0
  %2334 = vmatpush.msra.mxu0 0.0
  %2335 = vmatpush.msra.mxu0 0.0
  %2336 = vmatpush.msra.mxu0 0.0
  %2337 = vmatpush.msra.mxu0 0.0
  %2338 = vmatpush.msra.mxu0 %v1616
  %2339 = vmatpush.msra.mxu0 %v1614
  %2340 = vmatpush.msra.mxu0 %v1612
  %2341 = vmatpush.msra.mxu0 %v1610
  %2342 = vmatpush.msra.mxu0 %v1608
  %2343 = vmatpush.msra.mxu0 %v1606
  %2344 = vmatpush.msra.mxu0 %v1604
  %2345 = vmatpush.msra.mxu0 %v1602
  %2346 = vmatmul.f32.gmra.mxu0 %v2308
  %v2347 = vpop.f32.mrf.mxu0
  %v2348 = vadd.f32 0.0, %v2347
  %2349 = vdwg.mxu0
  %v2350 = vadd.f32 %v1576, %v2328
  %v2351 = vxor.u32 %v2350, 2147483648
  %v2352 = vmul.f32 %v2351, 1.442695
  %v2353 = vpow.pop %v2352
  %v2354 = vadd.f32 %v2353, 1.0
  %v2355 = vrcp.pop %v2354
  %v2356 = vmul.f32 %v2354, %v2355
  %v2357 = vsub.f32 1.0, %v2356
  %v2358 = vmul.f32 %v2355, %v2357
  %v2359 = vadd.f32 %v2355, %v2358
  %vm2360 = vweird.f32 %v2354
  %vm2361 = vweird.f32 %v2355
  %vm2362 = vmor %vm2360, %vm2361
  %v2363 = vsel %vm2362, %v2355, %v2359
  %v2364 = vand.u32 2147483647, %v2354
  %vm2365 = vcmp.eq.f32.partialorder %v2364, 8.507059e+37
  %v2366 = vand.u32 %v2354, 2147483648
  %v2367 = vor.u32 1.1754944e-38, %v2366
  %v2368 = vsel %vm2365, %v2367, %v2363
  %v2369 = vmul.f32 1.0, %v2368
  %v2370 = vadd.f32 %v2328, %v1680
  %2372 = vrot.lane.b32.xlu0 %v2370, 64
  %v2373 = vpop.permute.xlu0 %2372
  %v2375 = vmul.f32 %v2369, %v2373
  %2377 = vrot.lane.b32.xlu0 %v2375, 64
  %v2378 = vpop.permute.xlu0 %2377
  %v2380 = vadd.f32 %v1576, %v2378
  %v2381 = vtanh.pop %v2380
  %v2382 = vsub.f32 1.0, %v2369
  %2384 = vrot.lane.b32.xlu0 %v2381, 96
  %v2385 = vpop.permute.xlu0 %2384
  %v2387 = vmul.f32 %v2382, %v2385
  %2388 = vrot.lane.b32.xlu0 %v2307, 32
  %v2389 = vpop.permute.xlu0 %2388
  %v2391 = vmul.f32 %v2369, %v2389
  %v2392 = vadd.f32 %v2387, %v2391
  %v2394 = vrot.slane %v2328, 2
  %v2396 = vadd.f32 %v1573, %v2394
  %v2397 = vxor.u32 %v2396, 2147483648
  %v2398 = vmul.f32 %v2397, 1.442695
  %v2399 = vpow.pop %v2398
  %v2400 = vadd.f32 %v2399, 1.0
  %v2401 = vrcp.pop %v2400
  %v2402 = vmul.f32 %v2400, %v2401
  %v2403 = vsub.f32 1.0, %v2402
  %v2404 = vmul.f32 %v2401, %v2403
  %v2405 = vadd.f32 %v2401, %v2404
  %vm2406 = vweird.f32 %v2400
  %vm2407 = vweird.f32 %v2401
  %vm2408 = vmor %vm2406, %vm2407
  %v2409 = vsel %vm2408, %v2401, %v2405
  %v2410 = vand.u32 2147483647, %v2400
  %vm2411 = vcmp.eq.f32.partialorder %v2410, 8.507059e+37
  %v2412 = vand.u32 %v2400, 2147483648
  %v2413 = vor.u32 1.1754944e-38, %v2412
  %v2414 = vsel %vm2411, %v2413, %v2409
  %v2415 = vmul.f32 1.0, %v2414
  %v2417 = vrot.slane %v2348, 2
  %v2419 = vadd.f32 %v1596, %v2417
  %v2420 = vxor.u32 %v2419, 2147483648
  %v2421 = vmul.f32 %v2420, 1.442695
  %v2422 = vpow.pop %v2421
  %v2423 = vadd.f32 %v2422, 1.0
  %v2424 = vrcp.pop %v2423
  %v2425 = vmul.f32 %v2423, %v2424
  %v2426 = vsub.f32 1.0, %v2425
  %v2427 = vmul.f32 %v2424, %v2426
  %v2428 = vadd.f32 %v2424, %v2427
  %vm2429 = vweird.f32 %v2423
  %vm2430 = vweird.f32 %v2424
  %vm2431 = vmor %vm2429, %vm2430
  %v2432 = vsel %vm2431, %v2424, %v2428
  %v2433 = vand.u32 2147483647, %v2423
  %vm2434 = vcmp.eq.f32.partialorder %v2433, 8.507059e+37
  %v2435 = vand.u32 %v2423, 2147483648
  %v2436 = vor.u32 1.1754944e-38, %v2435
  %v2437 = vsel %vm2434, %v2436, %v2432
  %v2438 = vmul.f32 1.0, %v2437
  %v2439 = vadd.f32 %v2348, %v1617
  %v2441 = vrot.slane %v2439, 2
  %2442 = vrot.lane.b32.xlu0 %v2441, 64
  %v2443 = vpop.permute.xlu0 %2442
  %v2445 = vmul.f32 %v2415, %v2443
  %2447 = vrot.lane.b32.xlu0 %v2445, 64
  %v2448 = vpop.permute.xlu0 %2447
  %v2450 = vadd.f32 %v1596, %v2448
  %v2451 = vtanh.pop %v2450
  %v2452 = vsub.f32 1.0, %v2438
  %2454 = vrot.lane.b32.xlu0 %v2451, 96
  %v2455 = vpop.permute.xlu0 %2454
  %v2457 = vmul.f32 %v2452, %v2455
  %2458 = vrot.lane.b32.xlu0 %v2305, 96
  %v2459 = vpop.permute.xlu0 %2458
  %v2461 = vmul.f32 %v2438, %v2459
  %v2462 = vadd.f32 %v2457, %v2461
  %2464 = vrot.lane.b32.xlu0 %v2392, 96
  %v2465 = vpop.permute.xlu0 %2464
  %2467 = vst.msk [vmem:[#allocation4 + $0x8] sm:$0x3] %vm293, %v2465
  %2469 = vrot.lane.b32.xlu0 %v2462, 32
  %v2470 = vpop.permute.xlu0 %2469
  %2472 = vst.msk [vmem:[#allocation4] sm:$0xc0] %vm299, %v2470
  %v2473 = vrot.slane %v2462, 6
  %2474 = vrot.lane.b32.xlu0 %v2473, 32
  %v2475 = vpop.permute.xlu0 %2474
  %v2477 = vsel %vm305, %v2465, %v2475
  %v2479 = vsel %vm134, %v2477, 0
  %2481 = vmatpush.msra.mxu0 0.0
  %2482 = vmatpush.msra.mxu0 0.0
  %2483 = vmatpush.msra.mxu0 0.0
  %2484 = vmatpush.msra.mxu0 0.0
  %2485 = vmatpush.msra.mxu0 0.0
  %2486 = vmatpush.msra.mxu0 0.0
  %2487 = vmatpush.msra.mxu0 0.0
  %2488 = vmatpush.msra.mxu0 0.0
  %2489 = vmatpush.msra.mxu0 %v1615
  %2490 = vmatpush.msra.mxu0 %v1613
  %2491 = vmatpush.msra.mxu0 %v1611
  %2492 = vmatpush.msra.mxu0 %v1609
  %2493 = vmatpush.msra.mxu0 %v1607
  %2494 = vmatpush.msra.mxu0 %v1605
  %2495 = vmatpush.msra.mxu0 %v1603
  %2496 = vmatpush.msra.mxu0 %v1601
  %2497 = vmatmul.f32.gmra.mxu0 %v2479
  %v2498 = vpop.f32.mrf.mxu0
  %v2499 = vadd.f32 0.0, %v2498
  %2500 = vdwg.mxu0
  %2501 = vmatpush.msra.mxu0 0.0
  %2502 = vmatpush.msra.mxu0 0.0
  %2503 = vmatpush.msra.mxu0 0.0
  %2504 = vmatpush.msra.mxu0 0.0
  %2505 = vmatpush.msra.mxu0 0.0
  %2506 = vmatpush.msra.mxu0 0.0
  %2507 = vmatpush.msra.mxu0 0.0
  %2508 = vmatpush.msra.mxu0 0.0
  %2509 = vmatpush.msra.mxu0 %v1616
  %2510 = vmatpush.msra.mxu0 %v1614
  %2511 = vmatpush.msra.mxu0 %v1612
  %2512 = vmatpush.msra.mxu0 %v1610
  %2513 = vmatpush.msra.mxu0 %v1608
  %2514 = vmatpush.msra.mxu0 %v1606
  %2515 = vmatpush.msra.mxu0 %v1604
  %2516 = vmatpush.msra.mxu0 %v1602
  %2517 = vmatmul.f32.gmra.mxu0 %v2479
  %v2518 = vpop.f32.mrf.mxu0
  %v2519 = vadd.f32 0.0, %v2518
  %2520 = vdwg.mxu0
  %v2522 = vrot.slane %v2499, 6
  %v2524 = vadd.f32 %v1576, %v2522
  %v2525 = vxor.u32 %v2524, 2147483648
  %v2526 = vmul.f32 %v2525, 1.442695
  %v2527 = vpow.pop %v2526
  %v2528 = vadd.f32 %v2527, 1.0
  %v2529 = vrcp.pop %v2528
  %v2530 = vmul.f32 %v2528, %v2529
  %v2531 = vsub.f32 1.0, %v2530
  %v2532 = vmul.f32 %v2529, %v2531
  %v2533 = vadd.f32 %v2529, %v2532
  %vm2534 = vweird.f32 %v2528
  %vm2535 = vweird.f32 %v2529
  %vm2536 = vmor %vm2534, %vm2535
  %v2537 = vsel %vm2536, %v2529, %v2533
  %v2538 = vand.u32 2147483647, %v2528
  %vm2539 = vcmp.eq.f32.partialorder %v2538, 8.507059e+37
  %v2540 = vand.u32 %v2528, 2147483648
  %v2541 = vor.u32 1.1754944e-38, %v2540
  %v2542 = vsel %vm2539, %v2541, %v2537
  %v2543 = vmul.f32 1.0, %v2542
  %v2544 = vadd.f32 %v2499, %v1680
  %v2546 = vrot.slane %v2544, 6
  %2547 = vrot.lane.b32.xlu0 %v2546, 64
  %v2548 = vpop.permute.xlu0 %2547
  %v2550 = vmul.f32 %v2543, %v2548
  %2552 = vrot.lane.b32.xlu0 %v2550, 64
  %v2553 = vpop.permute.xlu0 %2552
  %v2555 = vadd.f32 %v1576, %v2553
  %v2556 = vtanh.pop %v2555
  %v2557 = vsub.f32 1.0, %v2543
  %2559 = vrot.lane.b32.xlu0 %v2556, 96
  %v2560 = vpop.permute.xlu0 %2559
  %v2562 = vmul.f32 %v2557, %v2560
  %v2563 = vrot.slane %v2477, 6
  %2564 = vrot.lane.b32.xlu0 %v2563, 32
  %v2565 = vpop.permute.xlu0 %2564
  %v2567 = vmul.f32 %v2543, %v2565
  %v2568 = vadd.f32 %v2562, %v2567
  %v2569 = vrot.slane %v2499, 4
  %v2571 = vadd.f32 %v1573, %v2569
  %v2572 = vxor.u32 %v2571, 2147483648
  %v2573 = vmul.f32 %v2572, 1.442695
  %v2574 = vpow.pop %v2573
  %v2575 = vadd.f32 %v2574, 1.0
  %v2576 = vrcp.pop %v2575
  %v2577 = vmul.f32 %v2575, %v2576
  %v2578 = vsub.f32 1.0, %v2577
  %v2579 = vmul.f32 %v2576, %v2578
  %v2580 = vadd.f32 %v2576, %v2579
  %vm2581 = vweird.f32 %v2575
  %vm2582 = vweird.f32 %v2576
  %vm2583 = vmor %vm2581, %vm2582
  %v2584 = vsel %vm2583, %v2576, %v2580
  %v2585 = vand.u32 2147483647, %v2575
  %vm2586 = vcmp.eq.f32.partialorder %v2585, 8.507059e+37
  %v2587 = vand.u32 %v2575, 2147483648
  %v2588 = vor.u32 1.1754944e-38, %v2587
  %v2589 = vsel %vm2586, %v2588, %v2584
  %v2590 = vmul.f32 1.0, %v2589
  %v2592 = vrot.slane %v2519, 4
  %v2594 = vadd.f32 %v1596, %v2592
  %v2595 = vxor.u32 %v2594, 2147483648
  %v2596 = vmul.f32 %v2595, 1.442695
  %v2597 = vpow.pop %v2596
  %v2598 = vadd.f32 %v2597, 1.0
  %v2599 = vrcp.pop %v2598
  %v2600 = vmul.f32 %v2598, %v2599
  %v2601 = vsub.f32 1.0, %v2600
  %v2602 = vmul.f32 %v2599, %v2601
  %v2603 = vadd.f32 %v2599, %v2602
  %vm2604 = vweird.f32 %v2598
  %vm2605 = vweird.f32 %v2599
  %vm2606 = vmor %vm2604, %vm2605
  %v2607 = vsel %vm2606, %v2599, %v2603
  %v2608 = vand.u32 2147483647, %v2598
  %vm2609 = vcmp.eq.f32.partialorder %v2608, 8.507059e+37
  %v2610 = vand.u32 %v2598, 2147483648
  %v2611 = vor.u32 1.1754944e-38, %v2610
  %v2612 = vsel %vm2609, %v2611, %v2607
  %v2613 = vmul.f32 1.0, %v2612
  %v2614 = vadd.f32 %v2519, %v1617
  %v2616 = vrot.slane %v2614, 4
  %2617 = vrot.lane.b32.xlu0 %v2616, 64
  %v2618 = vpop.permute.xlu0 %2617
  %v2620 = vmul.f32 %v2590, %v2618
  %2622 = vrot.lane.b32.xlu0 %v2620, 64
  %v2623 = vpop.permute.xlu0 %2622
  %v2625 = vadd.f32 %v1596, %v2623
  %v2626 = vtanh.pop %v2625
  %v2627 = vsub.f32 1.0, %v2613
  %2629 = vrot.lane.b32.xlu0 %v2626, 96
  %v2630 = vpop.permute.xlu0 %2629
  %v2632 = vmul.f32 %v2627, %v2630
  %v2633 = vrot.slane %v2477, 4
  %2634 = vrot.lane.b32.xlu0 %v2633, 96
  %v2635 = vpop.permute.xlu0 %2634
  %v2637 = vmul.f32 %v2613, %v2635
  %v2638 = vadd.f32 %v2632, %v2637
  %2640 = vrot.lane.b32.xlu0 %v2568, 96
  %v2641 = vpop.permute.xlu0 %2640
  %2643 = vst.msk [vmem:[#allocation4 + $0x8] sm:$0xc] %vm472, %v2641
  %2645 = vrot.lane.b32.xlu0 %v2638, 32
  %v2646 = vpop.permute.xlu0 %2645
  %2648 = vst.msk [vmem:[#allocation4] sm:$0x30] %vm478, %v2646
  %v2649 = vrot.slane %v2638, 2
  %2650 = vrot.lane.b32.xlu0 %v2649, 32
  %v2651 = vpop.permute.xlu0 %2650
  %v2653 = vsel %vm305, %v2641, %v2651
  %v2655 = vrot.slane %v2653, 2
  %v2656 = vsel %vm134, %v2655, 0
  %2658 = vmatpush.msra.mxu0 0.0
  %2659 = vmatpush.msra.mxu0 0.0
  %2660 = vmatpush.msra.mxu0 0.0
  %2661 = vmatpush.msra.mxu0 0.0
  %2662 = vmatpush.msra.mxu0 0.0
  %2663 = vmatpush.msra.mxu0 0.0
  %2664 = vmatpush.msra.mxu0 0.0
  %2665 = vmatpush.msra.mxu0 0.0
  %2666 = vmatpush.msra.mxu0 %v1615
  %2667 = vmatpush.msra.mxu0 %v1613
  %2668 = vmatpush.msra.mxu0 %v1611
  %2669 = vmatpush.msra.mxu0 %v1609
  %2670 = vmatpush.msra.mxu0 %v1607
  %2671 = vmatpush.msra.mxu0 %v1605
  %2672 = vmatpush.msra.mxu0 %v1603
  %2673 = vmatpush.msra.mxu0 %v1601
  %2674 = vmatmul.f32.gmra.mxu0 %v2656
  %v2675 = vpop.f32.mrf.mxu0
  %v2676 = vadd.f32 0.0, %v2675
  %2677 = vdwg.mxu0
  %2678 = vmatpush.msra.mxu0 0.0
  %2679 = vmatpush.msra.mxu0 0.0
  %2680 = vmatpush.msra.mxu0 0.0
  %2681 = vmatpush.msra.mxu0 0.0
  %2682 = vmatpush.msra.mxu0 0.0
  %2683 = vmatpush.msra.mxu0 0.0
  %2684 = vmatpush.msra.mxu0 0.0
  %2685 = vmatpush.msra.mxu0 0.0
  %2686 = vmatpush.msra.mxu0 %v1616
  %2687 = vmatpush.msra.mxu0 %v1614
  %2688 = vmatpush.msra.mxu0 %v1612
  %2689 = vmatpush.msra.mxu0 %v1610
  %2690 = vmatpush.msra.mxu0 %v1608
  %2691 = vmatpush.msra.mxu0 %v1606
  %2692 = vmatpush.msra.mxu0 %v1604
  %2693 = vmatpush.msra.mxu0 %v1602
  %2694 = vmatmul.f32.gmra.mxu0 %v2656
  %v2695 = vpop.f32.mrf.mxu0
  %v2696 = vadd.f32 0.0, %v2695
  %2697 = vdwg.mxu0
  %v2699 = vrot.slane %v2676, 4
  %v2701 = vadd.f32 %v1576, %v2699
  %v2702 = vxor.u32 %v2701, 2147483648
  %v2703 = vmul.f32 %v2702, 1.442695
  %v2704 = vpow.pop %v2703
  %v2705 = vadd.f32 %v2704, 1.0
  %v2706 = vrcp.pop %v2705
  %v2707 = vmul.f32 %v2705, %v2706
  %v2708 = vsub.f32 1.0, %v2707
  %v2709 = vmul.f32 %v2706, %v2708
  %v2710 = vadd.f32 %v2706, %v2709
  %vm2711 = vweird.f32 %v2705
  %vm2712 = vweird.f32 %v2706
  %vm2713 = vmor %vm2711, %vm2712
  %v2714 = vsel %vm2713, %v2706, %v2710
  %v2715 = vand.u32 2147483647, %v2705
  %vm2716 = vcmp.eq.f32.partialorder %v2715, 8.507059e+37
  %v2717 = vand.u32 %v2705, 2147483648
  %v2718 = vor.u32 1.1754944e-38, %v2717
  %v2719 = vsel %vm2716, %v2718, %v2714
  %v2720 = vmul.f32 1.0, %v2719
  %v2721 = vadd.f32 %v2676, %v1680
  %v2723 = vrot.slane %v2721, 4
  %2724 = vrot.lane.b32.xlu0 %v2723, 64
  %v2725 = vpop.permute.xlu0 %2724
  %v2727 = vmul.f32 %v2720, %v2725
  %2729 = vrot.lane.b32.xlu0 %v2727, 64
  %v2730 = vpop.permute.xlu0 %2729
  %v2732 = vadd.f32 %v1576, %v2730
  %v2733 = vtanh.pop %v2732
  %v2734 = vsub.f32 1.0, %v2720
  %2736 = vrot.lane.b32.xlu0 %v2733, 96
  %v2737 = vpop.permute.xlu0 %2736
  %v2739 = vmul.f32 %v2734, %v2737
  %v2740 = vrot.slane %v2653, 6
  %2741 = vrot.lane.b32.xlu0 %v2740, 32
  %v2742 = vpop.permute.xlu0 %2741
  %v2744 = vmul.f32 %v2720, %v2742
  %v2745 = vadd.f32 %v2739, %v2744
  %v2746 = vrot.slane %v2676, 6
  %v2748 = vadd.f32 %v1573, %v2746
  %v2749 = vxor.u32 %v2748, 2147483648
  %v2750 = vmul.f32 %v2749, 1.442695
  %v2751 = vpow.pop %v2750
  %v2752 = vadd.f32 %v2751, 1.0
  %v2753 = vrcp.pop %v2752
  %v2754 = vmul.f32 %v2752, %v2753
  %v2755 = vsub.f32 1.0, %v2754
  %v2756 = vmul.f32 %v2753, %v2755
  %v2757 = vadd.f32 %v2753, %v2756
  %vm2758 = vweird.f32 %v2752
  %vm2759 = vweird.f32 %v2753
  %vm2760 = vmor %vm2758, %vm2759
  %v2761 = vsel %vm2760, %v2753, %v2757
  %v2762 = vand.u32 2147483647, %v2752
  %vm2763 = vcmp.eq.f32.partialorder %v2762, 8.507059e+37
  %v2764 = vand.u32 %v2752, 2147483648
  %v2765 = vor.u32 1.1754944e-38, %v2764
  %v2766 = vsel %vm2763, %v2765, %v2761
  %v2767 = vmul.f32 1.0, %v2766
  %v2769 = vrot.slane %v2696, 6
  %v2771 = vadd.f32 %v1596, %v2769
  %v2772 = vxor.u32 %v2771, 2147483648
  %v2773 = vmul.f32 %v2772, 1.442695
  %v2774 = vpow.pop %v2773
  %v2775 = vadd.f32 %v2774, 1.0
  %v2776 = vrcp.pop %v2775
  %v2777 = vmul.f32 %v2775, %v2776
  %v2778 = vsub.f32 1.0, %v2777
  %v2779 = vmul.f32 %v2776, %v2778
  %v2780 = vadd.f32 %v2776, %v2779
  %vm2781 = vweird.f32 %v2775
  %vm2782 = vweird.f32 %v2776
  %vm2783 = vmor %vm2781, %vm2782
  %v2784 = vsel %vm2783, %v2776, %v2780
  %v2785 = vand.u32 2147483647, %v2775
  %vm2786 = vcmp.eq.f32.partialorder %v2785, 8.507059e+37
  %v2787 = vand.u32 %v2775, 2147483648
  %v2788 = vor.u32 1.1754944e-38, %v2787
  %v2789 = vsel %vm2786, %v2788, %v2784
  %v2790 = vmul.f32 1.0, %v2789
  %v2791 = vadd.f32 %v2696, %v1617
  %v2793 = vrot.slane %v2791, 6
  %2794 = vrot.lane.b32.xlu0 %v2793, 64
  %v2795 = vpop.permute.xlu0 %2794
  %v2797 = vmul.f32 %v2767, %v2795
  %2799 = vrot.lane.b32.xlu0 %v2797, 64
  %v2800 = vpop.permute.xlu0 %2799
  %v2802 = vadd.f32 %v1596, %v2800
  %v2803 = vtanh.pop %v2802
  %v2804 = vsub.f32 1.0, %v2790
  %2806 = vrot.lane.b32.xlu0 %v2803, 96
  %v2807 = vpop.permute.xlu0 %2806
  %v2809 = vmul.f32 %v2804, %v2807
  %2810 = vrot.lane.b32.xlu0 %v2653, 96
  %v2811 = vpop.permute.xlu0 %2810
  %v2813 = vmul.f32 %v2790, %v2811
  %v2814 = vadd.f32 %v2809, %v2813
  %2816 = vrot.lane.b32.xlu0 %v2745, 96
  %v2817 = vpop.permute.xlu0 %2816
  %2819 = vst.msk [vmem:[#allocation4 + $0x8] sm:$0x30] %vm650, %v2817
  %2821 = vrot.lane.b32.xlu0 %v2814, 32
  %v2822 = vpop.permute.xlu0 %2821
  %2824 = vst.msk [vmem:[#allocation4] sm:$0xc] %vm656, %v2822
  %v2825 = vrot.slane %v2814, 6
  %2826 = vrot.lane.b32.xlu0 %v2825, 32
  %v2827 = vpop.permute.xlu0 %2826
  %v2829 = vsel %vm305, %v2817, %v2827
  %v2831 = vrot.slane %v2829, 4
  %v2832 = vsel %vm134, %v2831, 0
  %2834 = vmatpush.msra.mxu0 0.0
  %2835 = vmatpush.msra.mxu0 0.0
  %2836 = vmatpush.msra.mxu0 0.0
  %2837 = vmatpush.msra.mxu0 0.0
  %2838 = vmatpush.msra.mxu0 0.0
  %2839 = vmatpush.msra.mxu0 0.0
  %2840 = vmatpush.msra.mxu0 0.0
  %2841 = vmatpush.msra.mxu0 0.0
  %2842 = vmatpush.msra.mxu0 %v1615
  %2843 = vmatpush.msra.mxu0 %v1613
  %2844 = vmatpush.msra.mxu0 %v1611
  %2845 = vmatpush.msra.mxu0 %v1609
  %2846 = vmatpush.msra.mxu0 %v1607
  %2847 = vmatpush.msra.mxu0 %v1605
  %2848 = vmatpush.msra.mxu0 %v1603
  %2849 = vmatpush.msra.mxu0 %v1601
  %2850 = vmatmul.f32.gmra.mxu0 %v2832
  %v2851 = vpop.f32.mrf.mxu0
  %v2852 = vadd.f32 0.0, %v2851
  %2853 = vdwg.mxu0
  %2854 = vmatpush.msra.mxu0 0.0
  %2855 = vmatpush.msra.mxu0 0.0
  %2856 = vmatpush.msra.mxu0 0.0
  %2857 = vmatpush.msra.mxu0 0.0
  %2858 = vmatpush.msra.mxu0 0.0
  %2859 = vmatpush.msra.mxu0 0.0
  %2860 = vmatpush.msra.mxu0 0.0
  %2861 = vmatpush.msra.mxu0 0.0
  %2862 = vmatpush.msra.mxu0 %v1616
  %2863 = vmatpush.msra.mxu0 %v1614
  %2864 = vmatpush.msra.mxu0 %v1612
  %2865 = vmatpush.msra.mxu0 %v1610
  %2866 = vmatpush.msra.mxu0 %v1608
  %2867 = vmatpush.msra.mxu0 %v1606
  %2868 = vmatpush.msra.mxu0 %v1604
  %2869 = vmatpush.msra.mxu0 %v1602
  %2870 = vmatmul.f32.gmra.mxu0 %v2832
  %v2871 = vpop.f32.mrf.mxu0
  %v2872 = vadd.f32 0.0, %v2871
  %2873 = vdwg.mxu0
  %v2875 = vrot.slane %v2852, 2
  %v2877 = vadd.f32 %v1576, %v2875
  %v2878 = vxor.u32 %v2877, 2147483648
  %v2879 = vmul.f32 %v2878, 1.442695
  %v2880 = vpow.pop %v2879
  %v2881 = vadd.f32 %v2880, 1.0
  %v2882 = vrcp.pop %v2881
  %v2883 = vmul.f32 %v2881, %v2882
  %v2884 = vsub.f32 1.0, %v2883
  %v2885 = vmul.f32 %v2882, %v2884
  %v2886 = vadd.f32 %v2882, %v2885
  %vm2887 = vweird.f32 %v2881
  %vm2888 = vweird.f32 %v2882
  %vm2889 = vmor %vm2887, %vm2888
  %v2890 = vsel %vm2889, %v2882, %v2886
  %v2891 = vand.u32 2147483647, %v2881
  %vm2892 = vcmp.eq.f32.partialorder %v2891, 8.507059e+37
  %v2893 = vand.u32 %v2881, 2147483648
  %v2894 = vor.u32 1.1754944e-38, %v2893
  %v2895 = vsel %vm2892, %v2894, %v2890
  %v2896 = vmul.f32 1.0, %v2895
  %v2897 = vadd.f32 %v2852, %v1680
  %v2899 = vrot.slane %v2897, 2
  %2900 = vrot.lane.b32.xlu0 %v2899, 64
  %v2901 = vpop.permute.xlu0 %2900
  %v2903 = vmul.f32 %v2896, %v2901
  %2905 = vrot.lane.b32.xlu0 %v2903, 64
  %v2906 = vpop.permute.xlu0 %2905
  %v2908 = vadd.f32 %v1576, %v2906
  %v2909 = vtanh.pop %v2908
  %v2910 = vsub.f32 1.0, %v2896
  %2912 = vrot.lane.b32.xlu0 %v2909, 96
  %v2913 = vpop.permute.xlu0 %2912
  %v2915 = vmul.f32 %v2910, %v2913
  %v2916 = vrot.slane %v2829, 6
  %2917 = vrot.lane.b32.xlu0 %v2916, 32
  %v2918 = vpop.permute.xlu0 %2917
  %v2920 = vmul.f32 %v2896, %v2918
  %v2921 = vadd.f32 %v2915, %v2920
  %v2922 = vadd.f32 %v1573, %v2852
  %v2923 = vxor.u32 %v2922, 2147483648
  %v2924 = vmul.f32 %v2923, 1.442695
  %v2925 = vpow.pop %v2924
  %v2926 = vadd.f32 %v2925, 1.0
  %v2927 = vrcp.pop %v2926
  %v2928 = vmul.f32 %v2926, %v2927
  %v2929 = vsub.f32 1.0, %v2928
  %v2930 = vmul.f32 %v2927, %v2929
  %v2931 = vadd.f32 %v2927, %v2930
  %vm2932 = vweird.f32 %v2926
  %vm2933 = vweird.f32 %v2927
  %vm2934 = vmor %vm2932, %vm2933
  %v2935 = vsel %vm2934, %v2927, %v2931
  %v2936 = vand.u32 2147483647, %v2926
  %vm2937 = vcmp.eq.f32.partialorder %v2936, 8.507059e+37
  %v2938 = vand.u32 %v2926, 2147483648
  %v2939 = vor.u32 1.1754944e-38, %v2938
  %v2940 = vsel %vm2937, %v2939, %v2935
  %v2941 = vmul.f32 1.0, %v2940
  %v2942 = vadd.f32 %v1596, %v2872
  %v2943 = vxor.u32 %v2942, 2147483648
  %v2944 = vmul.f32 %v2943, 1.442695
  %v2945 = vpow.pop %v2944
  %v2946 = vadd.f32 %v2945, 1.0
  %v2947 = vrcp.pop %v2946
  %v2948 = vmul.f32 %v2946, %v2947
  %v2949 = vsub.f32 1.0, %v2948
  %v2950 = vmul.f32 %v2947, %v2949
  %v2951 = vadd.f32 %v2947, %v2950
  %vm2952 = vweird.f32 %v2946
  %vm2953 = vweird.f32 %v2947
  %vm2954 = vmor %vm2952, %vm2953
  %v2955 = vsel %vm2954, %v2947, %v2951
  %v2956 = vand.u32 2147483647, %v2946
  %vm2957 = vcmp.eq.f32.partialorder %v2956, 8.507059e+37
  %v2958 = vand.u32 %v2946, 2147483648
  %v2959 = vor.u32 1.1754944e-38, %v2958
  %v2960 = vsel %vm2957, %v2959, %v2955
  %v2961 = vmul.f32 1.0, %v2960
  %v2962 = vadd.f32 %v2872, %v1617
  %2964 = vrot.lane.b32.xlu0 %v2962, 64
  %v2965 = vpop.permute.xlu0 %2964
  %v2967 = vmul.f32 %v2941, %v2965
  %2969 = vrot.lane.b32.xlu0 %v2967, 64
  %v2970 = vpop.permute.xlu0 %2969
  %v2972 = vadd.f32 %v1596, %v2970
  %v2973 = vtanh.pop %v2972
  %v2974 = vsub.f32 1.0, %v2961
  %2976 = vrot.lane.b32.xlu0 %v2973, 96
  %v2977 = vpop.permute.xlu0 %2976
  %v2979 = vmul.f32 %v2974, %v2977
  %2980 = vrot.lane.b32.xlu0 %v2831, 96
  %v2981 = vpop.permute.xlu0 %2980
  %v2983 = vmul.f32 %v2961, %v2981
  %v2984 = vadd.f32 %v2979, %v2983
  %2986 = vrot.lane.b32.xlu0 %v2921, 96
  %v2987 = vpop.permute.xlu0 %2986
  %2989 = vst.msk [vmem:[#allocation4 + $0x8] sm:$0xc0] %vm822, %v2987
  %2991 = vrot.lane.b32.xlu0 %v2984, 32
  %v2992 = vpop.permute.xlu0 %2991
  %2994 = vst.msk [vmem:[#allocation4] sm:$0x3] %vm828, %v2992
  %v2995 = vrot.slane %v2984, 2
  %2996 = vrot.lane.b32.xlu0 %v2995, 32
  %v2997 = vpop.permute.xlu0 %2996
  %v2999 = vsel %vm305, %v2987, %v2997
  %v3000 = vld [vmem:[#allocation4] sm:$0xff]
  %v3001 = vld [vmem:[#allocation4 + $0x8] sm:$0xff]
  %v3002 = vld [vmem:[%s2 + $0x290] sm:$0xff]
  %v3003 = vld [vmem:[%s2 + $0x298] sm:$0xff]
  %v3004 = vld [vmem:[%s2 + $0x2a0] sm:$0xff]
  %v3005 = vld [vmem:[%s2 + $0x2a8] sm:$0xff]
  %v3006 = vld [vmem:[%s2 + $0x2b0] sm:$0xff]
  %v3007 = vld [vmem:[%s2 + $0x2b8] sm:$0xff]
  %v3008 = vld [vmem:[%s2 + $0x2c0] sm:$0xff]
  %v3009 = vld [vmem:[%s2 + $0x2c8] sm:$0xff]
  %v3010 = vld [vmem:[%s2 + $0x2d0] sm:$0xff]
  %v3011 = vld [vmem:[%s2 + $0x2d8] sm:$0xff]
  %v3012 = vld [vmem:[%s2 + $0x2e0] sm:$0xff]
  %v3013 = vld [vmem:[%s2 + $0x2e8] sm:$0xff]
  %v3014 = vld [vmem:[%s2 + $0x2f0] sm:$0xff]
  %v3015 = vld [vmem:[%s2 + $0x2f8] sm:$0xff]
  %v3016 = vld [vmem:[%s2 + $0x300] sm:$0xff]
  %v3017 = vld [vmem:[%s2 + $0x308] sm:$0xff]
  %s3018 = scalar_lea.vmem %s2, 1650
  %v3019 = vld [vmem:[%s3018] ss:$8 sm:$0x3]
  %v3021 = vperm.slane %v3019, 0
  %v3022 = vperm.slane %v3019, 1
  %v3026 = vsel %vm134, %v3000, 0
  %v3029 = vsel %vm134, %v3001, 0
  %3031 = vmatpush.msra.mxu0 0.0
  %3032 = vmatpush.msra.mxu0 0.0
  %3033 = vmatpush.msra.mxu0 0.0
  %3034 = vmatpush.msra.mxu0 0.0
  %3035 = vmatpush.msra.mxu0 0.0
  %3036 = vmatpush.msra.mxu0 0.0
  %3037 = vmatpush.msra.mxu0 0.0
  %3038 = vmatpush.msra.mxu0 0.0
  %3039 = vmatpush.msra.mxu0 %v3016
  %3040 = vmatpush.msra.mxu0 %v3014
  %3041 = vmatpush.msra.mxu0 %v3012
  %3042 = vmatpush.msra.mxu0 %v3010
  %3043 = vmatpush.msra.mxu0 %v3008
  %3044 = vmatpush.msra.mxu0 %v3006
  %3045 = vmatpush.msra.mxu0 %v3004
  %3046 = vmatpush.msra.mxu0 %v3002
  %3047 = vmatmul.f32.gmra.mxu0 %v3026
  %v3048 = vpop.f32.mrf.mxu0
  %v3049 = vadd.f32 %v3021, %v3048
  %3050 = vmatmul.f32.gmra.mxu0 %v3029
  %v3051 = vpop.f32.mrf.mxu0
  %v3052 = vadd.f32 %v3021, %v3051
  %3053 = vdwg.mxu0
  %3054 = vmatpush.msra.mxu0 0.0
  %3055 = vmatpush.msra.mxu0 0.0
  %3056 = vmatpush.msra.mxu0 0.0
  %3057 = vmatpush.msra.mxu0 0.0
  %3058 = vmatpush.msra.mxu0 0.0
  %3059 = vmatpush.msra.mxu0 0.0
  %3060 = vmatpush.msra.mxu0 0.0
  %3061 = vmatpush.msra.mxu0 0.0
  %3062 = vmatpush.msra.mxu0 %v3017
  %3063 = vmatpush.msra.mxu0 %v3015
  %3064 = vmatpush.msra.mxu0 %v3013
  %3065 = vmatpush.msra.mxu0 %v3011
  %3066 = vmatpush.msra.mxu0 %v3009
  %3067 = vmatpush.msra.mxu0 %v3007
  %3068 = vmatpush.msra.mxu0 %v3005
  %3069 = vmatpush.msra.mxu0 %v3003
  %3070 = vmatmul.f32.gmra.mxu0 %v3026
  %v3071 = vpop.f32.mrf.mxu0
  %v3072 = vadd.f32 %v3022, %v3071
  %3073 = vmatmul.f32.gmra.mxu0 %v3029
  %v3074 = vpop.f32.mrf.mxu0
  %v3075 = vadd.f32 %v3022, %v3074
  %3076 = vdwg.mxu0
  %3079 = vrot.lane.b32.xlu0 %v3049, 64
  %v3080 = vpop.permute.xlu0 %3079
  %3081 = vrot.lane.b32.xlu0 %v3052, 64
  %v3082 = vpop.permute.xlu0 %3081
  %v3083 = vsel %vm134, %v3049, 0
  %v3085 = vsel %vm134, %v3052, 0
  %v3087 = vsel %vm134, %v3080, 0
  %v3089 = vsel %vm134, %v3082, 0
  %3091 = vmatpush.xpose.msra.mxu0 0.0
  %3092 = vmatpush.xpose.msra.mxu0 0.0
  %3093 = vmatpush.xpose.msra.mxu0 0.0
  %3094 = vmatpush.xpose.msra.mxu0 0.0
  %3095 = vmatpush.xpose.msra.mxu0 0.0
  %3096 = vmatpush.xpose.msra.mxu0 0.0
  %3097 = vmatpush.xpose.msra.mxu0 0.0
  %3098 = vmatpush.xpose.msra.mxu0 0.0
  %3099 = vmatpush.xpose.msra.mxu0 0.0
  %3100 = vmatpush.xpose.msra.mxu0 0.0
  %3101 = vmatpush.xpose.msra.mxu0 0.0
  %3102 = vmatpush.xpose.msra.mxu0 0.0
  %3103 = vmatpush.xpose.msra.mxu0 0.0
  %3104 = vmatpush.xpose.msra.mxu0 0.0
  %3105 = vmatpush.xpose.msra.mxu0 %v3089
  %3106 = vmatpush.xpose.msra.mxu0 %v3087
  %3107 = vmatmul.f32.gmra.mxu0 %v3083
  %v3108 = vpop.f32.mrf.mxu0
  %v3109 = vadd.f32 0.0, %v3108
  %3110 = vmatmul.f32.gmra.mxu0 %v3085
  %v3111 = vpop.f32.mrf.mxu0
  %v3112 = vadd.f32 0.0, %v3111
  %3113 = vdwg.mxu0
  %v3114 = vmul.f32 %v3109, 0.125
  %v3115 = vmul.f32 %v3112, 0.125
  %v3116 = vld [vmem:[%s2 + $0x640] sm:$0xff]
  %v3117 = vld [vmem:[%s2 + $0x650] sm:$0xff]
  %v3118 = vadd.f32 %v3114, %v3116
  %v3119 = vadd.f32 %v3115, %v3117
  %vm3120 = vcmask 130048
  %v3121 = vsel %vm3120, %v3118, -inf
  %3122 = vmax.xlane.f32.xlu0 %v3121
  %v3123 = vpop.xlane.xlu0 %3122
  %v3124 = vsel %vm3120, %v3119, -inf
  %3125 = vmax.xlane.f32.xlu0 %v3124
  %v3126 = vpop.xlane.xlu0 %3125
  %v3127 = vsub.f32 %v3118, %v3123
  %v3128 = vsub.f32 %v3119, %v3126
  %v3129 = vmul.f32 %v3127, 1.442695
  %v3130 = vpow.pop %v3129
  %v3131 = vmul.f32 %v3128, 1.442695
  %v3132 = vpow.pop %v3131
  %v3133 = vsel %vm3120, %v3130, 0.0
  %3134 = vadd.xlane.f32.xlu0 %v3133
  %v3135 = vpop.xlane.xlu0 %3134
  %v3136 = vsel %vm3120, %v3132, 0.0
  %3137 = vadd.xlane.f32.xlu0 %v3136
  %v3138 = vpop.xlane.xlu0 %3137
  %v3139 = vrcp.pop %v3135
  %v3140 = vrcp.pop %v3138
  %v3141 = vmul.f32 %v3130, %v3139
  %v3142 = vmul.f32 %v3132, %v3140
  %v3144 = vsel %vm3120, %v3141, 0
  %v3147 = vsel %vm3120, %v3142, 0
  %3149 = vmatpush.msra.mxu0 0.0
  %3150 = vmatpush.msra.mxu0 0.0
  %3151 = vmatpush.msra.mxu0 0.0
  %3152 = vmatpush.msra.mxu0 0.0
  %3153 = vmatpush.msra.mxu0 0.0
  %3154 = vmatpush.msra.mxu0 0.0
  %3155 = vmatpush.msra.mxu0 0.0
  %3156 = vmatpush.msra.mxu0 0.0
  %3157 = vmatpush.msra.mxu0 0.0
  %3158 = vmatpush.msra.mxu0 0.0
  %3159 = vmatpush.msra.mxu0 0.0
  %3160 = vmatpush.msra.mxu0 0.0
  %3161 = vmatpush.msra.mxu0 0.0
  %3162 = vmatpush.msra.mxu0 0.0
  %3163 = vmatpush.msra.mxu0 %v3075
  %3164 = vmatpush.msra.mxu0 %v3072
  %3165 = vmatmul.f32.gmra.mxu0 %v3144
  %v3166 = vpop.f32.mrf.mxu0
  %v3167 = vadd.f32 0.0, %v3166
  %3168 = vmatmul.f32.gmra.mxu0 %v3147
  %v3169 = vpop.f32.mrf.mxu0
  %v3170 = vadd.f32 0.0, %v3169
  %3171 = vdwg.mxu0
  %v3172 = vld [vmem:[%s2 + $0x660] sm:$0x3]
  %v3174 = vsel %vm3120, %v3172, 0
  %3176 = vmatpush.msra.mxu0 0.0
  %3177 = vmatpush.msra.mxu0 0.0
  %3178 = vmatpush.msra.mxu0 0.0
  %3179 = vmatpush.msra.mxu0 0.0
  %3180 = vmatpush.msra.mxu0 0.0
  %3181 = vmatpush.msra.mxu0 0.0
  %3182 = vmatpush.msra.mxu0 0.0
  %3183 = vmatpush.msra.mxu0 0.0
  %3184 = vmatpush.msra.mxu0 0.0
  %3185 = vmatpush.msra.mxu0 0.0
  %3186 = vmatpush.msra.mxu0 0.0
  %3187 = vmatpush.msra.mxu0 0.0
  %3188 = vmatpush.msra.mxu0 0.0
  %3189 = vmatpush.msra.mxu0 0.0
  %3190 = vmatpush.msra.mxu0 %v3170
  %3191 = vmatpush.msra.mxu0 %v3167
  %3192 = vmatmul.f32.gmra.mxu0 %v3174
  %v3193 = vpop.f32.mrf.mxu0
  %v3194 = vadd.f32 0.0, %v3193
  %3195 = vdwg.mxu0
  %v3196 = vld [vmem:[%s2 + $0x410] sm:$0xff]
  %v3197 = vld [vmem:[%s2 + $0x420] sm:$0xff]
  %v3198 = vld [vmem:[%s2 + $0x430] sm:$0xff]
  %v3199 = vld [vmem:[%s2 + $0x440] sm:$0xff]
  %v3200 = vld [vmem:[%s2 + $0x450] sm:$0xff]
  %v3201 = vld [vmem:[%s2 + $0x460] sm:$0xff]
  %v3202 = vld [vmem:[%s2 + $0x470] sm:$0xff]
  %v3203 = vld [vmem:[%s2 + $0x480] sm:$0xff]
  %v3204 = vld [vmem:[%s1] sm:$0x3]
  %v3205 = vld [vmem:[%s2 + $0x490] sm:$0xf]
  %vm3206 = vcmask 31744
  %v3208 = vsel %vm3206, %v3204, 0
  %vm3210 = vcmask 1043456
  %v3212 = vsel %vm3210, %v3205, 0
  %3214 = vmatpush.msra.mxu0 0.0
  %3215 = vmatpush.msra.mxu0 0.0
  %3216 = vmatpush.msra.mxu0 0.0
  %3217 = vmatpush.msra.mxu0 0.0
  %3218 = vmatpush.msra.mxu0 0.0
  %3219 = vmatpush.msra.mxu0 0.0
  %3220 = vmatpush.msra.mxu0 0.0
  %3221 = vmatpush.msra.mxu0 0.0
  %3222 = vmatpush.msra.mxu0 0.0
  %3223 = vmatpush.msra.mxu0 0.0
  %3224 = vmatpush.msra.mxu0 0.0
  %3225 = vmatpush.msra.mxu0 0.0
  %3226 = vmatpush.msra.mxu0 0.0
  %3227 = vmatpush.msra.mxu0 0.0
  %3228 = vmatpush.msra.mxu0 0.0
  %3229 = vmatpush.msra.mxu0 %v3212
  %3230 = vmatmul.f32.gmra.mxu0 %v3208
  %v3231 = vpop.f32.mrf.mxu0
  %v3232 = vadd.f32 0.0, %v3231
  %3233 = vdwg.mxu0
  %v3235 = vsel %vm134, %v3194, 0
  %3237 = vmatpush.msra.mxu0 0.0
  %3238 = vmatpush.msra.mxu0 0.0
  %3239 = vmatpush.msra.mxu0 0.0
  %3240 = vmatpush.msra.mxu0 0.0
  %3241 = vmatpush.msra.mxu0 0.0
  %3242 = vmatpush.msra.mxu0 0.0
  %3243 = vmatpush.msra.mxu0 0.0
  %3244 = vmatpush.msra.mxu0 0.0
  %3245 = vmatpush.msra.mxu0 %v3203
  %3246 = vmatpush.msra.mxu0 %v3202
  %3247 = vmatpush.msra.mxu0 %v3201
  %3248 = vmatpush.msra.mxu0 %v3200
  %3249 = vmatpush.msra.mxu0 %v3199
  %3250 = vmatpush.msra.mxu0 %v3198
  %3251 = vmatpush.msra.mxu0 %v3197
  %3252 = vmatpush.msra.mxu0 %v3196
  %3253 = vmatmul.f32.gmra.mxu0 %v3235
  %v3254 = vpop.f32.mrf.mxu0
  %v3255 = vadd.f32 %v3232, %v3254
  %3256 = vdwg.mxu0
  %v3257 = vld [vmem:[%s2 + $0x673] ss:$0 sm:$0xff]
  %v3258 = vadd.f32 %v3255, %v3257
  %v3259 = vtanh.pop %v3258
  %v3260 = vld [vmem:[%s2 + $0x310] sm:$0xff]
  %v3261 = vld [vmem:[%s2 + $0x320] sm:$0xff]
  %v3262 = vld [vmem:[%s2 + $0x330] sm:$0xff]
  %v3263 = vld [vmem:[%s2 + $0x340] sm:$0xff]
  %v3264 = vld [vmem:[%s2 + $0x350] sm:$0xff]
  %v3265 = vld [vmem:[%s2 + $0x360] sm:$0xff]
  %v3266 = vld [vmem:[%s2 + $0x370] sm:$0xff]
  %v3267 = vld [vmem:[%s2 + $0x380] sm:$0xff]
  %v3268 = vld [vmem:[%s2 + $0x390] sm:$0xff]
  %v3269 = vld [vmem:[%s2 + $0x3a0] sm:$0xff]
  %v3270 = vld [vmem:[%s2 + $0x3b0] sm:$0xff]
  %v3271 = vld [vmem:[%s2 + $0x3c0] sm:$0xff]
  %v3272 = vld [vmem:[%s2 + $0x3d0] sm:$0xff]
  %v3273 = vld [vmem:[%s2 + $0x3e0] sm:$0xff]
  %v3274 = vld [vmem:[%s2 + $0x3f0] sm:$0xff]
  %v3275 = vld [vmem:[%s2 + $0x400] sm:$0xff]
  %v3276 = vld [vmem:[%s2 + $0x674] ss:$0 sm:$0xff]
  %v3278 = vsel %vm134, %v3276, 0
  %3280 = vmatpush.msra.mxu0 0.0
  %3281 = vmatpush.msra.mxu0 0.0
  %3282 = vmatpush.msra.mxu0 0.0
  %3283 = vmatpush.msra.mxu0 0.0
  %3284 = vmatpush.msra.mxu0 0.0
  %3285 = vmatpush.msra.mxu0 0.0
  %3286 = vmatpush.msra.mxu0 0.0
  %3287 = vmatpush.msra.mxu0 0.0
  %3288 = vmatpush.msra.mxu0 %v3267
  %3289 = vmatpush.msra.mxu0 %v3266
  %3290 = vmatpush.msra.mxu0 %v3265
  %3291 = vmatpush.msra.mxu0 %v3264
  %3292 = vmatpush.msra.mxu0 %v3263
  %3293 = vmatpush.msra.mxu0 %v3262
  %3294 = vmatpush.msra.mxu0 %v3261
  %3295 = vmatpush.msra.mxu0 %v3260
  %3296 = vmatmul.f32.gmra.mxu0 %v3278
  %v3297 = vpop.f32.mrf.mxu0
  %v3298 = vadd.f32 0.0, %v3297
  %3299 = vdwg.mxu0
  %v3300 = vld [vmem:[%s2 + $0x675] ss:$0 sm:$0xff]
  %v3302 = vsel %vm134, %v3300, 0
  %3304 = vmatpush.msra.mxu0 0.0
  %3305 = vmatpush.msra.mxu0 0.0
  %3306 = vmatpush.msra.mxu0 0.0
  %3307 = vmatpush.msra.mxu0 0.0
  %3308 = vmatpush.msra.mxu0 0.0
  %3309 = vmatpush.msra.mxu0 0.0
  %3310 = vmatpush.msra.mxu0 0.0
  %3311 = vmatpush.msra.mxu0 0.0
  %3312 = vmatpush.msra.mxu0 %v3267
  %3313 = vmatpush.msra.mxu0 %v3266
  %3314 = vmatpush.msra.mxu0 %v3265
  %3315 = vmatpush.msra.mxu0 %v3264
  %3316 = vmatpush.msra.mxu0 %v3263
  %3317 = vmatpush.msra.mxu0 %v3262
  %3318 = vmatpush.msra.mxu0 %v3261
  %3319 = vmatpush.msra.mxu0 %v3260
  %3320 = vmatmul.f32.gmra.mxu0 %v3302
  %v3321 = vpop.f32.mrf.mxu0
  %v3322 = vadd.f32 0.0, %v3321
  %3323 = vdwg.mxu0
  %v3325 = vsel %vm134, %v3259, 0
  %3327 = vmatpush.msra.mxu0 0.0
  %3328 = vmatpush.msra.mxu0 0.0
  %3329 = vmatpush.msra.mxu0 0.0
  %3330 = vmatpush.msra.mxu0 0.0
  %3331 = vmatpush.msra.mxu0 0.0
  %3332 = vmatpush.msra.mxu0 0.0
  %3333 = vmatpush.msra.mxu0 0.0
  %3334 = vmatpush.msra.mxu0 0.0
  %3335 = vmatpush.msra.mxu0 %v3275
  %3336 = vmatpush.msra.mxu0 %v3274
  %3337 = vmatpush.msra.mxu0 %v3273
  %3338 = vmatpush.msra.mxu0 %v3272
  %3339 = vmatpush.msra.mxu0 %v3271
  %3340 = vmatpush.msra.mxu0 %v3270
  %3341 = vmatpush.msra.mxu0 %v3269
  %3342 = vmatpush.msra.mxu0 %v3268
  %3343 = vmatmul.f32.gmra.mxu0 %v3325
  %v3344 = vpop.f32.mrf.mxu0
  %v3345 = vadd.f32 0.0, %v3344
  %3346 = vdwg.mxu0
  %v3347 = vperm.slane %v3322, 0
  %v3348 = vadd.f32 %v3347, %v3345
  %v3349 = vld [vmem:[%s2 + $0x676] ss:$0 sm:$0xff]
  %v3350 = vadd.f32 %v3348, %v3349
  %v3351 = vld [vmem:[%s2 + $0x190] sm:$0xff]
  %v3352 = vld [vmem:[%s2 + $0x198] sm:$0xff]
  %v3353 = vld [vmem:[%s2 + $0x1a0] sm:$0xff]
  %v3354 = vld [vmem:[%s2 + $0x1a8] sm:$0xff]
  %v3355 = vld [vmem:[%s2 + $0x1b0] sm:$0xff]
  %v3356 = vld [vmem:[%s2 + $0x1b8] sm:$0xff]
  %v3357 = vld [vmem:[%s2 + $0x1c0] sm:$0xff]
  %v3358 = vld [vmem:[%s2 + $0x1c8] sm:$0xff]
  %v3359 = vld [vmem:[%s2 + $0x1d0] sm:$0xff]
  %v3360 = vld [vmem:[%s2 + $0x1d8] sm:$0xff]
  %v3361 = vld [vmem:[%s2 + $0x1e0] sm:$0xff]
  %v3362 = vld [vmem:[%s2 + $0x1e8] sm:$0xff]
  %v3363 = vld [vmem:[%s2 + $0x1f0] sm:$0xff]
  %v3364 = vld [vmem:[%s2 + $0x1f8] sm:$0xff]
  %v3365 = vld [vmem:[%s2 + $0x200] sm:$0xff]
  %v3366 = vld [vmem:[%s2 + $0x208] sm:$0xff]
  %v3368 = vsel %vm134, %v3298, 0
  %3370 = vmatpush.msra.mxu0 0.0
  %3371 = vmatpush.msra.mxu0 0.0
  %3372 = vmatpush.msra.mxu0 0.0
  %3373 = vmatpush.msra.mxu0 0.0
  %3374 = vmatpush.msra.mxu0 0.0
  %3375 = vmatpush.msra.mxu0 0.0
  %3376 = vmatpush.msra.mxu0 0.0
  %3377 = vmatpush.msra.mxu0 0.0
  %3378 = vmatpush.msra.mxu0 %v3365
  %3379 = vmatpush.msra.mxu0 %v3363
  %3380 = vmatpush.msra.mxu0 %v3361
  %3381 = vmatpush.msra.mxu0 %v3359
  %3382 = vmatpush.msra.mxu0 %v3357
  %3383 = vmatpush.msra.mxu0 %v3355
  %3384 = vmatpush.msra.mxu0 %v3353
  %3385 = vmatpush.msra.mxu0 %v3351
  %3386 = vmatmul.f32.gmra.mxu0 %v3368
  %v3387 = vpop.f32.mrf.mxu0
  %v3388 = vadd.f32 0.0, %v3387
  %3389 = vdwg.mxu0
  %3390 = vmatpush.msra.mxu0 0.0
  %3391 = vmatpush.msra.mxu0 0.0
  %3392 = vmatpush.msra.mxu0 0.0
  %3393 = vmatpush.msra.mxu0 0.0
  %3394 = vmatpush.msra.mxu0 0.0
  %3395 = vmatpush.msra.mxu0 0.0
  %3396 = vmatpush.msra.mxu0 0.0
  %3397 = vmatpush.msra.mxu0 0.0
  %3398 = vmatpush.msra.mxu0 %v3366
  %3399 = vmatpush.msra.mxu0 %v3364
  %3400 = vmatpush.msra.mxu0 %v3362
  %3401 = vmatpush.msra.mxu0 %v3360
  %3402 = vmatpush.msra.mxu0 %v3358
  %3403 = vmatpush.msra.mxu0 %v3356
  %3404 = vmatpush.msra.mxu0 %v3354
  %3405 = vmatpush.msra.mxu0 %v3352
  %3406 = vmatmul.f32.gmra.mxu0 %v3368
  %v3407 = vpop.f32.mrf.mxu0
  %v3408 = vadd.f32 0.0, %v3407
  %3409 = vdwg.mxu0
  %s3410 = scalar_lea.vmem %s2, 1648
  %v3411 = vld [vmem:[%s3410] ss:$8 sm:$0x3]
  %v3413 = vperm.slane %v3411, 0
  %v3414 = vperm.slane %v3411, 1
  %v3418 = vsel %vm134, %v3350, 0
  %3420 = vmatpush.msra.mxu0 0.0
  %3421 = vmatpush.msra.mxu0 0.0
  %3422 = vmatpush.msra.mxu0 0.0
  %3423 = vmatpush.msra.mxu0 0.0
  %3424 = vmatpush.msra.mxu0 0.0
  %3425 = vmatpush.msra.mxu0 0.0
  %3426 = vmatpush.msra.mxu0 0.0
  %3427 = vmatpush.msra.mxu0 0.0
  %3428 = vmatpush.msra.mxu0 %v3365
  %3429 = vmatpush.msra.mxu0 %v3363
  %3430 = vmatpush.msra.mxu0 %v3361
  %3431 = vmatpush.msra.mxu0 %v3359
  %3432 = vmatpush.msra.mxu0 %v3357
  %3433 = vmatpush.msra.mxu0 %v3355
  %3434 = vmatpush.msra.mxu0 %v3353
  %3435 = vmatpush.msra.mxu0 %v3351
  %3436 = vmatmul.f32.gmra.mxu0 %v3418
  %v3437 = vpop.f32.mrf.mxu0
  %v3438 = vadd.f32 %v3413, %v3437
  %3439 = vdwg.mxu0
  %3440 = vmatpush.msra.mxu0 0.0
  %3441 = vmatpush.msra.mxu0 0.0
  %3442 = vmatpush.msra.mxu0 0.0
  %3443 = vmatpush.msra.mxu0 0.0
  %3444 = vmatpush.msra.mxu0 0.0
  %3445 = vmatpush.msra.mxu0 0.0
  %3446 = vmatpush.msra.mxu0 0.0
  %3447 = vmatpush.msra.mxu0 0.0
  %3448 = vmatpush.msra.mxu0 %v3366
  %3449 = vmatpush.msra.mxu0 %v3364
  %3450 = vmatpush.msra.mxu0 %v3362
  %3451 = vmatpush.msra.mxu0 %v3360
  %3452 = vmatpush.msra.mxu0 %v3358
  %3453 = vmatpush.msra.mxu0 %v3356
  %3454 = vmatpush.msra.mxu0 %v3354
  %3455 = vmatpush.msra.mxu0 %v3352
  %3456 = vmatmul.f32.gmra.mxu0 %v3418
  %v3457 = vpop.f32.mrf.mxu0
  %v3458 = vadd.f32 %v3414, %v3457
  %3459 = vdwg.mxu0
  %v3460 = vld [vmem:[%s2 + $0x210] sm:$0xff]
  %v3461 = vld [vmem:[%s2 + $0x218] sm:$0xff]
  %v3462 = vld [vmem:[%s2 + $0x220] sm:$0xff]
  %v3463 = vld [vmem:[%s2 + $0x228] sm:$0xff]
  %v3464 = vld [vmem:[%s2 + $0x230] sm:$0xff]
  %v3465 = vld [vmem:[%s2 + $0x238] sm:$0xff]
  %v3466 = vld [vmem:[%s2 + $0x240] sm:$0xff]
  %v3467 = vld [vmem:[%s2 + $0x248] sm:$0xff]
  %v3468 = vld [vmem:[%s2 + $0x250] sm:$0xff]
  %v3469 = vld [vmem:[%s2 + $0x258] sm:$0xff]
  %v3470 = vld [vmem:[%s2 + $0x260] sm:$0xff]
  %v3471 = vld [vmem:[%s2 + $0x268] sm:$0xff]
  %v3472 = vld [vmem:[%s2 + $0x270] sm:$0xff]
  %v3473 = vld [vmem:[%s2 + $0x278] sm:$0xff]
  %v3474 = vld [vmem:[%s2 + $0x280] sm:$0xff]
  %v3475 = vld [vmem:[%s2 + $0x288] sm:$0xff]
  %v3476 = vld [vmem:[%s2 + $0x671] ss:$0 sm:$0xff]
  %v3478 = vrot.slane %v2999, 6
  %v3479 = vsel %vm134, %v3478, 0
  %3481 = vmatpush.msra.mxu0 0.0
  %3482 = vmatpush.msra.mxu0 0.0
  %3483 = vmatpush.msra.mxu0 0.0
  %3484 = vmatpush.msra.mxu0 0.0
  %3485 = vmatpush.msra.mxu0 0.0
  %3486 = vmatpush.msra.mxu0 0.0
  %3487 = vmatpush.msra.mxu0 0.0
  %3488 = vmatpush.msra.mxu0 0.0
  %3489 = vmatpush.msra.mxu0 %v3474
  %3490 = vmatpush.msra.mxu0 %v3472
  %3491 = vmatpush.msra.mxu0 %v3470
  %3492 = vmatpush.msra.mxu0 %v3468
  %3493 = vmatpush.msra.mxu0 %v3466
  %3494 = vmatpush.msra.mxu0 %v3464
  %3495 = vmatpush.msra.mxu0 %v3462
  %3496 = vmatpush.msra.mxu0 %v3460
  %3497 = vmatmul.f32.gmra.mxu0 %v3479
  %v3498 = vpop.f32.mrf.mxu0
  %v3499 = vadd.f32 0.0, %v3498
  %3500 = vdwg.mxu0
  %3501 = vmatpush.msra.mxu0 0.0
  %3502 = vmatpush.msra.mxu0 0.0
  %3503 = vmatpush.msra.mxu0 0.0
  %3504 = vmatpush.msra.mxu0 0.0
  %3505 = vmatpush.msra.mxu0 0.0
  %3506 = vmatpush.msra.mxu0 0.0
  %3507 = vmatpush.msra.mxu0 0.0
  %3508 = vmatpush.msra.mxu0 0.0
  %3509 = vmatpush.msra.mxu0 %v3475
  %3510 = vmatpush.msra.mxu0 %v3473
  %3511 = vmatpush.msra.mxu0 %v3471
  %3512 = vmatpush.msra.mxu0 %v3469
  %3513 = vmatpush.msra.mxu0 %v3467
  %3514 = vmatpush.msra.mxu0 %v3465
  %3515 = vmatpush.msra.mxu0 %v3463
  %3516 = vmatpush.msra.mxu0 %v3461
  %3517 = vmatmul.f32.gmra.mxu0 %v3479
  %v3518 = vpop.f32.mrf.mxu0
  %v3519 = vadd.f32 0.0, %v3518
  %3520 = vdwg.mxu0
  %v3521 = vmul.f32 %v3388, 0.0
  %v3522 = vperm.slane %v3521, 0
  %v3523 = vadd.f32 %v3522, %v3438
  %v3524 = vadd.f32 %v3523, %v3499
  %v3525 = vxor.u32 %v3524, 2147483648
  %v3526 = vmul.f32 %v3525, 1.442695
  %v3527 = vpow.pop %v3526
  %v3528 = vadd.f32 %v3527, 1.0
  %v3529 = vrcp.pop %v3528
  %v3530 = vmul.f32 %v3528, %v3529
  %v3531 = vsub.f32 1.0, %v3530
  %v3532 = vmul.f32 %v3529, %v3531
  %v3533 = vadd.f32 %v3529, %v3532
  %vm3534 = vweird.f32 %v3528
  %vm3535 = vweird.f32 %v3529
  %vm3536 = vmor %vm3534, %vm3535
  %v3537 = vsel %vm3536, %v3529, %v3533
  %v3538 = vand.u32 2147483647, %v3528
  %vm3539 = vcmp.eq.f32.partialorder %v3538, 8.507059e+37
  %v3540 = vand.u32 %v3528, 2147483648
  %v3541 = vor.u32 1.1754944e-38, %v3540
  %v3542 = vsel %vm3539, %v3541, %v3537
  %v3543 = vmul.f32 1.0, %v3542
  %3545 = vrot.lane.b32.xlu0 %v3476, 64
  %v3546 = vpop.permute.xlu0 %3545
  %v3548 = vadd.f32 %v3499, %v3546
  %3550 = vrot.lane.b32.xlu0 %v3548, 64
  %v3551 = vpop.permute.xlu0 %3550
  %v3553 = vmul.f32 %v3543, %v3551
  %3555 = vrot.lane.b32.xlu0 %v3553, 64
  %v3556 = vpop.permute.xlu0 %3555
  %v3558 = vadd.f32 %v3523, %v3556
  %v3559 = vtanh.pop %v3558
  %v3560 = vsub.f32 1.0, %v3543
  %3562 = vrot.lane.b32.xlu0 %v3559, 96
  %v3563 = vpop.permute.xlu0 %3562
  %v3565 = vmul.f32 %v3560, %v3563
  %3566 = vrot.lane.b32.xlu0 %v3478, 32
  %v3567 = vpop.permute.xlu0 %3566
  %v3569 = vmul.f32 %v3543, %v3567
  %v3570 = vadd.f32 %v3565, %v3569
  %v3571 = vperm.slane %v3388, 0
  %v3572 = vperm.slane %v3408, 0
  %v3573 = vadd.f32 %v3571, %v3438
  %v3574 = vadd.f32 %v3572, %v3458
  %v3575 = vadd.f32 %v3573, %v3499
  %v3576 = vxor.u32 %v3575, 2147483648
  %v3577 = vmul.f32 %v3576, 1.442695
  %v3578 = vpow.pop %v3577
  %v3579 = vadd.f32 %v3578, 1.0
  %v3580 = vrcp.pop %v3579
  %v3581 = vmul.f32 %v3579, %v3580
  %v3582 = vsub.f32 1.0, %v3581
  %v3583 = vmul.f32 %v3580, %v3582
  %v3584 = vadd.f32 %v3580, %v3583
  %vm3585 = vweird.f32 %v3579
  %vm3586 = vweird.f32 %v3580
  %vm3587 = vmor %vm3585, %vm3586
  %v3588 = vsel %vm3587, %v3580, %v3584
  %v3589 = vand.u32 2147483647, %v3579
  %vm3590 = vcmp.eq.f32.partialorder %v3589, 8.507059e+37
  %v3591 = vand.u32 %v3579, 2147483648
  %v3592 = vor.u32 1.1754944e-38, %v3591
  %v3593 = vsel %vm3590, %v3592, %v3588
  %v3594 = vmul.f32 1.0, %v3593
  %v3595 = vadd.f32 %v3574, %v3519
  %v3596 = vxor.u32 %v3595, 2147483648
  %v3597 = vmul.f32 %v3596, 1.442695
  %v3598 = vpow.pop %v3597
  %v3599 = vadd.f32 %v3598, 1.0
  %v3600 = vrcp.pop %v3599
  %v3601 = vmul.f32 %v3599, %v3600
  %v3602 = vsub.f32 1.0, %v3601
  %v3603 = vmul.f32 %v3600, %v3602
  %v3604 = vadd.f32 %v3600, %v3603
  %vm3605 = vweird.f32 %v3599
  %vm3606 = vweird.f32 %v3600
  %vm3607 = vmor %vm3605, %vm3606
  %v3608 = vsel %vm3607, %v3600, %v3604
  %v3609 = vand.u32 2147483647, %v3599
  %vm3610 = vcmp.eq.f32.partialorder %v3609, 8.507059e+37
  %v3611 = vand.u32 %v3599, 2147483648
  %v3612 = vor.u32 1.1754944e-38, %v3611
  %v3613 = vsel %vm3610, %v3612, %v3608
  %v3614 = vmul.f32 1.0, %v3613
  %v3615 = vadd.f32 %v3519, %v3476
  %3617 = vrot.lane.b32.xlu0 %v3615, 64
  %v3618 = vpop.permute.xlu0 %3617
  %v3620 = vmul.f32 %v3594, %v3618
  %3622 = vrot.lane.b32.xlu0 %v3620, 64
  %v3623 = vpop.permute.xlu0 %3622
  %v3625 = vadd.f32 %v3574, %v3623
  %v3626 = vtanh.pop %v3625
  %v3627 = vsub.f32 1.0, %v3614
  %3629 = vrot.lane.b32.xlu0 %v3626, 96
  %v3630 = vpop.permute.xlu0 %3629
  %v3632 = vmul.f32 %v3627, %v3630
  %3633 = vrot.lane.b32.xlu0 %v3478, 96
  %v3634 = vpop.permute.xlu0 %3633
  %v3636 = vmul.f32 %v3614, %v3634
  %v3637 = vadd.f32 %v3632, %v3636
  %3639 = vrot.lane.b32.xlu0 %v3570, 96
  %v3640 = vpop.permute.xlu0 %3639
  %3642 = vst.msk [vmem:[#allocation5] sm:$0x3] %vm293, %v3640
  %3644 = vrot.lane.b32.xlu0 %v3637, 32
  %v3645 = vpop.permute.xlu0 %3644
  %3647 = vst.msk [vmem:[#allocation5 + $0x16] sm:$0x3] %vm828, %v3645
  %v3648 = vsel %vm305, %v3640, %v3645
  %v3650 = vsel %vm134, %v3648, 0
  %3652 = vmatpush.msra.mxu0 0.0
  %3653 = vmatpush.msra.mxu0 0.0
  %3654 = vmatpush.msra.mxu0 0.0
  %3655 = vmatpush.msra.mxu0 0.0
  %3656 = vmatpush.msra.mxu0 0.0
  %3657 = vmatpush.msra.mxu0 0.0
  %3658 = vmatpush.msra.mxu0 0.0
  %3659 = vmatpush.msra.mxu0 0.0
  %3660 = vmatpush.msra.mxu0 %v3474
  %3661 = vmatpush.msra.mxu0 %v3472
  %3662 = vmatpush.msra.mxu0 %v3470
  %3663 = vmatpush.msra.mxu0 %v3468
  %3664 = vmatpush.msra.mxu0 %v3466
  %3665 = vmatpush.msra.mxu0 %v3464
  %3666 = vmatpush.msra.mxu0 %v3462
  %3667 = vmatpush.msra.mxu0 %v3460
  %3668 = vmatmul.f32.gmra.mxu0 %v3650
  %v3669 = vpop.f32.mrf.mxu0
  %v3670 = vadd.f32 0.0, %v3669
  %3671 = vdwg.mxu0
  %3672 = vmatpush.msra.mxu0 0.0
  %3673 = vmatpush.msra.mxu0 0.0
  %3674 = vmatpush.msra.mxu0 0.0
  %3675 = vmatpush.msra.mxu0 0.0
  %3676 = vmatpush.msra.mxu0 0.0
  %3677 = vmatpush.msra.mxu0 0.0
  %3678 = vmatpush.msra.mxu0 0.0
  %3679 = vmatpush.msra.mxu0 0.0
  %3680 = vmatpush.msra.mxu0 %v3475
  %3681 = vmatpush.msra.mxu0 %v3473
  %3682 = vmatpush.msra.mxu0 %v3471
  %3683 = vmatpush.msra.mxu0 %v3469
  %3684 = vmatpush.msra.mxu0 %v3467
  %3685 = vmatpush.msra.mxu0 %v3465
  %3686 = vmatpush.msra.mxu0 %v3463
  %3687 = vmatpush.msra.mxu0 %v3461
  %3688 = vmatmul.f32.gmra.mxu0 %v3650
  %v3689 = vpop.f32.mrf.mxu0
  %v3690 = vadd.f32 0.0, %v3689
  %3691 = vdwg.mxu0
  %v3692 = vmul.f32 %v3388, 0.09090909
  %v3693 = vperm.slane %v3692, 0
  %v3694 = vadd.f32 %v3693, %v3438
  %v3695 = vadd.f32 %v3694, %v3670
  %v3696 = vxor.u32 %v3695, 2147483648
  %v3697 = vmul.f32 %v3696, 1.442695
  %v3698 = vpow.pop %v3697
  %v3699 = vadd.f32 %v3698, 1.0
  %v3700 = vrcp.pop %v3699
  %v3701 = vmul.f32 %v3699, %v3700
  %v3702 = vsub.f32 1.0, %v3701
  %v3703 = vmul.f32 %v3700, %v3702
  %v3704 = vadd.f32 %v3700, %v3703
  %vm3705 = vweird.f32 %v3699
  %vm3706 = vweird.f32 %v3700
  %vm3707 = vmor %vm3705, %vm3706
  %v3708 = vsel %vm3707, %v3700, %v3704
  %v3709 = vand.u32 2147483647, %v3699
  %vm3710 = vcmp.eq.f32.partialorder %v3709, 8.507059e+37
  %v3711 = vand.u32 %v3699, 2147483648
  %v3712 = vor.u32 1.1754944e-38, %v3711
  %v3713 = vsel %vm3710, %v3712, %v3708
  %v3714 = vmul.f32 1.0, %v3713
  %v3715 = vadd.f32 %v3670, %v3546
  %3717 = vrot.lane.b32.xlu0 %v3715, 64
  %v3718 = vpop.permute.xlu0 %3717
  %v3720 = vmul.f32 %v3714, %v3718
  %3722 = vrot.lane.b32.xlu0 %v3720, 64
  %v3723 = vpop.permute.xlu0 %3722
  %v3725 = vadd.f32 %v3694, %v3723
  %v3726 = vtanh.pop %v3725
  %v3727 = vsub.f32 1.0, %v3714
  %3729 = vrot.lane.b32.xlu0 %v3726, 96
  %v3730 = vpop.permute.xlu0 %3729
  %v3732 = vmul.f32 %v3727, %v3730
  %3733 = vrot.lane.b32.xlu0 %v3648, 32
  %v3734 = vpop.permute.xlu0 %3733
  %v3736 = vmul.f32 %v3714, %v3734
  %v3737 = vadd.f32 %v3732, %v3736
  %v3738 = vmul.f32 %v3388, 0.90909094
  %v3739 = vmul.f32 %v3408, 0.90909094
  %v3740 = vperm.slane %v3738, 0
  %v3741 = vperm.slane %v3739, 0
  %v3742 = vadd.f32 %v3740, %v3438
  %v3743 = vadd.f32 %v3741, %v3458
  %v3744 = vadd.f32 %v3742, %v3670
  %v3745 = vxor.u32 %v3744, 2147483648
  %v3746 = vmul.f32 %v3745, 1.442695
  %v3747 = vpow.pop %v3746
  %v3748 = vadd.f32 %v3747, 1.0
  %v3749 = vrcp.pop %v3748
  %v3750 = vmul.f32 %v3748, %v3749
  %v3751 = vsub.f32 1.0, %v3750
  %v3752 = vmul.f32 %v3749, %v3751
  %v3753 = vadd.f32 %v3749, %v3752
  %vm3754 = vweird.f32 %v3748
  %vm3755 = vweird.f32 %v3749
  %vm3756 = vmor %vm3754, %vm3755
  %v3757 = vsel %vm3756, %v3749, %v3753
  %v3758 = vand.u32 2147483647, %v3748
  %vm3759 = vcmp.eq.f32.partialorder %v3758, 8.507059e+37
  %v3760 = vand.u32 %v3748, 2147483648
  %v3761 = vor.u32 1.1754944e-38, %v3760
  %v3762 = vsel %vm3759, %v3761, %v3757
  %v3763 = vmul.f32 1.0, %v3762
  %v3764 = vadd.f32 %v3743, %v3690
  %v3765 = vxor.u32 %v3764, 2147483648
  %v3766 = vmul.f32 %v3765, 1.442695
  %v3767 = vpow.pop %v3766
  %v3768 = vadd.f32 %v3767, 1.0
  %v3769 = vrcp.pop %v3768
  %v3770 = vmul.f32 %v3768, %v3769
  %v3771 = vsub.f32 1.0, %v3770
  %v3772 = vmul.f32 %v3769, %v3771
  %v3773 = vadd.f32 %v3769, %v3772
  %vm3774 = vweird.f32 %v3768
  %vm3775 = vweird.f32 %v3769
  %vm3776 = vmor %vm3774, %vm3775
  %v3777 = vsel %vm3776, %v3769, %v3773
  %v3778 = vand.u32 2147483647, %v3768
  %vm3779 = vcmp.eq.f32.partialorder %v3778, 8.507059e+37
  %v3780 = vand.u32 %v3768, 2147483648
  %v3781 = vor.u32 1.1754944e-38, %v3780
  %v3782 = vsel %vm3779, %v3781, %v3777
  %v3783 = vmul.f32 1.0, %v3782
  %v3784 = vadd.f32 %v3690, %v3476
  %3786 = vrot.lane.b32.xlu0 %v3784, 64
  %v3787 = vpop.permute.xlu0 %3786
  %v3789 = vmul.f32 %v3763, %v3787
  %3791 = vrot.lane.b32.xlu0 %v3789, 64
  %v3792 = vpop.permute.xlu0 %3791
  %v3794 = vadd.f32 %v3743, %v3792
  %v3795 = vtanh.pop %v3794
  %v3796 = vsub.f32 1.0, %v3783
  %3798 = vrot.lane.b32.xlu0 %v3795, 96
  %v3799 = vpop.permute.xlu0 %3798
  %v3801 = vmul.f32 %v3796, %v3799
  %3802 = vrot.lane.b32.xlu0 %v3648, 96
  %v3803 = vpop.permute.xlu0 %3802
  %v3805 = vmul.f32 %v3783, %v3803
  %v3806 = vadd.f32 %v3801, %v3805
  %3808 = vrot.lane.b32.xlu0 %v3737, 96
  %v3809 = vpop.permute.xlu0 %3808
  %3811 = vst.msk [vmem:[#allocation5 + $0x2] sm:$0x3] %vm293, %v3809
  %3813 = vrot.lane.b32.xlu0 %v3806, 32
  %v3814 = vpop.permute.xlu0 %3813
  %3816 = vst.msk [vmem:[#allocation5 + $0x14] sm:$0x3] %vm828, %v3814
  %v3817 = vsel %vm305, %v3809, %v3814
  %v3819 = vsel %vm134, %v3817, 0
  %3821 = vmatpush.msra.mxu0 0.0
  %3822 = vmatpush.msra.mxu0 0.0
  %3823 = vmatpush.msra.mxu0 0.0
  %3824 = vmatpush.msra.mxu0 0.0
  %3825 = vmatpush.msra.mxu0 0.0
  %3826 = vmatpush.msra.mxu0 0.0
  %3827 = vmatpush.msra.mxu0 0.0
  %3828 = vmatpush.msra.mxu0 0.0
  %3829 = vmatpush.msra.mxu0 %v3474
  %3830 = vmatpush.msra.mxu0 %v3472
  %3831 = vmatpush.msra.mxu0 %v3470
  %3832 = vmatpush.msra.mxu0 %v3468
  %3833 = vmatpush.msra.mxu0 %v3466
  %3834 = vmatpush.msra.mxu0 %v3464
  %3835 = vmatpush.msra.mxu0 %v3462
  %3836 = vmatpush.msra.mxu0 %v3460
  %3837 = vmatmul.f32.gmra.mxu0 %v3819
  %v3838 = vpop.f32.mrf.mxu0
  %v3839 = vadd.f32 0.0, %v3838
  %3840 = vdwg.mxu0
  %3841 = vmatpush.msra.mxu0 0.0
  %3842 = vmatpush.msra.mxu0 0.0
  %3843 = vmatpush.msra.mxu0 0.0
  %3844 = vmatpush.msra.mxu0 0.0
  %3845 = vmatpush.msra.mxu0 0.0
  %3846 = vmatpush.msra.mxu0 0.0
  %3847 = vmatpush.msra.mxu0 0.0
  %3848 = vmatpush.msra.mxu0 0.0
  %3849 = vmatpush.msra.mxu0 %v3475
  %3850 = vmatpush.msra.mxu0 %v3473
  %3851 = vmatpush.msra.mxu0 %v3471
  %3852 = vmatpush.msra.mxu0 %v3469
  %3853 = vmatpush.msra.mxu0 %v3467
  %3854 = vmatpush.msra.mxu0 %v3465
  %3855 = vmatpush.msra.mxu0 %v3463
  %3856 = vmatpush.msra.mxu0 %v3461
  %3857 = vmatmul.f32.gmra.mxu0 %v3819
  %v3858 = vpop.f32.mrf.mxu0
  %v3859 = vadd.f32 0.0, %v3858
  %3860 = vdwg.mxu0
  %v3861 = vmul.f32 %v3388, 0.18181819
  %v3862 = vperm.slane %v3861, 0
  %v3863 = vadd.f32 %v3862, %v3438
  %v3864 = vadd.f32 %v3863, %v3839
  %v3865 = vxor.u32 %v3864, 2147483648
  %v3866 = vmul.f32 %v3865, 1.442695
  %v3867 = vpow.pop %v3866
  %v3868 = vadd.f32 %v3867, 1.0
  %v3869 = vrcp.pop %v3868
  %v3870 = vmul.f32 %v3868, %v3869
  %v3871 = vsub.f32 1.0, %v3870
  %v3872 = vmul.f32 %v3869, %v3871
  %v3873 = vadd.f32 %v3869, %v3872
  %vm3874 = vweird.f32 %v3868
  %vm3875 = vweird.f32 %v3869
  %vm3876 = vmor %vm3874, %vm3875
  %v3877 = vsel %vm3876, %v3869, %v3873
  %v3878 = vand.u32 2147483647, %v3868
  %vm3879 = vcmp.eq.f32.partialorder %v3878, 8.507059e+37
  %v3880 = vand.u32 %v3868, 2147483648
  %v3881 = vor.u32 1.1754944e-38, %v3880
  %v3882 = vsel %vm3879, %v3881, %v3877
  %v3883 = vmul.f32 1.0, %v3882
  %v3884 = vadd.f32 %v3839, %v3546
  %3886 = vrot.lane.b32.xlu0 %v3884, 64
  %v3887 = vpop.permute.xlu0 %3886
  %v3889 = vmul.f32 %v3883, %v3887
  %3891 = vrot.lane.b32.xlu0 %v3889, 64
  %v3892 = vpop.permute.xlu0 %3891
  %v3894 = vadd.f32 %v3863, %v3892
  %v3895 = vtanh.pop %v3894
  %v3896 = vsub.f32 1.0, %v3883
  %3898 = vrot.lane.b32.xlu0 %v3895, 96
  %v3899 = vpop.permute.xlu0 %3898
  %v3901 = vmul.f32 %v3896, %v3899
  %3902 = vrot.lane.b32.xlu0 %v3817, 32
  %v3903 = vpop.permute.xlu0 %3902
  %v3905 = vmul.f32 %v3883, %v3903
  %v3906 = vadd.f32 %v3901, %v3905
  %v3907 = vmul.f32 %v3388, 0.8181818
  %v3908 = vmul.f32 %v3408, 0.8181818
  %v3909 = vperm.slane %v3907, 0
  %v3910 = vperm.slane %v3908, 0
  %v3911 = vadd.f32 %v3909, %v3438
  %v3912 = vadd.f32 %v3910, %v3458
  %v3913 = vadd.f32 %v3911, %v3839
  %v3914 = vxor.u32 %v3913, 2147483648
  %v3915 = vmul.f32 %v3914, 1.442695
  %v3916 = vpow.pop %v3915
  %v3917 = vadd.f32 %v3916, 1.0
  %v3918 = vrcp.pop %v3917
  %v3919 = vmul.f32 %v3917, %v3918
  %v3920 = vsub.f32 1.0, %v3919
  %v3921 = vmul.f32 %v3918, %v3920
  %v3922 = vadd.f32 %v3918, %v3921
  %vm3923 = vweird.f32 %v3917
  %vm3924 = vweird.f32 %v3918
  %vm3925 = vmor %vm3923, %vm3924
  %v3926 = vsel %vm3925, %v3918, %v3922
  %v3927 = vand.u32 2147483647, %v3917
  %vm3928 = vcmp.eq.f32.partialorder %v3927, 8.507059e+37
  %v3929 = vand.u32 %v3917, 2147483648
  %v3930 = vor.u32 1.1754944e-38, %v3929
  %v3931 = vsel %vm3928, %v3930, %v3926
  %v3932 = vmul.f32 1.0, %v3931
  %v3933 = vadd.f32 %v3912, %v3859
  %v3934 = vxor.u32 %v3933, 2147483648
  %v3935 = vmul.f32 %v3934, 1.442695
  %v3936 = vpow.pop %v3935
  %v3937 = vadd.f32 %v3936, 1.0
  %v3938 = vrcp.pop %v3937
  %v3939 = vmul.f32 %v3937, %v3938
  %v3940 = vsub.f32 1.0, %v3939
  %v3941 = vmul.f32 %v3938, %v3940
  %v3942 = vadd.f32 %v3938, %v3941
  %vm3943 = vweird.f32 %v3937
  %vm3944 = vweird.f32 %v3938
  %vm3945 = vmor %vm3943, %vm3944
  %v3946 = vsel %vm3945, %v3938, %v3942
  %v3947 = vand.u32 2147483647, %v3937
  %vm3948 = vcmp.eq.f32.partialorder %v3947, 8.507059e+37
  %v3949 = vand.u32 %v3937, 2147483648
  %v3950 = vor.u32 1.1754944e-38, %v3949
  %v3951 = vsel %vm3948, %v3950, %v3946
  %v3952 = vmul.f32 1.0, %v3951
  %v3953 = vadd.f32 %v3859, %v3476
  %3955 = vrot.lane.b32.xlu0 %v3953, 64
  %v3956 = vpop.permute.xlu0 %3955
  %v3958 = vmul.f32 %v3932, %v3956
  %3960 = vrot.lane.b32.xlu0 %v3958, 64
  %v3961 = vpop.permute.xlu0 %3960
  %v3963 = vadd.f32 %v3912, %v3961
  %v3964 = vtanh.pop %v3963
  %v3965 = vsub.f32 1.0, %v3952
  %3967 = vrot.lane.b32.xlu0 %v3964, 96
  %v3968 = vpop.permute.xlu0 %3967
  %v3970 = vmul.f32 %v3965, %v3968
  %3971 = vrot.lane.b32.xlu0 %v3817, 96
  %v3972 = vpop.permute.xlu0 %3971
  %v3974 = vmul.f32 %v3952, %v3972
  %v3975 = vadd.f32 %v3970, %v3974
  %3977 = vrot.lane.b32.xlu0 %v3906, 96
  %v3978 = vpop.permute.xlu0 %3977
  %3980 = vst.msk [vmem:[#allocation5 + $0x4] sm:$0x3] %vm293, %v3978
  %3982 = vrot.lane.b32.xlu0 %v3975, 32
  %v3983 = vpop.permute.xlu0 %3982
  %3985 = vst.msk [vmem:[#allocation5 + $0x12] sm:$0x3] %vm828, %v3983
  %v3986 = vsel %vm305, %v3978, %v3983
  %v3988 = vsel %vm134, %v3986, 0
  %3990 = vmatpush.msra.mxu0 0.0
  %3991 = vmatpush.msra.mxu0 0.0
  %3992 = vmatpush.msra.mxu0 0.0
  %3993 = vmatpush.msra.mxu0 0.0
  %3994 = vmatpush.msra.mxu0 0.0
  %3995 = vmatpush.msra.mxu0 0.0
  %3996 = vmatpush.msra.mxu0 0.0
  %3997 = vmatpush.msra.mxu0 0.0
  %3998 = vmatpush.msra.mxu0 %v3474
  %3999 = vmatpush.msra.mxu0 %v3472
  %4000 = vmatpush.msra.mxu0 %v3470
  %4001 = vmatpush.msra.mxu0 %v3468
  %4002 = vmatpush.msra.mxu0 %v3466
  %4003 = vmatpush.msra.mxu0 %v3464
  %4004 = vmatpush.msra.mxu0 %v3462
  %4005 = vmatpush.msra.mxu0 %v3460
  %4006 = vmatmul.f32.gmra.mxu0 %v3988
  %v4007 = vpop.f32.mrf.mxu0
  %v4008 = vadd.f32 0.0, %v4007
  %4009 = vdwg.mxu0
  %4010 = vmatpush.msra.mxu0 0.0
  %4011 = vmatpush.msra.mxu0 0.0
  %4012 = vmatpush.msra.mxu0 0.0
  %4013 = vmatpush.msra.mxu0 0.0
  %4014 = vmatpush.msra.mxu0 0.0
  %4015 = vmatpush.msra.mxu0 0.0
  %4016 = vmatpush.msra.mxu0 0.0
  %4017 = vmatpush.msra.mxu0 0.0
  %4018 = vmatpush.msra.mxu0 %v3475
  %4019 = vmatpush.msra.mxu0 %v3473
  %4020 = vmatpush.msra.mxu0 %v3471
  %4021 = vmatpush.msra.mxu0 %v3469
  %4022 = vmatpush.msra.mxu0 %v3467
  %4023 = vmatpush.msra.mxu0 %v3465
  %4024 = vmatpush.msra.mxu0 %v3463
  %4025 = vmatpush.msra.mxu0 %v3461
  %4026 = vmatmul.f32.gmra.mxu0 %v3988
  %v4027 = vpop.f32.mrf.mxu0
  %v4028 = vadd.f32 0.0, %v4027
  %4029 = vdwg.mxu0
  %v4030 = vmul.f32 %v3388, 0.27272728
  %v4031 = vperm.slane %v4030, 0
  %v4032 = vadd.f32 %v4031, %v3438
  %v4033 = vadd.f32 %v4032, %v4008
  %v4034 = vxor.u32 %v4033, 2147483648
  %v4035 = vmul.f32 %v4034, 1.442695
  %v4036 = vpow.pop %v4035
  %v4037 = vadd.f32 %v4036, 1.0
  %v4038 = vrcp.pop %v4037
  %v4039 = vmul.f32 %v4037, %v4038
  %v4040 = vsub.f32 1.0, %v4039
  %v4041 = vmul.f32 %v4038, %v4040
  %v4042 = vadd.f32 %v4038, %v4041
  %vm4043 = vweird.f32 %v4037
  %vm4044 = vweird.f32 %v4038
  %vm4045 = vmor %vm4043, %vm4044
  %v4046 = vsel %vm4045, %v4038, %v4042
  %v4047 = vand.u32 2147483647, %v4037
  %vm4048 = vcmp.eq.f32.partialorder %v4047, 8.507059e+37
  %v4049 = vand.u32 %v4037, 2147483648
  %v4050 = vor.u32 1.1754944e-38, %v4049
  %v4051 = vsel %vm4048, %v4050, %v4046
  %v4052 = vmul.f32 1.0, %v4051
  %v4053 = vadd.f32 %v4008, %v3546
  %4055 = vrot.lane.b32.xlu0 %v4053, 64
  %v4056 = vpop.permute.xlu0 %4055
  %v4058 = vmul.f32 %v4052, %v4056
  %4060 = vrot.lane.b32.xlu0 %v4058, 64
  %v4061 = vpop.permute.xlu0 %4060
  %v4063 = vadd.f32 %v4032, %v4061
  %v4064 = vtanh.pop %v4063
  %v4065 = vsub.f32 1.0, %v4052
  %4067 = vrot.lane.b32.xlu0 %v4064, 96
  %v4068 = vpop.permute.xlu0 %4067
  %v4070 = vmul.f32 %v4065, %v4068
  %4071 = vrot.lane.b32.xlu0 %v3986, 32
  %v4072 = vpop.permute.xlu0 %4071
  %v4074 = vmul.f32 %v4052, %v4072
  %v4075 = vadd.f32 %v4070, %v4074
  %v4076 = vmul.f32 %v3388, 0.72727275
  %v4077 = vmul.f32 %v3408, 0.72727275
  %v4078 = vperm.slane %v4076, 0
  %v4079 = vperm.slane %v4077, 0
  %v4080 = vadd.f32 %v4078, %v3438
  %v4081 = vadd.f32 %v4079, %v3458
  %v4082 = vadd.f32 %v4080, %v4008
  %v4083 = vxor.u32 %v4082, 2147483648
  %v4084 = vmul.f32 %v4083, 1.442695
  %v4085 = vpow.pop %v4084
  %v4086 = vadd.f32 %v4085, 1.0
  %v4087 = vrcp.pop %v4086
  %v4088 = vmul.f32 %v4086, %v4087
  %v4089 = vsub.f32 1.0, %v4088
  %v4090 = vmul.f32 %v4087, %v4089
  %v4091 = vadd.f32 %v4087, %v4090
  %vm4092 = vweird.f32 %v4086
  %vm4093 = vweird.f32 %v4087
  %vm4094 = vmor %vm4092, %vm4093
  %v4095 = vsel %vm4094, %v4087, %v4091
  %v4096 = vand.u32 2147483647, %v4086
  %vm4097 = vcmp.eq.f32.partialorder %v4096, 8.507059e+37
  %v4098 = vand.u32 %v4086, 2147483648
  %v4099 = vor.u32 1.1754944e-38, %v4098
  %v4100 = vsel %vm4097, %v4099, %v4095
  %v4101 = vmul.f32 1.0, %v4100
  %v4102 = vadd.f32 %v4081, %v4028
  %v4103 = vxor.u32 %v4102, 2147483648
  %v4104 = vmul.f32 %v4103, 1.442695
  %v4105 = vpow.pop %v4104
  %v4106 = vadd.f32 %v4105, 1.0
  %v4107 = vrcp.pop %v4106
  %v4108 = vmul.f32 %v4106, %v4107
  %v4109 = vsub.f32 1.0, %v4108
  %v4110 = vmul.f32 %v4107, %v4109
  %v4111 = vadd.f32 %v4107, %v4110
  %vm4112 = vweird.f32 %v4106
  %vm4113 = vweird.f32 %v4107
  %vm4114 = vmor %vm4112, %vm4113
  %v4115 = vsel %vm4114, %v4107, %v4111
  %v4116 = vand.u32 2147483647, %v4106
  %vm4117 = vcmp.eq.f32.partialorder %v4116, 8.507059e+37
  %v4118 = vand.u32 %v4106, 2147483648
  %v4119 = vor.u32 1.1754944e-38, %v4118
  %v4120 = vsel %vm4117, %v4119, %v4115
  %v4121 = vmul.f32 1.0, %v4120
  %v4122 = vadd.f32 %v4028, %v3476
  %4124 = vrot.lane.b32.xlu0 %v4122, 64
  %v4125 = vpop.permute.xlu0 %4124
  %v4127 = vmul.f32 %v4101, %v4125
  %4129 = vrot.lane.b32.xlu0 %v4127, 64
  %v4130 = vpop.permute.xlu0 %4129
  %v4132 = vadd.f32 %v4081, %v4130
  %v4133 = vtanh.pop %v4132
  %v4134 = vsub.f32 1.0, %v4121
  %4136 = vrot.lane.b32.xlu0 %v4133, 96
  %v4137 = vpop.permute.xlu0 %4136
  %v4139 = vmul.f32 %v4134, %v4137
  %4140 = vrot.lane.b32.xlu0 %v3986, 96
  %v4141 = vpop.permute.xlu0 %4140
  %v4143 = vmul.f32 %v4121, %v4141
  %v4144 = vadd.f32 %v4139, %v4143
  %4146 = vrot.lane.b32.xlu0 %v4075, 96
  %v4147 = vpop.permute.xlu0 %4146
  %4149 = vst.msk [vmem:[#allocation5 + $0x6] sm:$0x3] %vm293, %v4147
  %4151 = vrot.lane.b32.xlu0 %v4144, 32
  %v4152 = vpop.permute.xlu0 %4151
  %4154 = vst.msk [vmem:[#allocation5 + $0x10] sm:$0x3] %vm828, %v4152
  %v4155 = vsel %vm305, %v4147, %v4152
  %v4157 = vsel %vm134, %v4155, 0
  %4159 = vmatpush.msra.mxu0 0.0
  %4160 = vmatpush.msra.mxu0 0.0
  %4161 = vmatpush.msra.mxu0 0.0
  %4162 = vmatpush.msra.mxu0 0.0
  %4163 = vmatpush.msra.mxu0 0.0
  %4164 = vmatpush.msra.mxu0 0.0
  %4165 = vmatpush.msra.mxu0 0.0
  %4166 = vmatpush.msra.mxu0 0.0
  %4167 = vmatpush.msra.mxu0 %v3474
  %4168 = vmatpush.msra.mxu0 %v3472
  %4169 = vmatpush.msra.mxu0 %v3470
  %4170 = vmatpush.msra.mxu0 %v3468
  %4171 = vmatpush.msra.mxu0 %v3466
  %4172 = vmatpush.msra.mxu0 %v3464
  %4173 = vmatpush.msra.mxu0 %v3462
  %4174 = vmatpush.msra.mxu0 %v3460
  %4175 = vmatmul.f32.gmra.mxu0 %v4157
  %v4176 = vpop.f32.mrf.mxu0
  %v4177 = vadd.f32 0.0, %v4176
  %4178 = vdwg.mxu0
  %4179 = vmatpush.msra.mxu0 0.0
  %4180 = vmatpush.msra.mxu0 0.0
  %4181 = vmatpush.msra.mxu0 0.0
  %4182 = vmatpush.msra.mxu0 0.0
  %4183 = vmatpush.msra.mxu0 0.0
  %4184 = vmatpush.msra.mxu0 0.0
  %4185 = vmatpush.msra.mxu0 0.0
  %4186 = vmatpush.msra.mxu0 0.0
  %4187 = vmatpush.msra.mxu0 %v3475
  %4188 = vmatpush.msra.mxu0 %v3473
  %4189 = vmatpush.msra.mxu0 %v3471
  %4190 = vmatpush.msra.mxu0 %v3469
  %4191 = vmatpush.msra.mxu0 %v3467
  %4192 = vmatpush.msra.mxu0 %v3465
  %4193 = vmatpush.msra.mxu0 %v3463
  %4194 = vmatpush.msra.mxu0 %v3461
  %4195 = vmatmul.f32.gmra.mxu0 %v4157
  %v4196 = vpop.f32.mrf.mxu0
  %v4197 = vadd.f32 0.0, %v4196
  %4198 = vdwg.mxu0
  %v4199 = vmul.f32 %v3388, 0.36363637
  %v4200 = vperm.slane %v4199, 0
  %v4201 = vadd.f32 %v4200, %v3438
  %v4202 = vadd.f32 %v4201, %v4177
  %v4203 = vxor.u32 %v4202, 2147483648
  %v4204 = vmul.f32 %v4203, 1.442695
  %v4205 = vpow.pop %v4204
  %v4206 = vadd.f32 %v4205, 1.0
  %v4207 = vrcp.pop %v4206
  %v4208 = vmul.f32 %v4206, %v4207
  %v4209 = vsub.f32 1.0, %v4208
  %v4210 = vmul.f32 %v4207, %v4209
  %v4211 = vadd.f32 %v4207, %v4210
  %vm4212 = vweird.f32 %v4206
  %vm4213 = vweird.f32 %v4207
  %vm4214 = vmor %vm4212, %vm4213
  %v4215 = vsel %vm4214, %v4207, %v4211
  %v4216 = vand.u32 2147483647, %v4206
  %vm4217 = vcmp.eq.f32.partialorder %v4216, 8.507059e+37
  %v4218 = vand.u32 %v4206, 2147483648
  %v4219 = vor.u32 1.1754944e-38, %v4218
  %v4220 = vsel %vm4217, %v4219, %v4215
  %v4221 = vmul.f32 1.0, %v4220
  %v4222 = vadd.f32 %v4177, %v3546
  %4224 = vrot.lane.b32.xlu0 %v4222, 64
  %v4225 = vpop.permute.xlu0 %4224
  %v4227 = vmul.f32 %v4221, %v4225
  %4229 = vrot.lane.b32.xlu0 %v4227, 64
  %v4230 = vpop.permute.xlu0 %4229
  %v4232 = vadd.f32 %v4201, %v4230
  %v4233 = vtanh.pop %v4232
  %v4234 = vsub.f32 1.0, %v4221
  %4236 = vrot.lane.b32.xlu0 %v4233, 96
  %v4237 = vpop.permute.xlu0 %4236
  %v4239 = vmul.f32 %v4234, %v4237
  %4240 = vrot.lane.b32.xlu0 %v4155, 32
  %v4241 = vpop.permute.xlu0 %4240
  %v4243 = vmul.f32 %v4221, %v4241
  %v4244 = vadd.f32 %v4239, %v4243
  %v4245 = vmul.f32 %v3388, 0.6363636
  %v4246 = vmul.f32 %v3408, 0.6363636
  %v4247 = vperm.slane %v4245, 0
  %v4248 = vperm.slane %v4246, 0
  %v4249 = vadd.f32 %v4247, %v3438
  %v4250 = vadd.f32 %v4248, %v3458
  %v4251 = vadd.f32 %v4249, %v4177
  %v4252 = vxor.u32 %v4251, 2147483648
  %v4253 = vmul.f32 %v4252, 1.442695
  %v4254 = vpow.pop %v4253
  %v4255 = vadd.f32 %v4254, 1.0
  %v4256 = vrcp.pop %v4255
  %v4257 = vmul.f32 %v4255, %v4256
  %v4258 = vsub.f32 1.0, %v4257
  %v4259 = vmul.f32 %v4256, %v4258
  %v4260 = vadd.f32 %v4256, %v4259
  %vm4261 = vweird.f32 %v4255
  %vm4262 = vweird.f32 %v4256
  %vm4263 = vmor %vm4261, %vm4262
  %v4264 = vsel %vm4263, %v4256, %v4260
  %v4265 = vand.u32 2147483647, %v4255
  %vm4266 = vcmp.eq.f32.partialorder %v4265, 8.507059e+37
  %v4267 = vand.u32 %v4255, 2147483648
  %v4268 = vor.u32 1.1754944e-38, %v4267
  %v4269 = vsel %vm4266, %v4268, %v4264
  %v4270 = vmul.f32 1.0, %v4269
  %v4271 = vadd.f32 %v4250, %v4197
  %v4272 = vxor.u32 %v4271, 2147483648
  %v4273 = vmul.f32 %v4272, 1.442695
  %v4274 = vpow.pop %v4273
  %v4275 = vadd.f32 %v4274, 1.0
  %v4276 = vrcp.pop %v4275
  %v4277 = vmul.f32 %v4275, %v4276
  %v4278 = vsub.f32 1.0, %v4277
  %v4279 = vmul.f32 %v4276, %v4278
  %v4280 = vadd.f32 %v4276, %v4279
  %vm4281 = vweird.f32 %v4275
  %vm4282 = vweird.f32 %v4276
  %vm4283 = vmor %vm4281, %vm4282
  %v4284 = vsel %vm4283, %v4276, %v4280
  %v4285 = vand.u32 2147483647, %v4275
  %vm4286 = vcmp.eq.f32.partialorder %v4285, 8.507059e+37
  %v4287 = vand.u32 %v4275, 2147483648
  %v4288 = vor.u32 1.1754944e-38, %v4287
  %v4289 = vsel %vm4286, %v4288, %v4284
  %v4290 = vmul.f32 1.0, %v4289
  %v4291 = vadd.f32 %v4197, %v3476
  %4293 = vrot.lane.b32.xlu0 %v4291, 64
  %v4294 = vpop.permute.xlu0 %4293
  %v4296 = vmul.f32 %v4270, %v4294
  %4298 = vrot.lane.b32.xlu0 %v4296, 64
  %v4299 = vpop.permute.xlu0 %4298
  %v4301 = vadd.f32 %v4250, %v4299
  %v4302 = vtanh.pop %v4301
  %v4303 = vsub.f32 1.0, %v4290
  %4305 = vrot.lane.b32.xlu0 %v4302, 96
  %v4306 = vpop.permute.xlu0 %4305
  %v4308 = vmul.f32 %v4303, %v4306
  %4309 = vrot.lane.b32.xlu0 %v4155, 96
  %v4310 = vpop.permute.xlu0 %4309
  %v4312 = vmul.f32 %v4290, %v4310
  %v4313 = vadd.f32 %v4308, %v4312
  %4315 = vrot.lane.b32.xlu0 %v4244, 96
  %v4316 = vpop.permute.xlu0 %4315
  %4318 = vst.msk [vmem:[#allocation5 + $0x8] sm:$0x3] %vm293, %v4316
  %4320 = vrot.lane.b32.xlu0 %v4313, 32
  %v4321 = vpop.permute.xlu0 %4320
  %4323 = vst.msk [vmem:[#allocation5 + $0xe] sm:$0x3] %vm828, %v4321
  %v4324 = vsel %vm305, %v4316, %v4321
  %v4326 = vsel %vm134, %v4324, 0
  %4328 = vmatpush.msra.mxu0 0.0
  %4329 = vmatpush.msra.mxu0 0.0
  %4330 = vmatpush.msra.mxu0 0.0
  %4331 = vmatpush.msra.mxu0 0.0
  %4332 = vmatpush.msra.mxu0 0.0
  %4333 = vmatpush.msra.mxu0 0.0
  %4334 = vmatpush.msra.mxu0 0.0
  %4335 = vmatpush.msra.mxu0 0.0
  %4336 = vmatpush.msra.mxu0 %v3474
  %4337 = vmatpush.msra.mxu0 %v3472
  %4338 = vmatpush.msra.mxu0 %v3470
  %4339 = vmatpush.msra.mxu0 %v3468
  %4340 = vmatpush.msra.mxu0 %v3466
  %4341 = vmatpush.msra.mxu0 %v3464
  %4342 = vmatpush.msra.mxu0 %v3462
  %4343 = vmatpush.msra.mxu0 %v3460
  %4344 = vmatmul.f32.gmra.mxu0 %v4326
  %v4345 = vpop.f32.mrf.mxu0
  %v4346 = vadd.f32 0.0, %v4345
  %4347 = vdwg.mxu0
  %4348 = vmatpush.msra.mxu0 0.0
  %4349 = vmatpush.msra.mxu0 0.0
  %4350 = vmatpush.msra.mxu0 0.0
  %4351 = vmatpush.msra.mxu0 0.0
  %4352 = vmatpush.msra.mxu0 0.0
  %4353 = vmatpush.msra.mxu0 0.0
  %4354 = vmatpush.msra.mxu0 0.0
  %4355 = vmatpush.msra.mxu0 0.0
  %4356 = vmatpush.msra.mxu0 %v3475
  %4357 = vmatpush.msra.mxu0 %v3473
  %4358 = vmatpush.msra.mxu0 %v3471
  %4359 = vmatpush.msra.mxu0 %v3469
  %4360 = vmatpush.msra.mxu0 %v3467
  %4361 = vmatpush.msra.mxu0 %v3465
  %4362 = vmatpush.msra.mxu0 %v3463
  %4363 = vmatpush.msra.mxu0 %v3461
  %4364 = vmatmul.f32.gmra.mxu0 %v4326
  %v4365 = vpop.f32.mrf.mxu0
  %v4366 = vadd.f32 0.0, %v4365
  %4367 = vdwg.mxu0
  %v4368 = vmul.f32 %v3388, 0.45454547
  %v4369 = vperm.slane %v4368, 0
  %v4370 = vadd.f32 %v4369, %v3438
  %v4371 = vadd.f32 %v4370, %v4346
  %v4372 = vxor.u32 %v4371, 2147483648
  %v4373 = vmul.f32 %v4372, 1.442695
  %v4374 = vpow.pop %v4373
  %v4375 = vadd.f32 %v4374, 1.0
  %v4376 = vrcp.pop %v4375
  %v4377 = vmul.f32 %v4375, %v4376
  %v4378 = vsub.f32 1.0, %v4377
  %v4379 = vmul.f32 %v4376, %v4378
  %v4380 = vadd.f32 %v4376, %v4379
  %vm4381 = vweird.f32 %v4375
  %vm4382 = vweird.f32 %v4376
  %vm4383 = vmor %vm4381, %vm4382
  %v4384 = vsel %vm4383, %v4376, %v4380
  %v4385 = vand.u32 2147483647, %v4375
  %vm4386 = vcmp.eq.f32.partialorder %v4385, 8.507059e+37
  %v4387 = vand.u32 %v4375, 2147483648
  %v4388 = vor.u32 1.1754944e-38, %v4387
  %v4389 = vsel %vm4386, %v4388, %v4384
  %v4390 = vmul.f32 1.0, %v4389
  %v4391 = vadd.f32 %v4346, %v3546
  %4393 = vrot.lane.b32.xlu0 %v4391, 64
  %v4394 = vpop.permute.xlu0 %4393
  %v4396 = vmul.f32 %v4390, %v4394
  %4398 = vrot.lane.b32.xlu0 %v4396, 64
  %v4399 = vpop.permute.xlu0 %4398
  %v4401 = vadd.f32 %v4370, %v4399
  %v4402 = vtanh.pop %v4401
  %v4403 = vsub.f32 1.0, %v4390
  %4405 = vrot.lane.b32.xlu0 %v4402, 96
  %v4406 = vpop.permute.xlu0 %4405
  %v4408 = vmul.f32 %v4403, %v4406
  %4409 = vrot.lane.b32.xlu0 %v4324, 32
  %v4410 = vpop.permute.xlu0 %4409
  %v4412 = vmul.f32 %v4390, %v4410
  %v4413 = vadd.f32 %v4408, %v4412
  %v4414 = vmul.f32 %v3388, 0.54545456
  %v4415 = vmul.f32 %v3408, 0.54545456
  %v4416 = vperm.slane %v4414, 0
  %v4417 = vperm.slane %v4415, 0
  %v4418 = vadd.f32 %v4416, %v3438
  %v4419 = vadd.f32 %v4417, %v3458
  %v4420 = vadd.f32 %v4418, %v4346
  %v4421 = vxor.u32 %v4420, 2147483648
  %v4422 = vmul.f32 %v4421, 1.442695
  %v4423 = vpow.pop %v4422
  %v4424 = vadd.f32 %v4423, 1.0
  %v4425 = vrcp.pop %v4424
  %v4426 = vmul.f32 %v4424, %v4425
  %v4427 = vsub.f32 1.0, %v4426
  %v4428 = vmul.f32 %v4425, %v4427
  %v4429 = vadd.f32 %v4425, %v4428
  %vm4430 = vweird.f32 %v4424
  %vm4431 = vweird.f32 %v4425
  %vm4432 = vmor %vm4430, %vm4431
  %v4433 = vsel %vm4432, %v4425, %v4429
  %v4434 = vand.u32 2147483647, %v4424
  %vm4435 = vcmp.eq.f32.partialorder %v4434, 8.507059e+37
  %v4436 = vand.u32 %v4424, 2147483648
  %v4437 = vor.u32 1.1754944e-38, %v4436
  %v4438 = vsel %vm4435, %v4437, %v4433
  %v4439 = vmul.f32 1.0, %v4438
  %v4440 = vadd.f32 %v4419, %v4366
  %v4441 = vxor.u32 %v4440, 2147483648
  %v4442 = vmul.f32 %v4441, 1.442695
  %v4443 = vpow.pop %v4442
  %v4444 = vadd.f32 %v4443, 1.0
  %v4445 = vrcp.pop %v4444
  %v4446 = vmul.f32 %v4444, %v4445
  %v4447 = vsub.f32 1.0, %v4446
  %v4448 = vmul.f32 %v4445, %v4447
  %v4449 = vadd.f32 %v4445, %v4448
  %vm4450 = vweird.f32 %v4444
  %vm4451 = vweird.f32 %v4445
  %vm4452 = vmor %vm4450, %vm4451
  %v4453 = vsel %vm4452, %v4445, %v4449
  %v4454 = vand.u32 2147483647, %v4444
  %vm4455 = vcmp.eq.f32.partialorder %v4454, 8.507059e+37
  %v4456 = vand.u32 %v4444, 2147483648
  %v4457 = vor.u32 1.1754944e-38, %v4456
  %v4458 = vsel %vm4455, %v4457, %v4453
  %v4459 = vmul.f32 1.0, %v4458
  %v4460 = vadd.f32 %v4366, %v3476
  %4462 = vrot.lane.b32.xlu0 %v4460, 64
  %v4463 = vpop.permute.xlu0 %4462
  %v4465 = vmul.f32 %v4439, %v4463
  %4467 = vrot.lane.b32.xlu0 %v4465, 64
  %v4468 = vpop.permute.xlu0 %4467
  %v4470 = vadd.f32 %v4419, %v4468
  %v4471 = vtanh.pop %v4470
  %v4472 = vsub.f32 1.0, %v4459
  %4474 = vrot.lane.b32.xlu0 %v4471, 96
  %v4475 = vpop.permute.xlu0 %4474
  %v4477 = vmul.f32 %v4472, %v4475
  %4478 = vrot.lane.b32.xlu0 %v4324, 96
  %v4479 = vpop.permute.xlu0 %4478
  %v4481 = vmul.f32 %v4459, %v4479
  %v4482 = vadd.f32 %v4477, %v4481
  %4484 = vrot.lane.b32.xlu0 %v4413, 96
  %v4485 = vpop.permute.xlu0 %4484
  %4487 = vst.msk [vmem:[#allocation5 + $0xa] sm:$0x3] %vm293, %v4485
  %4489 = vrot.lane.b32.xlu0 %v4482, 32
  %v4490 = vpop.permute.xlu0 %4489
  %4492 = vst.msk [vmem:[#allocation5 + $0xc] sm:$0x3] %vm828, %v4490
  %v4493 = vsel %vm305, %v4485, %v4490
  %v4495 = vsel %vm134, %v4493, 0
  %4497 = vmatpush.msra.mxu0 0.0
  %4498 = vmatpush.msra.mxu0 0.0
  %4499 = vmatpush.msra.mxu0 0.0
  %4500 = vmatpush.msra.mxu0 0.0
  %4501 = vmatpush.msra.mxu0 0.0
  %4502 = vmatpush.msra.mxu0 0.0
  %4503 = vmatpush.msra.mxu0 0.0
  %4504 = vmatpush.msra.mxu0 0.0
  %4505 = vmatpush.msra.mxu0 %v3474
  %4506 = vmatpush.msra.mxu0 %v3472
  %4507 = vmatpush.msra.mxu0 %v3470
  %4508 = vmatpush.msra.mxu0 %v3468
  %4509 = vmatpush.msra.mxu0 %v3466
  %4510 = vmatpush.msra.mxu0 %v3464
  %4511 = vmatpush.msra.mxu0 %v3462
  %4512 = vmatpush.msra.mxu0 %v3460
  %4513 = vmatmul.f32.gmra.mxu0 %v4495
  %v4514 = vpop.f32.mrf.mxu0
  %v4515 = vadd.f32 0.0, %v4514
  %4516 = vdwg.mxu0
  %4517 = vmatpush.msra.mxu0 0.0
  %4518 = vmatpush.msra.mxu0 0.0
  %4519 = vmatpush.msra.mxu0 0.0
  %4520 = vmatpush.msra.mxu0 0.0
  %4521 = vmatpush.msra.mxu0 0.0
  %4522 = vmatpush.msra.mxu0 0.0
  %4523 = vmatpush.msra.mxu0 0.0
  %4524 = vmatpush.msra.mxu0 0.0
  %4525 = vmatpush.msra.mxu0 %v3475
  %4526 = vmatpush.msra.mxu0 %v3473
  %4527 = vmatpush.msra.mxu0 %v3471
  %4528 = vmatpush.msra.mxu0 %v3469
  %4529 = vmatpush.msra.mxu0 %v3467
  %4530 = vmatpush.msra.mxu0 %v3465
  %4531 = vmatpush.msra.mxu0 %v3463
  %4532 = vmatpush.msra.mxu0 %v3461
  %4533 = vmatmul.f32.gmra.mxu0 %v4495
  %v4534 = vpop.f32.mrf.mxu0
  %v4535 = vadd.f32 0.0, %v4534
  %4536 = vdwg.mxu0
  %v4537 = vadd.f32 %v4418, %v4515
  %v4538 = vxor.u32 %v4537, 2147483648
  %v4539 = vmul.f32 %v4538, 1.442695
  %v4540 = vpow.pop %v4539
  %v4541 = vadd.f32 %v4540, 1.0
  %v4542 = vrcp.pop %v4541
  %v4543 = vmul.f32 %v4541, %v4542
  %v4544 = vsub.f32 1.0, %v4543
  %v4545 = vmul.f32 %v4542, %v4544
  %v4546 = vadd.f32 %v4542, %v4545
  %vm4547 = vweird.f32 %v4541
  %vm4548 = vweird.f32 %v4542
  %vm4549 = vmor %vm4547, %vm4548
  %v4550 = vsel %vm4549, %v4542, %v4546
  %v4551 = vand.u32 2147483647, %v4541
  %vm4552 = vcmp.eq.f32.partialorder %v4551, 8.507059e+37
  %v4553 = vand.u32 %v4541, 2147483648
  %v4554 = vor.u32 1.1754944e-38, %v4553
  %v4555 = vsel %vm4552, %v4554, %v4550
  %v4556 = vmul.f32 1.0, %v4555
  %v4557 = vadd.f32 %v4515, %v3546
  %4559 = vrot.lane.b32.xlu0 %v4557, 64
  %v4560 = vpop.permute.xlu0 %4559
  %v4562 = vmul.f32 %v4556, %v4560
  %4564 = vrot.lane.b32.xlu0 %v4562, 64
  %v4565 = vpop.permute.xlu0 %4564
  %v4567 = vadd.f32 %v4418, %v4565
  %v4568 = vtanh.pop %v4567
  %v4569 = vsub.f32 1.0, %v4556
  %4571 = vrot.lane.b32.xlu0 %v4568, 96
  %v4572 = vpop.permute.xlu0 %4571
  %v4574 = vmul.f32 %v4569, %v4572
  %4575 = vrot.lane.b32.xlu0 %v4493, 32
  %v4576 = vpop.permute.xlu0 %4575
  %v4578 = vmul.f32 %v4556, %v4576
  %v4579 = vadd.f32 %v4574, %v4578
  %v4580 = vmul.f32 %v3408, 0.45454547
  %v4581 = vperm.slane %v4580, 0
  %v4582 = vadd.f32 %v4581, %v3458
  %v4583 = vadd.f32 %v4370, %v4515
  %v4584 = vxor.u32 %v4583, 2147483648
  %v4585 = vmul.f32 %v4584, 1.442695
  %v4586 = vpow.pop %v4585
  %v4587 = vadd.f32 %v4586, 1.0
  %v4588 = vrcp.pop %v4587
  %v4589 = vmul.f32 %v4587, %v4588
  %v4590 = vsub.f32 1.0, %v4589
  %v4591 = vmul.f32 %v4588, %v4590
  %v4592 = vadd.f32 %v4588, %v4591
  %vm4593 = vweird.f32 %v4587
  %vm4594 = vweird.f32 %v4588
  %vm4595 = vmor %vm4593, %vm4594
  %v4596 = vsel %vm4595, %v4588, %v4592
  %v4597 = vand.u32 2147483647, %v4587
  %vm4598 = vcmp.eq.f32.partialorder %v4597, 8.507059e+37
  %v4599 = vand.u32 %v4587, 2147483648
  %v4600 = vor.u32 1.1754944e-38, %v4599
  %v4601 = vsel %vm4598, %v4600, %v4596
  %v4602 = vmul.f32 1.0, %v4601
  %v4603 = vadd.f32 %v4582, %v4535
  %v4604 = vxor.u32 %v4603, 2147483648
  %v4605 = vmul.f32 %v4604, 1.442695
  %v4606 = vpow.pop %v4605
  %v4607 = vadd.f32 %v4606, 1.0
  %v4608 = vrcp.pop %v4607
  %v4609 = vmul.f32 %v4607, %v4608
  %v4610 = vsub.f32 1.0, %v4609
  %v4611 = vmul.f32 %v4608, %v4610
  %v4612 = vadd.f32 %v4608, %v4611
  %vm4613 = vweird.f32 %v4607
  %vm4614 = vweird.f32 %v4608
  %vm4615 = vmor %vm4613, %vm4614
  %v4616 = vsel %vm4615, %v4608, %v4612
  %v4617 = vand.u32 2147483647, %v4607
  %vm4618 = vcmp.eq.f32.partialorder %v4617, 8.507059e+37
  %v4619 = vand.u32 %v4607, 2147483648
  %v4620 = vor.u32 1.1754944e-38, %v4619
  %v4621 = vsel %vm4618, %v4620, %v4616
  %v4622 = vmul.f32 1.0, %v4621
  %v4623 = vadd.f32 %v4535, %v3476
  %4625 = vrot.lane.b32.xlu0 %v4623, 64
  %v4626 = vpop.permute.xlu0 %4625
  %v4628 = vmul.f32 %v4602, %v4626
  %4630 = vrot.lane.b32.xlu0 %v4628, 64
  %v4631 = vpop.permute.xlu0 %4630
  %v4633 = vadd.f32 %v4582, %v4631
  %v4634 = vtanh.pop %v4633
  %v4635 = vsub.f32 1.0, %v4622
  %4637 = vrot.lane.b32.xlu0 %v4634, 96
  %v4638 = vpop.permute.xlu0 %4637
  %v4640 = vmul.f32 %v4635, %v4638
  %4641 = vrot.lane.b32.xlu0 %v4493, 96
  %v4642 = vpop.permute.xlu0 %4641
  %v4644 = vmul.f32 %v4622, %v4642
  %v4645 = vadd.f32 %v4640, %v4644
  %4647 = vrot.lane.b32.xlu0 %v4579, 96
  %v4648 = vpop.permute.xlu0 %4647
  %4650 = vst.msk [vmem:[#allocation5 + $0xc] sm:$0x3] %vm293, %v4648
  %4652 = vrot.lane.b32.xlu0 %v4645, 32
  %v4653 = vpop.permute.xlu0 %4652
  %4655 = vst.msk [vmem:[#allocation5 + $0xa] sm:$0x3] %vm828, %v4653
  %v4656 = vsel %vm305, %v4648, %v4653
  %v4658 = vsel %vm134, %v4656, 0
  %4660 = vmatpush.msra.mxu0 0.0
  %4661 = vmatpush.msra.mxu0 0.0
  %4662 = vmatpush.msra.mxu0 0.0
  %4663 = vmatpush.msra.mxu0 0.0
  %4664 = vmatpush.msra.mxu0 0.0
  %4665 = vmatpush.msra.mxu0 0.0
  %4666 = vmatpush.msra.mxu0 0.0
  %4667 = vmatpush.msra.mxu0 0.0
  %4668 = vmatpush.msra.mxu0 %v3474
  %4669 = vmatpush.msra.mxu0 %v3472
  %4670 = vmatpush.msra.mxu0 %v3470
  %4671 = vmatpush.msra.mxu0 %v3468
  %4672 = vmatpush.msra.mxu0 %v3466
  %4673 = vmatpush.msra.mxu0 %v3464
  %4674 = vmatpush.msra.mxu0 %v3462
  %4675 = vmatpush.msra.mxu0 %v3460
  %4676 = vmatmul.f32.gmra.mxu0 %v4658
  %v4677 = vpop.f32.mrf.mxu0
  %v4678 = vadd.f32 0.0, %v4677
  %4679 = vdwg.mxu0
  %4680 = vmatpush.msra.mxu0 0.0
  %4681 = vmatpush.msra.mxu0 0.0
  %4682 = vmatpush.msra.mxu0 0.0
  %4683 = vmatpush.msra.mxu0 0.0
  %4684 = vmatpush.msra.mxu0 0.0
  %4685 = vmatpush.msra.mxu0 0.0
  %4686 = vmatpush.msra.mxu0 0.0
  %4687 = vmatpush.msra.mxu0 0.0
  %4688 = vmatpush.msra.mxu0 %v3475
  %4689 = vmatpush.msra.mxu0 %v3473
  %4690 = vmatpush.msra.mxu0 %v3471
  %4691 = vmatpush.msra.mxu0 %v3469
  %4692 = vmatpush.msra.mxu0 %v3467
  %4693 = vmatpush.msra.mxu0 %v3465
  %4694 = vmatpush.msra.mxu0 %v3463
  %4695 = vmatpush.msra.mxu0 %v3461
  %4696 = vmatmul.f32.gmra.mxu0 %v4658
  %v4697 = vpop.f32.mrf.mxu0
  %v4698 = vadd.f32 0.0, %v4697
  %4699 = vdwg.mxu0
  %v4700 = vadd.f32 %v4249, %v4678
  %v4701 = vxor.u32 %v4700, 2147483648
  %v4702 = vmul.f32 %v4701, 1.442695
  %v4703 = vpow.pop %v4702
  %v4704 = vadd.f32 %v4703, 1.0
  %v4705 = vrcp.pop %v4704
  %v4706 = vmul.f32 %v4704, %v4705
  %v4707 = vsub.f32 1.0, %v4706
  %v4708 = vmul.f32 %v4705, %v4707
  %v4709 = vadd.f32 %v4705, %v4708
  %vm4710 = vweird.f32 %v4704
  %vm4711 = vweird.f32 %v4705
  %vm4712 = vmor %vm4710, %vm4711
  %v4713 = vsel %vm4712, %v4705, %v4709
  %v4714 = vand.u32 2147483647, %v4704
  %vm4715 = vcmp.eq.f32.partialorder %v4714, 8.507059e+37
  %v4716 = vand.u32 %v4704, 2147483648
  %v4717 = vor.u32 1.1754944e-38, %v4716
  %v4718 = vsel %vm4715, %v4717, %v4713
  %v4719 = vmul.f32 1.0, %v4718
  %v4720 = vadd.f32 %v4678, %v3546
  %4722 = vrot.lane.b32.xlu0 %v4720, 64
  %v4723 = vpop.permute.xlu0 %4722
  %v4725 = vmul.f32 %v4719, %v4723
  %4727 = vrot.lane.b32.xlu0 %v4725, 64
  %v4728 = vpop.permute.xlu0 %4727
  %v4730 = vadd.f32 %v4249, %v4728
  %v4731 = vtanh.pop %v4730
  %v4732 = vsub.f32 1.0, %v4719
  %4734 = vrot.lane.b32.xlu0 %v4731, 96
  %v4735 = vpop.permute.xlu0 %4734
  %v4737 = vmul.f32 %v4732, %v4735
  %4738 = vrot.lane.b32.xlu0 %v4656, 32
  %v4739 = vpop.permute.xlu0 %4738
  %v4741 = vmul.f32 %v4719, %v4739
  %v4742 = vadd.f32 %v4737, %v4741
  %v4743 = vmul.f32 %v3408, 0.36363637
  %v4744 = vperm.slane %v4743, 0
  %v4745 = vadd.f32 %v4744, %v3458
  %v4746 = vadd.f32 %v4201, %v4678
  %v4747 = vxor.u32 %v4746, 2147483648
  %v4748 = vmul.f32 %v4747, 1.442695
  %v4749 = vpow.pop %v4748
  %v4750 = vadd.f32 %v4749, 1.0
  %v4751 = vrcp.pop %v4750
  %v4752 = vmul.f32 %v4750, %v4751
  %v4753 = vsub.f32 1.0, %v4752
  %v4754 = vmul.f32 %v4751, %v4753
  %v4755 = vadd.f32 %v4751, %v4754
  %vm4756 = vweird.f32 %v4750
  %vm4757 = vweird.f32 %v4751
  %vm4758 = vmor %vm4756, %vm4757
  %v4759 = vsel %vm4758, %v4751, %v4755
  %v4760 = vand.u32 2147483647, %v4750
  %vm4761 = vcmp.eq.f32.partialorder %v4760, 8.507059e+37
  %v4762 = vand.u32 %v4750, 2147483648
  %v4763 = vor.u32 1.1754944e-38, %v4762
  %v4764 = vsel %vm4761, %v4763, %v4759
  %v4765 = vmul.f32 1.0, %v4764
  %v4766 = vadd.f32 %v4745, %v4698
  %v4767 = vxor.u32 %v4766, 2147483648
  %v4768 = vmul.f32 %v4767, 1.442695
  %v4769 = vpow.pop %v4768
  %v4770 = vadd.f32 %v4769, 1.0
  %v4771 = vrcp.pop %v4770
  %v4772 = vmul.f32 %v4770, %v4771
  %v4773 = vsub.f32 1.0, %v4772
  %v4774 = vmul.f32 %v4771, %v4773
  %v4775 = vadd.f32 %v4771, %v4774
  %vm4776 = vweird.f32 %v4770
  %vm4777 = vweird.f32 %v4771
  %vm4778 = vmor %vm4776, %vm4777
  %v4779 = vsel %vm4778, %v4771, %v4775
  %v4780 = vand.u32 2147483647, %v4770
  %vm4781 = vcmp.eq.f32.partialorder %v4780, 8.507059e+37
  %v4782 = vand.u32 %v4770, 2147483648
  %v4783 = vor.u32 1.1754944e-38, %v4782
  %v4784 = vsel %vm4781, %v4783, %v4779
  %v4785 = vmul.f32 1.0, %v4784
  %v4786 = vadd.f32 %v4698, %v3476
  %4788 = vrot.lane.b32.xlu0 %v4786, 64
  %v4789 = vpop.permute.xlu0 %4788
  %v4791 = vmul.f32 %v4765, %v4789
  %4793 = vrot.lane.b32.xlu0 %v4791, 64
  %v4794 = vpop.permute.xlu0 %4793
  %v4796 = vadd.f32 %v4745, %v4794
  %v4797 = vtanh.pop %v4796
  %v4798 = vsub.f32 1.0, %v4785
  %4800 = vrot.lane.b32.xlu0 %v4797, 96
  %v4801 = vpop.permute.xlu0 %4800
  %v4803 = vmul.f32 %v4798, %v4801
  %4804 = vrot.lane.b32.xlu0 %v4656, 96
  %v4805 = vpop.permute.xlu0 %4804
  %v4807 = vmul.f32 %v4785, %v4805
  %v4808 = vadd.f32 %v4803, %v4807
  %4810 = vrot.lane.b32.xlu0 %v4742, 96
  %v4811 = vpop.permute.xlu0 %4810
  %4813 = vst.msk [vmem:[#allocation5 + $0xe] sm:$0x3] %vm293, %v4811
  %4815 = vrot.lane.b32.xlu0 %v4808, 32
  %v4816 = vpop.permute.xlu0 %4815
  %4818 = vst.msk [vmem:[#allocation5 + $0x8] sm:$0x3] %vm828, %v4816
  %v4819 = vsel %vm305, %v4811, %v4816
  %v4821 = vsel %vm134, %v4819, 0
  %4823 = vmatpush.msra.mxu0 0.0
  %4824 = vmatpush.msra.mxu0 0.0
  %4825 = vmatpush.msra.mxu0 0.0
  %4826 = vmatpush.msra.mxu0 0.0
  %4827 = vmatpush.msra.mxu0 0.0
  %4828 = vmatpush.msra.mxu0 0.0
  %4829 = vmatpush.msra.mxu0 0.0
  %4830 = vmatpush.msra.mxu0 0.0
  %4831 = vmatpush.msra.mxu0 %v3474
  %4832 = vmatpush.msra.mxu0 %v3472
  %4833 = vmatpush.msra.mxu0 %v3470
  %4834 = vmatpush.msra.mxu0 %v3468
  %4835 = vmatpush.msra.mxu0 %v3466
  %4836 = vmatpush.msra.mxu0 %v3464
  %4837 = vmatpush.msra.mxu0 %v3462
  %4838 = vmatpush.msra.mxu0 %v3460
  %4839 = vmatmul.f32.gmra.mxu0 %v4821
  %v4840 = vpop.f32.mrf.mxu0
  %v4841 = vadd.f32 0.0, %v4840
  %4842 = vdwg.mxu0
  %4843 = vmatpush.msra.mxu0 0.0
  %4844 = vmatpush.msra.mxu0 0.0
  %4845 = vmatpush.msra.mxu0 0.0
  %4846 = vmatpush.msra.mxu0 0.0
  %4847 = vmatpush.msra.mxu0 0.0
  %4848 = vmatpush.msra.mxu0 0.0
  %4849 = vmatpush.msra.mxu0 0.0
  %4850 = vmatpush.msra.mxu0 0.0
  %4851 = vmatpush.msra.mxu0 %v3475
  %4852 = vmatpush.msra.mxu0 %v3473
  %4853 = vmatpush.msra.mxu0 %v3471
  %4854 = vmatpush.msra.mxu0 %v3469
  %4855 = vmatpush.msra.mxu0 %v3467
  %4856 = vmatpush.msra.mxu0 %v3465
  %4857 = vmatpush.msra.mxu0 %v3463
  %4858 = vmatpush.msra.mxu0 %v3461
  %4859 = vmatmul.f32.gmra.mxu0 %v4821
  %v4860 = vpop.f32.mrf.mxu0
  %v4861 = vadd.f32 0.0, %v4860
  %4862 = vdwg.mxu0
  %v4863 = vadd.f32 %v4080, %v4841
  %v4864 = vxor.u32 %v4863, 2147483648
  %v4865 = vmul.f32 %v4864, 1.442695
  %v4866 = vpow.pop %v4865
  %v4867 = vadd.f32 %v4866, 1.0
  %v4868 = vrcp.pop %v4867
  %v4869 = vmul.f32 %v4867, %v4868
  %v4870 = vsub.f32 1.0, %v4869
  %v4871 = vmul.f32 %v4868, %v4870
  %v4872 = vadd.f32 %v4868, %v4871
  %vm4873 = vweird.f32 %v4867
  %vm4874 = vweird.f32 %v4868
  %vm4875 = vmor %vm4873, %vm4874
  %v4876 = vsel %vm4875, %v4868, %v4872
  %v4877 = vand.u32 2147483647, %v4867
  %vm4878 = vcmp.eq.f32.partialorder %v4877, 8.507059e+37
  %v4879 = vand.u32 %v4867, 2147483648
  %v4880 = vor.u32 1.1754944e-38, %v4879
  %v4881 = vsel %vm4878, %v4880, %v4876
  %v4882 = vmul.f32 1.0, %v4881
  %v4883 = vadd.f32 %v4841, %v3546
  %4885 = vrot.lane.b32.xlu0 %v4883, 64
  %v4886 = vpop.permute.xlu0 %4885
  %v4888 = vmul.f32 %v4882, %v4886
  %4890 = vrot.lane.b32.xlu0 %v4888, 64
  %v4891 = vpop.permute.xlu0 %4890
  %v4893 = vadd.f32 %v4080, %v4891
  %v4894 = vtanh.pop %v4893
  %v4895 = vsub.f32 1.0, %v4882
  %4897 = vrot.lane.b32.xlu0 %v4894, 96
  %v4898 = vpop.permute.xlu0 %4897
  %v4900 = vmul.f32 %v4895, %v4898
  %4901 = vrot.lane.b32.xlu0 %v4819, 32
  %v4902 = vpop.permute.xlu0 %4901
  %v4904 = vmul.f32 %v4882, %v4902
  %v4905 = vadd.f32 %v4900, %v4904
  %v4906 = vmul.f32 %v3408, 0.27272728
  %v4907 = vperm.slane %v4906, 0
  %v4908 = vadd.f32 %v4907, %v3458
  %v4909 = vadd.f32 %v4032, %v4841
  %v4910 = vxor.u32 %v4909, 2147483648
  %v4911 = vmul.f32 %v4910, 1.442695
  %v4912 = vpow.pop %v4911
  %v4913 = vadd.f32 %v4912, 1.0
  %v4914 = vrcp.pop %v4913
  %v4915 = vmul.f32 %v4913, %v4914
  %v4916 = vsub.f32 1.0, %v4915
  %v4917 = vmul.f32 %v4914, %v4916
  %v4918 = vadd.f32 %v4914, %v4917
  %vm4919 = vweird.f32 %v4913
  %vm4920 = vweird.f32 %v4914
  %vm4921 = vmor %vm4919, %vm4920
  %v4922 = vsel %vm4921, %v4914, %v4918
  %v4923 = vand.u32 2147483647, %v4913
  %vm4924 = vcmp.eq.f32.partialorder %v4923, 8.507059e+37
  %v4925 = vand.u32 %v4913, 2147483648
  %v4926 = vor.u32 1.1754944e-38, %v4925
  %v4927 = vsel %vm4924, %v4926, %v4922
  %v4928 = vmul.f32 1.0, %v4927
  %v4929 = vadd.f32 %v4908, %v4861
  %v4930 = vxor.u32 %v4929, 2147483648
  %v4931 = vmul.f32 %v4930, 1.442695
  %v4932 = vpow.pop %v4931
  %v4933 = vadd.f32 %v4932, 1.0
  %v4934 = vrcp.pop %v4933
  %v4935 = vmul.f32 %v4933, %v4934
  %v4936 = vsub.f32 1.0, %v4935
  %v4937 = vmul.f32 %v4934, %v4936
  %v4938 = vadd.f32 %v4934, %v4937
  %vm4939 = vweird.f32 %v4933
  %vm4940 = vweird.f32 %v4934
  %vm4941 = vmor %vm4939, %vm4940
  %v4942 = vsel %vm4941, %v4934, %v4938
  %v4943 = vand.u32 2147483647, %v4933
  %vm4944 = vcmp.eq.f32.partialorder %v4943, 8.507059e+37
  %v4945 = vand.u32 %v4933, 2147483648
  %v4946 = vor.u32 1.1754944e-38, %v4945
  %v4947 = vsel %vm4944, %v4946, %v4942
  %v4948 = vmul.f32 1.0, %v4947
  %v4949 = vadd.f32 %v4861, %v3476
  %4951 = vrot.lane.b32.xlu0 %v4949, 64
  %v4952 = vpop.permute.xlu0 %4951
  %v4954 = vmul.f32 %v4928, %v4952
  %4956 = vrot.lane.b32.xlu0 %v4954, 64
  %v4957 = vpop.permute.xlu0 %4956
  %v4959 = vadd.f32 %v4908, %v4957
  %v4960 = vtanh.pop %v4959
  %v4961 = vsub.f32 1.0, %v4948
  %4963 = vrot.lane.b32.xlu0 %v4960, 96
  %v4964 = vpop.permute.xlu0 %4963
  %v4966 = vmul.f32 %v4961, %v4964
  %4967 = vrot.lane.b32.xlu0 %v4819, 96
  %v4968 = vpop.permute.xlu0 %4967
  %v4970 = vmul.f32 %v4948, %v4968
  %v4971 = vadd.f32 %v4966, %v4970
  %4973 = vrot.lane.b32.xlu0 %v4905, 96
  %v4974 = vpop.permute.xlu0 %4973
  %4976 = vst.msk [vmem:[#allocation5 + $0x10] sm:$0x3] %vm293, %v4974
  %4978 = vrot.lane.b32.xlu0 %v4971, 32
  %v4979 = vpop.permute.xlu0 %4978
  %4981 = vst.msk [vmem:[#allocation5 + $0x6] sm:$0x3] %vm828, %v4979
  %v4982 = vsel %vm305, %v4974, %v4979
  %v4984 = vsel %vm134, %v4982, 0
  %4986 = vmatpush.msra.mxu0 0.0
  %4987 = vmatpush.msra.mxu0 0.0
  %4988 = vmatpush.msra.mxu0 0.0
  %4989 = vmatpush.msra.mxu0 0.0
  %4990 = vmatpush.msra.mxu0 0.0
  %4991 = vmatpush.msra.mxu0 0.0
  %4992 = vmatpush.msra.mxu0 0.0
  %4993 = vmatpush.msra.mxu0 0.0
  %4994 = vmatpush.msra.mxu0 %v3474
  %4995 = vmatpush.msra.mxu0 %v3472
  %4996 = vmatpush.msra.mxu0 %v3470
  %4997 = vmatpush.msra.mxu0 %v3468
  %4998 = vmatpush.msra.mxu0 %v3466
  %4999 = vmatpush.msra.mxu0 %v3464
  %5000 = vmatpush.msra.mxu0 %v3462
  %5001 = vmatpush.msra.mxu0 %v3460
  %5002 = vmatmul.f32.gmra.mxu0 %v4984
  %v5003 = vpop.f32.mrf.mxu0
  %v5004 = vadd.f32 0.0, %v5003
  %5005 = vdwg.mxu0
  %5006 = vmatpush.msra.mxu0 0.0
  %5007 = vmatpush.msra.mxu0 0.0
  %5008 = vmatpush.msra.mxu0 0.0
  %5009 = vmatpush.msra.mxu0 0.0
  %5010 = vmatpush.msra.mxu0 0.0
  %5011 = vmatpush.msra.mxu0 0.0
  %5012 = vmatpush.msra.mxu0 0.0
  %5013 = vmatpush.msra.mxu0 0.0
  %5014 = vmatpush.msra.mxu0 %v3475
  %5015 = vmatpush.msra.mxu0 %v3473
  %5016 = vmatpush.msra.mxu0 %v3471
  %5017 = vmatpush.msra.mxu0 %v3469
  %5018 = vmatpush.msra.mxu0 %v3467
  %5019 = vmatpush.msra.mxu0 %v3465
  %5020 = vmatpush.msra.mxu0 %v3463
  %5021 = vmatpush.msra.mxu0 %v3461
  %5022 = vmatmul.f32.gmra.mxu0 %v4984
  %v5023 = vpop.f32.mrf.mxu0
  %v5024 = vadd.f32 0.0, %v5023
  %5025 = vdwg.mxu0
  %v5026 = vadd.f32 %v3911, %v5004
  %v5027 = vxor.u32 %v5026, 2147483648
  %v5028 = vmul.f32 %v5027, 1.442695
  %v5029 = vpow.pop %v5028
  %v5030 = vadd.f32 %v5029, 1.0
  %v5031 = vrcp.pop %v5030
  %v5032 = vmul.f32 %v5030, %v5031
  %v5033 = vsub.f32 1.0, %v5032
  %v5034 = vmul.f32 %v5031, %v5033
  %v5035 = vadd.f32 %v5031, %v5034
  %vm5036 = vweird.f32 %v5030
  %vm5037 = vweird.f32 %v5031
  %vm5038 = vmor %vm5036, %vm5037
  %v5039 = vsel %vm5038, %v5031, %v5035
  %v5040 = vand.u32 2147483647, %v5030
  %vm5041 = vcmp.eq.f32.partialorder %v5040, 8.507059e+37
  %v5042 = vand.u32 %v5030, 2147483648
  %v5043 = vor.u32 1.1754944e-38, %v5042
  %v5044 = vsel %vm5041, %v5043, %v5039
  %v5045 = vmul.f32 1.0, %v5044
  %v5046 = vadd.f32 %v5004, %v3546
  %5048 = vrot.lane.b32.xlu0 %v5046, 64
  %v5049 = vpop.permute.xlu0 %5048
  %v5051 = vmul.f32 %v5045, %v5049
  %5053 = vrot.lane.b32.xlu0 %v5051, 64
  %v5054 = vpop.permute.xlu0 %5053
  %v5056 = vadd.f32 %v3911, %v5054
  %v5057 = vtanh.pop %v5056
  %v5058 = vsub.f32 1.0, %v5045
  %5060 = vrot.lane.b32.xlu0 %v5057, 96
  %v5061 = vpop.permute.xlu0 %5060
  %v5063 = vmul.f32 %v5058, %v5061
  %5064 = vrot.lane.b32.xlu0 %v4982, 32
  %v5065 = vpop.permute.xlu0 %5064
  %v5067 = vmul.f32 %v5045, %v5065
  %v5068 = vadd.f32 %v5063, %v5067
  %v5069 = vmul.f32 %v3408, 0.18181819
  %v5070 = vperm.slane %v5069, 0
  %v5071 = vadd.f32 %v5070, %v3458
  %v5072 = vadd.f32 %v3863, %v5004
  %v5073 = vxor.u32 %v5072, 2147483648
  %v5074 = vmul.f32 %v5073, 1.442695
  %v5075 = vpow.pop %v5074
  %v5076 = vadd.f32 %v5075, 1.0
  %v5077 = vrcp.pop %v5076
  %v5078 = vmul.f32 %v5076, %v5077
  %v5079 = vsub.f32 1.0, %v5078
  %v5080 = vmul.f32 %v5077, %v5079
  %v5081 = vadd.f32 %v5077, %v5080
  %vm5082 = vweird.f32 %v5076
  %vm5083 = vweird.f32 %v5077
  %vm5084 = vmor %vm5082, %vm5083
  %v5085 = vsel %vm5084, %v5077, %v5081
  %v5086 = vand.u32 2147483647, %v5076
  %vm5087 = vcmp.eq.f32.partialorder %v5086, 8.507059e+37
  %v5088 = vand.u32 %v5076, 2147483648
  %v5089 = vor.u32 1.1754944e-38, %v5088
  %v5090 = vsel %vm5087, %v5089, %v5085
  %v5091 = vmul.f32 1.0, %v5090
  %v5092 = vadd.f32 %v5071, %v5024
  %v5093 = vxor.u32 %v5092, 2147483648
  %v5094 = vmul.f32 %v5093, 1.442695
  %v5095 = vpow.pop %v5094
  %v5096 = vadd.f32 %v5095, 1.0
  %v5097 = vrcp.pop %v5096
  %v5098 = vmul.f32 %v5096, %v5097
  %v5099 = vsub.f32 1.0, %v5098
  %v5100 = vmul.f32 %v5097, %v5099
  %v5101 = vadd.f32 %v5097, %v5100
  %vm5102 = vweird.f32 %v5096
  %vm5103 = vweird.f32 %v5097
  %vm5104 = vmor %vm5102, %vm5103
  %v5105 = vsel %vm5104, %v5097, %v5101
  %v5106 = vand.u32 2147483647, %v5096
  %vm5107 = vcmp.eq.f32.partialorder %v5106, 8.507059e+37
  %v5108 = vand.u32 %v5096, 2147483648
  %v5109 = vor.u32 1.1754944e-38, %v5108
  %v5110 = vsel %vm5107, %v5109, %v5105
  %v5111 = vmul.f32 1.0, %v5110
  %v5112 = vadd.f32 %v5024, %v3476
  %5114 = vrot.lane.b32.xlu0 %v5112, 64
  %v5115 = vpop.permute.xlu0 %5114
  %v5117 = vmul.f32 %v5091, %v5115
  %5119 = vrot.lane.b32.xlu0 %v5117, 64
  %v5120 = vpop.permute.xlu0 %5119
  %v5122 = vadd.f32 %v5071, %v5120
  %v5123 = vtanh.pop %v5122
  %v5124 = vsub.f32 1.0, %v5111
  %5126 = vrot.lane.b32.xlu0 %v5123, 96
  %v5127 = vpop.permute.xlu0 %5126
  %v5129 = vmul.f32 %v5124, %v5127
  %5130 = vrot.lane.b32.xlu0 %v4982, 96
  %v5131 = vpop.permute.xlu0 %5130
  %v5133 = vmul.f32 %v5111, %v5131
  %v5134 = vadd.f32 %v5129, %v5133
  %5136 = vrot.lane.b32.xlu0 %v5068, 96
  %v5137 = vpop.permute.xlu0 %5136
  %5139 = vst.msk [vmem:[#allocation5 + $0x12] sm:$0x3] %vm293, %v5137
  %5141 = vrot.lane.b32.xlu0 %v5134, 32
  %v5142 = vpop.permute.xlu0 %5141
  %5144 = vst.msk [vmem:[#allocation5 + $0x4] sm:$0x3] %vm828, %v5142
  %v5145 = vsel %vm305, %v5137, %v5142
  %v5147 = vsel %vm134, %v5145, 0
  %5149 = vmatpush.msra.mxu0 0.0
  %5150 = vmatpush.msra.mxu0 0.0
  %5151 = vmatpush.msra.mxu0 0.0
  %5152 = vmatpush.msra.mxu0 0.0
  %5153 = vmatpush.msra.mxu0 0.0
  %5154 = vmatpush.msra.mxu0 0.0
  %5155 = vmatpush.msra.mxu0 0.0
  %5156 = vmatpush.msra.mxu0 0.0
  %5157 = vmatpush.msra.mxu0 %v3474
  %5158 = vmatpush.msra.mxu0 %v3472
  %5159 = vmatpush.msra.mxu0 %v3470
  %5160 = vmatpush.msra.mxu0 %v3468
  %5161 = vmatpush.msra.mxu0 %v3466
  %5162 = vmatpush.msra.mxu0 %v3464
  %5163 = vmatpush.msra.mxu0 %v3462
  %5164 = vmatpush.msra.mxu0 %v3460
  %5165 = vmatmul.f32.gmra.mxu0 %v5147
  %v5166 = vpop.f32.mrf.mxu0
  %v5167 = vadd.f32 0.0, %v5166
  %5168 = vdwg.mxu0
  %5169 = vmatpush.msra.mxu0 0.0
  %5170 = vmatpush.msra.mxu0 0.0
  %5171 = vmatpush.msra.mxu0 0.0
  %5172 = vmatpush.msra.mxu0 0.0
  %5173 = vmatpush.msra.mxu0 0.0
  %5174 = vmatpush.msra.mxu0 0.0
  %5175 = vmatpush.msra.mxu0 0.0
  %5176 = vmatpush.msra.mxu0 0.0
  %5177 = vmatpush.msra.mxu0 %v3475
  %5178 = vmatpush.msra.mxu0 %v3473
  %5179 = vmatpush.msra.mxu0 %v3471
  %5180 = vmatpush.msra.mxu0 %v3469
  %5181 = vmatpush.msra.mxu0 %v3467
  %5182 = vmatpush.msra.mxu0 %v3465
  %5183 = vmatpush.msra.mxu0 %v3463
  %5184 = vmatpush.msra.mxu0 %v3461
  %5185 = vmatmul.f32.gmra.mxu0 %v5147
  %v5186 = vpop.f32.mrf.mxu0
  %v5187 = vadd.f32 0.0, %v5186
  %5188 = vdwg.mxu0
  %v5189 = vadd.f32 %v3742, %v5167
  %v5190 = vxor.u32 %v5189, 2147483648
  %v5191 = vmul.f32 %v5190, 1.442695
  %v5192 = vpow.pop %v5191
  %v5193 = vadd.f32 %v5192, 1.0
  %v5194 = vrcp.pop %v5193
  %v5195 = vmul.f32 %v5193, %v5194
  %v5196 = vsub.f32 1.0, %v5195
  %v5197 = vmul.f32 %v5194, %v5196
  %v5198 = vadd.f32 %v5194, %v5197
  %vm5199 = vweird.f32 %v5193
  %vm5200 = vweird.f32 %v5194
  %vm5201 = vmor %vm5199, %vm5200
  %v5202 = vsel %vm5201, %v5194, %v5198
  %v5203 = vand.u32 2147483647, %v5193
  %vm5204 = vcmp.eq.f32.partialorder %v5203, 8.507059e+37
  %v5205 = vand.u32 %v5193, 2147483648
  %v5206 = vor.u32 1.1754944e-38, %v5205
  %v5207 = vsel %vm5204, %v5206, %v5202
  %v5208 = vmul.f32 1.0, %v5207
  %v5209 = vadd.f32 %v5167, %v3546
  %5211 = vrot.lane.b32.xlu0 %v5209, 64
  %v5212 = vpop.permute.xlu0 %5211
  %v5214 = vmul.f32 %v5208, %v5212
  %5216 = vrot.lane.b32.xlu0 %v5214, 64
  %v5217 = vpop.permute.xlu0 %5216
  %v5219 = vadd.f32 %v3742, %v5217
  %v5220 = vtanh.pop %v5219
  %v5221 = vsub.f32 1.0, %v5208
  %5223 = vrot.lane.b32.xlu0 %v5220, 96
  %v5224 = vpop.permute.xlu0 %5223
  %v5226 = vmul.f32 %v5221, %v5224
  %5227 = vrot.lane.b32.xlu0 %v5145, 32
  %v5228 = vpop.permute.xlu0 %5227
  %v5230 = vmul.f32 %v5208, %v5228
  %v5231 = vadd.f32 %v5226, %v5230
  %v5232 = vmul.f32 %v3408, 0.09090909
  %v5233 = vperm.slane %v5232, 0
  %v5234 = vadd.f32 %v5233, %v3458
  %v5235 = vadd.f32 %v3694, %v5167
  %v5236 = vxor.u32 %v5235, 2147483648
  %v5237 = vmul.f32 %v5236, 1.442695
  %v5238 = vpow.pop %v5237
  %v5239 = vadd.f32 %v5238, 1.0
  %v5240 = vrcp.pop %v5239
  %v5241 = vmul.f32 %v5239, %v5240
  %v5242 = vsub.f32 1.0, %v5241
  %v5243 = vmul.f32 %v5240, %v5242
  %v5244 = vadd.f32 %v5240, %v5243
  %vm5245 = vweird.f32 %v5239
  %vm5246 = vweird.f32 %v5240
  %vm5247 = vmor %vm5245, %vm5246
  %v5248 = vsel %vm5247, %v5240, %v5244
  %v5249 = vand.u32 2147483647, %v5239
  %vm5250 = vcmp.eq.f32.partialorder %v5249, 8.507059e+37
  %v5251 = vand.u32 %v5239, 2147483648
  %v5252 = vor.u32 1.1754944e-38, %v5251
  %v5253 = vsel %vm5250, %v5252, %v5248
  %v5254 = vmul.f32 1.0, %v5253
  %v5255 = vadd.f32 %v5234, %v5187
  %v5256 = vxor.u32 %v5255, 2147483648
  %v5257 = vmul.f32 %v5256, 1.442695
  %v5258 = vpow.pop %v5257
  %v5259 = vadd.f32 %v5258, 1.0
  %v5260 = vrcp.pop %v5259
  %v5261 = vmul.f32 %v5259, %v5260
  %v5262 = vsub.f32 1.0, %v5261
  %v5263 = vmul.f32 %v5260, %v5262
  %v5264 = vadd.f32 %v5260, %v5263
  %vm5265 = vweird.f32 %v5259
  %vm5266 = vweird.f32 %v5260
  %vm5267 = vmor %vm5265, %vm5266
  %v5268 = vsel %vm5267, %v5260, %v5264
  %v5269 = vand.u32 2147483647, %v5259
  %vm5270 = vcmp.eq.f32.partialorder %v5269, 8.507059e+37
  %v5271 = vand.u32 %v5259, 2147483648
  %v5272 = vor.u32 1.1754944e-38, %v5271
  %v5273 = vsel %vm5270, %v5272, %v5268
  %v5274 = vmul.f32 1.0, %v5273
  %v5275 = vadd.f32 %v5187, %v3476
  %5277 = vrot.lane.b32.xlu0 %v5275, 64
  %v5278 = vpop.permute.xlu0 %5277
  %v5280 = vmul.f32 %v5254, %v5278
  %5282 = vrot.lane.b32.xlu0 %v5280, 64
  %v5283 = vpop.permute.xlu0 %5282
  %v5285 = vadd.f32 %v5234, %v5283
  %v5286 = vtanh.pop %v5285
  %v5287 = vsub.f32 1.0, %v5274
  %5289 = vrot.lane.b32.xlu0 %v5286, 96
  %v5290 = vpop.permute.xlu0 %5289
  %v5292 = vmul.f32 %v5287, %v5290
  %5293 = vrot.lane.b32.xlu0 %v5145, 96
  %v5294 = vpop.permute.xlu0 %5293
  %v5296 = vmul.f32 %v5274, %v5294
  %v5297 = vadd.f32 %v5292, %v5296
  %5299 = vrot.lane.b32.xlu0 %v5231, 96
  %v5300 = vpop.permute.xlu0 %5299
  %5302 = vst.msk [vmem:[#allocation5 + $0x14] sm:$0x3] %vm293, %v5300
  %5304 = vrot.lane.b32.xlu0 %v5297, 32
  %v5305 = vpop.permute.xlu0 %5304
  %5307 = vst.msk [vmem:[#allocation5 + $0x2] sm:$0x3] %vm828, %v5305
  %v5308 = vsel %vm305, %v5300, %v5305
  %v5310 = vsel %vm134, %v5308, 0
  %5312 = vmatpush.msra.mxu0 0.0
  %5313 = vmatpush.msra.mxu0 0.0
  %5314 = vmatpush.msra.mxu0 0.0
  %5315 = vmatpush.msra.mxu0 0.0
  %5316 = vmatpush.msra.mxu0 0.0
  %5317 = vmatpush.msra.mxu0 0.0
  %5318 = vmatpush.msra.mxu0 0.0
  %5319 = vmatpush.msra.mxu0 0.0
  %5320 = vmatpush.msra.mxu0 %v3474
  %5321 = vmatpush.msra.mxu0 %v3472
  %5322 = vmatpush.msra.mxu0 %v3470
  %5323 = vmatpush.msra.mxu0 %v3468
  %5324 = vmatpush.msra.mxu0 %v3466
  %5325 = vmatpush.msra.mxu0 %v3464
  %5326 = vmatpush.msra.mxu0 %v3462
  %5327 = vmatpush.msra.mxu0 %v3460
  %5328 = vmatmul.f32.gmra.mxu0 %v5310
  %v5329 = vpop.f32.mrf.mxu0
  %v5330 = vadd.f32 0.0, %v5329
  %5331 = vdwg.mxu0
  %5332 = vmatpush.msra.mxu0 0.0
  %5333 = vmatpush.msra.mxu0 0.0
  %5334 = vmatpush.msra.mxu0 0.0
  %5335 = vmatpush.msra.mxu0 0.0
  %5336 = vmatpush.msra.mxu0 0.0
  %5337 = vmatpush.msra.mxu0 0.0
  %5338 = vmatpush.msra.mxu0 0.0
  %5339 = vmatpush.msra.mxu0 0.0
  %5340 = vmatpush.msra.mxu0 %v3475
  %5341 = vmatpush.msra.mxu0 %v3473
  %5342 = vmatpush.msra.mxu0 %v3471
  %5343 = vmatpush.msra.mxu0 %v3469
  %5344 = vmatpush.msra.mxu0 %v3467
  %5345 = vmatpush.msra.mxu0 %v3465
  %5346 = vmatpush.msra.mxu0 %v3463
  %5347 = vmatpush.msra.mxu0 %v3461
  %5348 = vmatmul.f32.gmra.mxu0 %v5310
  %v5349 = vpop.f32.mrf.mxu0
  %v5350 = vadd.f32 0.0, %v5349
  %5351 = vdwg.mxu0
  %v5352 = vadd.f32 %v3573, %v5330
  %v5353 = vxor.u32 %v5352, 2147483648
  %v5354 = vmul.f32 %v5353, 1.442695
  %v5355 = vpow.pop %v5354
  %v5356 = vadd.f32 %v5355, 1.0
  %v5357 = vrcp.pop %v5356
  %v5358 = vmul.f32 %v5356, %v5357
  %v5359 = vsub.f32 1.0, %v5358
  %v5360 = vmul.f32 %v5357, %v5359
  %v5361 = vadd.f32 %v5357, %v5360
  %vm5362 = vweird.f32 %v5356
  %vm5363 = vweird.f32 %v5357
  %vm5364 = vmor %vm5362, %vm5363
  %v5365 = vsel %vm5364, %v5357, %v5361
  %v5366 = vand.u32 2147483647, %v5356
  %vm5367 = vcmp.eq.f32.partialorder %v5366, 8.507059e+37
  %v5368 = vand.u32 %v5356, 2147483648
  %v5369 = vor.u32 1.1754944e-38, %v5368
  %v5370 = vsel %vm5367, %v5369, %v5365
  %v5371 = vmul.f32 1.0, %v5370
  %v5372 = vadd.f32 %v5330, %v3546
  %5374 = vrot.lane.b32.xlu0 %v5372, 64
  %v5375 = vpop.permute.xlu0 %5374
  %v5377 = vmul.f32 %v5371, %v5375
  %5379 = vrot.lane.b32.xlu0 %v5377, 64
  %v5380 = vpop.permute.xlu0 %5379
  %v5382 = vadd.f32 %v3573, %v5380
  %v5383 = vtanh.pop %v5382
  %v5384 = vsub.f32 1.0, %v5371
  %5386 = vrot.lane.b32.xlu0 %v5383, 96
  %v5387 = vpop.permute.xlu0 %5386
  %v5389 = vmul.f32 %v5384, %v5387
  %5390 = vrot.lane.b32.xlu0 %v5308, 32
  %v5391 = vpop.permute.xlu0 %5390
  %v5393 = vmul.f32 %v5371, %v5391
  %v5394 = vadd.f32 %v5389, %v5393
  %v5395 = vmul.f32 %v3408, 0.0
  %v5396 = vperm.slane %v5395, 0
  %v5397 = vadd.f32 %v5396, %v3458
  %v5398 = vadd.f32 %v3523, %v5330
  %v5399 = vxor.u32 %v5398, 2147483648
  %v5400 = vmul.f32 %v5399, 1.442695
  %v5401 = vpow.pop %v5400
  %v5402 = vadd.f32 %v5401, 1.0
  %v5403 = vrcp.pop %v5402
  %v5404 = vmul.f32 %v5402, %v5403
  %v5405 = vsub.f32 1.0, %v5404
  %v5406 = vmul.f32 %v5403, %v5405
  %v5407 = vadd.f32 %v5403, %v5406
  %vm5408 = vweird.f32 %v5402
  %vm5409 = vweird.f32 %v5403
  %vm5410 = vmor %vm5408, %vm5409
  %v5411 = vsel %vm5410, %v5403, %v5407
  %v5412 = vand.u32 2147483647, %v5402
  %vm5413 = vcmp.eq.f32.partialorder %v5412, 8.507059e+37
  %v5414 = vand.u32 %v5402, 2147483648
  %v5415 = vor.u32 1.1754944e-38, %v5414
  %v5416 = vsel %vm5413, %v5415, %v5411
  %v5417 = vmul.f32 1.0, %v5416
  %v5418 = vadd.f32 %v5397, %v5350
  %v5419 = vxor.u32 %v5418, 2147483648
  %v5420 = vmul.f32 %v5419, 1.442695
  %v5421 = vpow.pop %v5420
  %v5422 = vadd.f32 %v5421, 1.0
  %v5423 = vrcp.pop %v5422
  %v5424 = vmul.f32 %v5422, %v5423
  %v5425 = vsub.f32 1.0, %v5424
  %v5426 = vmul.f32 %v5423, %v5425
  %v5427 = vadd.f32 %v5423, %v5426
  %vm5428 = vweird.f32 %v5422
  %vm5429 = vweird.f32 %v5423
  %vm5430 = vmor %vm5428, %vm5429
  %v5431 = vsel %vm5430, %v5423, %v5427
  %v5432 = vand.u32 2147483647, %v5422
  %vm5433 = vcmp.eq.f32.partialorder %v5432, 8.507059e+37
  %v5434 = vand.u32 %v5422, 2147483648
  %v5435 = vor.u32 1.1754944e-38, %v5434
  %v5436 = vsel %vm5433, %v5435, %v5431
  %v5437 = vmul.f32 1.0, %v5436
  %v5438 = vadd.f32 %v5350, %v3476
  %5440 = vrot.lane.b32.xlu0 %v5438, 64
  %v5441 = vpop.permute.xlu0 %5440
  %v5443 = vmul.f32 %v5417, %v5441
  %5445 = vrot.lane.b32.xlu0 %v5443, 64
  %v5446 = vpop.permute.xlu0 %5445
  %v5448 = vadd.f32 %v5397, %v5446
  %v5449 = vtanh.pop %v5448
  %v5450 = vsub.f32 1.0, %v5437
  %5452 = vrot.lane.b32.xlu0 %v5449, 96
  %v5453 = vpop.permute.xlu0 %5452
  %v5455 = vmul.f32 %v5450, %v5453
  %5456 = vrot.lane.b32.xlu0 %v5308, 96
  %v5457 = vpop.permute.xlu0 %5456
  %v5459 = vmul.f32 %v5437, %v5457
  %v5460 = vadd.f32 %v5455, %v5459
  %5462 = vrot.lane.b32.xlu0 %v5394, 96
  %v5463 = vpop.permute.xlu0 %5462
  %5465 = vst.msk [vmem:[#allocation5 + $0x16] sm:$0x3] %vm293, %v5463
  %5467 = vrot.lane.b32.xlu0 %v5460, 32
  %v5468 = vpop.permute.xlu0 %5467
  %5470 = vst.msk [vmem:[#allocation5] sm:$0x3] %vm828, %v5468
  %v5471 = vld [vmem:[#allocation5] sm:$0xff]
  %v5472 = vld [vmem:[#allocation5 + $0x8] sm:$0xff]
  %v5473 = vld [vmem:[#allocation5 + $0x10] sm:$0xff]
  %v5474 = vld [vmem:[%s2 + $0x4a0] sm:$0xff]
  %v5475 = vld [vmem:[%s2 + $0x4b0] sm:$0xff]
  %v5476 = vld [vmem:[%s2 + $0x4c0] sm:$0xff]
  %v5477 = vld [vmem:[%s2 + $0x4d0] sm:$0xff]
  %v5478 = vld [vmem:[%s2 + $0x4e0] sm:$0xff]
  %v5479 = vld [vmem:[%s2 + $0x4f0] sm:$0xff]
  %v5480 = vld [vmem:[%s2 + $0x500] sm:$0xff]
  %v5481 = vld [vmem:[%s2 + $0x510] sm:$0xff]
  %v5482 = vld [vmem:[%s2 + $0x677] ss:$0 sm:$0xff]
  %v5484 = vsel %vm134, %v5471, 0
  %v5487 = vsel %vm134, %v5472, 0
  %v5490 = vsel %vm134, %v5473, 0
  %5492 = vmatpush.msra.mxu0 0.0
  %5493 = vmatpush.msra.mxu0 0.0
  %5494 = vmatpush.msra.mxu0 0.0
  %5495 = vmatpush.msra.mxu0 0.0
  %5496 = vmatpush.msra.mxu0 0.0
  %5497 = vmatpush.msra.mxu0 0.0
  %5498 = vmatpush.msra.mxu0 0.0
  %5499 = vmatpush.msra.mxu0 0.0
  %5500 = vmatpush.msra.mxu0 %v5481
  %5501 = vmatpush.msra.mxu0 %v5480
  %5502 = vmatpush.msra.mxu0 %v5479
  %5503 = vmatpush.msra.mxu0 %v5478
  %5504 = vmatpush.msra.mxu0 %v5477
  %5505 = vmatpush.msra.mxu0 %v5476
  %5506 = vmatpush.msra.mxu0 %v5475
  %5507 = vmatpush.msra.mxu0 %v5474
  %5508 = vmatmul.f32.gmra.mxu0 %v5484
  %v5509 = vpop.f32.mrf.mxu0
  %v5510 = vadd.f32 %v5482, %v5509
  %5511 = vmatmul.f32.gmra.mxu0 %v5487
  %v5512 = vpop.f32.mrf.mxu0
  %v5513 = vadd.f32 %v5482, %v5512
  %5514 = vmatmul.f32.gmra.mxu0 %v5490
  %v5515 = vpop.f32.mrf.mxu0
  %v5516 = vadd.f32 %v5482, %v5515
  %5517 = vdwg.mxu0
  %v5518 = vtanh.pop %v5510
  %v5519 = vtanh.pop %v5513
  %v5520 = vtanh.pop %v5516
  %v5521 = vld [vmem:[%s2 + $0x660] sm:$0xc]
  %v5522 = vld [vmem:[%s2 + $0x520] sm:$0xff]
  %v5523 = vld [vmem:[%s2 + $0x530] sm:$0xff]
  %v5524 = vld [vmem:[%s2 + $0x540] sm:$0xff]
  %v5525 = vld [vmem:[%s2 + $0x550] sm:$0xff]
  %v5526 = vld [vmem:[%s2 + $0x680] ss:$0 sm:$0xff]
  %v5528 = vsel %vm305, %v5518, 0
  %v5531 = vsel %vm305, %v5519, 0
  %v5534 = vsel %vm305, %v5520, 0
  %5536 = vmatpush.msra.mxu0 0.0
  %5537 = vmatpush.msra.mxu0 0.0
  %5538 = vmatpush.msra.mxu0 0.0
  %5539 = vmatpush.msra.mxu0 0.0
  %5540 = vmatpush.msra.mxu0 0.0
  %5541 = vmatpush.msra.mxu0 0.0
  %5542 = vmatpush.msra.mxu0 0.0
  %5543 = vmatpush.msra.mxu0 0.0
  %5544 = vmatpush.msra.mxu0 0.0
  %5545 = vmatpush.msra.mxu0 0.0
  %5546 = vmatpush.msra.mxu0 0.0
  %5547 = vmatpush.msra.mxu0 0.0
  %5548 = vmatpush.msra.mxu0 %v5525
  %5549 = vmatpush.msra.mxu0 %v5524
  %5550 = vmatpush.msra.mxu0 %v5523
  %5551 = vmatpush.msra.mxu0 %v5522
  %5552 = vmatmul.f32.gmra.mxu0 %v5528
  %v5553 = vpop.f32.mrf.mxu0
  %v5554 = vadd.f32 %v5526, %v5553
  %5555 = vmatmul.f32.gmra.mxu0 %v5531
  %v5556 = vpop.f32.mrf.mxu0
  %v5557 = vadd.f32 %v5526, %v5556
  %5558 = vmatmul.f32.gmra.mxu0 %v5534
  %v5559 = vpop.f32.mrf.mxu0
  %v5560 = vadd.f32 %v5526, %v5559
  %5561 = vdwg.mxu0
  %v5562 = vmax.f32 %v5554, 0.0
  %v5563 = vmax.f32 %v5557, 0.0
  %v5564 = vmax.f32 %v5560, 0.0
  %v5565 = vld [vmem:[%s2 + $0x560] sm:$0xff]
  %v5566 = vld [vmem:[%s2 + $0x570] sm:$0xff]
  %v5567 = vld [vmem:[%s2 + $0x681] ss:$0 sm:$0xff]
  %v5569 = vsel %vm3120, %v5562, 0
  %v5572 = vsel %vm3120, %v5563, 0
  %v5575 = vsel %vm3120, %v5564, 0
  %5577 = vmatpush.msra.mxu0 0.0
  %5578 = vmatpush.msra.mxu0 0.0
  %5579 = vmatpush.msra.mxu0 0.0
  %5580 = vmatpush.msra.mxu0 0.0
  %5581 = vmatpush.msra.mxu0 0.0
  %5582 = vmatpush.msra.mxu0 0.0
  %5583 = vmatpush.msra.mxu0 0.0
  %5584 = vmatpush.msra.mxu0 0.0
  %5585 = vmatpush.msra.mxu0 0.0
  %5586 = vmatpush.msra.mxu0 0.0
  %5587 = vmatpush.msra.mxu0 0.0
  %5588 = vmatpush.msra.mxu0 0.0
  %5589 = vmatpush.msra.mxu0 0.0
  %5590 = vmatpush.msra.mxu0 0.0
  %5591 = vmatpush.msra.mxu0 %v5566
  %5592 = vmatpush.msra.mxu0 %v5565
  %5593 = vmatmul.f32.gmra.mxu0 %v5569
  %v5594 = vpop.f32.mrf.mxu0
  %v5595 = vadd.f32 %v5567, %v5594
  %5596 = vmatmul.f32.gmra.mxu0 %v5572
  %v5597 = vpop.f32.mrf.mxu0
  %v5598 = vadd.f32 %v5567, %v5597
  %5599 = vmatmul.f32.gmra.mxu0 %v5575
  %v5600 = vpop.f32.mrf.mxu0
  %v5601 = vadd.f32 %v5567, %v5600
  %5602 = vdwg.mxu0
  %v5604 = vrot.slane %v5521, 2
  %vm5605 = vcmask 195584
  %v5606 = vsel %vm5605, %v5604, 0
  %5608 = vmatpush.msra.mxu0 0.0
  %5609 = vmatpush.msra.mxu0 0.0
  %5610 = vmatpush.msra.mxu0 0.0
  %5611 = vmatpush.msra.mxu0 0.0
  %5612 = vmatpush.msra.mxu0 0.0
  %5613 = vmatpush.msra.mxu0 0.0
  %5614 = vmatpush.msra.mxu0 0.0
  %5615 = vmatpush.msra.mxu0 0.0
  %5616 = vmatpush.msra.mxu0 0.0
  %5617 = vmatpush.msra.mxu0 0.0
  %5618 = vmatpush.msra.mxu0 0.0
  %5619 = vmatpush.msra.mxu0 0.0
  %5620 = vmatpush.msra.mxu0 0.0
  %5621 = vmatpush.msra.mxu0 %v5601
  %5622 = vmatpush.msra.mxu0 %v5598
  %5623 = vmatpush.msra.mxu0 %v5595
  %5624 = vmatmul.f32.gmra.mxu0 %v5606
  %v5625 = vpop.f32.mrf.mxu0
  %v5626 = vadd.f32 0.0, %v5625
  %5627 = vdwg.mxu0
  %v5628 = vld [vmem:[%s2 + $0x686] ss:$0 sm:$0xff]
  %v5629 = vld [vmem:[%s2 + $0x687] ss:$0 sm:$0xff]
  %v5630 = vsub.f32 %v5629, %v5628
  %v5631 = vxor.u32 %v5626, 2147483648
  %v5632 = vmul.f32 %v5631, 1.442695
  %v5633 = vpow.pop %v5632
  %v5634 = vadd.f32 %v5633, 1.0
  %v5635 = vrcp.pop %v5634
  %v5636 = vmul.f32 %v5634, %v5635
  %v5637 = vsub.f32 1.0, %v5636
  %v5638 = vmul.f32 %v5635, %v5637
  %v5639 = vadd.f32 %v5635, %v5638
  %vm5640 = vweird.f32 %v5634
  %vm5641 = vweird.f32 %v5635
  %vm5642 = vmor %vm5640, %vm5641
  %v5643 = vsel %vm5642, %v5635, %v5639
  %v5644 = vand.u32 2147483647, %v5634
  %vm5645 = vcmp.eq.f32.partialorder %v5644, 8.507059e+37
  %v5646 = vand.u32 %v5634, 2147483648
  %v5647 = vor.u32 1.1754944e-38, %v5646
  %v5648 = vsel %vm5645, %v5647, %v5643
  %v5649 = vmul.f32 1.0, %v5648
  %v5650 = vmul.f32 %v5630, %v5649
  %v5651 = vadd.f32 %v5628, %v5650
  %5652 = vmatpush.msra.mxu0 0.0
  %5653 = vmatpush.msra.mxu0 0.0
  %5654 = vmatpush.msra.mxu0 0.0
  %5655 = vmatpush.msra.mxu0 0.0
  %5656 = vmatpush.msra.mxu0 0.0
  %5657 = vmatpush.msra.mxu0 0.0
  %5658 = vmatpush.msra.mxu0 0.0
  %5659 = vmatpush.msra.mxu0 0.0
  %5660 = vmatpush.msra.mxu0 0.0
  %5661 = vmatpush.msra.mxu0 0.0
  %5662 = vmatpush.msra.mxu0 0.0
  %5663 = vmatpush.msra.mxu0 0.0
  %5664 = vmatpush.msra.mxu0 0.0
  %5665 = vmatpush.msra.mxu0 %v5520
  %5666 = vmatpush.msra.mxu0 %v5519
  %5667 = vmatpush.msra.mxu0 %v5518
  %5668 = vmatmul.f32.gmra.mxu0 %v5606
  %v5669 = vpop.f32.mrf.mxu0
  %v5670 = vadd.f32 0.0, %v5669
  %5671 = vdwg.mxu0
  %v5672 = vld [vmem:[%s2 + $0x580] sm:$0xff]
  %v5673 = vld [vmem:[%s2 + $0x590] sm:$0xff]
  %v5674 = vld [vmem:[%s2 + $0x5a0] sm:$0xff]
  %v5675 = vld [vmem:[%s2 + $0x5b0] sm:$0xff]
  %v5676 = vld [vmem:[%s2 + $0x682] ss:$0 sm:$0xff]
  %v5678 = vrot.slane %v5670, 1
  %v5679 = vsel %vm305, %v5678, 0
  %5681 = vmatpush.msra.mxu0 0.0
  %5682 = vmatpush.msra.mxu0 0.0
  %5683 = vmatpush.msra.mxu0 0.0
  %5684 = vmatpush.msra.mxu0 0.0
  %5685 = vmatpush.msra.mxu0 0.0
  %5686 = vmatpush.msra.mxu0 0.0
  %5687 = vmatpush.msra.mxu0 0.0
  %5688 = vmatpush.msra.mxu0 0.0
  %5689 = vmatpush.msra.mxu0 0.0
  %5690 = vmatpush.msra.mxu0 0.0
  %5691 = vmatpush.msra.mxu0 0.0
  %5692 = vmatpush.msra.mxu0 0.0
  %5693 = vmatpush.msra.mxu0 %v5675
  %5694 = vmatpush.msra.mxu0 %v5674
  %5695 = vmatpush.msra.mxu0 %v5673
  %5696 = vmatpush.msra.mxu0 %v5672
  %5697 = vmatmul.f32.gmra.mxu0 %v5679
  %v5698 = vpop.f32.mrf.mxu0
  %v5699 = vadd.f32 %v5676, %v5698
  %5700 = vdwg.mxu0
  %v5701 = vmax.f32 %v5699, 0.0
  %v5702 = vld [vmem:[%s2 + $0x5c0] sm:$0xff]
  %v5703 = vld [vmem:[%s2 + $0x5d0] sm:$0xff]
  %v5704 = vld [vmem:[%s2 + $0x683] ss:$0 sm:$0xff]
  %v5706 = vsel %vm3120, %v5701, 0
  %5708 = vmatpush.msra.mxu0 0.0
  %5709 = vmatpush.msra.mxu0 0.0
  %5710 = vmatpush.msra.mxu0 0.0
  %5711 = vmatpush.msra.mxu0 0.0
  %5712 = vmatpush.msra.mxu0 0.0
  %5713 = vmatpush.msra.mxu0 0.0
  %5714 = vmatpush.msra.mxu0 0.0
  %5715 = vmatpush.msra.mxu0 0.0
  %5716 = vmatpush.msra.mxu0 0.0
  %5717 = vmatpush.msra.mxu0 0.0
  %5718 = vmatpush.msra.mxu0 0.0
  %5719 = vmatpush.msra.mxu0 0.0
  %5720 = vmatpush.msra.mxu0 0.0
  %5721 = vmatpush.msra.mxu0 0.0
  %5722 = vmatpush.msra.mxu0 %v5703
  %5723 = vmatpush.msra.mxu0 %v5702
  %5724 = vmatmul.f32.gmra.mxu0 %v5706
  %v5725 = vpop.f32.mrf.mxu0
  %v5726 = vadd.f32 %v5704, %v5725
  %5727 = vdwg.mxu0
  %v5728 = vld [vmem:[%s2 + $0x690] ss:$0 sm:$0xff]
  %v5729 = vld [vmem:[%s2 + $0x691] ss:$0 sm:$0xff]
  %v5730 = vsub.f32 %v5729, %v5728
  %v5731 = vxor.u32 %v5726, 2147483648
  %v5732 = vmul.f32 %v5731, 1.442695
  %v5733 = vpow.pop %v5732
  %v5734 = vadd.f32 %v5733, 1.0
  %v5735 = vrcp.pop %v5734
  %v5736 = vmul.f32 %v5734, %v5735
  %v5737 = vsub.f32 1.0, %v5736
  %v5738 = vmul.f32 %v5735, %v5737
  %v5739 = vadd.f32 %v5735, %v5738
  %vm5740 = vweird.f32 %v5734
  %vm5741 = vweird.f32 %v5735
  %vm5742 = vmor %vm5740, %vm5741
  %v5743 = vsel %vm5742, %v5735, %v5739
  %v5744 = vand.u32 2147483647, %v5734
  %vm5745 = vcmp.eq.f32.partialorder %v5744, 8.507059e+37
  %v5746 = vand.u32 %v5734, 2147483648
  %v5747 = vor.u32 1.1754944e-38, %v5746
  %v5748 = vsel %vm5745, %v5747, %v5743
  %v5749 = vmul.f32 1.0, %v5748
  %v5750 = vmul.f32 %v5730, %v5749
  %v5751 = vadd.f32 %v5728, %v5750
  %v5752 = vld [vmem:[%s2 + $0x5e0] sm:$0xff]
  %v5753 = vld [vmem:[%s2 + $0x5f0] sm:$0xff]
  %v5754 = vld [vmem:[%s2 + $0x600] sm:$0xff]
  %v5755 = vld [vmem:[%s2 + $0x610] sm:$0xff]
  %v5756 = vld [vmem:[%s2 + $0x684] ss:$0 sm:$0xff]
  %5757 = vmatpush.msra.mxu0 0.0
  %5758 = vmatpush.msra.mxu0 0.0
  %5759 = vmatpush.msra.mxu0 0.0
  %5760 = vmatpush.msra.mxu0 0.0
  %5761 = vmatpush.msra.mxu0 0.0
  %5762 = vmatpush.msra.mxu0 0.0
  %5763 = vmatpush.msra.mxu0 0.0
  %5764 = vmatpush.msra.mxu0 0.0
  %5765 = vmatpush.msra.mxu0 0.0
  %5766 = vmatpush.msra.mxu0 0.0
  %5767 = vmatpush.msra.mxu0 0.0
  %5768 = vmatpush.msra.mxu0 0.0
  %5769 = vmatpush.msra.mxu0 %v5755
  %5770 = vmatpush.msra.mxu0 %v5754
  %5771 = vmatpush.msra.mxu0 %v5753
  %5772 = vmatpush.msra.mxu0 %v5752
  %5773 = vmatmul.f32.gmra.mxu0 %v5679
  %v5774 = vpop.f32.mrf.mxu0
  %v5775 = vadd.f32 %v5756, %v5774
  %5776 = vdwg.mxu0
  %v5777 = vmax.f32 %v5775, 0.0
  %v5778 = vld [vmem:[%s2 + $0x620] sm:$0xff]
  %v5779 = vld [vmem:[%s2 + $0x630] sm:$0xff]
  %v5780 = vld [vmem:[%s2 + $0x685] ss:$0 sm:$0xff]
  %v5782 = vsel %vm3120, %v5777, 0
  %5784 = vmatpush.msra.mxu0 0.0
  %5785 = vmatpush.msra.mxu0 0.0
  %5786 = vmatpush.msra.mxu0 0.0
  %5787 = vmatpush.msra.mxu0 0.0
  %5788 = vmatpush.msra.mxu0 0.0
  %5789 = vmatpush.msra.mxu0 0.0
  %5790 = vmatpush.msra.mxu0 0.0
  %5791 = vmatpush.msra.mxu0 0.0
  %5792 = vmatpush.msra.mxu0 0.0
  %5793 = vmatpush.msra.mxu0 0.0
  %5794 = vmatpush.msra.mxu0 0.0
  %5795 = vmatpush.msra.mxu0 0.0
  %5796 = vmatpush.msra.mxu0 0.0
  %5797 = vmatpush.msra.mxu0 0.0
  %5798 = vmatpush.msra.mxu0 %v5779
  %5799 = vmatpush.msra.mxu0 %v5778
  %5800 = vmatmul.f32.gmra.mxu0 %v5782
  %v5801 = vpop.f32.mrf.mxu0
  %v5802 = vadd.f32 %v5780, %v5801
  %5803 = vdwg.mxu0
  %v5804 = vxor.u32 %v5802, 2147483648
  %v5805 = vmul.f32 %v5804, 1.442695
  %v5806 = vpow.pop %v5805
  %v5807 = vadd.f32 %v5806, 1.0
  %v5808 = vrcp.pop %v5807
  %v5809 = vmul.f32 %v5807, %v5808
  %v5810 = vsub.f32 1.0, %v5809
  %v5811 = vmul.f32 %v5808, %v5810
  %v5812 = vadd.f32 %v5808, %v5811
  %vm5813 = vweird.f32 %v5807
  %vm5814 = vweird.f32 %v5808
  %vm5815 = vmor %vm5813, %vm5814
  %v5816 = vsel %vm5815, %v5808, %v5812
  %v5817 = vand.u32 2147483647, %v5807
  %vm5818 = vcmp.eq.f32.partialorder %v5817, 8.507059e+37
  %v5819 = vand.u32 %v5807, 2147483648
  %v5820 = vor.u32 1.1754944e-38, %v5819
  %v5821 = vsel %vm5818, %v5820, %v5816
  %v5822 = vmul.f32 1.0, %v5821
  %v5823 = vsub.f32 0.0, %v5822
  %5824 = vst [vmem:[%s3] sm:$0xff] 0.0
  %vm5825 = vcmask 17408
  %5826 = vst.msk [vmem:[%s3] sm:$0x3] %vm5825, %v5651
  %vm5827 = vcmask 122880
  %5828 = vst.msk [vmem:[%s3 + $0x2] sm:$0x1] %vm5827, %v5751
  %5829 = vst.msk [vmem:[%s3 + $0x3] sm:$0x1] %vm5827, %v5823
  // Predicated region
  $region14: #{calibnn_forward.1} parent=0 // pred_check
    _
  $region15: #{calibnn_forward.1} parent=0 // pred_check_branch
    %5831 = sbr.rel (0) target = $region17
  $region16: #{calibnn_forward.1} parent=0 // pred_region
    _
  $region17: #{calibnn_forward.1} parent=0 // pred_fallthru
    _
  // Predicated region
  $region18: #{calibnn_forward.1} parent=0 // pred_check
    _
  $region19: #{calibnn_forward.1} parent=0 // pred_check_branch
    %5833 = sbr.rel (0) target = $region21
  $region20: #{calibnn_forward.1} parent=0 // pred_region
    _
  $region21: #{calibnn_forward.1} parent=0 // pred_fallthru
    _

</llo_original>
